<compile_context>
chip_gen: v7x
topology: tpu7x:2x2x1
jax: 0.10.0
libtpu: 0.0.40
codegen_flags: <defaults>
</compile_context>

<pallas_src>
import math
import functools

import jax
import jax.numpy as jnp
from jax.experimental import pallas as pl
from jax.experimental.pallas import tpu as pltpu

# True-f32 matmuls everywhere (kernel *and* reference) so both sides agree.
jax.config.update("jax_default_matmul_precision", "highest")

N_EMBD = 32
BLOCK_SIZE = 8          # max sequence length (T)
N_HEAD = 4
HEAD_SIZE = N_EMBD // N_HEAD
SEQS_PER_TILE = 64      # 64 seqs * 8 tokens = 512 rows per grid step


def block_kernel(x_ref, mask_ref, wqkv_ref, wp_ref, bp_ref,
                 w1_ref, b1_ref, w2_ref, b2_ref, o_ref, *, T, spt):
    """One grid step = `spt` sequences flattened to R = spt*T rows.

    x_ref    : (R, C)        input rows (row r belongs to sequence r // T)
    mask     : (T, T)        additive causal bias (0 on/below diag, -1e30 above)
    wqkv     : (C, 3C)       fused Q|K|V projection (scale folded into Q cols)
    wp, bp   : (C, C),(1,C)  MHA output projection
    w1, b1   : (C,4C),(1,4C) FFW linear 1
    w2, b2   : (4C,C),(1,C)  FFW linear 2
    o_ref    : (R, C)        output rows
    """
    x = x_ref[...]                                   # (R, C)
    R, C = x.shape
    bias = mask_ref[...]                             # (T, T)

    # --- fused QKV projection: one MXU matmul ---
    qkv = jnp.dot(x, wqkv_ref[...], preferred_element_type=jnp.float32)  # (R, 3C)

    wp = wp_ref[...]                                 # (C, C)
    sa = jnp.zeros((R, C), jnp.float32)
    for h in range(N_HEAD):                          # static unroll (4 heads)
        lo = h * HEAD_SIZE
        # (R, HS) -> (spt, T, HS): with T == 8 this is a pure relabel (no data
        # movement; sublane placement is unchanged).
        qh = qkv[:, lo:lo + HEAD_SIZE].reshape(spt, T, HEAD_SIZE)
        kh = qkv[:, C + lo:C + lo + HEAD_SIZE].reshape(spt, T, HEAD_SIZE)
        vh = qkv[:, 2 * C + lo:2 * C + lo + HEAD_SIZE].reshape(spt, T, HEAD_SIZE)

        # Per-sequence (T, T) scores — no block-diagonal (R, R) waste.
        s = jnp.einsum("bqd,bkd->bqk", qh, kh,
                       preferred_element_type=jnp.float32)         # (spt, T, T)
        s = s + bias                                                # causal mask
        s = s - jnp.max(s, axis=-1, keepdims=True)
        p = jnp.exp(s)
        p = p / jnp.sum(p, axis=-1, keepdims=True)                  # exact softmax

        oh = jnp.einsum("bqk,bkd->bqd", p, vh,
                        preferred_element_type=jnp.float32)         # (spt, T, HS)
        # Fold head output straight into the output projection: equivalent to
        # concat(heads) @ wp, but with no lane-shuffling concatenate.
        sa = sa + jnp.dot(oh.reshape(R, HEAD_SIZE), wp[lo:lo + HEAD_SIZE, :],
                          preferred_element_type=jnp.float32)

    x1 = x + sa + bp_ref[...]                                       # residual 1

    # --- feed-forward ---
    h1 = jnp.dot(x1, w1_ref[...], preferred_element_type=jnp.float32) + b1_ref[...]
    h1 = jnp.maximum(h1, 0.0)                                       # ReLU
    ff = jnp.dot(h1, w2_ref[...], preferred_element_type=jnp.float32) + b2_ref[...]

    o_ref[...] = x1 + ff                                            # residual 2


def transformer_block(x, params, seqs_per_tile=SEQS_PER_TILE):
    """x: (B, T, C) float32.  params: dict of weights (see init_params)."""
    B, T, C = x.shape
    assert C == N_EMBD and 1 <= T <= BLOCK_SIZE

    spt = max(1, min(seqs_per_tile, B))
    if -(-B // spt) == 1 and B >= 2:       # guarantee >= 2 grid steps (v7x: 2 TCs)
        spt = -(-B // 2)
    n_tiles = -(-B // spt)                 # cdiv
    B_pad = n_tiles * spt
    r_tile = spt * T
    assert n_tiles == 1 or r_tile % 8 == 0, "rows per tile must be a multiple of 8"

    x_rows = x.reshape(B * T, C)
    if B_pad != B:                         # zero-pad to a whole number of tiles
        x_rows = jnp.pad(x_rows, ((0, (B_pad - B) * T), (0, 0)))

    # Fuse Q/K/V weights once on the host; fold 1/sqrt(head_size) into Q cols.
    scale = HEAD_SIZE ** -0.5
    wqkv = jnp.concatenate(
        [params["wq"] * scale, params["wk"], params["wv"]], axis=1)

    # Additive causal mask: 0 on/below the diagonal, -1e30 above.
    mask_bias = jnp.where(jnp.tril(jnp.ones((T, T), dtype=bool)),
                          0.0, -1e30).astype(jnp.float32)

    kernel = functools.partial(block_kernel, T=T, spt=spt)
    full = lambda shape: pl.BlockSpec(shape, lambda i: tuple(0 for _ in shape))

    out_rows = pl.pallas_call(
        kernel,
        out_shape=jax.ShapeDtypeStruct((B_pad * T, C), jnp.float32),
        grid_spec=pltpu.PrefetchScalarGridSpec(
            num_scalar_prefetch=0,
            grid=(n_tiles,),
            in_specs=[
                pl.BlockSpec((r_tile, C), lambda i: (i, 0)),   # x rows
                full((T, T)),                                  # causal bias
                full((C, 3 * C)),                              # wqkv
                full((C, C)),                                  # wp
                full((1, C)),                                  # bp
                full((C, 4 * C)),                              # w1
                full((1, 4 * C)),                              # b1
                full((4 * C, C)),                              # w2
                full((1, C)),                                  # b2
            ],
            out_specs=pl.BlockSpec((r_tile, C), lambda i: (i, 0)),
        ),
        compiler_params=pltpu.CompilerParams(
            dimension_semantics=("parallel",)),
    )(x_rows, mask_bias, wqkv, params["wp"], params["bp"],
      params["w1"], params["b1"], params["w2"], params["b2"])

    return out_rows[: B * T].reshape(B, T, C)


def init_params(key):
    """Deterministic synthetic weights matching the PyTorch module's shapes.

    PyTorch Linear(in, out) stores weight (out, in); we store the transpose
    (in, out) so the kernel computes x @ W directly."""
    keys = jax.random.split(key, 10)
    u = lambda k, shape, fan_in: jax.random.uniform(
        k, shape, jnp.float32, -1.0 / math.sqrt(fan_in), 1.0 / math.sqrt(fan_in))
    C = N_EMBD
    return {
        "wq": u(keys[0], (C, C), C),          # heads' query weights, concat over heads
        "wk": u(keys[1], (C, C), C),          # heads' key weights
        "wv": u(keys[2], (C, C), C),          # heads' value weights
        "wp": u(keys[3], (C, C), C),          # MHA output proj weight
        "bp": u(keys[4], (1, C), C),          # MHA output proj bias
        "w1": u(keys[5], (C, 4 * C), C),      # FFW linear 1 weight
        "b1": u(keys[6], (1, 4 * C), C),      # FFW linear 1 bias
        "w2": u(keys[7], (4 * C, C), 4 * C),  # FFW linear 2 weight
        "b2": u(keys[8], (1, C), 4 * C),      # FFW linear 2 bias
    }


def reference_block(x, p):
    """Pure-JAX reference reproducing the PyTorch forward exactly."""
    B, T, C = x.shape
    q = x @ p["wq"]
    k = x @ p["wk"]
    v = x @ p["wv"]
    scale = HEAD_SIZE ** -0.5
    mask = jnp.tril(jnp.ones((T, T), bool))
    outs = []
    for h in range(N_HEAD):
        lo, hi = h * HEAD_SIZE, (h + 1) * HEAD_SIZE
        s = jnp.einsum("btd,bsd->bts", q[..., lo:hi], k[..., lo:hi]) * scale
        s = jnp.where(mask, s, -jnp.inf)
        w = jax.nn.softmax(s, axis=-1)
        outs.append(jnp.einsum("bts,bsd->btd", w, v[..., lo:hi]))
    sa = jnp.concatenate(outs, -1) @ p["wp"] + p["bp"][0]
    x1 = x + sa
    ff = jnp.maximum(x1 @ p["w1"] + p["b1"][0], 0.0) @ p["w2"] + p["b2"][0]
    return x1 + ff


if __name__ == "__main__":
    key = jax.random.PRNGKey(0)
    kx, kx2, kx3, kp = jax.random.split(key, 4)
    params = init_params(kp)

    T, C = BLOCK_SIZE, N_EMBD

    # Small spec-sized test: (B, T, C) = (2, 8, 32).
    x = jax.random.normal(kx, (2, T, C), jnp.float32)
    out = jax.block_until_ready(transformer_block(x, params))
    ref = reference_block(x, params)
    assert out.shape == x.shape
    assert jnp.allclose(out, ref, atol=1e-3, rtol=1e-3), "mismatch vs reference (B=2)"

    # Multiple grid steps, no padding (B=50 -> 2 tiles of 25 sequences).
    x2 = jax.random.normal(kx2, (50, T, C), jnp.float32)
    out2 = jax.block_until_ready(transformer_block(x2, params))
    ref2 = reference_block(x2, params)
    assert out2.shape == x2.shape
    assert jnp.allclose(out2, ref2, atol=1e-3, rtol=1e-3), "mismatch vs reference (B=50)"

    # Full 64-sequence tiles plus a zero-padded last tile (B=130 -> 3 tiles).
    x3 = jax.random.normal(kx3, (130, T, C), jnp.float32)
    out3 = jax.block_until_ready(transformer_block(x3, params))
    ref3 = reference_block(x3, params)
    assert out3.shape == x3.shape
    assert jnp.allclose(out3, ref3, atol=1e-3, rtol=1e-3), "mismatch vs reference (B=130)"

    print("KERNEL_OK")
</pallas_src>

<mosaic_0001>
module attributes {stable_mosaic.version = 11 : i64} {
  func.func @block_kernel(%arg0: i32, %arg1: memref<8x32xf32, #tpu.memory_space<vmem>>, %arg2: memref<8x8xf32, #tpu.memory_space<vmem>>, %arg3: memref<32x96xf32, #tpu.memory_space<vmem>>, %arg4: memref<32x32xf32, #tpu.memory_space<vmem>>, %arg5: memref<1x32xf32, #tpu.memory_space<vmem>>, %arg6: memref<32x128xf32, #tpu.memory_space<vmem>>, %arg7: memref<1x128xf32, #tpu.memory_space<vmem>>, %arg8: memref<128x32xf32, #tpu.memory_space<vmem>>, %arg9: memref<1x32xf32, #tpu.memory_space<vmem>>, %arg10: memref<8x32xf32, #tpu.memory_space<vmem>>) attributes {dimension_semantics = [#tpu.dimension_semantics<parallel>], iteration_bounds = array<i64: 2>, scalar_prefetch = 0 : i64, scratch_operands = 0 : i64, tpu.core_type = #tpu.core_type<tc>, window_params = [{transform_indices = @transform_0, window_bounds = array<i64: 8, 32>}, {pipeline_mode = #tpu.pipeline_mode<synchronous>, transform_indices = @transform_1, window_bounds = array<i64: 8, 8>}, {pipeline_mode = #tpu.pipeline_mode<synchronous>, transform_indices = @transform_2, window_bounds = array<i64: 32, 96>}, {pipeline_mode = #tpu.pipeline_mode<synchronous>, transform_indices = @transform_3, window_bounds = array<i64: 32, 32>}, {pipeline_mode = #tpu.pipeline_mode<synchronous>, transform_indices = @transform_4, window_bounds = array<i64: 1, 32>}, {pipeline_mode = #tpu.pipeline_mode<synchronous>, transform_indices = @transform_5, window_bounds = array<i64: 32, 128>}, {pipeline_mode = #tpu.pipeline_mode<synchronous>, transform_indices = @transform_6, window_bounds = array<i64: 1, 128>}, {pipeline_mode = #tpu.pipeline_mode<synchronous>, transform_indices = @transform_7, window_bounds = array<i64: 128, 32>}, {pipeline_mode = #tpu.pipeline_mode<synchronous>, transform_indices = @transform_8, window_bounds = array<i64: 1, 32>}, {transform_indices = @transform_9, window_bounds = array<i64: 8, 32>}]} {
    %c0 = arith.constant 0 : index
    %c0_0 = arith.constant 0 : index
    %0 = vector.load %arg1[%c0, %c0_0] : memref<8x32xf32, #tpu.memory_space<vmem>>, vector<8x32xf32>
    %c0_1 = arith.constant 0 : index
    %c0_2 = arith.constant 0 : index
    %1 = vector.load %arg2[%c0_1, %c0_2] : memref<8x8xf32, #tpu.memory_space<vmem>>, vector<8x8xf32>
    %c0_3 = arith.constant 0 : index
    %c0_4 = arith.constant 0 : index
    %2 = vector.load %arg3[%c0_3, %c0_4] : memref<32x96xf32, #tpu.memory_space<vmem>>, vector<32x96xf32>
    %cst = arith.constant dense<0.000000e+00> : vector<8x96xf32>
    %3 = tpu.matmul %0, %2, %cst {dimension_numbers = #tpu.dot_dimension_numbers<[1], [0], [0], [1], [0, 0, 1, 1], [], []>, precision = #tpu.contract_precision<fp32>} : vector<8x32xf32>, vector<32x96xf32>, vector<8x96xf32> -> vector<8x96xf32>
    %c0_5 = arith.constant 0 : index
    %c0_6 = arith.constant 0 : index
    %4 = vector.load %arg4[%c0_5, %c0_6] : memref<32x32xf32, #tpu.memory_space<vmem>>, vector<32x32xf32>
    %cst_7 = arith.constant 0.000000e+00 : f32
    %5 = vector.broadcast %cst_7 : f32 to vector<8x32xf32>
    %6 = vector.extract_strided_slice %3 {offsets = [0, 0], sizes = [8, 8], strides = [1, 1]} : vector<8x96xf32> to vector<8x8xf32>
    %7 = vector.shape_cast %6 : vector<8x8xf32> to vector<1x8x8xf32>
    %8 = vector.extract_strided_slice %3 {offsets = [0, 32], sizes = [8, 8], strides = [1, 1]} : vector<8x96xf32> to vector<8x8xf32>
    %9 = vector.shape_cast %8 : vector<8x8xf32> to vector<1x8x8xf32>
    %10 = vector.extract_strided_slice %3 {offsets = [0, 64], sizes = [8, 8], strides = [1, 1]} : vector<8x96xf32> to vector<8x8xf32>
    %11 = vector.shape_cast %10 : vector<8x8xf32> to vector<1x8x8xf32>
    "tpu.trace_start"() <{level = 10 : i32, message = "bqd,bkd->bqk"}> : () -> ()
    %cst_8 = arith.constant dense<0.000000e+00> : vector<1x8x8xf32>
    %12 = tpu.matmul %7, %9, %cst_8 {dimension_numbers = #tpu.dot_dimension_numbers<[2], [2], [1], [1], [0, 0, 0, 1, 1, 1], [0], [0]>, precision = #tpu.contract_precision<fp32>} : vector<1x8x8xf32>, vector<1x8x8xf32>, vector<1x8x8xf32> -> vector<1x8x8xf32>
    "tpu.trace_stop"() : () -> ()
    %13 = vector.shape_cast %1 : vector<8x8xf32> to vector<1x8x8xf32>
    %14 = arith.addf %12, %13 : vector<1x8x8xf32>
    %cst_9 = arith.constant dense<0xFF800000> : vector<1x8xf32>
    %15 = vector.multi_reduction <maximumf>, %14, %cst_9 [2] : vector<1x8x8xf32> to vector<1x8xf32>
    %16 = vector.shape_cast %15 : vector<1x8xf32> to vector<1x8x1xf32>
    %17 = vector.broadcast %16 : vector<1x8x1xf32> to vector<1x8x8xf32>
    %18 = arith.subf %14, %17 : vector<1x8x8xf32>
    %19 = math.exp %18 : vector<1x8x8xf32>
    %cst_10 = arith.constant dense<0.000000e+00> : vector<1x8xf32>
    %20 = vector.multi_reduction <add>, %19, %cst_10 [2] : vector<1x8x8xf32> to vector<1x8xf32>
    %21 = vector.shape_cast %20 : vector<1x8xf32> to vector<1x8x1xf32>
    %22 = vector.broadcast %21 : vector<1x8x1xf32> to vector<1x8x8xf32>
    %23 = arith.divf %19, %22 : vector<1x8x8xf32>
    "tpu.trace_start"() <{level = 10 : i32, message = "bqk,bkd->bqd"}> : () -> ()
    %cst_11 = arith.constant dense<0.000000e+00> : vector<1x8x8xf32>
    %24 = tpu.matmul %23, %11, %cst_11 {dimension_numbers = #tpu.dot_dimension_numbers<[2], [1], [1], [2], [0, 0, 0, 1, 1, 2], [0], [0]>, precision = #tpu.contract_precision<fp32>} : vector<1x8x8xf32>, vector<1x8x8xf32>, vector<1x8x8xf32> -> vector<1x8x8xf32>
    "tpu.trace_stop"() : () -> ()
    %25 = vector.shape_cast %24 : vector<1x8x8xf32> to vector<8x8xf32>
    %26 = vector.extract_strided_slice %4 {offsets = [0, 0], sizes = [8, 32], strides = [1, 1]} : vector<32x32xf32> to vector<8x32xf32>
    %cst_12 = arith.constant dense<0.000000e+00> : vector<8x32xf32>
    %27 = tpu.matmul %25, %26, %cst_12 {dimension_numbers = #tpu.dot_dimension_numbers<[1], [0], [0], [1], [0, 0, 1, 1], [], []>, precision = #tpu.contract_precision<fp32>} : vector<8x8xf32>, vector<8x32xf32>, vector<8x32xf32> -> vector<8x32xf32>
    %28 = arith.addf %5, %27 : vector<8x32xf32>
    %29 = vector.extract_strided_slice %3 {offsets = [0, 8], sizes = [8, 8], strides = [1, 1]} : vector<8x96xf32> to vector<8x8xf32>
    %30 = vector.shape_cast %29 : vector<8x8xf32> to vector<1x8x8xf32>
    %31 = vector.extract_strided_slice %3 {offsets = [0, 40], sizes = [8, 8], strides = [1, 1]} : vector<8x96xf32> to vector<8x8xf32>
    %32 = vector.shape_cast %31 : vector<8x8xf32> to vector<1x8x8xf32>
    %33 = vector.extract_strided_slice %3 {offsets = [0, 72], sizes = [8, 8], strides = [1, 1]} : vector<8x96xf32> to vector<8x8xf32>
    %34 = vector.shape_cast %33 : vector<8x8xf32> to vector<1x8x8xf32>
    "tpu.trace_start"() <{level = 10 : i32, message = "bqd,bkd->bqk"}> : () -> ()
    %cst_13 = arith.constant dense<0.000000e+00> : vector<1x8x8xf32>
    %35 = tpu.matmul %30, %32, %cst_13 {dimension_numbers = #tpu.dot_dimension_numbers<[2], [2], [1], [1], [0, 0, 0, 1, 1, 1], [0], [0]>, precision = #tpu.contract_precision<fp32>} : vector<1x8x8xf32>, vector<1x8x8xf32>, vector<1x8x8xf32> -> vector<1x8x8xf32>
    "tpu.trace_stop"() : () -> ()
    %36 = vector.shape_cast %1 : vector<8x8xf32> to vector<1x8x8xf32>
    %37 = arith.addf %35, %36 : vector<1x8x8xf32>
    %cst_14 = arith.constant dense<0xFF800000> : vector<1x8xf32>
    %38 = vector.multi_reduction <maximumf>, %37, %cst_14 [2] : vector<1x8x8xf32> to vector<1x8xf32>
    %39 = vector.shape_cast %38 : vector<1x8xf32> to vector<1x8x1xf32>
    %40 = vector.broadcast %39 : vector<1x8x1xf32> to vector<1x8x8xf32>
    %41 = arith.subf %37, %40 : vector<1x8x8xf32>
    %42 = math.exp %41 : vector<1x8x8xf32>
    %cst_15 = arith.constant dense<0.000000e+00> : vector<1x8xf32>
    %43 = vector.multi_reduction <add>, %42, %cst_15 [2] : vector<1x8x8xf32> to vector<1x8xf32>
    %44 = vector.shape_cast %43 : vector<1x8xf32> to vector<1x8x1xf32>
    %45 = vector.broadcast %44 : vector<1x8x1xf32> to vector<1x8x8xf32>
    %46 = arith.divf %42, %45 : vector<1x8x8xf32>
    "tpu.trace_start"() <{level = 10 : i32, message = "bqk,bkd->bqd"}> : () -> ()
    %cst_16 = arith.constant dense<0.000000e+00> : vector<1x8x8xf32>
    %47 = tpu.matmul %46, %34, %cst_16 {dimension_numbers = #tpu.dot_dimension_numbers<[2], [1], [1], [2], [0, 0, 0, 1, 1, 2], [0], [0]>, precision = #tpu.contract_precision<fp32>} : vector<1x8x8xf32>, vector<1x8x8xf32>, vector<1x8x8xf32> -> vector<1x8x8xf32>
    "tpu.trace_stop"() : () -> ()
    %48 = vector.shape_cast %47 : vector<1x8x8xf32> to vector<8x8xf32>
    %49 = vector.extract_strided_slice %4 {offsets = [8, 0], sizes = [8, 32], strides = [1, 1]} : vector<32x32xf32> to vector<8x32xf32>
    %cst_17 = arith.constant dense<0.000000e+00> : vector<8x32xf32>
    %50 = tpu.matmul %48, %49, %cst_17 {dimension_numbers = #tpu.dot_dimension_numbers<[1], [0], [0], [1], [0, 0, 1, 1], [], []>, precision = #tpu.contract_precision<fp32>} : vector<8x8xf32>, vector<8x32xf32>, vector<8x32xf32> -> vector<8x32xf32>
    %51 = arith.addf %28, %50 : vector<8x32xf32>
    %52 = vector.extract_strided_slice %3 {offsets = [0, 16], sizes = [8, 8], strides = [1, 1]} : vector<8x96xf32> to vector<8x8xf32>
    %53 = vector.shape_cast %52 : vector<8x8xf32> to vector<1x8x8xf32>
    %54 = vector.extract_strided_slice %3 {offsets = [0, 48], sizes = [8, 8], strides = [1, 1]} : vector<8x96xf32> to vector<8x8xf32>
    %55 = vector.shape_cast %54 : vector<8x8xf32> to vector<1x8x8xf32>
    %56 = vector.extract_strided_slice %3 {offsets = [0, 80], sizes = [8, 8], strides = [1, 1]} : vector<8x96xf32> to vector<8x8xf32>
    %57 = vector.shape_cast %56 : vector<8x8xf32> to vector<1x8x8xf32>
    "tpu.trace_start"() <{level = 10 : i32, message = "bqd,bkd->bqk"}> : () -> ()
    %cst_18 = arith.constant dense<0.000000e+00> : vector<1x8x8xf32>
    %58 = tpu.matmul %53, %55, %cst_18 {dimension_numbers = #tpu.dot_dimension_numbers<[2], [2], [1], [1], [0, 0, 0, 1, 1, 1], [0], [0]>, precision = #tpu.contract_precision<fp32>} : vector<1x8x8xf32>, vector<1x8x8xf32>, vector<1x8x8xf32> -> vector<1x8x8xf32>
    "tpu.trace_stop"() : () -> ()
    %59 = vector.shape_cast %1 : vector<8x8xf32> to vector<1x8x8xf32>
    %60 = arith.addf %58, %59 : vector<1x8x8xf32>
    %cst_19 = arith.constant dense<0xFF800000> : vector<1x8xf32>
    %61 = vector.multi_reduction <maximumf>, %60, %cst_19 [2] : vector<1x8x8xf32> to vector<1x8xf32>
    %62 = vector.shape_cast %61 : vector<1x8xf32> to vector<1x8x1xf32>
    %63 = vector.broadcast %62 : vector<1x8x1xf32> to vector<1x8x8xf32>
    %64 = arith.subf %60, %63 : vector<1x8x8xf32>
    %65 = math.exp %64 : vector<1x8x8xf32>
    %cst_20 = arith.constant dense<0.000000e+00> : vector<1x8xf32>
    %66 = vector.multi_reduction <add>, %65, %cst_20 [2] : vector<1x8x8xf32> to vector<1x8xf32>
    %67 = vector.shape_cast %66 : vector<1x8xf32> to vector<1x8x1xf32>
    %68 = vector.broadcast %67 : vector<1x8x1xf32> to vector<1x8x8xf32>
    %69 = arith.divf %65, %68 : vector<1x8x8xf32>
    "tpu.trace_start"() <{level = 10 : i32, message = "bqk,bkd->bqd"}> : () -> ()
    %cst_21 = arith.constant dense<0.000000e+00> : vector<1x8x8xf32>
    %70 = tpu.matmul %69, %57, %cst_21 {dimension_numbers = #tpu.dot_dimension_numbers<[2], [1], [1], [2], [0, 0, 0, 1, 1, 2], [0], [0]>, precision = #tpu.contract_precision<fp32>} : vector<1x8x8xf32>, vector<1x8x8xf32>, vector<1x8x8xf32> -> vector<1x8x8xf32>
    "tpu.trace_stop"() : () -> ()
    %71 = vector.shape_cast %70 : vector<1x8x8xf32> to vector<8x8xf32>
    %72 = vector.extract_strided_slice %4 {offsets = [16, 0], sizes = [8, 32], strides = [1, 1]} : vector<32x32xf32> to vector<8x32xf32>
    %cst_22 = arith.constant dense<0.000000e+00> : vector<8x32xf32>
    %73 = tpu.matmul %71, %72, %cst_22 {dimension_numbers = #tpu.dot_dimension_numbers<[1], [0], [0], [1], [0, 0, 1, 1], [], []>, precision = #tpu.contract_precision<fp32>} : vector<8x8xf32>, vector<8x32xf32>, vector<8x32xf32> -> vector<8x32xf32>
    %74 = arith.addf %51, %73 : vector<8x32xf32>
    %75 = vector.extract_strided_slice %3 {offsets = [0, 24], sizes = [8, 8], strides = [1, 1]} : vector<8x96xf32> to vector<8x8xf32>
    %76 = vector.shape_cast %75 : vector<8x8xf32> to vector<1x8x8xf32>
    %77 = vector.extract_strided_slice %3 {offsets = [0, 56], sizes = [8, 8], strides = [1, 1]} : vector<8x96xf32> to vector<8x8xf32>
    %78 = vector.shape_cast %77 : vector<8x8xf32> to vector<1x8x8xf32>
    %79 = vector.extract_strided_slice %3 {offsets = [0, 88], sizes = [8, 8], strides = [1, 1]} : vector<8x96xf32> to vector<8x8xf32>
    %80 = vector.shape_cast %79 : vector<8x8xf32> to vector<1x8x8xf32>
    "tpu.trace_start"() <{level = 10 : i32, message = "bqd,bkd->bqk"}> : () -> ()
    %cst_23 = arith.constant dense<0.000000e+00> : vector<1x8x8xf32>
    %81 = tpu.matmul %76, %78, %cst_23 {dimension_numbers = #tpu.dot_dimension_numbers<[2], [2], [1], [1], [0, 0, 0, 1, 1, 1], [0], [0]>, precision = #tpu.contract_precision<fp32>} : vector<1x8x8xf32>, vector<1x8x8xf32>, vector<1x8x8xf32> -> vector<1x8x8xf32>
    "tpu.trace_stop"() : () -> ()
    %82 = vector.shape_cast %1 : vector<8x8xf32> to vector<1x8x8xf32>
    %83 = arith.addf %81, %82 : vector<1x8x8xf32>
    %cst_24 = arith.constant dense<0xFF800000> : vector<1x8xf32>
    %84 = vector.multi_reduction <maximumf>, %83, %cst_24 [2] : vector<1x8x8xf32> to vector<1x8xf32>
    %85 = vector.shape_cast %84 : vector<1x8xf32> to vector<1x8x1xf32>
    %86 = vector.broadcast %85 : vector<1x8x1xf32> to vector<1x8x8xf32>
    %87 = arith.subf %83, %86 : vector<1x8x8xf32>
    %88 = math.exp %87 : vector<1x8x8xf32>
    %cst_25 = arith.constant dense<0.000000e+00> : vector<1x8xf32>
    %89 = vector.multi_reduction <add>, %88, %cst_25 [2] : vector<1x8x8xf32> to vector<1x8xf32>
    %90 = vector.shape_cast %89 : vector<1x8xf32> to vector<1x8x1xf32>
    %91 = vector.broadcast %90 : vector<1x8x1xf32> to vector<1x8x8xf32>
    %92 = arith.divf %88, %91 : vector<1x8x8xf32>
    "tpu.trace_start"() <{level = 10 : i32, message = "bqk,bkd->bqd"}> : () -> ()
    %cst_26 = arith.constant dense<0.000000e+00> : vector<1x8x8xf32>
    %93 = tpu.matmul %92, %80, %cst_26 {dimension_numbers = #tpu.dot_dimension_numbers<[2], [1], [1], [2], [0, 0, 0, 1, 1, 2], [0], [0]>, precision = #tpu.contract_precision<fp32>} : vector<1x8x8xf32>, vector<1x8x8xf32>, vector<1x8x8xf32> -> vector<1x8x8xf32>
    "tpu.trace_stop"() : () -> ()
    %94 = vector.shape_cast %93 : vector<1x8x8xf32> to vector<8x8xf32>
    %95 = vector.extract_strided_slice %4 {offsets = [24, 0], sizes = [8, 32], strides = [1, 1]} : vector<32x32xf32> to vector<8x32xf32>
    %cst_27 = arith.constant dense<0.000000e+00> : vector<8x32xf32>
    %96 = tpu.matmul %94, %95, %cst_27 {dimension_numbers = #tpu.dot_dimension_numbers<[1], [0], [0], [1], [0, 0, 1, 1], [], []>, precision = #tpu.contract_precision<fp32>} : vector<8x8xf32>, vector<8x32xf32>, vector<8x32xf32> -> vector<8x32xf32>
    %97 = arith.addf %74, %96 : vector<8x32xf32>
    %98 = arith.addf %0, %97 : vector<8x32xf32>
    %c0_28 = arith.constant 0 : index
    %c0_29 = arith.constant 0 : index
    %99 = vector.load %arg5[%c0_28, %c0_29] : memref<1x32xf32, #tpu.memory_space<vmem>>, vector<1x32xf32>
    %100 = vector.broadcast %99 : vector<1x32xf32> to vector<8x32xf32>
    %101 = arith.addf %98, %100 : vector<8x32xf32>
    %c0_30 = arith.constant 0 : index
    %c0_31 = arith.constant 0 : index
    %102 = vector.load %arg6[%c0_30, %c0_31] : memref<32x128xf32, #tpu.memory_space<vmem>>, vector<32x128xf32>
    %cst_32 = arith.constant dense<0.000000e+00> : vector<8x128xf32>
    %103 = tpu.matmul %101, %102, %cst_32 {dimension_numbers = #tpu.dot_dimension_numbers<[1], [0], [0], [1], [0, 0, 1, 1], [], []>, precision = #tpu.contract_precision<fp32>} : vector<8x32xf32>, vector<32x128xf32>, vector<8x128xf32> -> vector<8x128xf32>
    %c0_33 = arith.constant 0 : index
    %c0_34 = arith.constant 0 : index
    %104 = vector.load %arg7[%c0_33, %c0_34] : memref<1x128xf32, #tpu.memory_space<vmem>>, vector<1x128xf32>
    %105 = vector.broadcast %104 : vector<1x128xf32> to vector<8x128xf32>
    %106 = arith.addf %103, %105 : vector<8x128xf32>
    %cst_35 = arith.constant 0.000000e+00 : f32
    %107 = vector.broadcast %cst_35 : f32 to vector<8x128xf32>
    %108 = arith.maximumf %106, %107 : vector<8x128xf32>
    %c0_36 = arith.constant 0 : index
    %c0_37 = arith.constant 0 : index
    %109 = vector.load %arg8[%c0_36, %c0_37] : memref<128x32xf32, #tpu.memory_space<vmem>>, vector<128x32xf32>
    %cst_38 = arith.constant dense<0.000000e+00> : vector<8x32xf32>
    %110 = tpu.matmul %108, %109, %cst_38 {dimension_numbers = #tpu.dot_dimension_numbers<[1], [0], [0], [1], [0, 0, 1, 1], [], []>, precision = #tpu.contract_precision<fp32>} : vector<8x128xf32>, vector<128x32xf32>, vector<8x32xf32> -> vector<8x32xf32>
    %c0_39 = arith.constant 0 : index
    %c0_40 = arith.constant 0 : index
    %111 = vector.load %arg9[%c0_39, %c0_40] : memref<1x32xf32, #tpu.memory_space<vmem>>, vector<1x32xf32>
    %112 = vector.broadcast %111 : vector<1x32xf32> to vector<8x32xf32>
    %113 = arith.addf %110, %112 : vector<8x32xf32>
    %114 = arith.addf %101, %113 : vector<8x32xf32>
    %c0_41 = arith.constant 0 : index
    %c0_42 = arith.constant 0 : index
    %115 = vector.load %arg10[%c0_41, %c0_42] : memref<8x32xf32, #tpu.memory_space<vmem>>, vector<8x32xf32>
    tpu.vector_store %arg10[%c0_41, %c0_42], %114 {strides = array<i32>} : memref<8x32xf32, #tpu.memory_space<vmem>>, vector<8x32xf32>,
    return
  }
  func.func @transform_0(%arg0: i32) -> (i32, i32) {
    %c0_i32 = arith.constant 0 : i32
    %c0_i32_0 = arith.constant 0 : i32
    return %arg0, %c0_i32 : i32, i32
  }
  func.func @transform_1(%arg0: i32) -> (i32, i32) {
    %c0_i32 = arith.constant 0 : i32
    %c0_i32_0 = arith.constant 0 : i32
    %c0_i32_1 = arith.constant 0 : i32
    return %c0_i32, %c0_i32_0 : i32, i32
  }
  func.func @transform_2(%arg0: i32) -> (i32, i32) {
    %c0_i32 = arith.constant 0 : i32
    %c0_i32_0 = arith.constant 0 : i32
    %c0_i32_1 = arith.constant 0 : i32
    return %c0_i32, %c0_i32_0 : i32, i32
  }
  func.func @transform_3(%arg0: i32) -> (i32, i32) {
    %c0_i32 = arith.constant 0 : i32
    %c0_i32_0 = arith.constant 0 : i32
    %c0_i32_1 = arith.constant 0 : i32
    return %c0_i32, %c0_i32_0 : i32, i32
  }
  func.func @transform_4(%arg0: i32) -> (i32, i32) {
    %c0_i32 = arith.constant 0 : i32
    %c0_i32_0 = arith.constant 0 : i32
    %c0_i32_1 = arith.constant 0 : i32
    return %c0_i32, %c0_i32_0 : i32, i32
  }
  func.func @transform_5(%arg0: i32) -> (i32, i32) {
    %c0_i32 = arith.constant 0 : i32
    %c0_i32_0 = arith.constant 0 : i32
    %c0_i32_1 = arith.constant 0 : i32
    return %c0_i32, %c0_i32_0 : i32, i32
  }
  func.func @transform_6(%arg0: i32) -> (i32, i32) {
    %c0_i32 = arith.constant 0 : i32
    %c0_i32_0 = arith.constant 0 : i32
    %c0_i32_1 = arith.constant 0 : i32
    return %c0_i32, %c0_i32_0 : i32, i32
  }
  func.func @transform_7(%arg0: i32) -> (i32, i32) {
    %c0_i32 = arith.constant 0 : i32
    %c0_i32_0 = arith.constant 0 : i32
    %c0_i32_1 = arith.constant 0 : i32
    return %c0_i32, %c0_i32_0 : i32, i32
  }
  func.func @transform_8(%arg0: i32) -> (i32, i32) {
    %c0_i32 = arith.constant 0 : i32
    %c0_i32_0 = arith.constant 0 : i32
    %c0_i32_1 = arith.constant 0 : i32
    return %c0_i32, %c0_i32_0 : i32, i32
  }
  func.func @transform_9(%arg0: i32) -> (i32, i32) {
    %c0_i32 = arith.constant 0 : i32
    %c0_i32_0 = arith.constant 0 : i32
    return %arg0, %c0_i32 : i32, i32
  }
}

</mosaic_0001>

<llo_original>
// kernel: tpu_custom_call.1
$region0: #{tpu_custom_call.1}
  #allocation0 [shape = 'u32[]', space=smem, size = 0x4, offset = 0x4, fixed_abs, tag = 'smem constant byte address 0x4 - core index']
  #allocation1 [shape = 'u32[144,128]{1,0:T(1,128)}', space=vmem, size = 0x12000, scoped, tag = 'internal scratch']
  %s0 = inlined_call_operand.vmem [shape: f32[16,32], index: 0, kind: input, shape index: {}]
  %s1 = inlined_call_operand.vmem [shape: f32[8,8], index: 1, kind: input, shape index: {}]
  %s2 = inlined_call_operand.vmem [shape: f32[32,96], index: 2, kind: input, shape index: {}]
  %s3 = inlined_call_operand.vmem [shape: f32[32,32], index: 3, kind: input, shape index: {}]
  %s4 = inlined_call_operand.vmem [shape: f32[1,32], index: 4, kind: input, shape index: {}]
  %s5 = inlined_call_operand.vmem [shape: f32[32,128], index: 5, kind: input, shape index: {}]
  %s6 = inlined_call_operand.vmem [shape: f32[1,128], index: 6, kind: input, shape index: {}]
  %s7 = inlined_call_operand.vmem [shape: f32[128,32], index: 7, kind: input, shape index: {}]
  %s8 = inlined_call_operand.vmem [shape: f32[1,32], index: 8, kind: input, shape index: {}]
  %s9 = inlined_call_operand.hbm [shape: f32[16,32], index: 9, kind: output, shape index: {}]
  %s10 = sld [smem:[#allocation0]]
  $region69: #{tpu_custom_call.1} parent=0
    _
  %s12 = ssub.s32 1, %s10
  %s13 = scalar_select 0, %s12, %s10
  $region1: #{tpu_custom_call.1} parent=0
    #allocation2 [shape = 'u8[8192]{0}', space=vmem, size = 0x2000, scoped, tag = 'output window, operand 0']
    #allocation3 [shape = 's32[2]{0}', space=sflag, size = 0x8, scoped, tag = 'scoped memory for tpu_custom_call.1']
    %14 = vsyncpa [#allocation3], 0
    %s15 = scalar_lea.sflag [#allocation3], 1
    %16 = vsyncpa %s15, 0
    loop: start=0, step=1, limit=4
    $region2: #{tpu_custom_call.1} parent=1 // loop_pre_header
      _
    $region3: #{tpu_custom_call.1} parent=1 // loop_header
      %s18 = sphi 0, %s22
      %p19 = scmp.ge.s32.totalorder %s18, 4
      %s28 = sphi 0, %s30
      %s31 = sphi 0, %s28
      %s32 = sphi 0, %s31
      %s48 = sphi 0, %s32
      %s52 = sphi 0, %s52
      %s54 = sphi 0, %s52
      %s55 = sphi 0, %s54
      %s69 = sphi 0, %s55
      %s73 = sphi 0, %s73
      %s75 = sphi 0, %s73
      %s76 = sphi 0, %s75
      %s90 = sphi 0, %s76
      %s94 = sphi 0, %s94
      %s96 = sphi 0, %s94
      %s97 = sphi 0, %s96
      %s111 = sphi 0, %s97
      %s115 = sphi 0, %s115
      %s117 = sphi 0, %s115
      %s118 = sphi 0, %s117
      %s132 = sphi 0, %s118
      %s136 = sphi 0, %s136
      %s138 = sphi 0, %s136
      %s139 = sphi 0, %s138
      %s153 = sphi 0, %s139
      %s157 = sphi 0, %s157
      %s159 = sphi 0, %s157
      %s160 = sphi 0, %s159
      %s174 = sphi 0, %s160
      %s178 = sphi 0, %s178
      %s180 = sphi 0, %s178
      %s181 = sphi 0, %s180
      %s195 = sphi 0, %s181
      %s199 = sphi 0, %s199
      %s201 = sphi 0, %s199
      %s202 = sphi 0, %s201
      %s216 = sphi 0, %s202
      %s222 = sphi 0, %s224
      %s225 = sphi 0, %s222
      %s226 = sphi 0, %s225
      %s242 = sphi 0, %s226
    $region4: #{tpu_custom_call.1} parent=1 // loop_header_branch
      %21 = sbr.rel (%p19) target = $region8
    $region5: #{tpu_custom_call.1} parent=1 // loop_body
      %s23 = ssub.s32 %s18, 1
      %s24 = ssub.s32 %s18, 2
      %s25 = sadd.s32 %s18, 1
      %s26 = ssub.s32 %s18, %s25
      %p27 = scmp.eq.s32.totalorder %s26, 0
      %s29 = sadd.s32 %s28, 1
      %s30 = scalar_select %p27, %s28, %s29
      %p33 = pneg %p27
      %p34 = scmp.eq.s32.totalorder %s18, 1
      %p35 = por %p33, %p34
      %p36 = scmp.ne.s32.totalorder %s28, %s31
      %p37 = scmp.eq.s32.totalorder %s18, 0
      %p38 = por %p36, %p37
      %p39 = scmp.ne.s32.totalorder %s28, %s31
      %p40 = scmp.eq.s32.totalorder %s23, 1
      %p41 = por %p39, %p40
      %p42 = scmp.ne.s32.totalorder %s31, %s32
      %p43 = scmp.eq.s32.totalorder %s23, 0
      %p44 = por %p42, %p43
      %p45 = scmp.ne.s32.totalorder %s31, %s32
      %p46 = scmp.eq.s32.totalorder %s24, 1
      %p47 = por %p45, %p46
      %p49 = scmp.ne.s32.totalorder %s32, %s48
      %p50 = scmp.eq.s32.totalorder %s24, 0
      %p51 = por %p49, %p50
      %s53 = sadd.s32 %s52, 1
      %p56 = scmp.eq.s32.totalorder %s18, 1
      %p57 = scmp.ne.s32.totalorder %s52, %s54
      %p58 = scmp.eq.s32.totalorder %s18, 0
      %p59 = por %p57, %p58
      %p60 = scmp.ne.s32.totalorder %s52, %s54
      %p61 = scmp.eq.s32.totalorder %s23, 1
      %p62 = por %p60, %p61
      %p63 = scmp.ne.s32.totalorder %s54, %s55
      %p64 = scmp.eq.s32.totalorder %s23, 0
      %p65 = por %p63, %p64
      %p66 = scmp.ne.s32.totalorder %s54, %s55
      %p67 = scmp.eq.s32.totalorder %s24, 1
      %p68 = por %p66, %p67
      %p70 = scmp.ne.s32.totalorder %s55, %s69
      %p71 = scmp.eq.s32.totalorder %s24, 0
      %p72 = por %p70, %p71
      %s74 = sadd.s32 %s73, 1
      %p77 = scmp.eq.s32.totalorder %s18, 1
      %p78 = scmp.ne.s32.totalorder %s73, %s75
      %p79 = scmp.eq.s32.totalorder %s18, 0
      %p80 = por %p78, %p79
      %p81 = scmp.ne.s32.totalorder %s73, %s75
      %p82 = scmp.eq.s32.totalorder %s23, 1
      %p83 = por %p81, %p82
      %p84 = scmp.ne.s32.totalorder %s75, %s76
      %p85 = scmp.eq.s32.totalorder %s23, 0
      %p86 = por %p84, %p85
      %p87 = scmp.ne.s32.totalorder %s75, %s76
      %p88 = scmp.eq.s32.totalorder %s24, 1
      %p89 = por %p87, %p88
      %p91 = scmp.ne.s32.totalorder %s76, %s90
      %p92 = scmp.eq.s32.totalorder %s24, 0
      %p93 = por %p91, %p92
      %s95 = sadd.s32 %s94, 1
      %p98 = scmp.eq.s32.totalorder %s18, 1
      %p99 = scmp.ne.s32.totalorder %s94, %s96
      %p100 = scmp.eq.s32.totalorder %s18, 0
      %p101 = por %p99, %p100
      %p102 = scmp.ne.s32.totalorder %s94, %s96
      %p103 = scmp.eq.s32.totalorder %s23, 1
      %p104 = por %p102, %p103
      %p105 = scmp.ne.s32.totalorder %s96, %s97
      %p106 = scmp.eq.s32.totalorder %s23, 0
      %p107 = por %p105, %p106
      %p108 = scmp.ne.s32.totalorder %s96, %s97
      %p109 = scmp.eq.s32.totalorder %s24, 1
      %p110 = por %p108, %p109
      %p112 = scmp.ne.s32.totalorder %s97, %s111
      %p113 = scmp.eq.s32.totalorder %s24, 0
      %p114 = por %p112, %p113
      %s116 = sadd.s32 %s115, 1
      %p119 = scmp.eq.s32.totalorder %s18, 1
      %p120 = scmp.ne.s32.totalorder %s115, %s117
      %p121 = scmp.eq.s32.totalorder %s18, 0
      %p122 = por %p120, %p121
      %p123 = scmp.ne.s32.totalorder %s115, %s117
      %p124 = scmp.eq.s32.totalorder %s23, 1
      %p125 = por %p123, %p124
      %p126 = scmp.ne.s32.totalorder %s117, %s118
      %p127 = scmp.eq.s32.totalorder %s23, 0
      %p128 = por %p126, %p127
      %p129 = scmp.ne.s32.totalorder %s117, %s118
      %p130 = scmp.eq.s32.totalorder %s24, 1
      %p131 = por %p129, %p130
      %p133 = scmp.ne.s32.totalorder %s118, %s132
      %p134 = scmp.eq.s32.totalorder %s24, 0
      %p135 = por %p133, %p134
      %s137 = sadd.s32 %s136, 1
      %p140 = scmp.eq.s32.totalorder %s18, 1
      %p141 = scmp.ne.s32.totalorder %s136, %s138
      %p142 = scmp.eq.s32.totalorder %s18, 0
      %p143 = por %p141, %p142
      %p144 = scmp.ne.s32.totalorder %s136, %s138
      %p145 = scmp.eq.s32.totalorder %s23, 1
      %p146 = por %p144, %p145
      %p147 = scmp.ne.s32.totalorder %s138, %s139
      %p148 = scmp.eq.s32.totalorder %s23, 0
      %p149 = por %p147, %p148
      %p150 = scmp.ne.s32.totalorder %s138, %s139
      %p151 = scmp.eq.s32.totalorder %s24, 1
      %p152 = por %p150, %p151
      %p154 = scmp.ne.s32.totalorder %s139, %s153
      %p155 = scmp.eq.s32.totalorder %s24, 0
      %p156 = por %p154, %p155
      %s158 = sadd.s32 %s157, 1
      %p161 = scmp.eq.s32.totalorder %s18, 1
      %p162 = scmp.ne.s32.totalorder %s157, %s159
      %p163 = scmp.eq.s32.totalorder %s18, 0
      %p164 = por %p162, %p163
      %p165 = scmp.ne.s32.totalorder %s157, %s159
      %p166 = scmp.eq.s32.totalorder %s23, 1
      %p167 = por %p165, %p166
      %p168 = scmp.ne.s32.totalorder %s159, %s160
      %p169 = scmp.eq.s32.totalorder %s23, 0
      %p170 = por %p168, %p169
      %p171 = scmp.ne.s32.totalorder %s159, %s160
      %p172 = scmp.eq.s32.totalorder %s24, 1
      %p173 = por %p171, %p172
      %p175 = scmp.ne.s32.totalorder %s160, %s174
      %p176 = scmp.eq.s32.totalorder %s24, 0
      %p177 = por %p175, %p176
      %s179 = sadd.s32 %s178, 1
      %p182 = scmp.eq.s32.totalorder %s18, 1
      %p183 = scmp.ne.s32.totalorder %s178, %s180
      %p184 = scmp.eq.s32.totalorder %s18, 0
      %p185 = por %p183, %p184
      %p186 = scmp.ne.s32.totalorder %s178, %s180
      %p187 = scmp.eq.s32.totalorder %s23, 1
      %p188 = por %p186, %p187
      %p189 = scmp.ne.s32.totalorder %s180, %s181
      %p190 = scmp.eq.s32.totalorder %s23, 0
      %p191 = por %p189, %p190
      %p192 = scmp.ne.s32.totalorder %s180, %s181
      %p193 = scmp.eq.s32.totalorder %s24, 1
      %p194 = por %p192, %p193
      %p196 = scmp.ne.s32.totalorder %s181, %s195
      %p197 = scmp.eq.s32.totalorder %s24, 0
      %p198 = por %p196, %p197
      %s200 = sadd.s32 %s199, 1
      %p203 = scmp.eq.s32.totalorder %s18, 1
      %p204 = scmp.ne.s32.totalorder %s199, %s201
      %p205 = scmp.eq.s32.totalorder %s18, 0
      %p206 = por %p204, %p205
      %p207 = scmp.ne.s32.totalorder %s199, %s201
      %p208 = scmp.eq.s32.totalorder %s23, 1
      %p209 = por %p207, %p208
      %p210 = scmp.ne.s32.totalorder %s201, %s202
      %p211 = scmp.eq.s32.totalorder %s23, 0
      %p212 = por %p210, %p211
      %p213 = scmp.ne.s32.totalorder %s201, %s202
      %p214 = scmp.eq.s32.totalorder %s24, 1
      %p215 = por %p213, %p214
      %p217 = scmp.ne.s32.totalorder %s202, %s216
      %p218 = scmp.eq.s32.totalorder %s24, 0
      %p219 = por %p217, %p218
      %s220 = ssub.s32 %s18, %s25
      %p221 = scmp.eq.s32.totalorder %s220, 0
      %s223 = sadd.s32 %s222, 1
      %s224 = scalar_select %p221, %s222, %s223
      %p227 = pneg %p221
      %p228 = scmp.eq.s32.totalorder %s18, 1
      %p229 = por %p227, %p228
      %p230 = scmp.ne.s32.totalorder %s222, %s225
      %p231 = scmp.eq.s32.totalorder %s18, 0
      %p232 = por %p230, %p231
      %p233 = scmp.ne.s32.totalorder %s222, %s225
      %p234 = scmp.eq.s32.totalorder %s23, 1
      %p235 = por %p233, %p234
      %p236 = scmp.ne.s32.totalorder %s225, %s226
      %p237 = scmp.eq.s32.totalorder %s23, 0
      %p238 = por %p236, %p237
      %p239 = scmp.ne.s32.totalorder %s225, %s226
      %p240 = scmp.eq.s32.totalorder %s24, 1
      %p241 = por %p239, %p240
      %p243 = scmp.ne.s32.totalorder %s226, %s242
      %p244 = scmp.eq.s32.totalorder %s24, 0
      %p245 = por %p243, %p244
      %p246 = scmp.le.s32.totalorder 1, %s18
      %p247 = scmp.lt.s32.totalorder %s18, 3
      %p248 = pnand %p246, %p247
      %p249 = pneg %p248
      // Predicated region
      $region9: #{tpu_custom_call.1} parent=5 // pred_check
        _
      $region10: #{tpu_custom_call.1} parent=5 // pred_check_branch
        %251 = sbr.rel (%p248) target = $region12
      $region11: #{tpu_custom_call.1} parent=5 // pred_region
        %s252 = ssub.s32 %s18, 1
        // Predicated region
        $region13: #{tpu_custom_call.1} parent=11 // pred_check
          %p253 = pneg %p65
        $region14: #{tpu_custom_call.1} parent=11 // pred_check_branch
          %255 = sbr.rel (%p253) target = $region16
        $region15: #{tpu_custom_call.1} parent=11 // pred_region
          _
        $region16: #{tpu_custom_call.1} parent=11 // pred_fallthru
          _
        // Predicated region
        $region17: #{tpu_custom_call.1} parent=11 // pred_check
          %p256 = pneg %p86
        $region18: #{tpu_custom_call.1} parent=11 // pred_check_branch
          %258 = sbr.rel (%p256) target = $region20
        $region19: #{tpu_custom_call.1} parent=11 // pred_region
          _
        $region20: #{tpu_custom_call.1} parent=11 // pred_fallthru
          _
        // Predicated region
        $region21: #{tpu_custom_call.1} parent=11 // pred_check
          %p259 = pneg %p107
        $region22: #{tpu_custom_call.1} parent=11 // pred_check_branch
          %261 = sbr.rel (%p259) target = $region24
        $region23: #{tpu_custom_call.1} parent=11 // pred_region
          _
        $region24: #{tpu_custom_call.1} parent=11 // pred_fallthru
          _
        // Predicated region
        $region25: #{tpu_custom_call.1} parent=11 // pred_check
          %p262 = pneg %p128
        $region26: #{tpu_custom_call.1} parent=11 // pred_check_branch
          %264 = sbr.rel (%p262) target = $region28
        $region27: #{tpu_custom_call.1} parent=11 // pred_region
          _
        $region28: #{tpu_custom_call.1} parent=11 // pred_fallthru
          _
        // Predicated region
        $region29: #{tpu_custom_call.1} parent=11 // pred_check
          %p265 = pneg %p149
        $region30: #{tpu_custom_call.1} parent=11 // pred_check_branch
          %267 = sbr.rel (%p265) target = $region32
        $region31: #{tpu_custom_call.1} parent=11 // pred_region
          _
        $region32: #{tpu_custom_call.1} parent=11 // pred_fallthru
          _
        // Predicated region
        $region33: #{tpu_custom_call.1} parent=11 // pred_check
          %p268 = pneg %p170
        $region34: #{tpu_custom_call.1} parent=11 // pred_check_branch
          %270 = sbr.rel (%p268) target = $region36
        $region35: #{tpu_custom_call.1} parent=11 // pred_region
          _
        $region36: #{tpu_custom_call.1} parent=11 // pred_fallthru
          _
        // Predicated region
        $region37: #{tpu_custom_call.1} parent=11 // pred_check
          %p271 = pneg %p191
        $region38: #{tpu_custom_call.1} parent=11 // pred_check_branch
          %273 = sbr.rel (%p271) target = $region40
        $region39: #{tpu_custom_call.1} parent=11 // pred_region
          _
        $region40: #{tpu_custom_call.1} parent=11 // pred_fallthru
          _
        // Predicated region
        $region41: #{tpu_custom_call.1} parent=11 // pred_check
          %p274 = pneg %p212
        $region42: #{tpu_custom_call.1} parent=11 // pred_check_branch
          %276 = sbr.rel (%p274) target = $region44
        $region43: #{tpu_custom_call.1} parent=11 // pred_region
          _
        $region44: #{tpu_custom_call.1} parent=11 // pred_fallthru
          _
      $region12: #{tpu_custom_call.1} parent=5 // pred_fallthru
        _
      %p277 = scmp.lt.s32.totalorder %s18, 2
      // Predicated region
      $region45: #{tpu_custom_call.1} parent=5 // pred_check
        %p278 = pneg %p277
      $region46: #{tpu_custom_call.1} parent=5 // pred_check_branch
        %280 = sbr.rel (%p278) target = $region48
      $region47: #{tpu_custom_call.1} parent=5 // pred_region
        // Predicated region
        $region49: #{tpu_custom_call.1} parent=47 // pred_check
          %p281 = pneg %p38
        $region50: #{tpu_custom_call.1} parent=47 // pred_check_branch
          %283 = sbr.rel (%p281) target = $region52
        $region51: #{tpu_custom_call.1} parent=47 // pred_region
          %p284 = scmp.lt.s32.totalorder %s18, 1
          %s285 = scalar_select %p284, %s18, 1
          %s286 = smul.addr %s285, 8
          %s287 = scalar_lea.vmem %s0, %s286
        $region52: #{tpu_custom_call.1} parent=47 // pred_fallthru
          _
      $region48: #{tpu_custom_call.1} parent=5 // pred_fallthru
        _
      %p288 = scmp.le.s32.totalorder 1, %s18
      %p289 = scmp.lt.s32.totalorder %s18, 3
      %p290 = pnand %p288, %p289
      %p291 = pneg %p290
      // Predicated region
      $region53: #{tpu_custom_call.1} parent=5 // pred_check
        _
      $region54: #{tpu_custom_call.1} parent=5 // pred_check_branch
        %293 = sbr.rel (%p290) target = $region56
      $region55: #{tpu_custom_call.1} parent=5 // pred_region
        %s294 = ssub.s32 %s18, 1
        %p295 = scmp.lt.s32.totalorder %s23, 1
        %s296 = scalar_select %p295, %s23, 1
        %s297 = smul.addr %s296, 8
        %s298 = scalar_lea.vmem %s0, %s297
        %p299 = pneg %p44
        %p300 = pneg %p41
        %p301 = pneg %p65
        %p302 = pneg %p62
        %p303 = pneg %p86
        %p304 = pneg %p83
        %p305 = pneg %p107
        %p306 = pneg %p104
        %p307 = pneg %p128
        %p308 = pneg %p125
        %p309 = pneg %p149
        %p310 = pneg %p146
        %p311 = pneg %p170
        %p312 = pneg %p167
        %p313 = pneg %p191
        %p314 = pneg %p188
        %p315 = pneg %p212
        %p316 = pneg %p209
        %p317 = pneg %p238
        %p318 = pneg %p235
        %s319 = sand.u32 %s225, 1
        %s320 = scalar_lea.sflag [#allocation3], %s319
        %s321 = sand.u32 %s225, 1
        %s322 = smul.addr %s321, 8
        %s323 = scalar_lea.vmem [#allocation2], %s322
        %p324 = scmp.lt.s32.totalorder %s23, 1
        %s325 = scalar_select %p324, %s23, 1
        %s326 = smul.addr %s325, 8
        %s327 = scalar_lea.vmem %s0, %s326
        %v328 = vld [vmem:[%s327] sm:$0xff]
        %v329 = vld [vmem:[%s1] sm:$0xff]
        %v330 = vld [vmem:[%s2] sm:$0xff]
        %v331 = vld [vmem:[%s2 + $0x8] sm:$0xff]
        %v332 = vld [vmem:[%s2 + $0x10] sm:$0xff]
        %v333 = vld [vmem:[%s2 + $0x18] sm:$0xff]
        %vm334 = vcmask 261120
        %v336 = vsel %vm334, %v328, 0
        %338 = vmatprep.subr.mxu0 0.0
        %v339 = vand.u32 %v330, 4294901760
        %340 = vmatpush1.msra.mxu0 %v339
        %341 = vmatprep.subr.mxu0 0.0
        %v342 = vand.u32 %v331, 4294901760
        %343 = vmatpush1.msra.mxu0 %v342
        %344 = vmatprep.subr.mxu0 0.0
        %v345 = vand.u32 %v332, 4294901760
        %346 = vmatpush1.msra.mxu0 %v345
        %347 = vmatprep.subr.mxu0 0.0
        %v348 = vand.u32 %v333, 4294901760
        %349 = vmatpush1.msra.mxu0 %v348
        %350 = vmatprep.subr.mxu0 0.0
        %351 = vmatpush1.msra.mxu0 0.0
        %352 = vmatprep.subr.mxu0 0.0
        %353 = vmatpush1.msra.mxu0 0.0
        %354 = vmatprep.subr.mxu0 0.0
        %355 = vmatpush1.msra.mxu0 0.0
        %356 = vmatprep.subr.mxu0 0.0
        %357 = vmatpush1.msra.mxu0 0.0
        %358 = vmatprep.subr.mxu0 0.0
        %359 = vmatpush1.msra.mxu0 0.0
        %360 = vmatprep.subr.mxu0 0.0
        %361 = vmatpush1.msra.mxu0 0.0
        %362 = vmatprep.subr.mxu0 0.0
        %363 = vmatpush1.msra.mxu0 0.0
        %364 = vmatprep.subr.mxu0 0.0
        %365 = vmatpush1.msra.mxu0 0.0
        %366 = vmatprep.subr.mxu0 0.0
        %367 = vmatpush1.msra.mxu0 0.0
        %368 = vmatprep.subr.mxu0 0.0
        %369 = vmatpush1.msra.mxu0 0.0
        %370 = vmatprep.subr.mxu0 0.0
        %371 = vmatpush1.msra.mxu0 0.0
        %372 = vmatprep.subr.mxu0 0.0
        %373 = vmatpush1.msra.mxu0 0.0
        %374 = vmatprep.subr.mxu0 0.0
        %375 = vmatpush1.msra.mxu0 0.0
        %376 = vmatprep.subr.mxu0 0.0
        %377 = vmatpush1.msra.mxu0 0.0
        %378 = vmatprep.subr.mxu0 0.0
        %379 = vmatpush1.msra.mxu0 0.0
        %380 = vmatprep.subr.mxu0 0.0
        %381 = vmatpush1.msra.mxu0 0.0
        %382 = vmatprep.subr.mxu0 0.0
        %383 = vmatpush1.msra.mxu0 0.0
        %384 = vmatprep.subr.mxu0 0.0
        %385 = vmatpush1.msra.mxu0 0.0
        %386 = vmatprep.subr.mxu0 0.0
        %387 = vmatpush1.msra.mxu0 0.0
        %388 = vmatprep.subr.mxu0 0.0
        %389 = vmatpush1.msra.mxu0 0.0
        %390 = vmatprep.subr.mxu0 0.0
        %391 = vmatpush1.msra.mxu0 0.0
        %392 = vmatprep.subr.mxu0 0.0
        %393 = vmatpush1.msra.mxu0 0.0
        %394 = vmatprep.subr.mxu0 0.0
        %395 = vmatpush1.msra.mxu0 0.0
        %396 = vmatprep.subr.mxu0 0.0
        %397 = vmatpush1.msra.mxu0 0.0
        %398 = vmatprep.subr.mxu0 0.0
        %399 = vmatpush1.msra.mxu0 0.0
        %400 = vmatprep.subr.mxu0 0.0
        %401 = vmatpush1.msra.mxu0 0.0
        %402 = vmatprep.subr.mxu0 0.0
        %403 = vmatpush1.msra.mxu0 0.0
        %404 = vmatprep.subr.mxu0 0.0
        %405 = vmatpush1.msra.mxu0 0.0
        %406 = vmatprep.mubr.f32.mxu0 0.0
        %v407 = vand.u32 %v336, 4294901760
        %v408 = vsub.f32 %v336, %v407
        %v409 = vand.u32 %v408, 4294901760
        %v410 = vsub.f32 %v408, %v409
        %v411 = vand.u32 %v410, 4294901760
        %412 = vmatmul.mubr.f32.gmra.mrb[0].mxu0 %v411
        %v413 = vpop.f32.mrb[0].mxu0
        %v414 = vadd.f32 0.0, %v413
        %v415 = vpop.f32.mrb[0].mxu0
        %416 = vdwg.mxu0
        %417 = vmatprep.subr.mxu0 0.0
        %v418 = vand.u32 %v330, 4294901760
        %v419 = vsub.f32 %v330, %v418
        %v420 = vand.u32 %v419, 4294901760
        %v421 = vsub.f32 %v419, %v420
        %v422 = vand.u32 %v421, 4294901760
        %423 = vmatpush1.msra.mxu0 %v422
        %424 = vmatprep.subr.mxu0 0.0
        %v425 = vand.u32 %v331, 4294901760
        %v426 = vsub.f32 %v331, %v425
        %v427 = vand.u32 %v426, 4294901760
        %v428 = vsub.f32 %v426, %v427
        %v429 = vand.u32 %v428, 4294901760
        %430 = vmatpush1.msra.mxu0 %v429
        %431 = vmatprep.subr.mxu0 0.0
        %v432 = vand.u32 %v332, 4294901760
        %v433 = vsub.f32 %v332, %v432
        %v434 = vand.u32 %v433, 4294901760
        %v435 = vsub.f32 %v433, %v434
        %v436 = vand.u32 %v435, 4294901760
        %437 = vmatpush1.msra.mxu0 %v436
        %438 = vmatprep.subr.mxu0 0.0
        %v439 = vand.u32 %v333, 4294901760
        %v440 = vsub.f32 %v333, %v439
        %v441 = vand.u32 %v440, 4294901760
        %v442 = vsub.f32 %v440, %v441
        %v443 = vand.u32 %v442, 4294901760
        %444 = vmatpush1.msra.mxu0 %v443
        %445 = vmatprep.subr.mxu0 0.0
        %446 = vmatpush1.msra.mxu0 0.0
        %447 = vmatprep.subr.mxu0 0.0
        %448 = vmatpush1.msra.mxu0 0.0
        %449 = vmatprep.subr.mxu0 0.0
        %450 = vmatpush1.msra.mxu0 0.0
        %451 = vmatprep.subr.mxu0 0.0
        %452 = vmatpush1.msra.mxu0 0.0
        %453 = vmatprep.subr.mxu0 0.0
        %454 = vmatpush1.msra.mxu0 0.0
        %455 = vmatprep.subr.mxu0 0.0
        %456 = vmatpush1.msra.mxu0 0.0
        %457 = vmatprep.subr.mxu0 0.0
        %458 = vmatpush1.msra.mxu0 0.0
        %459 = vmatprep.subr.mxu0 0.0
        %460 = vmatpush1.msra.mxu0 0.0
        %461 = vmatprep.subr.mxu0 0.0
        %462 = vmatpush1.msra.mxu0 0.0
        %463 = vmatprep.subr.mxu0 0.0
        %464 = vmatpush1.msra.mxu0 0.0
        %465 = vmatprep.subr.mxu0 0.0
        %466 = vmatpush1.msra.mxu0 0.0
        %467 = vmatprep.subr.mxu0 0.0
        %468 = vmatpush1.msra.mxu0 0.0
        %469 = vmatprep.subr.mxu0 0.0
        %470 = vmatpush1.msra.mxu0 0.0
        %471 = vmatprep.subr.mxu0 0.0
        %472 = vmatpush1.msra.mxu0 0.0
        %473 = vmatprep.subr.mxu0 0.0
        %474 = vmatpush1.msra.mxu0 0.0
        %475 = vmatprep.subr.mxu0 0.0
        %476 = vmatpush1.msra.mxu0 0.0
        %477 = vmatprep.subr.mxu0 0.0
        %478 = vmatpush1.msra.mxu0 0.0
        %479 = vmatprep.subr.mxu0 0.0
        %480 = vmatpush1.msra.mxu0 0.0
        %481 = vmatprep.subr.mxu0 0.0
        %482 = vmatpush1.msra.mxu0 0.0
        %483 = vmatprep.subr.mxu0 0.0
        %484 = vmatpush1.msra.mxu0 0.0
        %485 = vmatprep.subr.mxu0 0.0
        %486 = vmatpush1.msra.mxu0 0.0
        %487 = vmatprep.subr.mxu0 0.0
        %488 = vmatpush1.msra.mxu0 0.0
        %489 = vmatprep.subr.mxu0 0.0
        %490 = vmatpush1.msra.mxu0 0.0
        %491 = vmatprep.subr.mxu0 0.0
        %492 = vmatpush1.msra.mxu0 0.0
        %493 = vmatprep.subr.mxu0 0.0
        %494 = vmatpush1.msra.mxu0 0.0
        %495 = vmatprep.subr.mxu0 0.0
        %496 = vmatpush1.msra.mxu0 0.0
        %497 = vmatprep.subr.mxu0 0.0
        %498 = vmatpush1.msra.mxu0 0.0
        %499 = vmatprep.subr.mxu0 0.0
        %500 = vmatpush1.msra.mxu0 0.0
        %501 = vmatprep.mubr.f32.mxu0 0.0
        %v502 = vand.u32 %v336, 4294901760
        %503 = vmatmul.mubr.f32.gmra.mrb[0].mxu0 %v502
        %v504 = vpop.f32.mrb[0].mxu0
        %v505 = vadd.f32 %v414, %v504
        %v506 = vpop.f32.mrb[0].mxu0
        %507 = vdwg.mxu0
        %508 = vmatprep.subr.mxu0 0.0
        %v509 = vand.u32 %v330, 4294901760
        %v510 = vsub.f32 %v330, %v509
        %511 = vmatpush1.msra.mxu0 %v510
        %512 = vmatprep.subr.mxu0 0.0
        %v513 = vand.u32 %v331, 4294901760
        %v514 = vsub.f32 %v331, %v513
        %515 = vmatpush1.msra.mxu0 %v514
        %516 = vmatprep.subr.mxu0 0.0
        %v517 = vand.u32 %v332, 4294901760
        %v518 = vsub.f32 %v332, %v517
        %519 = vmatpush1.msra.mxu0 %v518
        %520 = vmatprep.subr.mxu0 0.0
        %v521 = vand.u32 %v333, 4294901760
        %v522 = vsub.f32 %v333, %v521
        %523 = vmatpush1.msra.mxu0 %v522
        %524 = vmatprep.subr.mxu0 0.0
        %525 = vmatpush1.msra.mxu0 0.0
        %526 = vmatprep.subr.mxu0 0.0
        %527 = vmatpush1.msra.mxu0 0.0
        %528 = vmatprep.subr.mxu0 0.0
        %529 = vmatpush1.msra.mxu0 0.0
        %530 = vmatprep.subr.mxu0 0.0
        %531 = vmatpush1.msra.mxu0 0.0
        %532 = vmatprep.subr.mxu0 0.0
        %533 = vmatpush1.msra.mxu0 0.0
        %534 = vmatprep.subr.mxu0 0.0
        %535 = vmatpush1.msra.mxu0 0.0
        %536 = vmatprep.subr.mxu0 0.0
        %537 = vmatpush1.msra.mxu0 0.0
        %538 = vmatprep.subr.mxu0 0.0
        %539 = vmatpush1.msra.mxu0 0.0
        %540 = vmatprep.subr.mxu0 0.0
        %541 = vmatpush1.msra.mxu0 0.0
        %542 = vmatprep.subr.mxu0 0.0
        %543 = vmatpush1.msra.mxu0 0.0
        %544 = vmatprep.subr.mxu0 0.0
        %545 = vmatpush1.msra.mxu0 0.0
        %546 = vmatprep.subr.mxu0 0.0
        %547 = vmatpush1.msra.mxu0 0.0
        %548 = vmatprep.subr.mxu0 0.0
        %549 = vmatpush1.msra.mxu0 0.0
        %550 = vmatprep.subr.mxu0 0.0
        %551 = vmatpush1.msra.mxu0 0.0
        %552 = vmatprep.subr.mxu0 0.0
        %553 = vmatpush1.msra.mxu0 0.0
        %554 = vmatprep.subr.mxu0 0.0
        %555 = vmatpush1.msra.mxu0 0.0
        %556 = vmatprep.subr.mxu0 0.0
        %557 = vmatpush1.msra.mxu0 0.0
        %558 = vmatprep.subr.mxu0 0.0
        %559 = vmatpush1.msra.mxu0 0.0
        %560 = vmatprep.subr.mxu0 0.0
        %561 = vmatpush1.msra.mxu0 0.0
        %562 = vmatprep.subr.mxu0 0.0
        %563 = vmatpush1.msra.mxu0 0.0
        %564 = vmatprep.subr.mxu0 0.0
        %565 = vmatpush1.msra.mxu0 0.0
        %566 = vmatprep.subr.mxu0 0.0
        %567 = vmatpush1.msra.mxu0 0.0
        %568 = vmatprep.subr.mxu0 0.0
        %569 = vmatpush1.msra.mxu0 0.0
        %570 = vmatprep.subr.mxu0 0.0
        %571 = vmatpush1.msra.mxu0 0.0
        %572 = vmatprep.subr.mxu0 0.0
        %573 = vmatpush1.msra.mxu0 0.0
        %574 = vmatprep.subr.mxu0 0.0
        %575 = vmatpush1.msra.mxu0 0.0
        %576 = vmatprep.subr.mxu0 0.0
        %577 = vmatpush1.msra.mxu0 0.0
        %578 = vmatprep.subr.mxu0 0.0
        %579 = vmatpush1.msra.mxu0 0.0
        %580 = vmatprep.mubr.f32.mxu0 0.0
        %v581 = vand.u32 %v336, 4294901760
        %v582 = vsub.f32 %v336, %v581
        %583 = vmatmul.mubr.f32.gmra.mrb[0].mxu0 %v582
        %v584 = vpop.f32.mrb[0].mxu0
        %v585 = vadd.f32 %v505, %v584
        %v586 = vpop.f32.mrb[0].mxu0
        %587 = vdwg.mxu0
        %588 = vmatprep.subr.mxu0 0.0
        %v589 = vand.u32 %v330, 4294901760
        %590 = vmatpush1.msra.mxu0 %v589
        %591 = vmatprep.subr.mxu0 0.0
        %v592 = vand.u32 %v331, 4294901760
        %593 = vmatpush1.msra.mxu0 %v592
        %594 = vmatprep.subr.mxu0 0.0
        %v595 = vand.u32 %v332, 4294901760
        %596 = vmatpush1.msra.mxu0 %v595
        %597 = vmatprep.subr.mxu0 0.0
        %v598 = vand.u32 %v333, 4294901760
        %599 = vmatpush1.msra.mxu0 %v598
        %600 = vmatprep.subr.mxu0 0.0
        %601 = vmatpush1.msra.mxu0 0.0
        %602 = vmatprep.subr.mxu0 0.0
        %603 = vmatpush1.msra.mxu0 0.0
        %604 = vmatprep.subr.mxu0 0.0
        %605 = vmatpush1.msra.mxu0 0.0
        %606 = vmatprep.subr.mxu0 0.0
        %607 = vmatpush1.msra.mxu0 0.0
        %608 = vmatprep.subr.mxu0 0.0
        %609 = vmatpush1.msra.mxu0 0.0
        %610 = vmatprep.subr.mxu0 0.0
        %611 = vmatpush1.msra.mxu0 0.0
        %612 = vmatprep.subr.mxu0 0.0
        %613 = vmatpush1.msra.mxu0 0.0
        %614 = vmatprep.subr.mxu0 0.0
        %615 = vmatpush1.msra.mxu0 0.0
        %616 = vmatprep.subr.mxu0 0.0
        %617 = vmatpush1.msra.mxu0 0.0
        %618 = vmatprep.subr.mxu0 0.0
        %619 = vmatpush1.msra.mxu0 0.0
        %620 = vmatprep.subr.mxu0 0.0
        %621 = vmatpush1.msra.mxu0 0.0
        %622 = vmatprep.subr.mxu0 0.0
        %623 = vmatpush1.msra.mxu0 0.0
        %624 = vmatprep.subr.mxu0 0.0
        %625 = vmatpush1.msra.mxu0 0.0
        %626 = vmatprep.subr.mxu0 0.0
        %627 = vmatpush1.msra.mxu0 0.0
        %628 = vmatprep.subr.mxu0 0.0
        %629 = vmatpush1.msra.mxu0 0.0
        %630 = vmatprep.subr.mxu0 0.0
        %631 = vmatpush1.msra.mxu0 0.0
        %632 = vmatprep.subr.mxu0 0.0
        %633 = vmatpush1.msra.mxu0 0.0
        %634 = vmatprep.subr.mxu0 0.0
        %635 = vmatpush1.msra.mxu0 0.0
        %636 = vmatprep.subr.mxu0 0.0
        %637 = vmatpush1.msra.mxu0 0.0
        %638 = vmatprep.subr.mxu0 0.0
        %639 = vmatpush1.msra.mxu0 0.0
        %640 = vmatprep.subr.mxu0 0.0
        %641 = vmatpush1.msra.mxu0 0.0
        %642 = vmatprep.subr.mxu0 0.0
        %643 = vmatpush1.msra.mxu0 0.0
        %644 = vmatprep.subr.mxu0 0.0
        %645 = vmatpush1.msra.mxu0 0.0
        %646 = vmatprep.subr.mxu0 0.0
        %647 = vmatpush1.msra.mxu0 0.0
        %648 = vmatprep.subr.mxu0 0.0
        %649 = vmatpush1.msra.mxu0 0.0
        %650 = vmatprep.subr.mxu0 0.0
        %651 = vmatpush1.msra.mxu0 0.0
        %652 = vmatprep.subr.mxu0 0.0
        %653 = vmatpush1.msra.mxu0 0.0
        %654 = vmatprep.subr.mxu0 0.0
        %655 = vmatpush1.msra.mxu0 0.0
        %656 = vmatprep.mubr.f32.mxu0 0.0
        %v657 = vand.u32 %v336, 4294901760
        %v658 = vsub.f32 %v336, %v657
        %v659 = vand.u32 %v658, 4294901760
        %660 = vmatmul.mubr.f32.gmra.mrb[0].mxu0 %v659
        %v661 = vpop.f32.mrb[0].mxu0
        %v662 = vadd.f32 %v585, %v661
        %v663 = vpop.f32.mrb[0].mxu0
        %664 = vdwg.mxu0
        %665 = vmatprep.subr.mxu0 0.0
        %v666 = vand.u32 %v330, 4294901760
        %v667 = vsub.f32 %v330, %v666
        %v668 = vand.u32 %v667, 4294901760
        %669 = vmatpush1.msra.mxu0 %v668
        %670 = vmatprep.subr.mxu0 0.0
        %v671 = vand.u32 %v331, 4294901760
        %v672 = vsub.f32 %v331, %v671
        %v673 = vand.u32 %v672, 4294901760
        %674 = vmatpush1.msra.mxu0 %v673
        %675 = vmatprep.subr.mxu0 0.0
        %v676 = vand.u32 %v332, 4294901760
        %v677 = vsub.f32 %v332, %v676
        %v678 = vand.u32 %v677, 4294901760
        %679 = vmatpush1.msra.mxu0 %v678
        %680 = vmatprep.subr.mxu0 0.0
        %v681 = vand.u32 %v333, 4294901760
        %v682 = vsub.f32 %v333, %v681
        %v683 = vand.u32 %v682, 4294901760
        %684 = vmatpush1.msra.mxu0 %v683
        %685 = vmatprep.subr.mxu0 0.0
        %686 = vmatpush1.msra.mxu0 0.0
        %687 = vmatprep.subr.mxu0 0.0
        %688 = vmatpush1.msra.mxu0 0.0
        %689 = vmatprep.subr.mxu0 0.0
        %690 = vmatpush1.msra.mxu0 0.0
        %691 = vmatprep.subr.mxu0 0.0
        %692 = vmatpush1.msra.mxu0 0.0
        %693 = vmatprep.subr.mxu0 0.0
        %694 = vmatpush1.msra.mxu0 0.0
        %695 = vmatprep.subr.mxu0 0.0
        %696 = vmatpush1.msra.mxu0 0.0
        %697 = vmatprep.subr.mxu0 0.0
        %698 = vmatpush1.msra.mxu0 0.0
        %699 = vmatprep.subr.mxu0 0.0
        %700 = vmatpush1.msra.mxu0 0.0
        %701 = vmatprep.subr.mxu0 0.0
        %702 = vmatpush1.msra.mxu0 0.0
        %703 = vmatprep.subr.mxu0 0.0
        %704 = vmatpush1.msra.mxu0 0.0
        %705 = vmatprep.subr.mxu0 0.0
        %706 = vmatpush1.msra.mxu0 0.0
        %707 = vmatprep.subr.mxu0 0.0
        %708 = vmatpush1.msra.mxu0 0.0
        %709 = vmatprep.subr.mxu0 0.0
        %710 = vmatpush1.msra.mxu0 0.0
        %711 = vmatprep.subr.mxu0 0.0
        %712 = vmatpush1.msra.mxu0 0.0
        %713 = vmatprep.subr.mxu0 0.0
        %714 = vmatpush1.msra.mxu0 0.0
        %715 = vmatprep.subr.mxu0 0.0
        %716 = vmatpush1.msra.mxu0 0.0
        %717 = vmatprep.subr.mxu0 0.0
        %718 = vmatpush1.msra.mxu0 0.0
        %719 = vmatprep.subr.mxu0 0.0
        %720 = vmatpush1.msra.mxu0 0.0
        %721 = vmatprep.subr.mxu0 0.0
        %722 = vmatpush1.msra.mxu0 0.0
        %723 = vmatprep.subr.mxu0 0.0
        %724 = vmatpush1.msra.mxu0 0.0
        %725 = vmatprep.subr.mxu0 0.0
        %726 = vmatpush1.msra.mxu0 0.0
        %727 = vmatprep.subr.mxu0 0.0
        %728 = vmatpush1.msra.mxu0 0.0
        %729 = vmatprep.subr.mxu0 0.0
        %730 = vmatpush1.msra.mxu0 0.0
        %731 = vmatprep.subr.mxu0 0.0
        %732 = vmatpush1.msra.mxu0 0.0
        %733 = vmatprep.subr.mxu0 0.0
        %734 = vmatpush1.msra.mxu0 0.0
        %735 = vmatprep.subr.mxu0 0.0
        %736 = vmatpush1.msra.mxu0 0.0
        %737 = vmatprep.subr.mxu0 0.0
        %738 = vmatpush1.msra.mxu0 0.0
        %739 = vmatprep.subr.mxu0 0.0
        %740 = vmatpush1.msra.mxu0 0.0
        %741 = vmatprep.mubr.f32.mxu0 0.0
        %v742 = vand.u32 %v336, 4294901760
        %743 = vmatmul.mubr.f32.gmra.mrb[0].mxu0 %v742
        %v744 = vpop.f32.mrb[0].mxu0
        %v745 = vadd.f32 %v662, %v744
        %v746 = vpop.f32.mrb[0].mxu0
        %747 = vdwg.mxu0
        %748 = vmatprep.subr.mxu0 0.0
        %v749 = vand.u32 %v330, 4294901760
        %750 = vmatpush1.msra.mxu0 %v749
        %751 = vmatprep.subr.mxu0 0.0
        %v752 = vand.u32 %v331, 4294901760
        %753 = vmatpush1.msra.mxu0 %v752
        %754 = vmatprep.subr.mxu0 0.0
        %v755 = vand.u32 %v332, 4294901760
        %756 = vmatpush1.msra.mxu0 %v755
        %757 = vmatprep.subr.mxu0 0.0
        %v758 = vand.u32 %v333, 4294901760
        %759 = vmatpush1.msra.mxu0 %v758
        %760 = vmatprep.subr.mxu0 0.0
        %761 = vmatpush1.msra.mxu0 0.0
        %762 = vmatprep.subr.mxu0 0.0
        %763 = vmatpush1.msra.mxu0 0.0
        %764 = vmatprep.subr.mxu0 0.0
        %765 = vmatpush1.msra.mxu0 0.0
        %766 = vmatprep.subr.mxu0 0.0
        %767 = vmatpush1.msra.mxu0 0.0
        %768 = vmatprep.subr.mxu0 0.0
        %769 = vmatpush1.msra.mxu0 0.0
        %770 = vmatprep.subr.mxu0 0.0
        %771 = vmatpush1.msra.mxu0 0.0
        %772 = vmatprep.subr.mxu0 0.0
        %773 = vmatpush1.msra.mxu0 0.0
        %774 = vmatprep.subr.mxu0 0.0
        %775 = vmatpush1.msra.mxu0 0.0
        %776 = vmatprep.subr.mxu0 0.0
        %777 = vmatpush1.msra.mxu0 0.0
        %778 = vmatprep.subr.mxu0 0.0
        %779 = vmatpush1.msra.mxu0 0.0
        %780 = vmatprep.subr.mxu0 0.0
        %781 = vmatpush1.msra.mxu0 0.0
        %782 = vmatprep.subr.mxu0 0.0
        %783 = vmatpush1.msra.mxu0 0.0
        %784 = vmatprep.subr.mxu0 0.0
        %785 = vmatpush1.msra.mxu0 0.0
        %786 = vmatprep.subr.mxu0 0.0
        %787 = vmatpush1.msra.mxu0 0.0
        %788 = vmatprep.subr.mxu0 0.0
        %789 = vmatpush1.msra.mxu0 0.0
        %790 = vmatprep.subr.mxu0 0.0
        %791 = vmatpush1.msra.mxu0 0.0
        %792 = vmatprep.subr.mxu0 0.0
        %793 = vmatpush1.msra.mxu0 0.0
        %794 = vmatprep.subr.mxu0 0.0
        %795 = vmatpush1.msra.mxu0 0.0
        %796 = vmatprep.subr.mxu0 0.0
        %797 = vmatpush1.msra.mxu0 0.0
        %798 = vmatprep.subr.mxu0 0.0
        %799 = vmatpush1.msra.mxu0 0.0
        %800 = vmatprep.subr.mxu0 0.0
        %801 = vmatpush1.msra.mxu0 0.0
        %802 = vmatprep.subr.mxu0 0.0
        %803 = vmatpush1.msra.mxu0 0.0
        %804 = vmatprep.subr.mxu0 0.0
        %805 = vmatpush1.msra.mxu0 0.0
        %806 = vmatprep.subr.mxu0 0.0
        %807 = vmatpush1.msra.mxu0 0.0
        %808 = vmatprep.subr.mxu0 0.0
        %809 = vmatpush1.msra.mxu0 0.0
        %810 = vmatprep.subr.mxu0 0.0
        %811 = vmatpush1.msra.mxu0 0.0
        %812 = vmatprep.subr.mxu0 0.0
        %813 = vmatpush1.msra.mxu0 0.0
        %814 = vmatprep.subr.mxu0 0.0
        %815 = vmatpush1.msra.mxu0 0.0
        %816 = vmatprep.mubr.f32.mxu0 0.0
        %v817 = vand.u32 %v336, 4294901760
        %818 = vmatmul.mubr.f32.gmra.mrb[0].mxu0 %v817
        %v819 = vpop.f32.mrb[0].mxu0
        %v820 = vadd.f32 %v745, %v819
        %v821 = vpop.f32.mrb[0].mxu0
        %822 = vdwg.mxu0
        %v823 = vld [vmem:[%s3] sm:$0xff]
        %v824 = vld [vmem:[%s3 + $0x8] sm:$0xff]
        %v825 = vld [vmem:[%s3 + $0x10] sm:$0xff]
        %v826 = vld [vmem:[%s3 + $0x18] sm:$0xff]
        %828 = vrot.lane.b32.xlu0 %v820, 96
        %v829 = vpop.permute.xlu0 %828
        %vm830 = vcmask 64512
        %v831 = vsel %vm830, %v820, 0
        %v833 = vsel %vm830, %v829, 0
        %835 = vmatprep.subr.mxu0 0.0
        %v836 = vand.u32 %v833, 4294901760
        %837 = vmatpush1.xpose.msra.mxu0 %v836
        %838 = vmatprep.subr.mxu0 0.0
        %839 = vmatpush1.xpose.msra.mxu0 0.0
        %840 = vmatprep.subr.mxu0 0.0
        %841 = vmatpush1.xpose.msra.mxu0 0.0
        %842 = vmatprep.subr.mxu0 0.0
        %843 = vmatpush1.xpose.msra.mxu0 0.0
        %844 = vmatprep.subr.mxu0 0.0
        %845 = vmatpush1.xpose.msra.mxu0 0.0
        %846 = vmatprep.subr.mxu0 0.0
        %847 = vmatpush1.xpose.msra.mxu0 0.0
        %848 = vmatprep.subr.mxu0 0.0
        %849 = vmatpush1.xpose.msra.mxu0 0.0
        %850 = vmatprep.subr.mxu0 0.0
        %851 = vmatpush1.xpose.msra.mxu0 0.0
        %852 = vmatprep.subr.mxu0 0.0
        %853 = vmatpush1.xpose.msra.mxu0 0.0
        %854 = vmatprep.subr.mxu0 0.0
        %855 = vmatpush1.xpose.msra.mxu0 0.0
        %856 = vmatprep.subr.mxu0 0.0
        %857 = vmatpush1.xpose.msra.mxu0 0.0
        %858 = vmatprep.subr.mxu0 0.0
        %859 = vmatpush1.xpose.msra.mxu0 0.0
        %860 = vmatprep.subr.mxu0 0.0
        %861 = vmatpush1.xpose.msra.mxu0 0.0
        %862 = vmatprep.subr.mxu0 0.0
        %863 = vmatpush1.xpose.msra.mxu0 0.0
        %864 = vmatprep.subr.mxu0 0.0
        %865 = vmatpush1.xpose.msra.mxu0 0.0
        %866 = vmatprep.subr.mxu0 0.0
        %867 = vmatpush1.xpose.msra.mxu0 0.0
        %868 = vmatprep.subr.mxu0 0.0
        %869 = vmatpush1.xpose.msra.mxu0 0.0
        %870 = vmatprep.subr.mxu0 0.0
        %871 = vmatpush1.xpose.msra.mxu0 0.0
        %872 = vmatprep.subr.mxu0 0.0
        %873 = vmatpush1.xpose.msra.mxu0 0.0
        %874 = vmatprep.subr.mxu0 0.0
        %875 = vmatpush1.xpose.msra.mxu0 0.0
        %876 = vmatprep.subr.mxu0 0.0
        %877 = vmatpush1.xpose.msra.mxu0 0.0
        %878 = vmatprep.subr.mxu0 0.0
        %879 = vmatpush1.xpose.msra.mxu0 0.0
        %880 = vmatprep.subr.mxu0 0.0
        %881 = vmatpush1.xpose.msra.mxu0 0.0
        %882 = vmatprep.subr.mxu0 0.0
        %883 = vmatpush1.xpose.msra.mxu0 0.0
        %884 = vmatprep.subr.mxu0 0.0
        %885 = vmatpush1.xpose.msra.mxu0 0.0
        %886 = vmatprep.subr.mxu0 0.0
        %887 = vmatpush1.xpose.msra.mxu0 0.0
        %888 = vmatprep.subr.mxu0 0.0
        %889 = vmatpush1.xpose.msra.mxu0 0.0
        %890 = vmatprep.subr.mxu0 0.0
        %891 = vmatpush1.xpose.msra.mxu0 0.0
        %892 = vmatprep.subr.mxu0 0.0
        %893 = vmatpush1.xpose.msra.mxu0 0.0
        %894 = vmatprep.subr.mxu0 0.0
        %895 = vmatpush1.xpose.msra.mxu0 0.0
        %896 = vmatprep.subr.mxu0 0.0
        %897 = vmatpush1.xpose.msra.mxu0 0.0
        %898 = vmatprep.subr.mxu0 0.0
        %899 = vmatpush1.xpose.msra.mxu0 0.0
        %900 = vmatprep.mubr.f32.mxu0 0.0
        %v901 = vand.u32 %v831, 4294901760
        %v902 = vsub.f32 %v831, %v901
        %v903 = vand.u32 %v902, 4294901760
        %v904 = vsub.f32 %v902, %v903
        %v905 = vand.u32 %v904, 4294901760
        %906 = vmatmul.mubr.f32.gmra.mrb[0].mxu0 %v905
        %v907 = vpop.f32.mrb[0].mxu0
        %v908 = vadd.f32 %v329, %v907
        %v909 = vpop.f32.mrb[0].mxu0
        %910 = vdwg.mxu0
        %911 = vmatprep.subr.mxu0 0.0
        %v912 = vand.u32 %v833, 4294901760
        %v913 = vsub.f32 %v833, %v912
        %v914 = vand.u32 %v913, 4294901760
        %v915 = vsub.f32 %v913, %v914
        %v916 = vand.u32 %v915, 4294901760
        %917 = vmatpush1.xpose.msra.mxu0 %v916
        %918 = vmatprep.subr.mxu0 0.0
        %919 = vmatpush1.xpose.msra.mxu0 0.0
        %920 = vmatprep.subr.mxu0 0.0
        %921 = vmatpush1.xpose.msra.mxu0 0.0
        %922 = vmatprep.subr.mxu0 0.0
        %923 = vmatpush1.xpose.msra.mxu0 0.0
        %924 = vmatprep.subr.mxu0 0.0
        %925 = vmatpush1.xpose.msra.mxu0 0.0
        %926 = vmatprep.subr.mxu0 0.0
        %927 = vmatpush1.xpose.msra.mxu0 0.0
        %928 = vmatprep.subr.mxu0 0.0
        %929 = vmatpush1.xpose.msra.mxu0 0.0
        %930 = vmatprep.subr.mxu0 0.0
        %931 = vmatpush1.xpose.msra.mxu0 0.0
        %932 = vmatprep.subr.mxu0 0.0
        %933 = vmatpush1.xpose.msra.mxu0 0.0
        %934 = vmatprep.subr.mxu0 0.0
        %935 = vmatpush1.xpose.msra.mxu0 0.0
        %936 = vmatprep.subr.mxu0 0.0
        %937 = vmatpush1.xpose.msra.mxu0 0.0
        %938 = vmatprep.subr.mxu0 0.0
        %939 = vmatpush1.xpose.msra.mxu0 0.0
        %940 = vmatprep.subr.mxu0 0.0
        %941 = vmatpush1.xpose.msra.mxu0 0.0
        %942 = vmatprep.subr.mxu0 0.0
        %943 = vmatpush1.xpose.msra.mxu0 0.0
        %944 = vmatprep.subr.mxu0 0.0
        %945 = vmatpush1.xpose.msra.mxu0 0.0
        %946 = vmatprep.subr.mxu0 0.0
        %947 = vmatpush1.xpose.msra.mxu0 0.0
        %948 = vmatprep.subr.mxu0 0.0
        %949 = vmatpush1.xpose.msra.mxu0 0.0
        %950 = vmatprep.subr.mxu0 0.0
        %951 = vmatpush1.xpose.msra.mxu0 0.0
        %952 = vmatprep.subr.mxu0 0.0
        %953 = vmatpush1.xpose.msra.mxu0 0.0
        %954 = vmatprep.subr.mxu0 0.0
        %955 = vmatpush1.xpose.msra.mxu0 0.0
        %956 = vmatprep.subr.mxu0 0.0
        %957 = vmatpush1.xpose.msra.mxu0 0.0
        %958 = vmatprep.subr.mxu0 0.0
        %959 = vmatpush1.xpose.msra.mxu0 0.0
        %960 = vmatprep.subr.mxu0 0.0
        %961 = vmatpush1.xpose.msra.mxu0 0.0
        %962 = vmatprep.subr.mxu0 0.0
        %963 = vmatpush1.xpose.msra.mxu0 0.0
        %964 = vmatprep.subr.mxu0 0.0
        %965 = vmatpush1.xpose.msra.mxu0 0.0
        %966 = vmatprep.subr.mxu0 0.0
        %967 = vmatpush1.xpose.msra.mxu0 0.0
        %968 = vmatprep.subr.mxu0 0.0
        %969 = vmatpush1.xpose.msra.mxu0 0.0
        %970 = vmatprep.subr.mxu0 0.0
        %971 = vmatpush1.xpose.msra.mxu0 0.0
        %972 = vmatprep.subr.mxu0 0.0
        %973 = vmatpush1.xpose.msra.mxu0 0.0
        %974 = vmatprep.subr.mxu0 0.0
        %975 = vmatpush1.xpose.msra.mxu0 0.0
        %976 = vmatprep.subr.mxu0 0.0
        %977 = vmatpush1.xpose.msra.mxu0 0.0
        %978 = vmatprep.subr.mxu0 0.0
        %979 = vmatpush1.xpose.msra.mxu0 0.0
        %980 = vmatprep.mubr.f32.mxu0 0.0
        %v981 = vand.u32 %v831, 4294901760
        %982 = vmatmul.mubr.f32.gmra.mrb[0].mxu0 %v981
        %v983 = vpop.f32.mrb[0].mxu0
        %v984 = vadd.f32 %v908, %v983
        %v985 = vpop.f32.mrb[0].mxu0
        %986 = vdwg.mxu0
        %987 = vmatprep.subr.mxu0 0.0
        %v988 = vand.u32 %v833, 4294901760
        %v989 = vsub.f32 %v833, %v988
        %990 = vmatpush1.xpose.msra.mxu0 %v989
        %991 = vmatprep.subr.mxu0 0.0
        %992 = vmatpush1.xpose.msra.mxu0 0.0
        %993 = vmatprep.subr.mxu0 0.0
        %994 = vmatpush1.xpose.msra.mxu0 0.0
        %995 = vmatprep.subr.mxu0 0.0
        %996 = vmatpush1.xpose.msra.mxu0 0.0
        %997 = vmatprep.subr.mxu0 0.0
        %998 = vmatpush1.xpose.msra.mxu0 0.0
        %999 = vmatprep.subr.mxu0 0.0
        %1000 = vmatpush1.xpose.msra.mxu0 0.0
        %1001 = vmatprep.subr.mxu0 0.0
        %1002 = vmatpush1.xpose.msra.mxu0 0.0
        %1003 = vmatprep.subr.mxu0 0.0
        %1004 = vmatpush1.xpose.msra.mxu0 0.0
        %1005 = vmatprep.subr.mxu0 0.0
        %1006 = vmatpush1.xpose.msra.mxu0 0.0
        %1007 = vmatprep.subr.mxu0 0.0
        %1008 = vmatpush1.xpose.msra.mxu0 0.0
        %1009 = vmatprep.subr.mxu0 0.0
        %1010 = vmatpush1.xpose.msra.mxu0 0.0
        %1011 = vmatprep.subr.mxu0 0.0
        %1012 = vmatpush1.xpose.msra.mxu0 0.0
        %1013 = vmatprep.subr.mxu0 0.0
        %1014 = vmatpush1.xpose.msra.mxu0 0.0
        %1015 = vmatprep.subr.mxu0 0.0
        %1016 = vmatpush1.xpose.msra.mxu0 0.0
        %1017 = vmatprep.subr.mxu0 0.0
        %1018 = vmatpush1.xpose.msra.mxu0 0.0
        %1019 = vmatprep.subr.mxu0 0.0
        %1020 = vmatpush1.xpose.msra.mxu0 0.0
        %1021 = vmatprep.subr.mxu0 0.0
        %1022 = vmatpush1.xpose.msra.mxu0 0.0
        %1023 = vmatprep.subr.mxu0 0.0
        %1024 = vmatpush1.xpose.msra.mxu0 0.0
        %1025 = vmatprep.subr.mxu0 0.0
        %1026 = vmatpush1.xpose.msra.mxu0 0.0
        %1027 = vmatprep.subr.mxu0 0.0
        %1028 = vmatpush1.xpose.msra.mxu0 0.0
        %1029 = vmatprep.subr.mxu0 0.0
        %1030 = vmatpush1.xpose.msra.mxu0 0.0
        %1031 = vmatprep.subr.mxu0 0.0
        %1032 = vmatpush1.xpose.msra.mxu0 0.0
        %1033 = vmatprep.subr.mxu0 0.0
        %1034 = vmatpush1.xpose.msra.mxu0 0.0
        %1035 = vmatprep.subr.mxu0 0.0
        %1036 = vmatpush1.xpose.msra.mxu0 0.0
        %1037 = vmatprep.subr.mxu0 0.0
        %1038 = vmatpush1.xpose.msra.mxu0 0.0
        %1039 = vmatprep.subr.mxu0 0.0
        %1040 = vmatpush1.xpose.msra.mxu0 0.0
        %1041 = vmatprep.subr.mxu0 0.0
        %1042 = vmatpush1.xpose.msra.mxu0 0.0
        %1043 = vmatprep.subr.mxu0 0.0
        %1044 = vmatpush1.xpose.msra.mxu0 0.0
        %1045 = vmatprep.subr.mxu0 0.0
        %1046 = vmatpush1.xpose.msra.mxu0 0.0
        %1047 = vmatprep.subr.mxu0 0.0
        %1048 = vmatpush1.xpose.msra.mxu0 0.0
        %1049 = vmatprep.subr.mxu0 0.0
        %1050 = vmatpush1.xpose.msra.mxu0 0.0
        %1051 = vmatprep.subr.mxu0 0.0
        %1052 = vmatpush1.xpose.msra.mxu0 0.0
        %1053 = vmatprep.mubr.f32.mxu0 0.0
        %v1054 = vand.u32 %v831, 4294901760
        %v1055 = vsub.f32 %v831, %v1054
        %1056 = vmatmul.mubr.f32.gmra.mrb[0].mxu0 %v1055
        %v1057 = vpop.f32.mrb[0].mxu0
        %v1058 = vadd.f32 %v984, %v1057
        %v1059 = vpop.f32.mrb[0].mxu0
        %1060 = vdwg.mxu0
        %1061 = vmatprep.subr.mxu0 0.0
        %v1062 = vand.u32 %v833, 4294901760
        %1063 = vmatpush1.xpose.msra.mxu0 %v1062
        %1064 = vmatprep.subr.mxu0 0.0
        %1065 = vmatpush1.xpose.msra.mxu0 0.0
        %1066 = vmatprep.subr.mxu0 0.0
        %1067 = vmatpush1.xpose.msra.mxu0 0.0
        %1068 = vmatprep.subr.mxu0 0.0
        %1069 = vmatpush1.xpose.msra.mxu0 0.0
        %1070 = vmatprep.subr.mxu0 0.0
        %1071 = vmatpush1.xpose.msra.mxu0 0.0
        %1072 = vmatprep.subr.mxu0 0.0
        %1073 = vmatpush1.xpose.msra.mxu0 0.0
        %1074 = vmatprep.subr.mxu0 0.0
        %1075 = vmatpush1.xpose.msra.mxu0 0.0
        %1076 = vmatprep.subr.mxu0 0.0
        %1077 = vmatpush1.xpose.msra.mxu0 0.0
        %1078 = vmatprep.subr.mxu0 0.0
        %1079 = vmatpush1.xpose.msra.mxu0 0.0
        %1080 = vmatprep.subr.mxu0 0.0
        %1081 = vmatpush1.xpose.msra.mxu0 0.0
        %1082 = vmatprep.subr.mxu0 0.0
        %1083 = vmatpush1.xpose.msra.mxu0 0.0
        %1084 = vmatprep.subr.mxu0 0.0
        %1085 = vmatpush1.xpose.msra.mxu0 0.0
        %1086 = vmatprep.subr.mxu0 0.0
        %1087 = vmatpush1.xpose.msra.mxu0 0.0
        %1088 = vmatprep.subr.mxu0 0.0
        %1089 = vmatpush1.xpose.msra.mxu0 0.0
        %1090 = vmatprep.subr.mxu0 0.0
        %1091 = vmatpush1.xpose.msra.mxu0 0.0
        %1092 = vmatprep.subr.mxu0 0.0
        %1093 = vmatpush1.xpose.msra.mxu0 0.0
        %1094 = vmatprep.subr.mxu0 0.0
        %1095 = vmatpush1.xpose.msra.mxu0 0.0
        %1096 = vmatprep.subr.mxu0 0.0
        %1097 = vmatpush1.xpose.msra.mxu0 0.0
        %1098 = vmatprep.subr.mxu0 0.0
        %1099 = vmatpush1.xpose.msra.mxu0 0.0
        %1100 = vmatprep.subr.mxu0 0.0
        %1101 = vmatpush1.xpose.msra.mxu0 0.0
        %1102 = vmatprep.subr.mxu0 0.0
        %1103 = vmatpush1.xpose.msra.mxu0 0.0
        %1104 = vmatprep.subr.mxu0 0.0
        %1105 = vmatpush1.xpose.msra.mxu0 0.0
        %1106 = vmatprep.subr.mxu0 0.0
        %1107 = vmatpush1.xpose.msra.mxu0 0.0
        %1108 = vmatprep.subr.mxu0 0.0
        %1109 = vmatpush1.xpose.msra.mxu0 0.0
        %1110 = vmatprep.subr.mxu0 0.0
        %1111 = vmatpush1.xpose.msra.mxu0 0.0
        %1112 = vmatprep.subr.mxu0 0.0
        %1113 = vmatpush1.xpose.msra.mxu0 0.0
        %1114 = vmatprep.subr.mxu0 0.0
        %1115 = vmatpush1.xpose.msra.mxu0 0.0
        %1116 = vmatprep.subr.mxu0 0.0
        %1117 = vmatpush1.xpose.msra.mxu0 0.0
        %1118 = vmatprep.subr.mxu0 0.0
        %1119 = vmatpush1.xpose.msra.mxu0 0.0
        %1120 = vmatprep.subr.mxu0 0.0
        %1121 = vmatpush1.xpose.msra.mxu0 0.0
        %1122 = vmatprep.subr.mxu0 0.0
        %1123 = vmatpush1.xpose.msra.mxu0 0.0
        %1124 = vmatprep.subr.mxu0 0.0
        %1125 = vmatpush1.xpose.msra.mxu0 0.0
        %1126 = vmatprep.mubr.f32.mxu0 0.0
        %v1127 = vand.u32 %v831, 4294901760
        %v1128 = vsub.f32 %v831, %v1127
        %v1129 = vand.u32 %v1128, 4294901760
        %1130 = vmatmul.mubr.f32.gmra.mrb[0].mxu0 %v1129
        %v1131 = vpop.f32.mrb[0].mxu0
        %v1132 = vadd.f32 %v1058, %v1131
        %v1133 = vpop.f32.mrb[0].mxu0
        %1134 = vdwg.mxu0
        %1135 = vmatprep.subr.mxu0 0.0
        %v1136 = vand.u32 %v833, 4294901760
        %v1137 = vsub.f32 %v833, %v1136
        %v1138 = vand.u32 %v1137, 4294901760
        %1139 = vmatpush1.xpose.msra.mxu0 %v1138
        %1140 = vmatprep.subr.mxu0 0.0
        %1141 = vmatpush1.xpose.msra.mxu0 0.0
        %1142 = vmatprep.subr.mxu0 0.0
        %1143 = vmatpush1.xpose.msra.mxu0 0.0
        %1144 = vmatprep.subr.mxu0 0.0
        %1145 = vmatpush1.xpose.msra.mxu0 0.0
        %1146 = vmatprep.subr.mxu0 0.0
        %1147 = vmatpush1.xpose.msra.mxu0 0.0
        %1148 = vmatprep.subr.mxu0 0.0
        %1149 = vmatpush1.xpose.msra.mxu0 0.0
        %1150 = vmatprep.subr.mxu0 0.0
        %1151 = vmatpush1.xpose.msra.mxu0 0.0
        %1152 = vmatprep.subr.mxu0 0.0
        %1153 = vmatpush1.xpose.msra.mxu0 0.0
        %1154 = vmatprep.subr.mxu0 0.0
        %1155 = vmatpush1.xpose.msra.mxu0 0.0
        %1156 = vmatprep.subr.mxu0 0.0
        %1157 = vmatpush1.xpose.msra.mxu0 0.0
        %1158 = vmatprep.subr.mxu0 0.0
        %1159 = vmatpush1.xpose.msra.mxu0 0.0
        %1160 = vmatprep.subr.mxu0 0.0
        %1161 = vmatpush1.xpose.msra.mxu0 0.0
        %1162 = vmatprep.subr.mxu0 0.0
        %1163 = vmatpush1.xpose.msra.mxu0 0.0
        %1164 = vmatprep.subr.mxu0 0.0
        %1165 = vmatpush1.xpose.msra.mxu0 0.0
        %1166 = vmatprep.subr.mxu0 0.0
        %1167 = vmatpush1.xpose.msra.mxu0 0.0
        %1168 = vmatprep.subr.mxu0 0.0
        %1169 = vmatpush1.xpose.msra.mxu0 0.0
        %1170 = vmatprep.subr.mxu0 0.0
        %1171 = vmatpush1.xpose.msra.mxu0 0.0
        %1172 = vmatprep.subr.mxu0 0.0
        %1173 = vmatpush1.xpose.msra.mxu0 0.0
        %1174 = vmatprep.subr.mxu0 0.0
        %1175 = vmatpush1.xpose.msra.mxu0 0.0
        %1176 = vmatprep.subr.mxu0 0.0
        %1177 = vmatpush1.xpose.msra.mxu0 0.0
        %1178 = vmatprep.subr.mxu0 0.0
        %1179 = vmatpush1.xpose.msra.mxu0 0.0
        %1180 = vmatprep.subr.mxu0 0.0
        %1181 = vmatpush1.xpose.msra.mxu0 0.0
        %1182 = vmatprep.subr.mxu0 0.0
        %1183 = vmatpush1.xpose.msra.mxu0 0.0
        %1184 = vmatprep.subr.mxu0 0.0
        %1185 = vmatpush1.xpose.msra.mxu0 0.0
        %1186 = vmatprep.subr.mxu0 0.0
        %1187 = vmatpush1.xpose.msra.mxu0 0.0
        %1188 = vmatprep.subr.mxu0 0.0
        %1189 = vmatpush1.xpose.msra.mxu0 0.0
        %1190 = vmatprep.subr.mxu0 0.0
        %1191 = vmatpush1.xpose.msra.mxu0 0.0
        %1192 = vmatprep.subr.mxu0 0.0
        %1193 = vmatpush1.xpose.msra.mxu0 0.0
        %1194 = vmatprep.subr.mxu0 0.0
        %1195 = vmatpush1.xpose.msra.mxu0 0.0
        %1196 = vmatprep.subr.mxu0 0.0
        %1197 = vmatpush1.xpose.msra.mxu0 0.0
        %1198 = vmatprep.subr.mxu0 0.0
        %1199 = vmatpush1.xpose.msra.mxu0 0.0
        %1200 = vmatprep.subr.mxu0 0.0
        %1201 = vmatpush1.xpose.msra.mxu0 0.0
        %1202 = vmatprep.mubr.f32.mxu0 0.0
        %v1203 = vand.u32 %v831, 4294901760
        %1204 = vmatmul.mubr.f32.gmra.mrb[0].mxu0 %v1203
        %v1205 = vpop.f32.mrb[0].mxu0
        %v1206 = vadd.f32 %v1132, %v1205
        %v1207 = vpop.f32.mrb[0].mxu0
        %1208 = vdwg.mxu0
        %1209 = vmatprep.subr.mxu0 0.0
        %v1210 = vand.u32 %v833, 4294901760
        %1211 = vmatpush1.xpose.msra.mxu0 %v1210
        %1212 = vmatprep.subr.mxu0 0.0
        %1213 = vmatpush1.xpose.msra.mxu0 0.0
        %1214 = vmatprep.subr.mxu0 0.0
        %1215 = vmatpush1.xpose.msra.mxu0 0.0
        %1216 = vmatprep.subr.mxu0 0.0
        %1217 = vmatpush1.xpose.msra.mxu0 0.0
        %1218 = vmatprep.subr.mxu0 0.0
        %1219 = vmatpush1.xpose.msra.mxu0 0.0
        %1220 = vmatprep.subr.mxu0 0.0
        %1221 = vmatpush1.xpose.msra.mxu0 0.0
        %1222 = vmatprep.subr.mxu0 0.0
        %1223 = vmatpush1.xpose.msra.mxu0 0.0
        %1224 = vmatprep.subr.mxu0 0.0
        %1225 = vmatpush1.xpose.msra.mxu0 0.0
        %1226 = vmatprep.subr.mxu0 0.0
        %1227 = vmatpush1.xpose.msra.mxu0 0.0
        %1228 = vmatprep.subr.mxu0 0.0
        %1229 = vmatpush1.xpose.msra.mxu0 0.0
        %1230 = vmatprep.subr.mxu0 0.0
        %1231 = vmatpush1.xpose.msra.mxu0 0.0
        %1232 = vmatprep.subr.mxu0 0.0
        %1233 = vmatpush1.xpose.msra.mxu0 0.0
        %1234 = vmatprep.subr.mxu0 0.0
        %1235 = vmatpush1.xpose.msra.mxu0 0.0
        %1236 = vmatprep.subr.mxu0 0.0
        %1237 = vmatpush1.xpose.msra.mxu0 0.0
        %1238 = vmatprep.subr.mxu0 0.0
        %1239 = vmatpush1.xpose.msra.mxu0 0.0
        %1240 = vmatprep.subr.mxu0 0.0
        %1241 = vmatpush1.xpose.msra.mxu0 0.0
        %1242 = vmatprep.subr.mxu0 0.0
        %1243 = vmatpush1.xpose.msra.mxu0 0.0
        %1244 = vmatprep.subr.mxu0 0.0
        %1245 = vmatpush1.xpose.msra.mxu0 0.0
        %1246 = vmatprep.subr.mxu0 0.0
        %1247 = vmatpush1.xpose.msra.mxu0 0.0
        %1248 = vmatprep.subr.mxu0 0.0
        %1249 = vmatpush1.xpose.msra.mxu0 0.0
        %1250 = vmatprep.subr.mxu0 0.0
        %1251 = vmatpush1.xpose.msra.mxu0 0.0
        %1252 = vmatprep.subr.mxu0 0.0
        %1253 = vmatpush1.xpose.msra.mxu0 0.0
        %1254 = vmatprep.subr.mxu0 0.0
        %1255 = vmatpush1.xpose.msra.mxu0 0.0
        %1256 = vmatprep.subr.mxu0 0.0
        %1257 = vmatpush1.xpose.msra.mxu0 0.0
        %1258 = vmatprep.subr.mxu0 0.0
        %1259 = vmatpush1.xpose.msra.mxu0 0.0
        %1260 = vmatprep.subr.mxu0 0.0
        %1261 = vmatpush1.xpose.msra.mxu0 0.0
        %1262 = vmatprep.subr.mxu0 0.0
        %1263 = vmatpush1.xpose.msra.mxu0 0.0
        %1264 = vmatprep.subr.mxu0 0.0
        %1265 = vmatpush1.xpose.msra.mxu0 0.0
        %1266 = vmatprep.subr.mxu0 0.0
        %1267 = vmatpush1.xpose.msra.mxu0 0.0
        %1268 = vmatprep.subr.mxu0 0.0
        %1269 = vmatpush1.xpose.msra.mxu0 0.0
        %1270 = vmatprep.subr.mxu0 0.0
        %1271 = vmatpush1.xpose.msra.mxu0 0.0
        %1272 = vmatprep.subr.mxu0 0.0
        %1273 = vmatpush1.xpose.msra.mxu0 0.0
        %1274 = vmatprep.mubr.f32.mxu0 0.0
        %v1275 = vand.u32 %v831, 4294901760
        %1276 = vmatmul.mubr.f32.gmra.mrb[0].mxu0 %v1275
        %v1277 = vpop.f32.mrb[0].mxu0
        %v1278 = vadd.f32 %v1206, %v1277
        %v1279 = vpop.f32.mrb[0].mxu0
        %1280 = vdwg.mxu0
        %v1281 = vsel %vm830, %v1278, -inf
        %1282 = vmax.xlane.f32.xlu0 %v1281
        %v1283 = vpop.xlane.xlu0 %1282
        %v1284 = vsub.f32 %v1278, %v1283
        %v1285 = vmul.f32 %v1284, 1.442695
        %v1286 = vpow.pop %v1285
        %v1287 = vsel %vm830, %v1286, 0.0
        %1288 = vadd.xlane.f32.xlu0 %v1287
        %v1289 = vpop.xlane.xlu0 %1288
        %v1290 = vrcp.pop %v1289
        %v1291 = vmul.f32 %v1286, %v1290
        %1292 = vrot.lane.b32.xlu0 %v820, 64
        %v1293 = vpop.permute.xlu0 %1292
        %v1296 = vsel %vm830, %v1291, 0
        %1298 = vmatprep.subr.mxu0 0.0
        %v1299 = vand.u32 %v1293, 4294901760
        %1300 = vmatpush1.msra.mxu0 %v1299
        %1301 = vmatprep.subr.mxu0 0.0
        %1302 = vmatpush1.msra.mxu0 0.0
        %1303 = vmatprep.subr.mxu0 0.0
        %1304 = vmatpush1.msra.mxu0 0.0
        %1305 = vmatprep.subr.mxu0 0.0
        %1306 = vmatpush1.msra.mxu0 0.0
        %1307 = vmatprep.subr.mxu0 0.0
        %1308 = vmatpush1.msra.mxu0 0.0
        %1309 = vmatprep.subr.mxu0 0.0
        %1310 = vmatpush1.msra.mxu0 0.0
        %1311 = vmatprep.subr.mxu0 0.0
        %1312 = vmatpush1.msra.mxu0 0.0
        %1313 = vmatprep.subr.mxu0 0.0
        %1314 = vmatpush1.msra.mxu0 0.0
        %1315 = vmatprep.subr.mxu0 0.0
        %1316 = vmatpush1.msra.mxu0 0.0
        %1317 = vmatprep.subr.mxu0 0.0
        %1318 = vmatpush1.msra.mxu0 0.0
        %1319 = vmatprep.subr.mxu0 0.0
        %1320 = vmatpush1.msra.mxu0 0.0
        %1321 = vmatprep.subr.mxu0 0.0
        %1322 = vmatpush1.msra.mxu0 0.0
        %1323 = vmatprep.subr.mxu0 0.0
        %1324 = vmatpush1.msra.mxu0 0.0
        %1325 = vmatprep.subr.mxu0 0.0
        %1326 = vmatpush1.msra.mxu0 0.0
        %1327 = vmatprep.subr.mxu0 0.0
        %1328 = vmatpush1.msra.mxu0 0.0
        %1329 = vmatprep.subr.mxu0 0.0
        %1330 = vmatpush1.msra.mxu0 0.0
        %1331 = vmatprep.subr.mxu0 0.0
        %1332 = vmatpush1.msra.mxu0 0.0
        %1333 = vmatprep.subr.mxu0 0.0
        %1334 = vmatpush1.msra.mxu0 0.0
        %1335 = vmatprep.subr.mxu0 0.0
        %1336 = vmatpush1.msra.mxu0 0.0
        %1337 = vmatprep.subr.mxu0 0.0
        %1338 = vmatpush1.msra.mxu0 0.0
        %1339 = vmatprep.subr.mxu0 0.0
        %1340 = vmatpush1.msra.mxu0 0.0
        %1341 = vmatprep.subr.mxu0 0.0
        %1342 = vmatpush1.msra.mxu0 0.0
        %1343 = vmatprep.subr.mxu0 0.0
        %1344 = vmatpush1.msra.mxu0 0.0
        %1345 = vmatprep.subr.mxu0 0.0
        %1346 = vmatpush1.msra.mxu0 0.0
        %1347 = vmatprep.subr.mxu0 0.0
        %1348 = vmatpush1.msra.mxu0 0.0
        %1349 = vmatprep.subr.mxu0 0.0
        %1350 = vmatpush1.msra.mxu0 0.0
        %1351 = vmatprep.subr.mxu0 0.0
        %1352 = vmatpush1.msra.mxu0 0.0
        %1353 = vmatprep.subr.mxu0 0.0
        %1354 = vmatpush1.msra.mxu0 0.0
        %1355 = vmatprep.subr.mxu0 0.0
        %1356 = vmatpush1.msra.mxu0 0.0
        %1357 = vmatprep.subr.mxu0 0.0
        %1358 = vmatpush1.msra.mxu0 0.0
        %1359 = vmatprep.subr.mxu0 0.0
        %1360 = vmatpush1.msra.mxu0 0.0
        %1361 = vmatprep.subr.mxu0 0.0
        %1362 = vmatpush1.msra.mxu0 0.0
        %1363 = vmatprep.mubr.f32.mxu0 0.0
        %v1364 = vand.u32 %v1296, 4294901760
        %v1365 = vsub.f32 %v1296, %v1364
        %v1366 = vand.u32 %v1365, 4294901760
        %v1367 = vsub.f32 %v1365, %v1366
        %v1368 = vand.u32 %v1367, 4294901760
        %1369 = vmatmul.mubr.f32.gmra.mrb[0].mxu0 %v1368
        %v1370 = vpop.f32.mrb[0].mxu0
        %v1371 = vadd.f32 0.0, %v1370
        %v1372 = vpop.f32.mrb[0].mxu0
        %1373 = vdwg.mxu0
        %1374 = vmatprep.subr.mxu0 0.0
        %v1375 = vand.u32 %v1293, 4294901760
        %v1376 = vsub.f32 %v1293, %v1375
        %v1377 = vand.u32 %v1376, 4294901760
        %v1378 = vsub.f32 %v1376, %v1377
        %v1379 = vand.u32 %v1378, 4294901760
        %1380 = vmatpush1.msra.mxu0 %v1379
        %1381 = vmatprep.subr.mxu0 0.0
        %1382 = vmatpush1.msra.mxu0 0.0
        %1383 = vmatprep.subr.mxu0 0.0
        %1384 = vmatpush1.msra.mxu0 0.0
        %1385 = vmatprep.subr.mxu0 0.0
        %1386 = vmatpush1.msra.mxu0 0.0
        %1387 = vmatprep.subr.mxu0 0.0
        %1388 = vmatpush1.msra.mxu0 0.0
        %1389 = vmatprep.subr.mxu0 0.0
        %1390 = vmatpush1.msra.mxu0 0.0
        %1391 = vmatprep.subr.mxu0 0.0
        %1392 = vmatpush1.msra.mxu0 0.0
        %1393 = vmatprep.subr.mxu0 0.0
        %1394 = vmatpush1.msra.mxu0 0.0
        %1395 = vmatprep.subr.mxu0 0.0
        %1396 = vmatpush1.msra.mxu0 0.0
        %1397 = vmatprep.subr.mxu0 0.0
        %1398 = vmatpush1.msra.mxu0 0.0
        %1399 = vmatprep.subr.mxu0 0.0
        %1400 = vmatpush1.msra.mxu0 0.0
        %1401 = vmatprep.subr.mxu0 0.0
        %1402 = vmatpush1.msra.mxu0 0.0
        %1403 = vmatprep.subr.mxu0 0.0
        %1404 = vmatpush1.msra.mxu0 0.0
        %1405 = vmatprep.subr.mxu0 0.0
        %1406 = vmatpush1.msra.mxu0 0.0
        %1407 = vmatprep.subr.mxu0 0.0
        %1408 = vmatpush1.msra.mxu0 0.0
        %1409 = vmatprep.subr.mxu0 0.0
        %1410 = vmatpush1.msra.mxu0 0.0
        %1411 = vmatprep.subr.mxu0 0.0
        %1412 = vmatpush1.msra.mxu0 0.0
        %1413 = vmatprep.subr.mxu0 0.0
        %1414 = vmatpush1.msra.mxu0 0.0
        %1415 = vmatprep.subr.mxu0 0.0
        %1416 = vmatpush1.msra.mxu0 0.0
        %1417 = vmatprep.subr.mxu0 0.0
        %1418 = vmatpush1.msra.mxu0 0.0
        %1419 = vmatprep.subr.mxu0 0.0
        %1420 = vmatpush1.msra.mxu0 0.0
        %1421 = vmatprep.subr.mxu0 0.0
        %1422 = vmatpush1.msra.mxu0 0.0
        %1423 = vmatprep.subr.mxu0 0.0
        %1424 = vmatpush1.msra.mxu0 0.0
        %1425 = vmatprep.subr.mxu0 0.0
        %1426 = vmatpush1.msra.mxu0 0.0
        %1427 = vmatprep.subr.mxu0 0.0
        %1428 = vmatpush1.msra.mxu0 0.0
        %1429 = vmatprep.subr.mxu0 0.0
        %1430 = vmatpush1.msra.mxu0 0.0
        %1431 = vmatprep.subr.mxu0 0.0
        %1432 = vmatpush1.msra.mxu0 0.0
        %1433 = vmatprep.subr.mxu0 0.0
        %1434 = vmatpush1.msra.mxu0 0.0
        %1435 = vmatprep.subr.mxu0 0.0
        %1436 = vmatpush1.msra.mxu0 0.0
        %1437 = vmatprep.subr.mxu0 0.0
        %1438 = vmatpush1.msra.mxu0 0.0
        %1439 = vmatprep.subr.mxu0 0.0
        %1440 = vmatpush1.msra.mxu0 0.0
        %1441 = vmatprep.subr.mxu0 0.0
        %1442 = vmatpush1.msra.mxu0 0.0
        %1443 = vmatprep.mubr.f32.mxu0 0.0
        %v1444 = vand.u32 %v1296, 4294901760
        %1445 = vmatmul.mubr.f32.gmra.mrb[0].mxu0 %v1444
        %v1446 = vpop.f32.mrb[0].mxu0
        %v1447 = vadd.f32 %v1371, %v1446
        %v1448 = vpop.f32.mrb[0].mxu0
        %1449 = vdwg.mxu0
        %1450 = vmatprep.subr.mxu0 0.0
        %v1451 = vand.u32 %v1293, 4294901760
        %v1452 = vsub.f32 %v1293, %v1451
        %1453 = vmatpush1.msra.mxu0 %v1452
        %1454 = vmatprep.subr.mxu0 0.0
        %1455 = vmatpush1.msra.mxu0 0.0
        %1456 = vmatprep.subr.mxu0 0.0
        %1457 = vmatpush1.msra.mxu0 0.0
        %1458 = vmatprep.subr.mxu0 0.0
        %1459 = vmatpush1.msra.mxu0 0.0
        %1460 = vmatprep.subr.mxu0 0.0
        %1461 = vmatpush1.msra.mxu0 0.0
        %1462 = vmatprep.subr.mxu0 0.0
        %1463 = vmatpush1.msra.mxu0 0.0
        %1464 = vmatprep.subr.mxu0 0.0
        %1465 = vmatpush1.msra.mxu0 0.0
        %1466 = vmatprep.subr.mxu0 0.0
        %1467 = vmatpush1.msra.mxu0 0.0
        %1468 = vmatprep.subr.mxu0 0.0
        %1469 = vmatpush1.msra.mxu0 0.0
        %1470 = vmatprep.subr.mxu0 0.0
        %1471 = vmatpush1.msra.mxu0 0.0
        %1472 = vmatprep.subr.mxu0 0.0
        %1473 = vmatpush1.msra.mxu0 0.0
        %1474 = vmatprep.subr.mxu0 0.0
        %1475 = vmatpush1.msra.mxu0 0.0
        %1476 = vmatprep.subr.mxu0 0.0
        %1477 = vmatpush1.msra.mxu0 0.0
        %1478 = vmatprep.subr.mxu0 0.0
        %1479 = vmatpush1.msra.mxu0 0.0
        %1480 = vmatprep.subr.mxu0 0.0
        %1481 = vmatpush1.msra.mxu0 0.0
        %1482 = vmatprep.subr.mxu0 0.0
        %1483 = vmatpush1.msra.mxu0 0.0
        %1484 = vmatprep.subr.mxu0 0.0
        %1485 = vmatpush1.msra.mxu0 0.0
        %1486 = vmatprep.subr.mxu0 0.0
        %1487 = vmatpush1.msra.mxu0 0.0
        %1488 = vmatprep.subr.mxu0 0.0
        %1489 = vmatpush1.msra.mxu0 0.0
        %1490 = vmatprep.subr.mxu0 0.0
        %1491 = vmatpush1.msra.mxu0 0.0
        %1492 = vmatprep.subr.mxu0 0.0
        %1493 = vmatpush1.msra.mxu0 0.0
        %1494 = vmatprep.subr.mxu0 0.0
        %1495 = vmatpush1.msra.mxu0 0.0
        %1496 = vmatprep.subr.mxu0 0.0
        %1497 = vmatpush1.msra.mxu0 0.0
        %1498 = vmatprep.subr.mxu0 0.0
        %1499 = vmatpush1.msra.mxu0 0.0
        %1500 = vmatprep.subr.mxu0 0.0
        %1501 = vmatpush1.msra.mxu0 0.0
        %1502 = vmatprep.subr.mxu0 0.0
        %1503 = vmatpush1.msra.mxu0 0.0
        %1504 = vmatprep.subr.mxu0 0.0
        %1505 = vmatpush1.msra.mxu0 0.0
        %1506 = vmatprep.subr.mxu0 0.0
        %1507 = vmatpush1.msra.mxu0 0.0
        %1508 = vmatprep.subr.mxu0 0.0
        %1509 = vmatpush1.msra.mxu0 0.0
        %1510 = vmatprep.subr.mxu0 0.0
        %1511 = vmatpush1.msra.mxu0 0.0
        %1512 = vmatprep.subr.mxu0 0.0
        %1513 = vmatpush1.msra.mxu0 0.0
        %1514 = vmatprep.subr.mxu0 0.0
        %1515 = vmatpush1.msra.mxu0 0.0
        %1516 = vmatprep.mubr.f32.mxu0 0.0
        %v1517 = vand.u32 %v1296, 4294901760
        %v1518 = vsub.f32 %v1296, %v1517
        %1519 = vmatmul.mubr.f32.gmra.mrb[0].mxu0 %v1518
        %v1520 = vpop.f32.mrb[0].mxu0
        %v1521 = vadd.f32 %v1447, %v1520
        %v1522 = vpop.f32.mrb[0].mxu0
        %1523 = vdwg.mxu0
        %1524 = vmatprep.subr.mxu0 0.0
        %v1525 = vand.u32 %v1293, 4294901760
        %1526 = vmatpush1.msra.mxu0 %v1525
        %1527 = vmatprep.subr.mxu0 0.0
        %1528 = vmatpush1.msra.mxu0 0.0
        %1529 = vmatprep.subr.mxu0 0.0
        %1530 = vmatpush1.msra.mxu0 0.0
        %1531 = vmatprep.subr.mxu0 0.0
        %1532 = vmatpush1.msra.mxu0 0.0
        %1533 = vmatprep.subr.mxu0 0.0
        %1534 = vmatpush1.msra.mxu0 0.0
        %1535 = vmatprep.subr.mxu0 0.0
        %1536 = vmatpush1.msra.mxu0 0.0
        %1537 = vmatprep.subr.mxu0 0.0
        %1538 = vmatpush1.msra.mxu0 0.0
        %1539 = vmatprep.subr.mxu0 0.0
        %1540 = vmatpush1.msra.mxu0 0.0
        %1541 = vmatprep.subr.mxu0 0.0
        %1542 = vmatpush1.msra.mxu0 0.0
        %1543 = vmatprep.subr.mxu0 0.0
        %1544 = vmatpush1.msra.mxu0 0.0
        %1545 = vmatprep.subr.mxu0 0.0
        %1546 = vmatpush1.msra.mxu0 0.0
        %1547 = vmatprep.subr.mxu0 0.0
        %1548 = vmatpush1.msra.mxu0 0.0
        %1549 = vmatprep.subr.mxu0 0.0
        %1550 = vmatpush1.msra.mxu0 0.0
        %1551 = vmatprep.subr.mxu0 0.0
        %1552 = vmatpush1.msra.mxu0 0.0
        %1553 = vmatprep.subr.mxu0 0.0
        %1554 = vmatpush1.msra.mxu0 0.0
        %1555 = vmatprep.subr.mxu0 0.0
        %1556 = vmatpush1.msra.mxu0 0.0
        %1557 = vmatprep.subr.mxu0 0.0
        %1558 = vmatpush1.msra.mxu0 0.0
        %1559 = vmatprep.subr.mxu0 0.0
        %1560 = vmatpush1.msra.mxu0 0.0
        %1561 = vmatprep.subr.mxu0 0.0
        %1562 = vmatpush1.msra.mxu0 0.0
        %1563 = vmatprep.subr.mxu0 0.0
        %1564 = vmatpush1.msra.mxu0 0.0
        %1565 = vmatprep.subr.mxu0 0.0
        %1566 = vmatpush1.msra.mxu0 0.0
        %1567 = vmatprep.subr.mxu0 0.0
        %1568 = vmatpush1.msra.mxu0 0.0
        %1569 = vmatprep.subr.mxu0 0.0
        %1570 = vmatpush1.msra.mxu0 0.0
        %1571 = vmatprep.subr.mxu0 0.0
        %1572 = vmatpush1.msra.mxu0 0.0
        %1573 = vmatprep.subr.mxu0 0.0
        %1574 = vmatpush1.msra.mxu0 0.0
        %1575 = vmatprep.subr.mxu0 0.0
        %1576 = vmatpush1.msra.mxu0 0.0
        %1577 = vmatprep.subr.mxu0 0.0
        %1578 = vmatpush1.msra.mxu0 0.0
        %1579 = vmatprep.subr.mxu0 0.0
        %1580 = vmatpush1.msra.mxu0 0.0
        %1581 = vmatprep.subr.mxu0 0.0
        %1582 = vmatpush1.msra.mxu0 0.0
        %1583 = vmatprep.subr.mxu0 0.0
        %1584 = vmatpush1.msra.mxu0 0.0
        %1585 = vmatprep.subr.mxu0 0.0
        %1586 = vmatpush1.msra.mxu0 0.0
        %1587 = vmatprep.subr.mxu0 0.0
        %1588 = vmatpush1.msra.mxu0 0.0
        %1589 = vmatprep.mubr.f32.mxu0 0.0
        %v1590 = vand.u32 %v1296, 4294901760
        %v1591 = vsub.f32 %v1296, %v1590
        %v1592 = vand.u32 %v1591, 4294901760
        %1593 = vmatmul.mubr.f32.gmra.mrb[0].mxu0 %v1592
        %v1594 = vpop.f32.mrb[0].mxu0
        %v1595 = vadd.f32 %v1521, %v1594
        %v1596 = vpop.f32.mrb[0].mxu0
        %1597 = vdwg.mxu0
        %1598 = vmatprep.subr.mxu0 0.0
        %v1599 = vand.u32 %v1293, 4294901760
        %v1600 = vsub.f32 %v1293, %v1599
        %v1601 = vand.u32 %v1600, 4294901760
        %1602 = vmatpush1.msra.mxu0 %v1601
        %1603 = vmatprep.subr.mxu0 0.0
        %1604 = vmatpush1.msra.mxu0 0.0
        %1605 = vmatprep.subr.mxu0 0.0
        %1606 = vmatpush1.msra.mxu0 0.0
        %1607 = vmatprep.subr.mxu0 0.0
        %1608 = vmatpush1.msra.mxu0 0.0
        %1609 = vmatprep.subr.mxu0 0.0
        %1610 = vmatpush1.msra.mxu0 0.0
        %1611 = vmatprep.subr.mxu0 0.0
        %1612 = vmatpush1.msra.mxu0 0.0
        %1613 = vmatprep.subr.mxu0 0.0
        %1614 = vmatpush1.msra.mxu0 0.0
        %1615 = vmatprep.subr.mxu0 0.0
        %1616 = vmatpush1.msra.mxu0 0.0
        %1617 = vmatprep.subr.mxu0 0.0
        %1618 = vmatpush1.msra.mxu0 0.0
        %1619 = vmatprep.subr.mxu0 0.0
        %1620 = vmatpush1.msra.mxu0 0.0
        %1621 = vmatprep.subr.mxu0 0.0
        %1622 = vmatpush1.msra.mxu0 0.0
        %1623 = vmatprep.subr.mxu0 0.0
        %1624 = vmatpush1.msra.mxu0 0.0
        %1625 = vmatprep.subr.mxu0 0.0
        %1626 = vmatpush1.msra.mxu0 0.0
        %1627 = vmatprep.subr.mxu0 0.0
        %1628 = vmatpush1.msra.mxu0 0.0
        %1629 = vmatprep.subr.mxu0 0.0
        %1630 = vmatpush1.msra.mxu0 0.0
        %1631 = vmatprep.subr.mxu0 0.0
        %1632 = vmatpush1.msra.mxu0 0.0
        %1633 = vmatprep.subr.mxu0 0.0
        %1634 = vmatpush1.msra.mxu0 0.0
        %1635 = vmatprep.subr.mxu0 0.0
        %1636 = vmatpush1.msra.mxu0 0.0
        %1637 = vmatprep.subr.mxu0 0.0
        %1638 = vmatpush1.msra.mxu0 0.0
        %1639 = vmatprep.subr.mxu0 0.0
        %1640 = vmatpush1.msra.mxu0 0.0
        %1641 = vmatprep.subr.mxu0 0.0
        %1642 = vmatpush1.msra.mxu0 0.0
        %1643 = vmatprep.subr.mxu0 0.0
        %1644 = vmatpush1.msra.mxu0 0.0
        %1645 = vmatprep.subr.mxu0 0.0
        %1646 = vmatpush1.msra.mxu0 0.0
        %1647 = vmatprep.subr.mxu0 0.0
        %1648 = vmatpush1.msra.mxu0 0.0
        %1649 = vmatprep.subr.mxu0 0.0
        %1650 = vmatpush1.msra.mxu0 0.0
        %1651 = vmatprep.subr.mxu0 0.0
        %1652 = vmatpush1.msra.mxu0 0.0
        %1653 = vmatprep.subr.mxu0 0.0
        %1654 = vmatpush1.msra.mxu0 0.0
        %1655 = vmatprep.subr.mxu0 0.0
        %1656 = vmatpush1.msra.mxu0 0.0
        %1657 = vmatprep.subr.mxu0 0.0
        %1658 = vmatpush1.msra.mxu0 0.0
        %1659 = vmatprep.subr.mxu0 0.0
        %1660 = vmatpush1.msra.mxu0 0.0
        %1661 = vmatprep.subr.mxu0 0.0
        %1662 = vmatpush1.msra.mxu0 0.0
        %1663 = vmatprep.subr.mxu0 0.0
        %1664 = vmatpush1.msra.mxu0 0.0
        %1665 = vmatprep.mubr.f32.mxu0 0.0
        %v1666 = vand.u32 %v1296, 4294901760
        %1667 = vmatmul.mubr.f32.gmra.mrb[0].mxu0 %v1666
        %v1668 = vpop.f32.mrb[0].mxu0
        %v1669 = vadd.f32 %v1595, %v1668
        %v1670 = vpop.f32.mrb[0].mxu0
        %1671 = vdwg.mxu0
        %1672 = vmatprep.subr.mxu0 0.0
        %v1673 = vand.u32 %v1293, 4294901760
        %1674 = vmatpush1.msra.mxu0 %v1673
        %1675 = vmatprep.subr.mxu0 0.0
        %1676 = vmatpush1.msra.mxu0 0.0
        %1677 = vmatprep.subr.mxu0 0.0
        %1678 = vmatpush1.msra.mxu0 0.0
        %1679 = vmatprep.subr.mxu0 0.0
        %1680 = vmatpush1.msra.mxu0 0.0
        %1681 = vmatprep.subr.mxu0 0.0
        %1682 = vmatpush1.msra.mxu0 0.0
        %1683 = vmatprep.subr.mxu0 0.0
        %1684 = vmatpush1.msra.mxu0 0.0
        %1685 = vmatprep.subr.mxu0 0.0
        %1686 = vmatpush1.msra.mxu0 0.0
        %1687 = vmatprep.subr.mxu0 0.0
        %1688 = vmatpush1.msra.mxu0 0.0
        %1689 = vmatprep.subr.mxu0 0.0
        %1690 = vmatpush1.msra.mxu0 0.0
        %1691 = vmatprep.subr.mxu0 0.0
        %1692 = vmatpush1.msra.mxu0 0.0
        %1693 = vmatprep.subr.mxu0 0.0
        %1694 = vmatpush1.msra.mxu0 0.0
        %1695 = vmatprep.subr.mxu0 0.0
        %1696 = vmatpush1.msra.mxu0 0.0
        %1697 = vmatprep.subr.mxu0 0.0
        %1698 = vmatpush1.msra.mxu0 0.0
        %1699 = vmatprep.subr.mxu0 0.0
        %1700 = vmatpush1.msra.mxu0 0.0
        %1701 = vmatprep.subr.mxu0 0.0
        %1702 = vmatpush1.msra.mxu0 0.0
        %1703 = vmatprep.subr.mxu0 0.0
        %1704 = vmatpush1.msra.mxu0 0.0
        %1705 = vmatprep.subr.mxu0 0.0
        %1706 = vmatpush1.msra.mxu0 0.0
        %1707 = vmatprep.subr.mxu0 0.0
        %1708 = vmatpush1.msra.mxu0 0.0
        %1709 = vmatprep.subr.mxu0 0.0
        %1710 = vmatpush1.msra.mxu0 0.0
        %1711 = vmatprep.subr.mxu0 0.0
        %1712 = vmatpush1.msra.mxu0 0.0
        %1713 = vmatprep.subr.mxu0 0.0
        %1714 = vmatpush1.msra.mxu0 0.0
        %1715 = vmatprep.subr.mxu0 0.0
        %1716 = vmatpush1.msra.mxu0 0.0
        %1717 = vmatprep.subr.mxu0 0.0
        %1718 = vmatpush1.msra.mxu0 0.0
        %1719 = vmatprep.subr.mxu0 0.0
        %1720 = vmatpush1.msra.mxu0 0.0
        %1721 = vmatprep.subr.mxu0 0.0
        %1722 = vmatpush1.msra.mxu0 0.0
        %1723 = vmatprep.subr.mxu0 0.0
        %1724 = vmatpush1.msra.mxu0 0.0
        %1725 = vmatprep.subr.mxu0 0.0
        %1726 = vmatpush1.msra.mxu0 0.0
        %1727 = vmatprep.subr.mxu0 0.0
        %1728 = vmatpush1.msra.mxu0 0.0
        %1729 = vmatprep.subr.mxu0 0.0
        %1730 = vmatpush1.msra.mxu0 0.0
        %1731 = vmatprep.subr.mxu0 0.0
        %1732 = vmatpush1.msra.mxu0 0.0
        %1733 = vmatprep.subr.mxu0 0.0
        %1734 = vmatpush1.msra.mxu0 0.0
        %1735 = vmatprep.subr.mxu0 0.0
        %1736 = vmatpush1.msra.mxu0 0.0
        %1737 = vmatprep.mubr.f32.mxu0 0.0
        %v1738 = vand.u32 %v1296, 4294901760
        %1739 = vmatmul.mubr.f32.gmra.mrb[0].mxu0 %v1738
        %v1740 = vpop.f32.mrb[0].mxu0
        %v1741 = vadd.f32 %v1669, %v1740
        %v1742 = vpop.f32.mrb[0].mxu0
        %1743 = vdwg.mxu0
        %1744 = vrot.lane.b32.xlu0 %v820, 120
        %v1745 = vpop.permute.xlu0 %1744
        %1746 = vrot.lane.b32.xlu0 %v820, 88
        %v1747 = vpop.permute.xlu0 %1746
        %v1748 = vsel %vm830, %v1745, 0
        %v1750 = vsel %vm830, %v1747, 0
        %1752 = vmatprep.subr.mxu0 0.0
        %v1753 = vand.u32 %v1750, 4294901760
        %1754 = vmatpush1.xpose.msra.mxu0 %v1753
        %1755 = vmatprep.subr.mxu0 0.0
        %1756 = vmatpush1.xpose.msra.mxu0 0.0
        %1757 = vmatprep.subr.mxu0 0.0
        %1758 = vmatpush1.xpose.msra.mxu0 0.0
        %1759 = vmatprep.subr.mxu0 0.0
        %1760 = vmatpush1.xpose.msra.mxu0 0.0
        %1761 = vmatprep.subr.mxu0 0.0
        %1762 = vmatpush1.xpose.msra.mxu0 0.0
        %1763 = vmatprep.subr.mxu0 0.0
        %1764 = vmatpush1.xpose.msra.mxu0 0.0
        %1765 = vmatprep.subr.mxu0 0.0
        %1766 = vmatpush1.xpose.msra.mxu0 0.0
        %1767 = vmatprep.subr.mxu0 0.0
        %1768 = vmatpush1.xpose.msra.mxu0 0.0
        %1769 = vmatprep.subr.mxu0 0.0
        %1770 = vmatpush1.xpose.msra.mxu0 0.0
        %1771 = vmatprep.subr.mxu0 0.0
        %1772 = vmatpush1.xpose.msra.mxu0 0.0
        %1773 = vmatprep.subr.mxu0 0.0
        %1774 = vmatpush1.xpose.msra.mxu0 0.0
        %1775 = vmatprep.subr.mxu0 0.0
        %1776 = vmatpush1.xpose.msra.mxu0 0.0
        %1777 = vmatprep.subr.mxu0 0.0
        %1778 = vmatpush1.xpose.msra.mxu0 0.0
        %1779 = vmatprep.subr.mxu0 0.0
        %1780 = vmatpush1.xpose.msra.mxu0 0.0
        %1781 = vmatprep.subr.mxu0 0.0
        %1782 = vmatpush1.xpose.msra.mxu0 0.0
        %1783 = vmatprep.subr.mxu0 0.0
        %1784 = vmatpush1.xpose.msra.mxu0 0.0
        %1785 = vmatprep.subr.mxu0 0.0
        %1786 = vmatpush1.xpose.msra.mxu0 0.0
        %1787 = vmatprep.subr.mxu0 0.0
        %1788 = vmatpush1.xpose.msra.mxu0 0.0
        %1789 = vmatprep.subr.mxu0 0.0
        %1790 = vmatpush1.xpose.msra.mxu0 0.0
        %1791 = vmatprep.subr.mxu0 0.0
        %1792 = vmatpush1.xpose.msra.mxu0 0.0
        %1793 = vmatprep.subr.mxu0 0.0
        %1794 = vmatpush1.xpose.msra.mxu0 0.0
        %1795 = vmatprep.subr.mxu0 0.0
        %1796 = vmatpush1.xpose.msra.mxu0 0.0
        %1797 = vmatprep.subr.mxu0 0.0
        %1798 = vmatpush1.xpose.msra.mxu0 0.0
        %1799 = vmatprep.subr.mxu0 0.0
        %1800 = vmatpush1.xpose.msra.mxu0 0.0
        %1801 = vmatprep.subr.mxu0 0.0
        %1802 = vmatpush1.xpose.msra.mxu0 0.0
        %1803 = vmatprep.subr.mxu0 0.0
        %1804 = vmatpush1.xpose.msra.mxu0 0.0
        %1805 = vmatprep.subr.mxu0 0.0
        %1806 = vmatpush1.xpose.msra.mxu0 0.0
        %1807 = vmatprep.subr.mxu0 0.0
        %1808 = vmatpush1.xpose.msra.mxu0 0.0
        %1809 = vmatprep.subr.mxu0 0.0
        %1810 = vmatpush1.xpose.msra.mxu0 0.0
        %1811 = vmatprep.subr.mxu0 0.0
        %1812 = vmatpush1.xpose.msra.mxu0 0.0
        %1813 = vmatprep.subr.mxu0 0.0
        %1814 = vmatpush1.xpose.msra.mxu0 0.0
        %1815 = vmatprep.subr.mxu0 0.0
        %1816 = vmatpush1.xpose.msra.mxu0 0.0
        %1817 = vmatprep.mubr.f32.mxu0 0.0
        %v1818 = vand.u32 %v1748, 4294901760
        %v1819 = vsub.f32 %v1748, %v1818
        %v1820 = vand.u32 %v1819, 4294901760
        %v1821 = vsub.f32 %v1819, %v1820
        %v1822 = vand.u32 %v1821, 4294901760
        %1823 = vmatmul.mubr.f32.gmra.mrb[0].mxu0 %v1822
        %v1824 = vpop.f32.mrb[0].mxu0
        %v1825 = vadd.f32 %v329, %v1824
        %v1826 = vpop.f32.mrb[0].mxu0
        %1827 = vdwg.mxu0
        %1828 = vmatprep.subr.mxu0 0.0
        %v1829 = vand.u32 %v1750, 4294901760
        %v1830 = vsub.f32 %v1750, %v1829
        %v1831 = vand.u32 %v1830, 4294901760
        %v1832 = vsub.f32 %v1830, %v1831
        %v1833 = vand.u32 %v1832, 4294901760
        %1834 = vmatpush1.xpose.msra.mxu0 %v1833
        %1835 = vmatprep.subr.mxu0 0.0
        %1836 = vmatpush1.xpose.msra.mxu0 0.0
        %1837 = vmatprep.subr.mxu0 0.0
        %1838 = vmatpush1.xpose.msra.mxu0 0.0
        %1839 = vmatprep.subr.mxu0 0.0
        %1840 = vmatpush1.xpose.msra.mxu0 0.0
        %1841 = vmatprep.subr.mxu0 0.0
        %1842 = vmatpush1.xpose.msra.mxu0 0.0
        %1843 = vmatprep.subr.mxu0 0.0
        %1844 = vmatpush1.xpose.msra.mxu0 0.0
        %1845 = vmatprep.subr.mxu0 0.0
        %1846 = vmatpush1.xpose.msra.mxu0 0.0
        %1847 = vmatprep.subr.mxu0 0.0
        %1848 = vmatpush1.xpose.msra.mxu0 0.0
        %1849 = vmatprep.subr.mxu0 0.0
        %1850 = vmatpush1.xpose.msra.mxu0 0.0
        %1851 = vmatprep.subr.mxu0 0.0
        %1852 = vmatpush1.xpose.msra.mxu0 0.0
        %1853 = vmatprep.subr.mxu0 0.0
        %1854 = vmatpush1.xpose.msra.mxu0 0.0
        %1855 = vmatprep.subr.mxu0 0.0
        %1856 = vmatpush1.xpose.msra.mxu0 0.0
        %1857 = vmatprep.subr.mxu0 0.0
        %1858 = vmatpush1.xpose.msra.mxu0 0.0
        %1859 = vmatprep.subr.mxu0 0.0
        %1860 = vmatpush1.xpose.msra.mxu0 0.0
        %1861 = vmatprep.subr.mxu0 0.0
        %1862 = vmatpush1.xpose.msra.mxu0 0.0
        %1863 = vmatprep.subr.mxu0 0.0
        %1864 = vmatpush1.xpose.msra.mxu0 0.0
        %1865 = vmatprep.subr.mxu0 0.0
        %1866 = vmatpush1.xpose.msra.mxu0 0.0
        %1867 = vmatprep.subr.mxu0 0.0
        %1868 = vmatpush1.xpose.msra.mxu0 0.0
        %1869 = vmatprep.subr.mxu0 0.0
        %1870 = vmatpush1.xpose.msra.mxu0 0.0
        %1871 = vmatprep.subr.mxu0 0.0
        %1872 = vmatpush1.xpose.msra.mxu0 0.0
        %1873 = vmatprep.subr.mxu0 0.0
        %1874 = vmatpush1.xpose.msra.mxu0 0.0
        %1875 = vmatprep.subr.mxu0 0.0
        %1876 = vmatpush1.xpose.msra.mxu0 0.0
        %1877 = vmatprep.subr.mxu0 0.0
        %1878 = vmatpush1.xpose.msra.mxu0 0.0
        %1879 = vmatprep.subr.mxu0 0.0
        %1880 = vmatpush1.xpose.msra.mxu0 0.0
        %1881 = vmatprep.subr.mxu0 0.0
        %1882 = vmatpush1.xpose.msra.mxu0 0.0
        %1883 = vmatprep.subr.mxu0 0.0
        %1884 = vmatpush1.xpose.msra.mxu0 0.0
        %1885 = vmatprep.subr.mxu0 0.0
        %1886 = vmatpush1.xpose.msra.mxu0 0.0
        %1887 = vmatprep.subr.mxu0 0.0
        %1888 = vmatpush1.xpose.msra.mxu0 0.0
        %1889 = vmatprep.subr.mxu0 0.0
        %1890 = vmatpush1.xpose.msra.mxu0 0.0
        %1891 = vmatprep.subr.mxu0 0.0
        %1892 = vmatpush1.xpose.msra.mxu0 0.0
        %1893 = vmatprep.subr.mxu0 0.0
        %1894 = vmatpush1.xpose.msra.mxu0 0.0
        %1895 = vmatprep.subr.mxu0 0.0
        %1896 = vmatpush1.xpose.msra.mxu0 0.0
        %1897 = vmatprep.mubr.f32.mxu0 0.0
        %v1898 = vand.u32 %v1748, 4294901760
        %1899 = vmatmul.mubr.f32.gmra.mrb[0].mxu0 %v1898
        %v1900 = vpop.f32.mrb[0].mxu0
        %v1901 = vadd.f32 %v1825, %v1900
        %v1902 = vpop.f32.mrb[0].mxu0
        %1903 = vdwg.mxu0
        %1904 = vmatprep.subr.mxu0 0.0
        %v1905 = vand.u32 %v1750, 4294901760
        %v1906 = vsub.f32 %v1750, %v1905
        %1907 = vmatpush1.xpose.msra.mxu0 %v1906
        %1908 = vmatprep.subr.mxu0 0.0
        %1909 = vmatpush1.xpose.msra.mxu0 0.0
        %1910 = vmatprep.subr.mxu0 0.0
        %1911 = vmatpush1.xpose.msra.mxu0 0.0
        %1912 = vmatprep.subr.mxu0 0.0
        %1913 = vmatpush1.xpose.msra.mxu0 0.0
        %1914 = vmatprep.subr.mxu0 0.0
        %1915 = vmatpush1.xpose.msra.mxu0 0.0
        %1916 = vmatprep.subr.mxu0 0.0
        %1917 = vmatpush1.xpose.msra.mxu0 0.0
        %1918 = vmatprep.subr.mxu0 0.0
        %1919 = vmatpush1.xpose.msra.mxu0 0.0
        %1920 = vmatprep.subr.mxu0 0.0
        %1921 = vmatpush1.xpose.msra.mxu0 0.0
        %1922 = vmatprep.subr.mxu0 0.0
        %1923 = vmatpush1.xpose.msra.mxu0 0.0
        %1924 = vmatprep.subr.mxu0 0.0
        %1925 = vmatpush1.xpose.msra.mxu0 0.0
        %1926 = vmatprep.subr.mxu0 0.0
        %1927 = vmatpush1.xpose.msra.mxu0 0.0
        %1928 = vmatprep.subr.mxu0 0.0
        %1929 = vmatpush1.xpose.msra.mxu0 0.0
        %1930 = vmatprep.subr.mxu0 0.0
        %1931 = vmatpush1.xpose.msra.mxu0 0.0
        %1932 = vmatprep.subr.mxu0 0.0
        %1933 = vmatpush1.xpose.msra.mxu0 0.0
        %1934 = vmatprep.subr.mxu0 0.0
        %1935 = vmatpush1.xpose.msra.mxu0 0.0
        %1936 = vmatprep.subr.mxu0 0.0
        %1937 = vmatpush1.xpose.msra.mxu0 0.0
        %1938 = vmatprep.subr.mxu0 0.0
        %1939 = vmatpush1.xpose.msra.mxu0 0.0
        %1940 = vmatprep.subr.mxu0 0.0
        %1941 = vmatpush1.xpose.msra.mxu0 0.0
        %1942 = vmatprep.subr.mxu0 0.0
        %1943 = vmatpush1.xpose.msra.mxu0 0.0
        %1944 = vmatprep.subr.mxu0 0.0
        %1945 = vmatpush1.xpose.msra.mxu0 0.0
        %1946 = vmatprep.subr.mxu0 0.0
        %1947 = vmatpush1.xpose.msra.mxu0 0.0
        %1948 = vmatprep.subr.mxu0 0.0
        %1949 = vmatpush1.xpose.msra.mxu0 0.0
        %1950 = vmatprep.subr.mxu0 0.0
        %1951 = vmatpush1.xpose.msra.mxu0 0.0
        %1952 = vmatprep.subr.mxu0 0.0
        %1953 = vmatpush1.xpose.msra.mxu0 0.0
        %1954 = vmatprep.subr.mxu0 0.0
        %1955 = vmatpush1.xpose.msra.mxu0 0.0
        %1956 = vmatprep.subr.mxu0 0.0
        %1957 = vmatpush1.xpose.msra.mxu0 0.0
        %1958 = vmatprep.subr.mxu0 0.0
        %1959 = vmatpush1.xpose.msra.mxu0 0.0
        %1960 = vmatprep.subr.mxu0 0.0
        %1961 = vmatpush1.xpose.msra.mxu0 0.0
        %1962 = vmatprep.subr.mxu0 0.0
        %1963 = vmatpush1.xpose.msra.mxu0 0.0
        %1964 = vmatprep.subr.mxu0 0.0
        %1965 = vmatpush1.xpose.msra.mxu0 0.0
        %1966 = vmatprep.subr.mxu0 0.0
        %1967 = vmatpush1.xpose.msra.mxu0 0.0
        %1968 = vmatprep.subr.mxu0 0.0
        %1969 = vmatpush1.xpose.msra.mxu0 0.0
        %1970 = vmatprep.mubr.f32.mxu0 0.0
        %v1971 = vand.u32 %v1748, 4294901760
        %v1972 = vsub.f32 %v1748, %v1971
        %1973 = vmatmul.mubr.f32.gmra.mrb[0].mxu0 %v1972
        %v1974 = vpop.f32.mrb[0].mxu0
        %v1975 = vadd.f32 %v1901, %v1974
        %v1976 = vpop.f32.mrb[0].mxu0
        %1977 = vdwg.mxu0
        %1978 = vmatprep.subr.mxu0 0.0
        %v1979 = vand.u32 %v1750, 4294901760
        %1980 = vmatpush1.xpose.msra.mxu0 %v1979
        %1981 = vmatprep.subr.mxu0 0.0
        %1982 = vmatpush1.xpose.msra.mxu0 0.0
        %1983 = vmatprep.subr.mxu0 0.0
        %1984 = vmatpush1.xpose.msra.mxu0 0.0
        %1985 = vmatprep.subr.mxu0 0.0
        %1986 = vmatpush1.xpose.msra.mxu0 0.0
        %1987 = vmatprep.subr.mxu0 0.0
        %1988 = vmatpush1.xpose.msra.mxu0 0.0
        %1989 = vmatprep.subr.mxu0 0.0
        %1990 = vmatpush1.xpose.msra.mxu0 0.0
        %1991 = vmatprep.subr.mxu0 0.0
        %1992 = vmatpush1.xpose.msra.mxu0 0.0
        %1993 = vmatprep.subr.mxu0 0.0
        %1994 = vmatpush1.xpose.msra.mxu0 0.0
        %1995 = vmatprep.subr.mxu0 0.0
        %1996 = vmatpush1.xpose.msra.mxu0 0.0
        %1997 = vmatprep.subr.mxu0 0.0
        %1998 = vmatpush1.xpose.msra.mxu0 0.0
        %1999 = vmatprep.subr.mxu0 0.0
        %2000 = vmatpush1.xpose.msra.mxu0 0.0
        %2001 = vmatprep.subr.mxu0 0.0
        %2002 = vmatpush1.xpose.msra.mxu0 0.0
        %2003 = vmatprep.subr.mxu0 0.0
        %2004 = vmatpush1.xpose.msra.mxu0 0.0
        %2005 = vmatprep.subr.mxu0 0.0
        %2006 = vmatpush1.xpose.msra.mxu0 0.0
        %2007 = vmatprep.subr.mxu0 0.0
        %2008 = vmatpush1.xpose.msra.mxu0 0.0
        %2009 = vmatprep.subr.mxu0 0.0
        %2010 = vmatpush1.xpose.msra.mxu0 0.0
        %2011 = vmatprep.subr.mxu0 0.0
        %2012 = vmatpush1.xpose.msra.mxu0 0.0
        %2013 = vmatprep.subr.mxu0 0.0
        %2014 = vmatpush1.xpose.msra.mxu0 0.0
        %2015 = vmatprep.subr.mxu0 0.0
        %2016 = vmatpush1.xpose.msra.mxu0 0.0
        %2017 = vmatprep.subr.mxu0 0.0
        %2018 = vmatpush1.xpose.msra.mxu0 0.0
        %2019 = vmatprep.subr.mxu0 0.0
        %2020 = vmatpush1.xpose.msra.mxu0 0.0
        %2021 = vmatprep.subr.mxu0 0.0
        %2022 = vmatpush1.xpose.msra.mxu0 0.0
        %2023 = vmatprep.subr.mxu0 0.0
        %2024 = vmatpush1.xpose.msra.mxu0 0.0
        %2025 = vmatprep.subr.mxu0 0.0
        %2026 = vmatpush1.xpose.msra.mxu0 0.0
        %2027 = vmatprep.subr.mxu0 0.0
        %2028 = vmatpush1.xpose.msra.mxu0 0.0
        %2029 = vmatprep.subr.mxu0 0.0
        %2030 = vmatpush1.xpose.msra.mxu0 0.0
        %2031 = vmatprep.subr.mxu0 0.0
        %2032 = vmatpush1.xpose.msra.mxu0 0.0
        %2033 = vmatprep.subr.mxu0 0.0
        %2034 = vmatpush1.xpose.msra.mxu0 0.0
        %2035 = vmatprep.subr.mxu0 0.0
        %2036 = vmatpush1.xpose.msra.mxu0 0.0
        %2037 = vmatprep.subr.mxu0 0.0
        %2038 = vmatpush1.xpose.msra.mxu0 0.0
        %2039 = vmatprep.subr.mxu0 0.0
        %2040 = vmatpush1.xpose.msra.mxu0 0.0
        %2041 = vmatprep.subr.mxu0 0.0
        %2042 = vmatpush1.xpose.msra.mxu0 0.0
        %2043 = vmatprep.mubr.f32.mxu0 0.0
        %v2044 = vand.u32 %v1748, 4294901760
        %v2045 = vsub.f32 %v1748, %v2044
        %v2046 = vand.u32 %v2045, 4294901760
        %2047 = vmatmul.mubr.f32.gmra.mrb[0].mxu0 %v2046
        %v2048 = vpop.f32.mrb[0].mxu0
        %v2049 = vadd.f32 %v1975, %v2048
        %v2050 = vpop.f32.mrb[0].mxu0
        %2051 = vdwg.mxu0
        %2052 = vmatprep.subr.mxu0 0.0
        %v2053 = vand.u32 %v1750, 4294901760
        %v2054 = vsub.f32 %v1750, %v2053
        %v2055 = vand.u32 %v2054, 4294901760
        %2056 = vmatpush1.xpose.msra.mxu0 %v2055
        %2057 = vmatprep.subr.mxu0 0.0
        %2058 = vmatpush1.xpose.msra.mxu0 0.0
        %2059 = vmatprep.subr.mxu0 0.0
        %2060 = vmatpush1.xpose.msra.mxu0 0.0
        %2061 = vmatprep.subr.mxu0 0.0
        %2062 = vmatpush1.xpose.msra.mxu0 0.0
        %2063 = vmatprep.subr.mxu0 0.0
        %2064 = vmatpush1.xpose.msra.mxu0 0.0
        %2065 = vmatprep.subr.mxu0 0.0
        %2066 = vmatpush1.xpose.msra.mxu0 0.0
        %2067 = vmatprep.subr.mxu0 0.0
        %2068 = vmatpush1.xpose.msra.mxu0 0.0
        %2069 = vmatprep.subr.mxu0 0.0
        %2070 = vmatpush1.xpose.msra.mxu0 0.0
        %2071 = vmatprep.subr.mxu0 0.0
        %2072 = vmatpush1.xpose.msra.mxu0 0.0
        %2073 = vmatprep.subr.mxu0 0.0
        %2074 = vmatpush1.xpose.msra.mxu0 0.0
        %2075 = vmatprep.subr.mxu0 0.0
        %2076 = vmatpush1.xpose.msra.mxu0 0.0
        %2077 = vmatprep.subr.mxu0 0.0
        %2078 = vmatpush1.xpose.msra.mxu0 0.0
        %2079 = vmatprep.subr.mxu0 0.0
        %2080 = vmatpush1.xpose.msra.mxu0 0.0
        %2081 = vmatprep.subr.mxu0 0.0
        %2082 = vmatpush1.xpose.msra.mxu0 0.0
        %2083 = vmatprep.subr.mxu0 0.0
        %2084 = vmatpush1.xpose.msra.mxu0 0.0
        %2085 = vmatprep.subr.mxu0 0.0
        %2086 = vmatpush1.xpose.msra.mxu0 0.0
        %2087 = vmatprep.subr.mxu0 0.0
        %2088 = vmatpush1.xpose.msra.mxu0 0.0
        %2089 = vmatprep.subr.mxu0 0.0
        %2090 = vmatpush1.xpose.msra.mxu0 0.0
        %2091 = vmatprep.subr.mxu0 0.0
        %2092 = vmatpush1.xpose.msra.mxu0 0.0
        %2093 = vmatprep.subr.mxu0 0.0
        %2094 = vmatpush1.xpose.msra.mxu0 0.0
        %2095 = vmatprep.subr.mxu0 0.0
        %2096 = vmatpush1.xpose.msra.mxu0 0.0
        %2097 = vmatprep.subr.mxu0 0.0
        %2098 = vmatpush1.xpose.msra.mxu0 0.0
        %2099 = vmatprep.subr.mxu0 0.0
        %2100 = vmatpush1.xpose.msra.mxu0 0.0
        %2101 = vmatprep.subr.mxu0 0.0
        %2102 = vmatpush1.xpose.msra.mxu0 0.0
        %2103 = vmatprep.subr.mxu0 0.0
        %2104 = vmatpush1.xpose.msra.mxu0 0.0
        %2105 = vmatprep.subr.mxu0 0.0
        %2106 = vmatpush1.xpose.msra.mxu0 0.0
        %2107 = vmatprep.subr.mxu0 0.0
        %2108 = vmatpush1.xpose.msra.mxu0 0.0
        %2109 = vmatprep.subr.mxu0 0.0
        %2110 = vmatpush1.xpose.msra.mxu0 0.0
        %2111 = vmatprep.subr.mxu0 0.0
        %2112 = vmatpush1.xpose.msra.mxu0 0.0
        %2113 = vmatprep.subr.mxu0 0.0
        %2114 = vmatpush1.xpose.msra.mxu0 0.0
        %2115 = vmatprep.subr.mxu0 0.0
        %2116 = vmatpush1.xpose.msra.mxu0 0.0
        %2117 = vmatprep.subr.mxu0 0.0
        %2118 = vmatpush1.xpose.msra.mxu0 0.0
        %2119 = vmatprep.mubr.f32.mxu0 0.0
        %v2120 = vand.u32 %v1748, 4294901760
        %2121 = vmatmul.mubr.f32.gmra.mrb[0].mxu0 %v2120
        %v2122 = vpop.f32.mrb[0].mxu0
        %v2123 = vadd.f32 %v2049, %v2122
        %v2124 = vpop.f32.mrb[0].mxu0
        %2125 = vdwg.mxu0
        %2126 = vmatprep.subr.mxu0 0.0
        %v2127 = vand.u32 %v1750, 4294901760
        %2128 = vmatpush1.xpose.msra.mxu0 %v2127
        %2129 = vmatprep.subr.mxu0 0.0
        %2130 = vmatpush1.xpose.msra.mxu0 0.0
        %2131 = vmatprep.subr.mxu0 0.0
        %2132 = vmatpush1.xpose.msra.mxu0 0.0
        %2133 = vmatprep.subr.mxu0 0.0
        %2134 = vmatpush1.xpose.msra.mxu0 0.0
        %2135 = vmatprep.subr.mxu0 0.0
        %2136 = vmatpush1.xpose.msra.mxu0 0.0
        %2137 = vmatprep.subr.mxu0 0.0
        %2138 = vmatpush1.xpose.msra.mxu0 0.0
        %2139 = vmatprep.subr.mxu0 0.0
        %2140 = vmatpush1.xpose.msra.mxu0 0.0
        %2141 = vmatprep.subr.mxu0 0.0
        %2142 = vmatpush1.xpose.msra.mxu0 0.0
        %2143 = vmatprep.subr.mxu0 0.0
        %2144 = vmatpush1.xpose.msra.mxu0 0.0
        %2145 = vmatprep.subr.mxu0 0.0
        %2146 = vmatpush1.xpose.msra.mxu0 0.0
        %2147 = vmatprep.subr.mxu0 0.0
        %2148 = vmatpush1.xpose.msra.mxu0 0.0
        %2149 = vmatprep.subr.mxu0 0.0
        %2150 = vmatpush1.xpose.msra.mxu0 0.0
        %2151 = vmatprep.subr.mxu0 0.0
        %2152 = vmatpush1.xpose.msra.mxu0 0.0
        %2153 = vmatprep.subr.mxu0 0.0
        %2154 = vmatpush1.xpose.msra.mxu0 0.0
        %2155 = vmatprep.subr.mxu0 0.0
        %2156 = vmatpush1.xpose.msra.mxu0 0.0
        %2157 = vmatprep.subr.mxu0 0.0
        %2158 = vmatpush1.xpose.msra.mxu0 0.0
        %2159 = vmatprep.subr.mxu0 0.0
        %2160 = vmatpush1.xpose.msra.mxu0 0.0
        %2161 = vmatprep.subr.mxu0 0.0
        %2162 = vmatpush1.xpose.msra.mxu0 0.0
        %2163 = vmatprep.subr.mxu0 0.0
        %2164 = vmatpush1.xpose.msra.mxu0 0.0
        %2165 = vmatprep.subr.mxu0 0.0
        %2166 = vmatpush1.xpose.msra.mxu0 0.0
        %2167 = vmatprep.subr.mxu0 0.0
        %2168 = vmatpush1.xpose.msra.mxu0 0.0
        %2169 = vmatprep.subr.mxu0 0.0
        %2170 = vmatpush1.xpose.msra.mxu0 0.0
        %2171 = vmatprep.subr.mxu0 0.0
        %2172 = vmatpush1.xpose.msra.mxu0 0.0
        %2173 = vmatprep.subr.mxu0 0.0
        %2174 = vmatpush1.xpose.msra.mxu0 0.0
        %2175 = vmatprep.subr.mxu0 0.0
        %2176 = vmatpush1.xpose.msra.mxu0 0.0
        %2177 = vmatprep.subr.mxu0 0.0
        %2178 = vmatpush1.xpose.msra.mxu0 0.0
        %2179 = vmatprep.subr.mxu0 0.0
        %2180 = vmatpush1.xpose.msra.mxu0 0.0
        %2181 = vmatprep.subr.mxu0 0.0
        %2182 = vmatpush1.xpose.msra.mxu0 0.0
        %2183 = vmatprep.subr.mxu0 0.0
        %2184 = vmatpush1.xpose.msra.mxu0 0.0
        %2185 = vmatprep.subr.mxu0 0.0
        %2186 = vmatpush1.xpose.msra.mxu0 0.0
        %2187 = vmatprep.subr.mxu0 0.0
        %2188 = vmatpush1.xpose.msra.mxu0 0.0
        %2189 = vmatprep.subr.mxu0 0.0
        %2190 = vmatpush1.xpose.msra.mxu0 0.0
        %2191 = vmatprep.mubr.f32.mxu0 0.0
        %v2192 = vand.u32 %v1748, 4294901760
        %2193 = vmatmul.mubr.f32.gmra.mrb[0].mxu0 %v2192
        %v2194 = vpop.f32.mrb[0].mxu0
        %v2195 = vadd.f32 %v2123, %v2194
        %v2196 = vpop.f32.mrb[0].mxu0
        %2197 = vdwg.mxu0
        %v2198 = vsel %vm830, %v2195, -inf
        %2199 = vmax.xlane.f32.xlu0 %v2198
        %v2200 = vpop.xlane.xlu0 %2199
        %v2201 = vsub.f32 %v2195, %v2200
        %v2202 = vmul.f32 %v2201, 1.442695
        %v2203 = vpow.pop %v2202
        %v2204 = vsel %vm830, %v2203, 0.0
        %2205 = vadd.xlane.f32.xlu0 %v2204
        %v2206 = vpop.xlane.xlu0 %2205
        %v2207 = vrcp.pop %v2206
        %v2208 = vmul.f32 %v2203, %v2207
        %2209 = vrot.lane.b32.xlu0 %v820, 56
        %v2210 = vpop.permute.xlu0 %2209
        %v2213 = vsel %vm830, %v2208, 0
        %2215 = vmatprep.subr.mxu0 0.0
        %v2216 = vand.u32 %v2210, 4294901760
        %2217 = vmatpush1.msra.mxu0 %v2216
        %2218 = vmatprep.subr.mxu0 0.0
        %2219 = vmatpush1.msra.mxu0 0.0
        %2220 = vmatprep.subr.mxu0 0.0
        %2221 = vmatpush1.msra.mxu0 0.0
        %2222 = vmatprep.subr.mxu0 0.0
        %2223 = vmatpush1.msra.mxu0 0.0
        %2224 = vmatprep.subr.mxu0 0.0
        %2225 = vmatpush1.msra.mxu0 0.0
        %2226 = vmatprep.subr.mxu0 0.0
        %2227 = vmatpush1.msra.mxu0 0.0
        %2228 = vmatprep.subr.mxu0 0.0
        %2229 = vmatpush1.msra.mxu0 0.0
        %2230 = vmatprep.subr.mxu0 0.0
        %2231 = vmatpush1.msra.mxu0 0.0
        %2232 = vmatprep.subr.mxu0 0.0
        %2233 = vmatpush1.msra.mxu0 0.0
        %2234 = vmatprep.subr.mxu0 0.0
        %2235 = vmatpush1.msra.mxu0 0.0
        %2236 = vmatprep.subr.mxu0 0.0
        %2237 = vmatpush1.msra.mxu0 0.0
        %2238 = vmatprep.subr.mxu0 0.0
        %2239 = vmatpush1.msra.mxu0 0.0
        %2240 = vmatprep.subr.mxu0 0.0
        %2241 = vmatpush1.msra.mxu0 0.0
        %2242 = vmatprep.subr.mxu0 0.0
        %2243 = vmatpush1.msra.mxu0 0.0
        %2244 = vmatprep.subr.mxu0 0.0
        %2245 = vmatpush1.msra.mxu0 0.0
        %2246 = vmatprep.subr.mxu0 0.0
        %2247 = vmatpush1.msra.mxu0 0.0
        %2248 = vmatprep.subr.mxu0 0.0
        %2249 = vmatpush1.msra.mxu0 0.0
        %2250 = vmatprep.subr.mxu0 0.0
        %2251 = vmatpush1.msra.mxu0 0.0
        %2252 = vmatprep.subr.mxu0 0.0
        %2253 = vmatpush1.msra.mxu0 0.0
        %2254 = vmatprep.subr.mxu0 0.0
        %2255 = vmatpush1.msra.mxu0 0.0
        %2256 = vmatprep.subr.mxu0 0.0
        %2257 = vmatpush1.msra.mxu0 0.0
        %2258 = vmatprep.subr.mxu0 0.0
        %2259 = vmatpush1.msra.mxu0 0.0
        %2260 = vmatprep.subr.mxu0 0.0
        %2261 = vmatpush1.msra.mxu0 0.0
        %2262 = vmatprep.subr.mxu0 0.0
        %2263 = vmatpush1.msra.mxu0 0.0
        %2264 = vmatprep.subr.mxu0 0.0
        %2265 = vmatpush1.msra.mxu0 0.0
        %2266 = vmatprep.subr.mxu0 0.0
        %2267 = vmatpush1.msra.mxu0 0.0
        %2268 = vmatprep.subr.mxu0 0.0
        %2269 = vmatpush1.msra.mxu0 0.0
        %2270 = vmatprep.subr.mxu0 0.0
        %2271 = vmatpush1.msra.mxu0 0.0
        %2272 = vmatprep.subr.mxu0 0.0
        %2273 = vmatpush1.msra.mxu0 0.0
        %2274 = vmatprep.subr.mxu0 0.0
        %2275 = vmatpush1.msra.mxu0 0.0
        %2276 = vmatprep.subr.mxu0 0.0
        %2277 = vmatpush1.msra.mxu0 0.0
        %2278 = vmatprep.subr.mxu0 0.0
        %2279 = vmatpush1.msra.mxu0 0.0
        %2280 = vmatprep.mubr.f32.mxu0 0.0
        %v2281 = vand.u32 %v2213, 4294901760
        %v2282 = vsub.f32 %v2213, %v2281
        %v2283 = vand.u32 %v2282, 4294901760
        %v2284 = vsub.f32 %v2282, %v2283
        %v2285 = vand.u32 %v2284, 4294901760
        %2286 = vmatmul.mubr.f32.gmra.mrb[0].mxu0 %v2285
        %v2287 = vpop.f32.mrb[0].mxu0
        %v2288 = vadd.f32 0.0, %v2287
        %v2289 = vpop.f32.mrb[0].mxu0
        %2290 = vdwg.mxu0
        %2291 = vmatprep.subr.mxu0 0.0
        %v2292 = vand.u32 %v2210, 4294901760
        %v2293 = vsub.f32 %v2210, %v2292
        %v2294 = vand.u32 %v2293, 4294901760
        %v2295 = vsub.f32 %v2293, %v2294
        %v2296 = vand.u32 %v2295, 4294901760
        %2297 = vmatpush1.msra.mxu0 %v2296
        %2298 = vmatprep.subr.mxu0 0.0
        %2299 = vmatpush1.msra.mxu0 0.0
        %2300 = vmatprep.subr.mxu0 0.0
        %2301 = vmatpush1.msra.mxu0 0.0
        %2302 = vmatprep.subr.mxu0 0.0
        %2303 = vmatpush1.msra.mxu0 0.0
        %2304 = vmatprep.subr.mxu0 0.0
        %2305 = vmatpush1.msra.mxu0 0.0
        %2306 = vmatprep.subr.mxu0 0.0
        %2307 = vmatpush1.msra.mxu0 0.0
        %2308 = vmatprep.subr.mxu0 0.0
        %2309 = vmatpush1.msra.mxu0 0.0
        %2310 = vmatprep.subr.mxu0 0.0
        %2311 = vmatpush1.msra.mxu0 0.0
        %2312 = vmatprep.subr.mxu0 0.0
        %2313 = vmatpush1.msra.mxu0 0.0
        %2314 = vmatprep.subr.mxu0 0.0
        %2315 = vmatpush1.msra.mxu0 0.0
        %2316 = vmatprep.subr.mxu0 0.0
        %2317 = vmatpush1.msra.mxu0 0.0
        %2318 = vmatprep.subr.mxu0 0.0
        %2319 = vmatpush1.msra.mxu0 0.0
        %2320 = vmatprep.subr.mxu0 0.0
        %2321 = vmatpush1.msra.mxu0 0.0
        %2322 = vmatprep.subr.mxu0 0.0
        %2323 = vmatpush1.msra.mxu0 0.0
        %2324 = vmatprep.subr.mxu0 0.0
        %2325 = vmatpush1.msra.mxu0 0.0
        %2326 = vmatprep.subr.mxu0 0.0
        %2327 = vmatpush1.msra.mxu0 0.0
        %2328 = vmatprep.subr.mxu0 0.0
        %2329 = vmatpush1.msra.mxu0 0.0
        %2330 = vmatprep.subr.mxu0 0.0
        %2331 = vmatpush1.msra.mxu0 0.0
        %2332 = vmatprep.subr.mxu0 0.0
        %2333 = vmatpush1.msra.mxu0 0.0
        %2334 = vmatprep.subr.mxu0 0.0
        %2335 = vmatpush1.msra.mxu0 0.0
        %2336 = vmatprep.subr.mxu0 0.0
        %2337 = vmatpush1.msra.mxu0 0.0
        %2338 = vmatprep.subr.mxu0 0.0
        %2339 = vmatpush1.msra.mxu0 0.0
        %2340 = vmatprep.subr.mxu0 0.0
        %2341 = vmatpush1.msra.mxu0 0.0
        %2342 = vmatprep.subr.mxu0 0.0
        %2343 = vmatpush1.msra.mxu0 0.0
        %2344 = vmatprep.subr.mxu0 0.0
        %2345 = vmatpush1.msra.mxu0 0.0
        %2346 = vmatprep.subr.mxu0 0.0
        %2347 = vmatpush1.msra.mxu0 0.0
        %2348 = vmatprep.subr.mxu0 0.0
        %2349 = vmatpush1.msra.mxu0 0.0
        %2350 = vmatprep.subr.mxu0 0.0
        %2351 = vmatpush1.msra.mxu0 0.0
        %2352 = vmatprep.subr.mxu0 0.0
        %2353 = vmatpush1.msra.mxu0 0.0
        %2354 = vmatprep.subr.mxu0 0.0
        %2355 = vmatpush1.msra.mxu0 0.0
        %2356 = vmatprep.subr.mxu0 0.0
        %2357 = vmatpush1.msra.mxu0 0.0
        %2358 = vmatprep.subr.mxu0 0.0
        %2359 = vmatpush1.msra.mxu0 0.0
        %2360 = vmatprep.mubr.f32.mxu0 0.0
        %v2361 = vand.u32 %v2213, 4294901760
        %2362 = vmatmul.mubr.f32.gmra.mrb[0].mxu0 %v2361
        %v2363 = vpop.f32.mrb[0].mxu0
        %v2364 = vadd.f32 %v2288, %v2363
        %v2365 = vpop.f32.mrb[0].mxu0
        %2366 = vdwg.mxu0
        %2367 = vmatprep.subr.mxu0 0.0
        %v2368 = vand.u32 %v2210, 4294901760
        %v2369 = vsub.f32 %v2210, %v2368
        %2370 = vmatpush1.msra.mxu0 %v2369
        %2371 = vmatprep.subr.mxu0 0.0
        %2372 = vmatpush1.msra.mxu0 0.0
        %2373 = vmatprep.subr.mxu0 0.0
        %2374 = vmatpush1.msra.mxu0 0.0
        %2375 = vmatprep.subr.mxu0 0.0
        %2376 = vmatpush1.msra.mxu0 0.0
        %2377 = vmatprep.subr.mxu0 0.0
        %2378 = vmatpush1.msra.mxu0 0.0
        %2379 = vmatprep.subr.mxu0 0.0
        %2380 = vmatpush1.msra.mxu0 0.0
        %2381 = vmatprep.subr.mxu0 0.0
        %2382 = vmatpush1.msra.mxu0 0.0
        %2383 = vmatprep.subr.mxu0 0.0
        %2384 = vmatpush1.msra.mxu0 0.0
        %2385 = vmatprep.subr.mxu0 0.0
        %2386 = vmatpush1.msra.mxu0 0.0
        %2387 = vmatprep.subr.mxu0 0.0
        %2388 = vmatpush1.msra.mxu0 0.0
        %2389 = vmatprep.subr.mxu0 0.0
        %2390 = vmatpush1.msra.mxu0 0.0
        %2391 = vmatprep.subr.mxu0 0.0
        %2392 = vmatpush1.msra.mxu0 0.0
        %2393 = vmatprep.subr.mxu0 0.0
        %2394 = vmatpush1.msra.mxu0 0.0
        %2395 = vmatprep.subr.mxu0 0.0
        %2396 = vmatpush1.msra.mxu0 0.0
        %2397 = vmatprep.subr.mxu0 0.0
        %2398 = vmatpush1.msra.mxu0 0.0
        %2399 = vmatprep.subr.mxu0 0.0
        %2400 = vmatpush1.msra.mxu0 0.0
        %2401 = vmatprep.subr.mxu0 0.0
        %2402 = vmatpush1.msra.mxu0 0.0
        %2403 = vmatprep.subr.mxu0 0.0
        %2404 = vmatpush1.msra.mxu0 0.0
        %2405 = vmatprep.subr.mxu0 0.0
        %2406 = vmatpush1.msra.mxu0 0.0
        %2407 = vmatprep.subr.mxu0 0.0
        %2408 = vmatpush1.msra.mxu0 0.0
        %2409 = vmatprep.subr.mxu0 0.0
        %2410 = vmatpush1.msra.mxu0 0.0
        %2411 = vmatprep.subr.mxu0 0.0
        %2412 = vmatpush1.msra.mxu0 0.0
        %2413 = vmatprep.subr.mxu0 0.0
        %2414 = vmatpush1.msra.mxu0 0.0
        %2415 = vmatprep.subr.mxu0 0.0
        %2416 = vmatpush1.msra.mxu0 0.0
        %2417 = vmatprep.subr.mxu0 0.0
        %2418 = vmatpush1.msra.mxu0 0.0
        %2419 = vmatprep.subr.mxu0 0.0
        %2420 = vmatpush1.msra.mxu0 0.0
        %2421 = vmatprep.subr.mxu0 0.0
        %2422 = vmatpush1.msra.mxu0 0.0
        %2423 = vmatprep.subr.mxu0 0.0
        %2424 = vmatpush1.msra.mxu0 0.0
        %2425 = vmatprep.subr.mxu0 0.0
        %2426 = vmatpush1.msra.mxu0 0.0
        %2427 = vmatprep.subr.mxu0 0.0
        %2428 = vmatpush1.msra.mxu0 0.0
        %2429 = vmatprep.subr.mxu0 0.0
        %2430 = vmatpush1.msra.mxu0 0.0
        %2431 = vmatprep.subr.mxu0 0.0
        %2432 = vmatpush1.msra.mxu0 0.0
        %2433 = vmatprep.mubr.f32.mxu0 0.0
        %v2434 = vand.u32 %v2213, 4294901760
        %v2435 = vsub.f32 %v2213, %v2434
        %2436 = vmatmul.mubr.f32.gmra.mrb[0].mxu0 %v2435
        %v2437 = vpop.f32.mrb[0].mxu0
        %v2438 = vadd.f32 %v2364, %v2437
        %v2439 = vpop.f32.mrb[0].mxu0
        %2440 = vdwg.mxu0
        %2441 = vmatprep.subr.mxu0 0.0
        %v2442 = vand.u32 %v2210, 4294901760
        %2443 = vmatpush1.msra.mxu0 %v2442
        %2444 = vmatprep.subr.mxu0 0.0
        %2445 = vmatpush1.msra.mxu0 0.0
        %2446 = vmatprep.subr.mxu0 0.0
        %2447 = vmatpush1.msra.mxu0 0.0
        %2448 = vmatprep.subr.mxu0 0.0
        %2449 = vmatpush1.msra.mxu0 0.0
        %2450 = vmatprep.subr.mxu0 0.0
        %2451 = vmatpush1.msra.mxu0 0.0
        %2452 = vmatprep.subr.mxu0 0.0
        %2453 = vmatpush1.msra.mxu0 0.0
        %2454 = vmatprep.subr.mxu0 0.0
        %2455 = vmatpush1.msra.mxu0 0.0
        %2456 = vmatprep.subr.mxu0 0.0
        %2457 = vmatpush1.msra.mxu0 0.0
        %2458 = vmatprep.subr.mxu0 0.0
        %2459 = vmatpush1.msra.mxu0 0.0
        %2460 = vmatprep.subr.mxu0 0.0
        %2461 = vmatpush1.msra.mxu0 0.0
        %2462 = vmatprep.subr.mxu0 0.0
        %2463 = vmatpush1.msra.mxu0 0.0
        %2464 = vmatprep.subr.mxu0 0.0
        %2465 = vmatpush1.msra.mxu0 0.0
        %2466 = vmatprep.subr.mxu0 0.0
        %2467 = vmatpush1.msra.mxu0 0.0
        %2468 = vmatprep.subr.mxu0 0.0
        %2469 = vmatpush1.msra.mxu0 0.0
        %2470 = vmatprep.subr.mxu0 0.0
        %2471 = vmatpush1.msra.mxu0 0.0
        %2472 = vmatprep.subr.mxu0 0.0
        %2473 = vmatpush1.msra.mxu0 0.0
        %2474 = vmatprep.subr.mxu0 0.0
        %2475 = vmatpush1.msra.mxu0 0.0
        %2476 = vmatprep.subr.mxu0 0.0
        %2477 = vmatpush1.msra.mxu0 0.0
        %2478 = vmatprep.subr.mxu0 0.0
        %2479 = vmatpush1.msra.mxu0 0.0
        %2480 = vmatprep.subr.mxu0 0.0
        %2481 = vmatpush1.msra.mxu0 0.0
        %2482 = vmatprep.subr.mxu0 0.0
        %2483 = vmatpush1.msra.mxu0 0.0
        %2484 = vmatprep.subr.mxu0 0.0
        %2485 = vmatpush1.msra.mxu0 0.0
        %2486 = vmatprep.subr.mxu0 0.0
        %2487 = vmatpush1.msra.mxu0 0.0
        %2488 = vmatprep.subr.mxu0 0.0
        %2489 = vmatpush1.msra.mxu0 0.0
        %2490 = vmatprep.subr.mxu0 0.0
        %2491 = vmatpush1.msra.mxu0 0.0
        %2492 = vmatprep.subr.mxu0 0.0
        %2493 = vmatpush1.msra.mxu0 0.0
        %2494 = vmatprep.subr.mxu0 0.0
        %2495 = vmatpush1.msra.mxu0 0.0
        %2496 = vmatprep.subr.mxu0 0.0
        %2497 = vmatpush1.msra.mxu0 0.0
        %2498 = vmatprep.subr.mxu0 0.0
        %2499 = vmatpush1.msra.mxu0 0.0
        %2500 = vmatprep.subr.mxu0 0.0
        %2501 = vmatpush1.msra.mxu0 0.0
        %2502 = vmatprep.subr.mxu0 0.0
        %2503 = vmatpush1.msra.mxu0 0.0
        %2504 = vmatprep.subr.mxu0 0.0
        %2505 = vmatpush1.msra.mxu0 0.0
        %2506 = vmatprep.mubr.f32.mxu0 0.0
        %v2507 = vand.u32 %v2213, 4294901760
        %v2508 = vsub.f32 %v2213, %v2507
        %v2509 = vand.u32 %v2508, 4294901760
        %2510 = vmatmul.mubr.f32.gmra.mrb[0].mxu0 %v2509
        %v2511 = vpop.f32.mrb[0].mxu0
        %v2512 = vadd.f32 %v2438, %v2511
        %v2513 = vpop.f32.mrb[0].mxu0
        %2514 = vdwg.mxu0
        %2515 = vmatprep.subr.mxu0 0.0
        %v2516 = vand.u32 %v2210, 4294901760
        %v2517 = vsub.f32 %v2210, %v2516
        %v2518 = vand.u32 %v2517, 4294901760
        %2519 = vmatpush1.msra.mxu0 %v2518
        %2520 = vmatprep.subr.mxu0 0.0
        %2521 = vmatpush1.msra.mxu0 0.0
        %2522 = vmatprep.subr.mxu0 0.0
        %2523 = vmatpush1.msra.mxu0 0.0
        %2524 = vmatprep.subr.mxu0 0.0
        %2525 = vmatpush1.msra.mxu0 0.0
        %2526 = vmatprep.subr.mxu0 0.0
        %2527 = vmatpush1.msra.mxu0 0.0
        %2528 = vmatprep.subr.mxu0 0.0
        %2529 = vmatpush1.msra.mxu0 0.0
        %2530 = vmatprep.subr.mxu0 0.0
        %2531 = vmatpush1.msra.mxu0 0.0
        %2532 = vmatprep.subr.mxu0 0.0
        %2533 = vmatpush1.msra.mxu0 0.0
        %2534 = vmatprep.subr.mxu0 0.0
        %2535 = vmatpush1.msra.mxu0 0.0
        %2536 = vmatprep.subr.mxu0 0.0
        %2537 = vmatpush1.msra.mxu0 0.0
        %2538 = vmatprep.subr.mxu0 0.0
        %2539 = vmatpush1.msra.mxu0 0.0
        %2540 = vmatprep.subr.mxu0 0.0
        %2541 = vmatpush1.msra.mxu0 0.0
        %2542 = vmatprep.subr.mxu0 0.0
        %2543 = vmatpush1.msra.mxu0 0.0
        %2544 = vmatprep.subr.mxu0 0.0
        %2545 = vmatpush1.msra.mxu0 0.0
        %2546 = vmatprep.subr.mxu0 0.0
        %2547 = vmatpush1.msra.mxu0 0.0
        %2548 = vmatprep.subr.mxu0 0.0
        %2549 = vmatpush1.msra.mxu0 0.0
        %2550 = vmatprep.subr.mxu0 0.0
        %2551 = vmatpush1.msra.mxu0 0.0
        %2552 = vmatprep.subr.mxu0 0.0
        %2553 = vmatpush1.msra.mxu0 0.0
        %2554 = vmatprep.subr.mxu0 0.0
        %2555 = vmatpush1.msra.mxu0 0.0
        %2556 = vmatprep.subr.mxu0 0.0
        %2557 = vmatpush1.msra.mxu0 0.0
        %2558 = vmatprep.subr.mxu0 0.0
        %2559 = vmatpush1.msra.mxu0 0.0
        %2560 = vmatprep.subr.mxu0 0.0
        %2561 = vmatpush1.msra.mxu0 0.0
        %2562 = vmatprep.subr.mxu0 0.0
        %2563 = vmatpush1.msra.mxu0 0.0
        %2564 = vmatprep.subr.mxu0 0.0
        %2565 = vmatpush1.msra.mxu0 0.0
        %2566 = vmatprep.subr.mxu0 0.0
        %2567 = vmatpush1.msra.mxu0 0.0
        %2568 = vmatprep.subr.mxu0 0.0
        %2569 = vmatpush1.msra.mxu0 0.0
        %2570 = vmatprep.subr.mxu0 0.0
        %2571 = vmatpush1.msra.mxu0 0.0
        %2572 = vmatprep.subr.mxu0 0.0
        %2573 = vmatpush1.msra.mxu0 0.0
        %2574 = vmatprep.subr.mxu0 0.0
        %2575 = vmatpush1.msra.mxu0 0.0
        %2576 = vmatprep.subr.mxu0 0.0
        %2577 = vmatpush1.msra.mxu0 0.0
        %2578 = vmatprep.subr.mxu0 0.0
        %2579 = vmatpush1.msra.mxu0 0.0
        %2580 = vmatprep.subr.mxu0 0.0
        %2581 = vmatpush1.msra.mxu0 0.0
        %2582 = vmatprep.mubr.f32.mxu0 0.0
        %v2583 = vand.u32 %v2213, 4294901760
        %2584 = vmatmul.mubr.f32.gmra.mrb[0].mxu0 %v2583
        %v2585 = vpop.f32.mrb[0].mxu0
        %v2586 = vadd.f32 %v2512, %v2585
        %v2587 = vpop.f32.mrb[0].mxu0
        %2588 = vdwg.mxu0
        %2589 = vmatprep.subr.mxu0 0.0
        %v2590 = vand.u32 %v2210, 4294901760
        %2591 = vmatpush1.msra.mxu0 %v2590
        %2592 = vmatprep.subr.mxu0 0.0
        %2593 = vmatpush1.msra.mxu0 0.0
        %2594 = vmatprep.subr.mxu0 0.0
        %2595 = vmatpush1.msra.mxu0 0.0
        %2596 = vmatprep.subr.mxu0 0.0
        %2597 = vmatpush1.msra.mxu0 0.0
        %2598 = vmatprep.subr.mxu0 0.0
        %2599 = vmatpush1.msra.mxu0 0.0
        %2600 = vmatprep.subr.mxu0 0.0
        %2601 = vmatpush1.msra.mxu0 0.0
        %2602 = vmatprep.subr.mxu0 0.0
        %2603 = vmatpush1.msra.mxu0 0.0
        %2604 = vmatprep.subr.mxu0 0.0
        %2605 = vmatpush1.msra.mxu0 0.0
        %2606 = vmatprep.subr.mxu0 0.0
        %2607 = vmatpush1.msra.mxu0 0.0
        %2608 = vmatprep.subr.mxu0 0.0
        %2609 = vmatpush1.msra.mxu0 0.0
        %2610 = vmatprep.subr.mxu0 0.0
        %2611 = vmatpush1.msra.mxu0 0.0
        %2612 = vmatprep.subr.mxu0 0.0
        %2613 = vmatpush1.msra.mxu0 0.0
        %2614 = vmatprep.subr.mxu0 0.0
        %2615 = vmatpush1.msra.mxu0 0.0
        %2616 = vmatprep.subr.mxu0 0.0
        %2617 = vmatpush1.msra.mxu0 0.0
        %2618 = vmatprep.subr.mxu0 0.0
        %2619 = vmatpush1.msra.mxu0 0.0
        %2620 = vmatprep.subr.mxu0 0.0
        %2621 = vmatpush1.msra.mxu0 0.0
        %2622 = vmatprep.subr.mxu0 0.0
        %2623 = vmatpush1.msra.mxu0 0.0
        %2624 = vmatprep.subr.mxu0 0.0
        %2625 = vmatpush1.msra.mxu0 0.0
        %2626 = vmatprep.subr.mxu0 0.0
        %2627 = vmatpush1.msra.mxu0 0.0
        %2628 = vmatprep.subr.mxu0 0.0
        %2629 = vmatpush1.msra.mxu0 0.0
        %2630 = vmatprep.subr.mxu0 0.0
        %2631 = vmatpush1.msra.mxu0 0.0
        %2632 = vmatprep.subr.mxu0 0.0
        %2633 = vmatpush1.msra.mxu0 0.0
        %2634 = vmatprep.subr.mxu0 0.0
        %2635 = vmatpush1.msra.mxu0 0.0
        %2636 = vmatprep.subr.mxu0 0.0
        %2637 = vmatpush1.msra.mxu0 0.0
        %2638 = vmatprep.subr.mxu0 0.0
        %2639 = vmatpush1.msra.mxu0 0.0
        %2640 = vmatprep.subr.mxu0 0.0
        %2641 = vmatpush1.msra.mxu0 0.0
        %2642 = vmatprep.subr.mxu0 0.0
        %2643 = vmatpush1.msra.mxu0 0.0
        %2644 = vmatprep.subr.mxu0 0.0
        %2645 = vmatpush1.msra.mxu0 0.0
        %2646 = vmatprep.subr.mxu0 0.0
        %2647 = vmatpush1.msra.mxu0 0.0
        %2648 = vmatprep.subr.mxu0 0.0
        %2649 = vmatpush1.msra.mxu0 0.0
        %2650 = vmatprep.subr.mxu0 0.0
        %2651 = vmatpush1.msra.mxu0 0.0
        %2652 = vmatprep.subr.mxu0 0.0
        %2653 = vmatpush1.msra.mxu0 0.0
        %2654 = vmatprep.mubr.f32.mxu0 0.0
        %v2655 = vand.u32 %v2213, 4294901760
        %2656 = vmatmul.mubr.f32.gmra.mrb[0].mxu0 %v2655
        %v2657 = vpop.f32.mrb[0].mxu0
        %v2658 = vadd.f32 %v2586, %v2657
        %v2659 = vpop.f32.mrb[0].mxu0
        %2660 = vdwg.mxu0
        %v2662 = vsel %vm830, %v2658, 0
        %2664 = vmatprep.subr.mxu0 0.0
        %v2665 = vand.u32 %v824, 4294901760
        %2666 = vmatpush1.msra.mxu0 %v2665
        %2667 = vmatprep.subr.mxu0 0.0
        %2668 = vmatpush1.msra.mxu0 0.0
        %2669 = vmatprep.subr.mxu0 0.0
        %2670 = vmatpush1.msra.mxu0 0.0
        %2671 = vmatprep.subr.mxu0 0.0
        %2672 = vmatpush1.msra.mxu0 0.0
        %2673 = vmatprep.subr.mxu0 0.0
        %2674 = vmatpush1.msra.mxu0 0.0
        %2675 = vmatprep.subr.mxu0 0.0
        %2676 = vmatpush1.msra.mxu0 0.0
        %2677 = vmatprep.subr.mxu0 0.0
        %2678 = vmatpush1.msra.mxu0 0.0
        %2679 = vmatprep.subr.mxu0 0.0
        %2680 = vmatpush1.msra.mxu0 0.0
        %2681 = vmatprep.subr.mxu0 0.0
        %2682 = vmatpush1.msra.mxu0 0.0
        %2683 = vmatprep.subr.mxu0 0.0
        %2684 = vmatpush1.msra.mxu0 0.0
        %2685 = vmatprep.subr.mxu0 0.0
        %2686 = vmatpush1.msra.mxu0 0.0
        %2687 = vmatprep.subr.mxu0 0.0
        %2688 = vmatpush1.msra.mxu0 0.0
        %2689 = vmatprep.subr.mxu0 0.0
        %2690 = vmatpush1.msra.mxu0 0.0
        %2691 = vmatprep.subr.mxu0 0.0
        %2692 = vmatpush1.msra.mxu0 0.0
        %2693 = vmatprep.subr.mxu0 0.0
        %2694 = vmatpush1.msra.mxu0 0.0
        %2695 = vmatprep.subr.mxu0 0.0
        %2696 = vmatpush1.msra.mxu0 0.0
        %2697 = vmatprep.subr.mxu0 0.0
        %2698 = vmatpush1.msra.mxu0 0.0
        %2699 = vmatprep.subr.mxu0 0.0
        %2700 = vmatpush1.msra.mxu0 0.0
        %2701 = vmatprep.subr.mxu0 0.0
        %2702 = vmatpush1.msra.mxu0 0.0
        %2703 = vmatprep.subr.mxu0 0.0
        %2704 = vmatpush1.msra.mxu0 0.0
        %2705 = vmatprep.subr.mxu0 0.0
        %2706 = vmatpush1.msra.mxu0 0.0
        %2707 = vmatprep.subr.mxu0 0.0
        %2708 = vmatpush1.msra.mxu0 0.0
        %2709 = vmatprep.subr.mxu0 0.0
        %2710 = vmatpush1.msra.mxu0 0.0
        %2711 = vmatprep.subr.mxu0 0.0
        %2712 = vmatpush1.msra.mxu0 0.0
        %2713 = vmatprep.subr.mxu0 0.0
        %2714 = vmatpush1.msra.mxu0 0.0
        %2715 = vmatprep.subr.mxu0 0.0
        %2716 = vmatpush1.msra.mxu0 0.0
        %2717 = vmatprep.subr.mxu0 0.0
        %2718 = vmatpush1.msra.mxu0 0.0
        %2719 = vmatprep.subr.mxu0 0.0
        %2720 = vmatpush1.msra.mxu0 0.0
        %2721 = vmatprep.subr.mxu0 0.0
        %2722 = vmatpush1.msra.mxu0 0.0
        %2723 = vmatprep.subr.mxu0 0.0
        %2724 = vmatpush1.msra.mxu0 0.0
        %2725 = vmatprep.subr.mxu0 0.0
        %2726 = vmatpush1.msra.mxu0 0.0
        %2727 = vmatprep.subr.mxu0 0.0
        %2728 = vmatpush1.msra.mxu0 0.0
        %2729 = vmatprep.mubr.f32.mxu0 0.0
        %v2730 = vand.u32 %v2662, 4294901760
        %v2731 = vsub.f32 %v2662, %v2730
        %v2732 = vand.u32 %v2731, 4294901760
        %v2733 = vsub.f32 %v2731, %v2732
        %v2734 = vand.u32 %v2733, 4294901760
        %2735 = vmatmul.mubr.f32.gmra.mrb[0].mxu0 %v2734
        %v2736 = vpop.f32.mrb[0].mxu0
        %v2737 = vadd.f32 0.0, %v2736
        %v2738 = vpop.f32.mrb[0].mxu0
        %2739 = vdwg.mxu0
        %2740 = vmatprep.subr.mxu0 0.0
        %v2741 = vand.u32 %v824, 4294901760
        %v2742 = vsub.f32 %v824, %v2741
        %v2743 = vand.u32 %v2742, 4294901760
        %v2744 = vsub.f32 %v2742, %v2743
        %v2745 = vand.u32 %v2744, 4294901760
        %2746 = vmatpush1.msra.mxu0 %v2745
        %2747 = vmatprep.subr.mxu0 0.0
        %2748 = vmatpush1.msra.mxu0 0.0
        %2749 = vmatprep.subr.mxu0 0.0
        %2750 = vmatpush1.msra.mxu0 0.0
        %2751 = vmatprep.subr.mxu0 0.0
        %2752 = vmatpush1.msra.mxu0 0.0
        %2753 = vmatprep.subr.mxu0 0.0
        %2754 = vmatpush1.msra.mxu0 0.0
        %2755 = vmatprep.subr.mxu0 0.0
        %2756 = vmatpush1.msra.mxu0 0.0
        %2757 = vmatprep.subr.mxu0 0.0
        %2758 = vmatpush1.msra.mxu0 0.0
        %2759 = vmatprep.subr.mxu0 0.0
        %2760 = vmatpush1.msra.mxu0 0.0
        %2761 = vmatprep.subr.mxu0 0.0
        %2762 = vmatpush1.msra.mxu0 0.0
        %2763 = vmatprep.subr.mxu0 0.0
        %2764 = vmatpush1.msra.mxu0 0.0
        %2765 = vmatprep.subr.mxu0 0.0
        %2766 = vmatpush1.msra.mxu0 0.0
        %2767 = vmatprep.subr.mxu0 0.0
        %2768 = vmatpush1.msra.mxu0 0.0
        %2769 = vmatprep.subr.mxu0 0.0
        %2770 = vmatpush1.msra.mxu0 0.0
        %2771 = vmatprep.subr.mxu0 0.0
        %2772 = vmatpush1.msra.mxu0 0.0
        %2773 = vmatprep.subr.mxu0 0.0
        %2774 = vmatpush1.msra.mxu0 0.0
        %2775 = vmatprep.subr.mxu0 0.0
        %2776 = vmatpush1.msra.mxu0 0.0
        %2777 = vmatprep.subr.mxu0 0.0
        %2778 = vmatpush1.msra.mxu0 0.0
        %2779 = vmatprep.subr.mxu0 0.0
        %2780 = vmatpush1.msra.mxu0 0.0
        %2781 = vmatprep.subr.mxu0 0.0
        %2782 = vmatpush1.msra.mxu0 0.0
        %2783 = vmatprep.subr.mxu0 0.0
        %2784 = vmatpush1.msra.mxu0 0.0
        %2785 = vmatprep.subr.mxu0 0.0
        %2786 = vmatpush1.msra.mxu0 0.0
        %2787 = vmatprep.subr.mxu0 0.0
        %2788 = vmatpush1.msra.mxu0 0.0
        %2789 = vmatprep.subr.mxu0 0.0
        %2790 = vmatpush1.msra.mxu0 0.0
        %2791 = vmatprep.subr.mxu0 0.0
        %2792 = vmatpush1.msra.mxu0 0.0
        %2793 = vmatprep.subr.mxu0 0.0
        %2794 = vmatpush1.msra.mxu0 0.0
        %2795 = vmatprep.subr.mxu0 0.0
        %2796 = vmatpush1.msra.mxu0 0.0
        %2797 = vmatprep.subr.mxu0 0.0
        %2798 = vmatpush1.msra.mxu0 0.0
        %2799 = vmatprep.subr.mxu0 0.0
        %2800 = vmatpush1.msra.mxu0 0.0
        %2801 = vmatprep.subr.mxu0 0.0
        %2802 = vmatpush1.msra.mxu0 0.0
        %2803 = vmatprep.subr.mxu0 0.0
        %2804 = vmatpush1.msra.mxu0 0.0
        %2805 = vmatprep.subr.mxu0 0.0
        %2806 = vmatpush1.msra.mxu0 0.0
        %2807 = vmatprep.subr.mxu0 0.0
        %2808 = vmatpush1.msra.mxu0 0.0
        %2809 = vmatprep.mubr.f32.mxu0 0.0
        %v2810 = vand.u32 %v2662, 4294901760
        %2811 = vmatmul.mubr.f32.gmra.mrb[0].mxu0 %v2810
        %v2812 = vpop.f32.mrb[0].mxu0
        %v2813 = vadd.f32 %v2737, %v2812
        %v2814 = vpop.f32.mrb[0].mxu0
        %2815 = vdwg.mxu0
        %2816 = vmatprep.subr.mxu0 0.0
        %v2817 = vand.u32 %v824, 4294901760
        %v2818 = vsub.f32 %v824, %v2817
        %2819 = vmatpush1.msra.mxu0 %v2818
        %2820 = vmatprep.subr.mxu0 0.0
        %2821 = vmatpush1.msra.mxu0 0.0
        %2822 = vmatprep.subr.mxu0 0.0
        %2823 = vmatpush1.msra.mxu0 0.0
        %2824 = vmatprep.subr.mxu0 0.0
        %2825 = vmatpush1.msra.mxu0 0.0
        %2826 = vmatprep.subr.mxu0 0.0
        %2827 = vmatpush1.msra.mxu0 0.0
        %2828 = vmatprep.subr.mxu0 0.0
        %2829 = vmatpush1.msra.mxu0 0.0
        %2830 = vmatprep.subr.mxu0 0.0
        %2831 = vmatpush1.msra.mxu0 0.0
        %2832 = vmatprep.subr.mxu0 0.0
        %2833 = vmatpush1.msra.mxu0 0.0
        %2834 = vmatprep.subr.mxu0 0.0
        %2835 = vmatpush1.msra.mxu0 0.0
        %2836 = vmatprep.subr.mxu0 0.0
        %2837 = vmatpush1.msra.mxu0 0.0
        %2838 = vmatprep.subr.mxu0 0.0
        %2839 = vmatpush1.msra.mxu0 0.0
        %2840 = vmatprep.subr.mxu0 0.0
        %2841 = vmatpush1.msra.mxu0 0.0
        %2842 = vmatprep.subr.mxu0 0.0
        %2843 = vmatpush1.msra.mxu0 0.0
        %2844 = vmatprep.subr.mxu0 0.0
        %2845 = vmatpush1.msra.mxu0 0.0
        %2846 = vmatprep.subr.mxu0 0.0
        %2847 = vmatpush1.msra.mxu0 0.0
        %2848 = vmatprep.subr.mxu0 0.0
        %2849 = vmatpush1.msra.mxu0 0.0
        %2850 = vmatprep.subr.mxu0 0.0
        %2851 = vmatpush1.msra.mxu0 0.0
        %2852 = vmatprep.subr.mxu0 0.0
        %2853 = vmatpush1.msra.mxu0 0.0
        %2854 = vmatprep.subr.mxu0 0.0
        %2855 = vmatpush1.msra.mxu0 0.0
        %2856 = vmatprep.subr.mxu0 0.0
        %2857 = vmatpush1.msra.mxu0 0.0
        %2858 = vmatprep.subr.mxu0 0.0
        %2859 = vmatpush1.msra.mxu0 0.0
        %2860 = vmatprep.subr.mxu0 0.0
        %2861 = vmatpush1.msra.mxu0 0.0
        %2862 = vmatprep.subr.mxu0 0.0
        %2863 = vmatpush1.msra.mxu0 0.0
        %2864 = vmatprep.subr.mxu0 0.0
        %2865 = vmatpush1.msra.mxu0 0.0
        %2866 = vmatprep.subr.mxu0 0.0
        %2867 = vmatpush1.msra.mxu0 0.0
        %2868 = vmatprep.subr.mxu0 0.0
        %2869 = vmatpush1.msra.mxu0 0.0
        %2870 = vmatprep.subr.mxu0 0.0
        %2871 = vmatpush1.msra.mxu0 0.0
        %2872 = vmatprep.subr.mxu0 0.0
        %2873 = vmatpush1.msra.mxu0 0.0
        %2874 = vmatprep.subr.mxu0 0.0
        %2875 = vmatpush1.msra.mxu0 0.0
        %2876 = vmatprep.subr.mxu0 0.0
        %2877 = vmatpush1.msra.mxu0 0.0
        %2878 = vmatprep.subr.mxu0 0.0
        %2879 = vmatpush1.msra.mxu0 0.0
        %2880 = vmatprep.subr.mxu0 0.0
        %2881 = vmatpush1.msra.mxu0 0.0
        %2882 = vmatprep.mubr.f32.mxu0 0.0
        %v2883 = vand.u32 %v2662, 4294901760
        %v2884 = vsub.f32 %v2662, %v2883
        %2885 = vmatmul.mubr.f32.gmra.mrb[0].mxu0 %v2884
        %v2886 = vpop.f32.mrb[0].mxu0
        %v2887 = vadd.f32 %v2813, %v2886
        %v2888 = vpop.f32.mrb[0].mxu0
        %2889 = vdwg.mxu0
        %2890 = vmatprep.subr.mxu0 0.0
        %v2891 = vand.u32 %v824, 4294901760
        %2892 = vmatpush1.msra.mxu0 %v2891
        %2893 = vmatprep.subr.mxu0 0.0
        %2894 = vmatpush1.msra.mxu0 0.0
        %2895 = vmatprep.subr.mxu0 0.0
        %2896 = vmatpush1.msra.mxu0 0.0
        %2897 = vmatprep.subr.mxu0 0.0
        %2898 = vmatpush1.msra.mxu0 0.0
        %2899 = vmatprep.subr.mxu0 0.0
        %2900 = vmatpush1.msra.mxu0 0.0
        %2901 = vmatprep.subr.mxu0 0.0
        %2902 = vmatpush1.msra.mxu0 0.0
        %2903 = vmatprep.subr.mxu0 0.0
        %2904 = vmatpush1.msra.mxu0 0.0
        %2905 = vmatprep.subr.mxu0 0.0
        %2906 = vmatpush1.msra.mxu0 0.0
        %2907 = vmatprep.subr.mxu0 0.0
        %2908 = vmatpush1.msra.mxu0 0.0
        %2909 = vmatprep.subr.mxu0 0.0
        %2910 = vmatpush1.msra.mxu0 0.0
        %2911 = vmatprep.subr.mxu0 0.0
        %2912 = vmatpush1.msra.mxu0 0.0
        %2913 = vmatprep.subr.mxu0 0.0
        %2914 = vmatpush1.msra.mxu0 0.0
        %2915 = vmatprep.subr.mxu0 0.0
        %2916 = vmatpush1.msra.mxu0 0.0
        %2917 = vmatprep.subr.mxu0 0.0
        %2918 = vmatpush1.msra.mxu0 0.0
        %2919 = vmatprep.subr.mxu0 0.0
        %2920 = vmatpush1.msra.mxu0 0.0
        %2921 = vmatprep.subr.mxu0 0.0
        %2922 = vmatpush1.msra.mxu0 0.0
        %2923 = vmatprep.subr.mxu0 0.0
        %2924 = vmatpush1.msra.mxu0 0.0
        %2925 = vmatprep.subr.mxu0 0.0
        %2926 = vmatpush1.msra.mxu0 0.0
        %2927 = vmatprep.subr.mxu0 0.0
        %2928 = vmatpush1.msra.mxu0 0.0
        %2929 = vmatprep.subr.mxu0 0.0
        %2930 = vmatpush1.msra.mxu0 0.0
        %2931 = vmatprep.subr.mxu0 0.0
        %2932 = vmatpush1.msra.mxu0 0.0
        %2933 = vmatprep.subr.mxu0 0.0
        %2934 = vmatpush1.msra.mxu0 0.0
        %2935 = vmatprep.subr.mxu0 0.0
        %2936 = vmatpush1.msra.mxu0 0.0
        %2937 = vmatprep.subr.mxu0 0.0
        %2938 = vmatpush1.msra.mxu0 0.0
        %2939 = vmatprep.subr.mxu0 0.0
        %2940 = vmatpush1.msra.mxu0 0.0
        %2941 = vmatprep.subr.mxu0 0.0
        %2942 = vmatpush1.msra.mxu0 0.0
        %2943 = vmatprep.subr.mxu0 0.0
        %2944 = vmatpush1.msra.mxu0 0.0
        %2945 = vmatprep.subr.mxu0 0.0
        %2946 = vmatpush1.msra.mxu0 0.0
        %2947 = vmatprep.subr.mxu0 0.0
        %2948 = vmatpush1.msra.mxu0 0.0
        %2949 = vmatprep.subr.mxu0 0.0
        %2950 = vmatpush1.msra.mxu0 0.0
        %2951 = vmatprep.subr.mxu0 0.0
        %2952 = vmatpush1.msra.mxu0 0.0
        %2953 = vmatprep.subr.mxu0 0.0
        %2954 = vmatpush1.msra.mxu0 0.0
        %2955 = vmatprep.mubr.f32.mxu0 0.0
        %v2956 = vand.u32 %v2662, 4294901760
        %v2957 = vsub.f32 %v2662, %v2956
        %v2958 = vand.u32 %v2957, 4294901760
        %2959 = vmatmul.mubr.f32.gmra.mrb[0].mxu0 %v2958
        %v2960 = vpop.f32.mrb[0].mxu0
        %v2961 = vadd.f32 %v2887, %v2960
        %v2962 = vpop.f32.mrb[0].mxu0
        %2963 = vdwg.mxu0
        %2964 = vmatprep.subr.mxu0 0.0
        %v2965 = vand.u32 %v824, 4294901760
        %v2966 = vsub.f32 %v824, %v2965
        %v2967 = vand.u32 %v2966, 4294901760
        %2968 = vmatpush1.msra.mxu0 %v2967
        %2969 = vmatprep.subr.mxu0 0.0
        %2970 = vmatpush1.msra.mxu0 0.0
        %2971 = vmatprep.subr.mxu0 0.0
        %2972 = vmatpush1.msra.mxu0 0.0
        %2973 = vmatprep.subr.mxu0 0.0
        %2974 = vmatpush1.msra.mxu0 0.0
        %2975 = vmatprep.subr.mxu0 0.0
        %2976 = vmatpush1.msra.mxu0 0.0
        %2977 = vmatprep.subr.mxu0 0.0
        %2978 = vmatpush1.msra.mxu0 0.0
        %2979 = vmatprep.subr.mxu0 0.0
        %2980 = vmatpush1.msra.mxu0 0.0
        %2981 = vmatprep.subr.mxu0 0.0
        %2982 = vmatpush1.msra.mxu0 0.0
        %2983 = vmatprep.subr.mxu0 0.0
        %2984 = vmatpush1.msra.mxu0 0.0
        %2985 = vmatprep.subr.mxu0 0.0
        %2986 = vmatpush1.msra.mxu0 0.0
        %2987 = vmatprep.subr.mxu0 0.0
        %2988 = vmatpush1.msra.mxu0 0.0
        %2989 = vmatprep.subr.mxu0 0.0
        %2990 = vmatpush1.msra.mxu0 0.0
        %2991 = vmatprep.subr.mxu0 0.0
        %2992 = vmatpush1.msra.mxu0 0.0
        %2993 = vmatprep.subr.mxu0 0.0
        %2994 = vmatpush1.msra.mxu0 0.0
        %2995 = vmatprep.subr.mxu0 0.0
        %2996 = vmatpush1.msra.mxu0 0.0
        %2997 = vmatprep.subr.mxu0 0.0
        %2998 = vmatpush1.msra.mxu0 0.0
        %2999 = vmatprep.subr.mxu0 0.0
        %3000 = vmatpush1.msra.mxu0 0.0
        %3001 = vmatprep.subr.mxu0 0.0
        %3002 = vmatpush1.msra.mxu0 0.0
        %3003 = vmatprep.subr.mxu0 0.0
        %3004 = vmatpush1.msra.mxu0 0.0
        %3005 = vmatprep.subr.mxu0 0.0
        %3006 = vmatpush1.msra.mxu0 0.0
        %3007 = vmatprep.subr.mxu0 0.0
        %3008 = vmatpush1.msra.mxu0 0.0
        %3009 = vmatprep.subr.mxu0 0.0
        %3010 = vmatpush1.msra.mxu0 0.0
        %3011 = vmatprep.subr.mxu0 0.0
        %3012 = vmatpush1.msra.mxu0 0.0
        %3013 = vmatprep.subr.mxu0 0.0
        %3014 = vmatpush1.msra.mxu0 0.0
        %3015 = vmatprep.subr.mxu0 0.0
        %3016 = vmatpush1.msra.mxu0 0.0
        %3017 = vmatprep.subr.mxu0 0.0
        %3018 = vmatpush1.msra.mxu0 0.0
        %3019 = vmatprep.subr.mxu0 0.0
        %3020 = vmatpush1.msra.mxu0 0.0
        %3021 = vmatprep.subr.mxu0 0.0
        %3022 = vmatpush1.msra.mxu0 0.0
        %3023 = vmatprep.subr.mxu0 0.0
        %3024 = vmatpush1.msra.mxu0 0.0
        %3025 = vmatprep.subr.mxu0 0.0
        %3026 = vmatpush1.msra.mxu0 0.0
        %3027 = vmatprep.subr.mxu0 0.0
        %3028 = vmatpush1.msra.mxu0 0.0
        %3029 = vmatprep.subr.mxu0 0.0
        %3030 = vmatpush1.msra.mxu0 0.0
        %3031 = vmatprep.mubr.f32.mxu0 0.0
        %v3032 = vand.u32 %v2662, 4294901760
        %3033 = vmatmul.mubr.f32.gmra.mrb[0].mxu0 %v3032
        %v3034 = vpop.f32.mrb[0].mxu0
        %v3035 = vadd.f32 %v2961, %v3034
        %v3036 = vpop.f32.mrb[0].mxu0
        %3037 = vdwg.mxu0
        %3038 = vmatprep.subr.mxu0 0.0
        %v3039 = vand.u32 %v824, 4294901760
        %3040 = vmatpush1.msra.mxu0 %v3039
        %3041 = vmatprep.subr.mxu0 0.0
        %3042 = vmatpush1.msra.mxu0 0.0
        %3043 = vmatprep.subr.mxu0 0.0
        %3044 = vmatpush1.msra.mxu0 0.0
        %3045 = vmatprep.subr.mxu0 0.0
        %3046 = vmatpush1.msra.mxu0 0.0
        %3047 = vmatprep.subr.mxu0 0.0
        %3048 = vmatpush1.msra.mxu0 0.0
        %3049 = vmatprep.subr.mxu0 0.0
        %3050 = vmatpush1.msra.mxu0 0.0
        %3051 = vmatprep.subr.mxu0 0.0
        %3052 = vmatpush1.msra.mxu0 0.0
        %3053 = vmatprep.subr.mxu0 0.0
        %3054 = vmatpush1.msra.mxu0 0.0
        %3055 = vmatprep.subr.mxu0 0.0
        %3056 = vmatpush1.msra.mxu0 0.0
        %3057 = vmatprep.subr.mxu0 0.0
        %3058 = vmatpush1.msra.mxu0 0.0
        %3059 = vmatprep.subr.mxu0 0.0
        %3060 = vmatpush1.msra.mxu0 0.0
        %3061 = vmatprep.subr.mxu0 0.0
        %3062 = vmatpush1.msra.mxu0 0.0
        %3063 = vmatprep.subr.mxu0 0.0
        %3064 = vmatpush1.msra.mxu0 0.0
        %3065 = vmatprep.subr.mxu0 0.0
        %3066 = vmatpush1.msra.mxu0 0.0
        %3067 = vmatprep.subr.mxu0 0.0
        %3068 = vmatpush1.msra.mxu0 0.0
        %3069 = vmatprep.subr.mxu0 0.0
        %3070 = vmatpush1.msra.mxu0 0.0
        %3071 = vmatprep.subr.mxu0 0.0
        %3072 = vmatpush1.msra.mxu0 0.0
        %3073 = vmatprep.subr.mxu0 0.0
        %3074 = vmatpush1.msra.mxu0 0.0
        %3075 = vmatprep.subr.mxu0 0.0
        %3076 = vmatpush1.msra.mxu0 0.0
        %3077 = vmatprep.subr.mxu0 0.0
        %3078 = vmatpush1.msra.mxu0 0.0
        %3079 = vmatprep.subr.mxu0 0.0
        %3080 = vmatpush1.msra.mxu0 0.0
        %3081 = vmatprep.subr.mxu0 0.0
        %3082 = vmatpush1.msra.mxu0 0.0
        %3083 = vmatprep.subr.mxu0 0.0
        %3084 = vmatpush1.msra.mxu0 0.0
        %3085 = vmatprep.subr.mxu0 0.0
        %3086 = vmatpush1.msra.mxu0 0.0
        %3087 = vmatprep.subr.mxu0 0.0
        %3088 = vmatpush1.msra.mxu0 0.0
        %3089 = vmatprep.subr.mxu0 0.0
        %3090 = vmatpush1.msra.mxu0 0.0
        %3091 = vmatprep.subr.mxu0 0.0
        %3092 = vmatpush1.msra.mxu0 0.0
        %3093 = vmatprep.subr.mxu0 0.0
        %3094 = vmatpush1.msra.mxu0 0.0
        %3095 = vmatprep.subr.mxu0 0.0
        %3096 = vmatpush1.msra.mxu0 0.0
        %3097 = vmatprep.subr.mxu0 0.0
        %3098 = vmatpush1.msra.mxu0 0.0
        %3099 = vmatprep.subr.mxu0 0.0
        %3100 = vmatpush1.msra.mxu0 0.0
        %3101 = vmatprep.subr.mxu0 0.0
        %3102 = vmatpush1.msra.mxu0 0.0
        %3103 = vmatprep.mubr.f32.mxu0 0.0
        %v3104 = vand.u32 %v2662, 4294901760
        %3105 = vmatmul.mubr.f32.gmra.mrb[0].mxu0 %v3104
        %v3106 = vpop.f32.mrb[0].mxu0
        %v3107 = vadd.f32 %v3035, %v3106
        %v3108 = vpop.f32.mrb[0].mxu0
        %3109 = vdwg.mxu0
        %v3111 = vsel %vm830, %v1741, 0
        %3113 = vmatprep.subr.mxu0 0.0
        %v3114 = vand.u32 %v823, 4294901760
        %3115 = vmatpush1.msra.mxu0 %v3114
        %3116 = vmatprep.subr.mxu0 0.0
        %3117 = vmatpush1.msra.mxu0 0.0
        %3118 = vmatprep.subr.mxu0 0.0
        %3119 = vmatpush1.msra.mxu0 0.0
        %3120 = vmatprep.subr.mxu0 0.0
        %3121 = vmatpush1.msra.mxu0 0.0
        %3122 = vmatprep.subr.mxu0 0.0
        %3123 = vmatpush1.msra.mxu0 0.0
        %3124 = vmatprep.subr.mxu0 0.0
        %3125 = vmatpush1.msra.mxu0 0.0
        %3126 = vmatprep.subr.mxu0 0.0
        %3127 = vmatpush1.msra.mxu0 0.0
        %3128 = vmatprep.subr.mxu0 0.0
        %3129 = vmatpush1.msra.mxu0 0.0
        %3130 = vmatprep.subr.mxu0 0.0
        %3131 = vmatpush1.msra.mxu0 0.0
        %3132 = vmatprep.subr.mxu0 0.0
        %3133 = vmatpush1.msra.mxu0 0.0
        %3134 = vmatprep.subr.mxu0 0.0
        %3135 = vmatpush1.msra.mxu0 0.0
        %3136 = vmatprep.subr.mxu0 0.0
        %3137 = vmatpush1.msra.mxu0 0.0
        %3138 = vmatprep.subr.mxu0 0.0
        %3139 = vmatpush1.msra.mxu0 0.0
        %3140 = vmatprep.subr.mxu0 0.0
        %3141 = vmatpush1.msra.mxu0 0.0
        %3142 = vmatprep.subr.mxu0 0.0
        %3143 = vmatpush1.msra.mxu0 0.0
        %3144 = vmatprep.subr.mxu0 0.0
        %3145 = vmatpush1.msra.mxu0 0.0
        %3146 = vmatprep.subr.mxu0 0.0
        %3147 = vmatpush1.msra.mxu0 0.0
        %3148 = vmatprep.subr.mxu0 0.0
        %3149 = vmatpush1.msra.mxu0 0.0
        %3150 = vmatprep.subr.mxu0 0.0
        %3151 = vmatpush1.msra.mxu0 0.0
        %3152 = vmatprep.subr.mxu0 0.0
        %3153 = vmatpush1.msra.mxu0 0.0
        %3154 = vmatprep.subr.mxu0 0.0
        %3155 = vmatpush1.msra.mxu0 0.0
        %3156 = vmatprep.subr.mxu0 0.0
        %3157 = vmatpush1.msra.mxu0 0.0
        %3158 = vmatprep.subr.mxu0 0.0
        %3159 = vmatpush1.msra.mxu0 0.0
        %3160 = vmatprep.subr.mxu0 0.0
        %3161 = vmatpush1.msra.mxu0 0.0
        %3162 = vmatprep.subr.mxu0 0.0
        %3163 = vmatpush1.msra.mxu0 0.0
        %3164 = vmatprep.subr.mxu0 0.0
        %3165 = vmatpush1.msra.mxu0 0.0
        %3166 = vmatprep.subr.mxu0 0.0
        %3167 = vmatpush1.msra.mxu0 0.0
        %3168 = vmatprep.subr.mxu0 0.0
        %3169 = vmatpush1.msra.mxu0 0.0
        %3170 = vmatprep.subr.mxu0 0.0
        %3171 = vmatpush1.msra.mxu0 0.0
        %3172 = vmatprep.subr.mxu0 0.0
        %3173 = vmatpush1.msra.mxu0 0.0
        %3174 = vmatprep.subr.mxu0 0.0
        %3175 = vmatpush1.msra.mxu0 0.0
        %3176 = vmatprep.subr.mxu0 0.0
        %3177 = vmatpush1.msra.mxu0 0.0
        %3178 = vmatprep.mubr.f32.mxu0 0.0
        %v3179 = vand.u32 %v3111, 4294901760
        %v3180 = vsub.f32 %v3111, %v3179
        %v3181 = vand.u32 %v3180, 4294901760
        %v3182 = vsub.f32 %v3180, %v3181
        %v3183 = vand.u32 %v3182, 4294901760
        %3184 = vmatmul.mubr.f32.gmra.mrb[0].mxu0 %v3183
        %v3185 = vpop.f32.mrb[0].mxu0
        %v3186 = vadd.f32 %v3107, %v3185
        %v3187 = vpop.f32.mrb[0].mxu0
        %3188 = vdwg.mxu0
        %3189 = vmatprep.subr.mxu0 0.0
        %v3190 = vand.u32 %v823, 4294901760
        %v3191 = vsub.f32 %v823, %v3190
        %v3192 = vand.u32 %v3191, 4294901760
        %v3193 = vsub.f32 %v3191, %v3192
        %v3194 = vand.u32 %v3193, 4294901760
        %3195 = vmatpush1.msra.mxu0 %v3194
        %3196 = vmatprep.subr.mxu0 0.0
        %3197 = vmatpush1.msra.mxu0 0.0
        %3198 = vmatprep.subr.mxu0 0.0
        %3199 = vmatpush1.msra.mxu0 0.0
        %3200 = vmatprep.subr.mxu0 0.0
        %3201 = vmatpush1.msra.mxu0 0.0
        %3202 = vmatprep.subr.mxu0 0.0
        %3203 = vmatpush1.msra.mxu0 0.0
        %3204 = vmatprep.subr.mxu0 0.0
        %3205 = vmatpush1.msra.mxu0 0.0
        %3206 = vmatprep.subr.mxu0 0.0
        %3207 = vmatpush1.msra.mxu0 0.0
        %3208 = vmatprep.subr.mxu0 0.0
        %3209 = vmatpush1.msra.mxu0 0.0
        %3210 = vmatprep.subr.mxu0 0.0
        %3211 = vmatpush1.msra.mxu0 0.0
        %3212 = vmatprep.subr.mxu0 0.0
        %3213 = vmatpush1.msra.mxu0 0.0
        %3214 = vmatprep.subr.mxu0 0.0
        %3215 = vmatpush1.msra.mxu0 0.0
        %3216 = vmatprep.subr.mxu0 0.0
        %3217 = vmatpush1.msra.mxu0 0.0
        %3218 = vmatprep.subr.mxu0 0.0
        %3219 = vmatpush1.msra.mxu0 0.0
        %3220 = vmatprep.subr.mxu0 0.0
        %3221 = vmatpush1.msra.mxu0 0.0
        %3222 = vmatprep.subr.mxu0 0.0
        %3223 = vmatpush1.msra.mxu0 0.0
        %3224 = vmatprep.subr.mxu0 0.0
        %3225 = vmatpush1.msra.mxu0 0.0
        %3226 = vmatprep.subr.mxu0 0.0
        %3227 = vmatpush1.msra.mxu0 0.0
        %3228 = vmatprep.subr.mxu0 0.0
        %3229 = vmatpush1.msra.mxu0 0.0
        %3230 = vmatprep.subr.mxu0 0.0
        %3231 = vmatpush1.msra.mxu0 0.0
        %3232 = vmatprep.subr.mxu0 0.0
        %3233 = vmatpush1.msra.mxu0 0.0
        %3234 = vmatprep.subr.mxu0 0.0
        %3235 = vmatpush1.msra.mxu0 0.0
        %3236 = vmatprep.subr.mxu0 0.0
        %3237 = vmatpush1.msra.mxu0 0.0
        %3238 = vmatprep.subr.mxu0 0.0
        %3239 = vmatpush1.msra.mxu0 0.0
        %3240 = vmatprep.subr.mxu0 0.0
        %3241 = vmatpush1.msra.mxu0 0.0
        %3242 = vmatprep.subr.mxu0 0.0
        %3243 = vmatpush1.msra.mxu0 0.0
        %3244 = vmatprep.subr.mxu0 0.0
        %3245 = vmatpush1.msra.mxu0 0.0
        %3246 = vmatprep.subr.mxu0 0.0
        %3247 = vmatpush1.msra.mxu0 0.0
        %3248 = vmatprep.subr.mxu0 0.0
        %3249 = vmatpush1.msra.mxu0 0.0
        %3250 = vmatprep.subr.mxu0 0.0
        %3251 = vmatpush1.msra.mxu0 0.0
        %3252 = vmatprep.subr.mxu0 0.0
        %3253 = vmatpush1.msra.mxu0 0.0
        %3254 = vmatprep.subr.mxu0 0.0
        %3255 = vmatpush1.msra.mxu0 0.0
        %3256 = vmatprep.subr.mxu0 0.0
        %3257 = vmatpush1.msra.mxu0 0.0
        %3258 = vmatprep.mubr.f32.mxu0 0.0
        %v3259 = vand.u32 %v3111, 4294901760
        %3260 = vmatmul.mubr.f32.gmra.mrb[0].mxu0 %v3259
        %v3261 = vpop.f32.mrb[0].mxu0
        %v3262 = vadd.f32 %v3186, %v3261
        %v3263 = vpop.f32.mrb[0].mxu0
        %3264 = vdwg.mxu0
        %3265 = vmatprep.subr.mxu0 0.0
        %v3266 = vand.u32 %v823, 4294901760
        %v3267 = vsub.f32 %v823, %v3266
        %3268 = vmatpush1.msra.mxu0 %v3267
        %3269 = vmatprep.subr.mxu0 0.0
        %3270 = vmatpush1.msra.mxu0 0.0
        %3271 = vmatprep.subr.mxu0 0.0
        %3272 = vmatpush1.msra.mxu0 0.0
        %3273 = vmatprep.subr.mxu0 0.0
        %3274 = vmatpush1.msra.mxu0 0.0
        %3275 = vmatprep.subr.mxu0 0.0
        %3276 = vmatpush1.msra.mxu0 0.0
        %3277 = vmatprep.subr.mxu0 0.0
        %3278 = vmatpush1.msra.mxu0 0.0
        %3279 = vmatprep.subr.mxu0 0.0
        %3280 = vmatpush1.msra.mxu0 0.0
        %3281 = vmatprep.subr.mxu0 0.0
        %3282 = vmatpush1.msra.mxu0 0.0
        %3283 = vmatprep.subr.mxu0 0.0
        %3284 = vmatpush1.msra.mxu0 0.0
        %3285 = vmatprep.subr.mxu0 0.0
        %3286 = vmatpush1.msra.mxu0 0.0
        %3287 = vmatprep.subr.mxu0 0.0
        %3288 = vmatpush1.msra.mxu0 0.0
        %3289 = vmatprep.subr.mxu0 0.0
        %3290 = vmatpush1.msra.mxu0 0.0
        %3291 = vmatprep.subr.mxu0 0.0
        %3292 = vmatpush1.msra.mxu0 0.0
        %3293 = vmatprep.subr.mxu0 0.0
        %3294 = vmatpush1.msra.mxu0 0.0
        %3295 = vmatprep.subr.mxu0 0.0
        %3296 = vmatpush1.msra.mxu0 0.0
        %3297 = vmatprep.subr.mxu0 0.0
        %3298 = vmatpush1.msra.mxu0 0.0
        %3299 = vmatprep.subr.mxu0 0.0
        %3300 = vmatpush1.msra.mxu0 0.0
        %3301 = vmatprep.subr.mxu0 0.0
        %3302 = vmatpush1.msra.mxu0 0.0
        %3303 = vmatprep.subr.mxu0 0.0
        %3304 = vmatpush1.msra.mxu0 0.0
        %3305 = vmatprep.subr.mxu0 0.0
        %3306 = vmatpush1.msra.mxu0 0.0
        %3307 = vmatprep.subr.mxu0 0.0
        %3308 = vmatpush1.msra.mxu0 0.0
        %3309 = vmatprep.subr.mxu0 0.0
        %3310 = vmatpush1.msra.mxu0 0.0
        %3311 = vmatprep.subr.mxu0 0.0
        %3312 = vmatpush1.msra.mxu0 0.0
        %3313 = vmatprep.subr.mxu0 0.0
        %3314 = vmatpush1.msra.mxu0 0.0
        %3315 = vmatprep.subr.mxu0 0.0
        %3316 = vmatpush1.msra.mxu0 0.0
        %3317 = vmatprep.subr.mxu0 0.0
        %3318 = vmatpush1.msra.mxu0 0.0
        %3319 = vmatprep.subr.mxu0 0.0
        %3320 = vmatpush1.msra.mxu0 0.0
        %3321 = vmatprep.subr.mxu0 0.0
        %3322 = vmatpush1.msra.mxu0 0.0
        %3323 = vmatprep.subr.mxu0 0.0
        %3324 = vmatpush1.msra.mxu0 0.0
        %3325 = vmatprep.subr.mxu0 0.0
        %3326 = vmatpush1.msra.mxu0 0.0
        %3327 = vmatprep.subr.mxu0 0.0
        %3328 = vmatpush1.msra.mxu0 0.0
        %3329 = vmatprep.subr.mxu0 0.0
        %3330 = vmatpush1.msra.mxu0 0.0
        %3331 = vmatprep.mubr.f32.mxu0 0.0
        %v3332 = vand.u32 %v3111, 4294901760
        %v3333 = vsub.f32 %v3111, %v3332
        %3334 = vmatmul.mubr.f32.gmra.mrb[0].mxu0 %v3333
        %v3335 = vpop.f32.mrb[0].mxu0
        %v3336 = vadd.f32 %v3262, %v3335
        %v3337 = vpop.f32.mrb[0].mxu0
        %3338 = vdwg.mxu0
        %3339 = vmatprep.subr.mxu0 0.0
        %v3340 = vand.u32 %v823, 4294901760
        %3341 = vmatpush1.msra.mxu0 %v3340
        %3342 = vmatprep.subr.mxu0 0.0
        %3343 = vmatpush1.msra.mxu0 0.0
        %3344 = vmatprep.subr.mxu0 0.0
        %3345 = vmatpush1.msra.mxu0 0.0
        %3346 = vmatprep.subr.mxu0 0.0
        %3347 = vmatpush1.msra.mxu0 0.0
        %3348 = vmatprep.subr.mxu0 0.0
        %3349 = vmatpush1.msra.mxu0 0.0
        %3350 = vmatprep.subr.mxu0 0.0
        %3351 = vmatpush1.msra.mxu0 0.0
        %3352 = vmatprep.subr.mxu0 0.0
        %3353 = vmatpush1.msra.mxu0 0.0
        %3354 = vmatprep.subr.mxu0 0.0
        %3355 = vmatpush1.msra.mxu0 0.0
        %3356 = vmatprep.subr.mxu0 0.0
        %3357 = vmatpush1.msra.mxu0 0.0
        %3358 = vmatprep.subr.mxu0 0.0
        %3359 = vmatpush1.msra.mxu0 0.0
        %3360 = vmatprep.subr.mxu0 0.0
        %3361 = vmatpush1.msra.mxu0 0.0
        %3362 = vmatprep.subr.mxu0 0.0
        %3363 = vmatpush1.msra.mxu0 0.0
        %3364 = vmatprep.subr.mxu0 0.0
        %3365 = vmatpush1.msra.mxu0 0.0
        %3366 = vmatprep.subr.mxu0 0.0
        %3367 = vmatpush1.msra.mxu0 0.0
        %3368 = vmatprep.subr.mxu0 0.0
        %3369 = vmatpush1.msra.mxu0 0.0
        %3370 = vmatprep.subr.mxu0 0.0
        %3371 = vmatpush1.msra.mxu0 0.0
        %3372 = vmatprep.subr.mxu0 0.0
        %3373 = vmatpush1.msra.mxu0 0.0
        %3374 = vmatprep.subr.mxu0 0.0
        %3375 = vmatpush1.msra.mxu0 0.0
        %3376 = vmatprep.subr.mxu0 0.0
        %3377 = vmatpush1.msra.mxu0 0.0
        %3378 = vmatprep.subr.mxu0 0.0
        %3379 = vmatpush1.msra.mxu0 0.0
        %3380 = vmatprep.subr.mxu0 0.0
        %3381 = vmatpush1.msra.mxu0 0.0
        %3382 = vmatprep.subr.mxu0 0.0
        %3383 = vmatpush1.msra.mxu0 0.0
        %3384 = vmatprep.subr.mxu0 0.0
        %3385 = vmatpush1.msra.mxu0 0.0
        %3386 = vmatprep.subr.mxu0 0.0
        %3387 = vmatpush1.msra.mxu0 0.0
        %3388 = vmatprep.subr.mxu0 0.0
        %3389 = vmatpush1.msra.mxu0 0.0
        %3390 = vmatprep.subr.mxu0 0.0
        %3391 = vmatpush1.msra.mxu0 0.0
        %3392 = vmatprep.subr.mxu0 0.0
        %3393 = vmatpush1.msra.mxu0 0.0
        %3394 = vmatprep.subr.mxu0 0.0
        %3395 = vmatpush1.msra.mxu0 0.0
        %3396 = vmatprep.subr.mxu0 0.0
        %3397 = vmatpush1.msra.mxu0 0.0
        %3398 = vmatprep.subr.mxu0 0.0
        %3399 = vmatpush1.msra.mxu0 0.0
        %3400 = vmatprep.subr.mxu0 0.0
        %3401 = vmatpush1.msra.mxu0 0.0
        %3402 = vmatprep.subr.mxu0 0.0
        %3403 = vmatpush1.msra.mxu0 0.0
        %3404 = vmatprep.mubr.f32.mxu0 0.0
        %v3405 = vand.u32 %v3111, 4294901760
        %v3406 = vsub.f32 %v3111, %v3405
        %v3407 = vand.u32 %v3406, 4294901760
        %3408 = vmatmul.mubr.f32.gmra.mrb[0].mxu0 %v3407
        %v3409 = vpop.f32.mrb[0].mxu0
        %v3410 = vadd.f32 %v3336, %v3409
        %v3411 = vpop.f32.mrb[0].mxu0
        %3412 = vdwg.mxu0
        %3413 = vmatprep.subr.mxu0 0.0
        %v3414 = vand.u32 %v823, 4294901760
        %v3415 = vsub.f32 %v823, %v3414
        %v3416 = vand.u32 %v3415, 4294901760
        %3417 = vmatpush1.msra.mxu0 %v3416
        %3418 = vmatprep.subr.mxu0 0.0
        %3419 = vmatpush1.msra.mxu0 0.0
        %3420 = vmatprep.subr.mxu0 0.0
        %3421 = vmatpush1.msra.mxu0 0.0
        %3422 = vmatprep.subr.mxu0 0.0
        %3423 = vmatpush1.msra.mxu0 0.0
        %3424 = vmatprep.subr.mxu0 0.0
        %3425 = vmatpush1.msra.mxu0 0.0
        %3426 = vmatprep.subr.mxu0 0.0
        %3427 = vmatpush1.msra.mxu0 0.0
        %3428 = vmatprep.subr.mxu0 0.0
        %3429 = vmatpush1.msra.mxu0 0.0
        %3430 = vmatprep.subr.mxu0 0.0
        %3431 = vmatpush1.msra.mxu0 0.0
        %3432 = vmatprep.subr.mxu0 0.0
        %3433 = vmatpush1.msra.mxu0 0.0
        %3434 = vmatprep.subr.mxu0 0.0
        %3435 = vmatpush1.msra.mxu0 0.0
        %3436 = vmatprep.subr.mxu0 0.0
        %3437 = vmatpush1.msra.mxu0 0.0
        %3438 = vmatprep.subr.mxu0 0.0
        %3439 = vmatpush1.msra.mxu0 0.0
        %3440 = vmatprep.subr.mxu0 0.0
        %3441 = vmatpush1.msra.mxu0 0.0
        %3442 = vmatprep.subr.mxu0 0.0
        %3443 = vmatpush1.msra.mxu0 0.0
        %3444 = vmatprep.subr.mxu0 0.0
        %3445 = vmatpush1.msra.mxu0 0.0
        %3446 = vmatprep.subr.mxu0 0.0
        %3447 = vmatpush1.msra.mxu0 0.0
        %3448 = vmatprep.subr.mxu0 0.0
        %3449 = vmatpush1.msra.mxu0 0.0
        %3450 = vmatprep.subr.mxu0 0.0
        %3451 = vmatpush1.msra.mxu0 0.0
        %3452 = vmatprep.subr.mxu0 0.0
        %3453 = vmatpush1.msra.mxu0 0.0
        %3454 = vmatprep.subr.mxu0 0.0
        %3455 = vmatpush1.msra.mxu0 0.0
        %3456 = vmatprep.subr.mxu0 0.0
        %3457 = vmatpush1.msra.mxu0 0.0
        %3458 = vmatprep.subr.mxu0 0.0
        %3459 = vmatpush1.msra.mxu0 0.0
        %3460 = vmatprep.subr.mxu0 0.0
        %3461 = vmatpush1.msra.mxu0 0.0
        %3462 = vmatprep.subr.mxu0 0.0
        %3463 = vmatpush1.msra.mxu0 0.0
        %3464 = vmatprep.subr.mxu0 0.0
        %3465 = vmatpush1.msra.mxu0 0.0
        %3466 = vmatprep.subr.mxu0 0.0
        %3467 = vmatpush1.msra.mxu0 0.0
        %3468 = vmatprep.subr.mxu0 0.0
        %3469 = vmatpush1.msra.mxu0 0.0
        %3470 = vmatprep.subr.mxu0 0.0
        %3471 = vmatpush1.msra.mxu0 0.0
        %3472 = vmatprep.subr.mxu0 0.0
        %3473 = vmatpush1.msra.mxu0 0.0
        %3474 = vmatprep.subr.mxu0 0.0
        %3475 = vmatpush1.msra.mxu0 0.0
        %3476 = vmatprep.subr.mxu0 0.0
        %3477 = vmatpush1.msra.mxu0 0.0
        %3478 = vmatprep.subr.mxu0 0.0
        %3479 = vmatpush1.msra.mxu0 0.0
        %3480 = vmatprep.mubr.f32.mxu0 0.0
        %v3481 = vand.u32 %v3111, 4294901760
        %3482 = vmatmul.mubr.f32.gmra.mrb[0].mxu0 %v3481
        %v3483 = vpop.f32.mrb[0].mxu0
        %v3484 = vadd.f32 %v3410, %v3483
        %v3485 = vpop.f32.mrb[0].mxu0
        %3486 = vdwg.mxu0
        %3487 = vmatprep.subr.mxu0 0.0
        %v3488 = vand.u32 %v823, 4294901760
        %3489 = vmatpush1.msra.mxu0 %v3488
        %3490 = vmatprep.subr.mxu0 0.0
        %3491 = vmatpush1.msra.mxu0 0.0
        %3492 = vmatprep.subr.mxu0 0.0
        %3493 = vmatpush1.msra.mxu0 0.0
        %3494 = vmatprep.subr.mxu0 0.0
        %3495 = vmatpush1.msra.mxu0 0.0
        %3496 = vmatprep.subr.mxu0 0.0
        %3497 = vmatpush1.msra.mxu0 0.0
        %3498 = vmatprep.subr.mxu0 0.0
        %3499 = vmatpush1.msra.mxu0 0.0
        %3500 = vmatprep.subr.mxu0 0.0
        %3501 = vmatpush1.msra.mxu0 0.0
        %3502 = vmatprep.subr.mxu0 0.0
        %3503 = vmatpush1.msra.mxu0 0.0
        %3504 = vmatprep.subr.mxu0 0.0
        %3505 = vmatpush1.msra.mxu0 0.0
        %3506 = vmatprep.subr.mxu0 0.0
        %3507 = vmatpush1.msra.mxu0 0.0
        %3508 = vmatprep.subr.mxu0 0.0
        %3509 = vmatpush1.msra.mxu0 0.0
        %3510 = vmatprep.subr.mxu0 0.0
        %3511 = vmatpush1.msra.mxu0 0.0
        %3512 = vmatprep.subr.mxu0 0.0
        %3513 = vmatpush1.msra.mxu0 0.0
        %3514 = vmatprep.subr.mxu0 0.0
        %3515 = vmatpush1.msra.mxu0 0.0
        %3516 = vmatprep.subr.mxu0 0.0
        %3517 = vmatpush1.msra.mxu0 0.0
        %3518 = vmatprep.subr.mxu0 0.0
        %3519 = vmatpush1.msra.mxu0 0.0
        %3520 = vmatprep.subr.mxu0 0.0
        %3521 = vmatpush1.msra.mxu0 0.0
        %3522 = vmatprep.subr.mxu0 0.0
        %3523 = vmatpush1.msra.mxu0 0.0
        %3524 = vmatprep.subr.mxu0 0.0
        %3525 = vmatpush1.msra.mxu0 0.0
        %3526 = vmatprep.subr.mxu0 0.0
        %3527 = vmatpush1.msra.mxu0 0.0
        %3528 = vmatprep.subr.mxu0 0.0
        %3529 = vmatpush1.msra.mxu0 0.0
        %3530 = vmatprep.subr.mxu0 0.0
        %3531 = vmatpush1.msra.mxu0 0.0
        %3532 = vmatprep.subr.mxu0 0.0
        %3533 = vmatpush1.msra.mxu0 0.0
        %3534 = vmatprep.subr.mxu0 0.0
        %3535 = vmatpush1.msra.mxu0 0.0
        %3536 = vmatprep.subr.mxu0 0.0
        %3537 = vmatpush1.msra.mxu0 0.0
        %3538 = vmatprep.subr.mxu0 0.0
        %3539 = vmatpush1.msra.mxu0 0.0
        %3540 = vmatprep.subr.mxu0 0.0
        %3541 = vmatpush1.msra.mxu0 0.0
        %3542 = vmatprep.subr.mxu0 0.0
        %3543 = vmatpush1.msra.mxu0 0.0
        %3544 = vmatprep.subr.mxu0 0.0
        %3545 = vmatpush1.msra.mxu0 0.0
        %3546 = vmatprep.subr.mxu0 0.0
        %3547 = vmatpush1.msra.mxu0 0.0
        %3548 = vmatprep.subr.mxu0 0.0
        %3549 = vmatpush1.msra.mxu0 0.0
        %3550 = vmatprep.subr.mxu0 0.0
        %3551 = vmatpush1.msra.mxu0 0.0
        %3552 = vmatprep.mubr.f32.mxu0 0.0
        %v3553 = vand.u32 %v3111, 4294901760
        %3554 = vmatmul.mubr.f32.gmra.mrb[0].mxu0 %v3553
        %v3555 = vpop.f32.mrb[0].mxu0
        %v3556 = vadd.f32 %v3484, %v3555
        %v3557 = vpop.f32.mrb[0].mxu0
        %3558 = vdwg.mxu0
        %3559 = vrot.lane.b32.xlu0 %v820, 112
        %v3560 = vpop.permute.xlu0 %3559
        %3561 = vrot.lane.b32.xlu0 %v820, 80
        %v3562 = vpop.permute.xlu0 %3561
        %v3563 = vsel %vm830, %v3560, 0
        %v3565 = vsel %vm830, %v3562, 0
        %3567 = vmatprep.subr.mxu0 0.0
        %v3568 = vand.u32 %v3565, 4294901760
        %3569 = vmatpush1.xpose.msra.mxu0 %v3568
        %3570 = vmatprep.subr.mxu0 0.0
        %3571 = vmatpush1.xpose.msra.mxu0 0.0
        %3572 = vmatprep.subr.mxu0 0.0
        %3573 = vmatpush1.xpose.msra.mxu0 0.0
        %3574 = vmatprep.subr.mxu0 0.0
        %3575 = vmatpush1.xpose.msra.mxu0 0.0
        %3576 = vmatprep.subr.mxu0 0.0
        %3577 = vmatpush1.xpose.msra.mxu0 0.0
        %3578 = vmatprep.subr.mxu0 0.0
        %3579 = vmatpush1.xpose.msra.mxu0 0.0
        %3580 = vmatprep.subr.mxu0 0.0
        %3581 = vmatpush1.xpose.msra.mxu0 0.0
        %3582 = vmatprep.subr.mxu0 0.0
        %3583 = vmatpush1.xpose.msra.mxu0 0.0
        %3584 = vmatprep.subr.mxu0 0.0
        %3585 = vmatpush1.xpose.msra.mxu0 0.0
        %3586 = vmatprep.subr.mxu0 0.0
        %3587 = vmatpush1.xpose.msra.mxu0 0.0
        %3588 = vmatprep.subr.mxu0 0.0
        %3589 = vmatpush1.xpose.msra.mxu0 0.0
        %3590 = vmatprep.subr.mxu0 0.0
        %3591 = vmatpush1.xpose.msra.mxu0 0.0
        %3592 = vmatprep.subr.mxu0 0.0
        %3593 = vmatpush1.xpose.msra.mxu0 0.0
        %3594 = vmatprep.subr.mxu0 0.0
        %3595 = vmatpush1.xpose.msra.mxu0 0.0
        %3596 = vmatprep.subr.mxu0 0.0
        %3597 = vmatpush1.xpose.msra.mxu0 0.0
        %3598 = vmatprep.subr.mxu0 0.0
        %3599 = vmatpush1.xpose.msra.mxu0 0.0
        %3600 = vmatprep.subr.mxu0 0.0
        %3601 = vmatpush1.xpose.msra.mxu0 0.0
        %3602 = vmatprep.subr.mxu0 0.0
        %3603 = vmatpush1.xpose.msra.mxu0 0.0
        %3604 = vmatprep.subr.mxu0 0.0
        %3605 = vmatpush1.xpose.msra.mxu0 0.0
        %3606 = vmatprep.subr.mxu0 0.0
        %3607 = vmatpush1.xpose.msra.mxu0 0.0
        %3608 = vmatprep.subr.mxu0 0.0
        %3609 = vmatpush1.xpose.msra.mxu0 0.0
        %3610 = vmatprep.subr.mxu0 0.0
        %3611 = vmatpush1.xpose.msra.mxu0 0.0
        %3612 = vmatprep.subr.mxu0 0.0
        %3613 = vmatpush1.xpose.msra.mxu0 0.0
        %3614 = vmatprep.subr.mxu0 0.0
        %3615 = vmatpush1.xpose.msra.mxu0 0.0
        %3616 = vmatprep.subr.mxu0 0.0
        %3617 = vmatpush1.xpose.msra.mxu0 0.0
        %3618 = vmatprep.subr.mxu0 0.0
        %3619 = vmatpush1.xpose.msra.mxu0 0.0
        %3620 = vmatprep.subr.mxu0 0.0
        %3621 = vmatpush1.xpose.msra.mxu0 0.0
        %3622 = vmatprep.subr.mxu0 0.0
        %3623 = vmatpush1.xpose.msra.mxu0 0.0
        %3624 = vmatprep.subr.mxu0 0.0
        %3625 = vmatpush1.xpose.msra.mxu0 0.0
        %3626 = vmatprep.subr.mxu0 0.0
        %3627 = vmatpush1.xpose.msra.mxu0 0.0
        %3628 = vmatprep.subr.mxu0 0.0
        %3629 = vmatpush1.xpose.msra.mxu0 0.0
        %3630 = vmatprep.subr.mxu0 0.0
        %3631 = vmatpush1.xpose.msra.mxu0 0.0
        %3632 = vmatprep.mubr.f32.mxu0 0.0
        %v3633 = vand.u32 %v3563, 4294901760
        %v3634 = vsub.f32 %v3563, %v3633
        %v3635 = vand.u32 %v3634, 4294901760
        %v3636 = vsub.f32 %v3634, %v3635
        %v3637 = vand.u32 %v3636, 4294901760
        %3638 = vmatmul.mubr.f32.gmra.mrb[0].mxu0 %v3637
        %v3639 = vpop.f32.mrb[0].mxu0
        %v3640 = vadd.f32 %v329, %v3639
        %v3641 = vpop.f32.mrb[0].mxu0
        %3642 = vdwg.mxu0
        %3643 = vmatprep.subr.mxu0 0.0
        %v3644 = vand.u32 %v3565, 4294901760
        %v3645 = vsub.f32 %v3565, %v3644
        %v3646 = vand.u32 %v3645, 4294901760
        %v3647 = vsub.f32 %v3645, %v3646
        %v3648 = vand.u32 %v3647, 4294901760
        %3649 = vmatpush1.xpose.msra.mxu0 %v3648
        %3650 = vmatprep.subr.mxu0 0.0
        %3651 = vmatpush1.xpose.msra.mxu0 0.0
        %3652 = vmatprep.subr.mxu0 0.0
        %3653 = vmatpush1.xpose.msra.mxu0 0.0
        %3654 = vmatprep.subr.mxu0 0.0
        %3655 = vmatpush1.xpose.msra.mxu0 0.0
        %3656 = vmatprep.subr.mxu0 0.0
        %3657 = vmatpush1.xpose.msra.mxu0 0.0
        %3658 = vmatprep.subr.mxu0 0.0
        %3659 = vmatpush1.xpose.msra.mxu0 0.0
        %3660 = vmatprep.subr.mxu0 0.0
        %3661 = vmatpush1.xpose.msra.mxu0 0.0
        %3662 = vmatprep.subr.mxu0 0.0
        %3663 = vmatpush1.xpose.msra.mxu0 0.0
        %3664 = vmatprep.subr.mxu0 0.0
        %3665 = vmatpush1.xpose.msra.mxu0 0.0
        %3666 = vmatprep.subr.mxu0 0.0
        %3667 = vmatpush1.xpose.msra.mxu0 0.0
        %3668 = vmatprep.subr.mxu0 0.0
        %3669 = vmatpush1.xpose.msra.mxu0 0.0
        %3670 = vmatprep.subr.mxu0 0.0
        %3671 = vmatpush1.xpose.msra.mxu0 0.0
        %3672 = vmatprep.subr.mxu0 0.0
        %3673 = vmatpush1.xpose.msra.mxu0 0.0
        %3674 = vmatprep.subr.mxu0 0.0
        %3675 = vmatpush1.xpose.msra.mxu0 0.0
        %3676 = vmatprep.subr.mxu0 0.0
        %3677 = vmatpush1.xpose.msra.mxu0 0.0
        %3678 = vmatprep.subr.mxu0 0.0
        %3679 = vmatpush1.xpose.msra.mxu0 0.0
        %3680 = vmatprep.subr.mxu0 0.0
        %3681 = vmatpush1.xpose.msra.mxu0 0.0
        %3682 = vmatprep.subr.mxu0 0.0
        %3683 = vmatpush1.xpose.msra.mxu0 0.0
        %3684 = vmatprep.subr.mxu0 0.0
        %3685 = vmatpush1.xpose.msra.mxu0 0.0
        %3686 = vmatprep.subr.mxu0 0.0
        %3687 = vmatpush1.xpose.msra.mxu0 0.0
        %3688 = vmatprep.subr.mxu0 0.0
        %3689 = vmatpush1.xpose.msra.mxu0 0.0
        %3690 = vmatprep.subr.mxu0 0.0
        %3691 = vmatpush1.xpose.msra.mxu0 0.0
        %3692 = vmatprep.subr.mxu0 0.0
        %3693 = vmatpush1.xpose.msra.mxu0 0.0
        %3694 = vmatprep.subr.mxu0 0.0
        %3695 = vmatpush1.xpose.msra.mxu0 0.0
        %3696 = vmatprep.subr.mxu0 0.0
        %3697 = vmatpush1.xpose.msra.mxu0 0.0
        %3698 = vmatprep.subr.mxu0 0.0
        %3699 = vmatpush1.xpose.msra.mxu0 0.0
        %3700 = vmatprep.subr.mxu0 0.0
        %3701 = vmatpush1.xpose.msra.mxu0 0.0
        %3702 = vmatprep.subr.mxu0 0.0
        %3703 = vmatpush1.xpose.msra.mxu0 0.0
        %3704 = vmatprep.subr.mxu0 0.0
        %3705 = vmatpush1.xpose.msra.mxu0 0.0
        %3706 = vmatprep.subr.mxu0 0.0
        %3707 = vmatpush1.xpose.msra.mxu0 0.0
        %3708 = vmatprep.subr.mxu0 0.0
        %3709 = vmatpush1.xpose.msra.mxu0 0.0
        %3710 = vmatprep.subr.mxu0 0.0
        %3711 = vmatpush1.xpose.msra.mxu0 0.0
        %3712 = vmatprep.mubr.f32.mxu0 0.0
        %v3713 = vand.u32 %v3563, 4294901760
        %3714 = vmatmul.mubr.f32.gmra.mrb[0].mxu0 %v3713
        %v3715 = vpop.f32.mrb[0].mxu0
        %v3716 = vadd.f32 %v3640, %v3715
        %v3717 = vpop.f32.mrb[0].mxu0
        %3718 = vdwg.mxu0
        %3719 = vmatprep.subr.mxu0 0.0
        %v3720 = vand.u32 %v3565, 4294901760
        %v3721 = vsub.f32 %v3565, %v3720
        %3722 = vmatpush1.xpose.msra.mxu0 %v3721
        %3723 = vmatprep.subr.mxu0 0.0
        %3724 = vmatpush1.xpose.msra.mxu0 0.0
        %3725 = vmatprep.subr.mxu0 0.0
        %3726 = vmatpush1.xpose.msra.mxu0 0.0
        %3727 = vmatprep.subr.mxu0 0.0
        %3728 = vmatpush1.xpose.msra.mxu0 0.0
        %3729 = vmatprep.subr.mxu0 0.0
        %3730 = vmatpush1.xpose.msra.mxu0 0.0
        %3731 = vmatprep.subr.mxu0 0.0
        %3732 = vmatpush1.xpose.msra.mxu0 0.0
        %3733 = vmatprep.subr.mxu0 0.0
        %3734 = vmatpush1.xpose.msra.mxu0 0.0
        %3735 = vmatprep.subr.mxu0 0.0
        %3736 = vmatpush1.xpose.msra.mxu0 0.0
        %3737 = vmatprep.subr.mxu0 0.0
        %3738 = vmatpush1.xpose.msra.mxu0 0.0
        %3739 = vmatprep.subr.mxu0 0.0
        %3740 = vmatpush1.xpose.msra.mxu0 0.0
        %3741 = vmatprep.subr.mxu0 0.0
        %3742 = vmatpush1.xpose.msra.mxu0 0.0
        %3743 = vmatprep.subr.mxu0 0.0
        %3744 = vmatpush1.xpose.msra.mxu0 0.0
        %3745 = vmatprep.subr.mxu0 0.0
        %3746 = vmatpush1.xpose.msra.mxu0 0.0
        %3747 = vmatprep.subr.mxu0 0.0
        %3748 = vmatpush1.xpose.msra.mxu0 0.0
        %3749 = vmatprep.subr.mxu0 0.0
        %3750 = vmatpush1.xpose.msra.mxu0 0.0
        %3751 = vmatprep.subr.mxu0 0.0
        %3752 = vmatpush1.xpose.msra.mxu0 0.0
        %3753 = vmatprep.subr.mxu0 0.0
        %3754 = vmatpush1.xpose.msra.mxu0 0.0
        %3755 = vmatprep.subr.mxu0 0.0
        %3756 = vmatpush1.xpose.msra.mxu0 0.0
        %3757 = vmatprep.subr.mxu0 0.0
        %3758 = vmatpush1.xpose.msra.mxu0 0.0
        %3759 = vmatprep.subr.mxu0 0.0
        %3760 = vmatpush1.xpose.msra.mxu0 0.0
        %3761 = vmatprep.subr.mxu0 0.0
        %3762 = vmatpush1.xpose.msra.mxu0 0.0
        %3763 = vmatprep.subr.mxu0 0.0
        %3764 = vmatpush1.xpose.msra.mxu0 0.0
        %3765 = vmatprep.subr.mxu0 0.0
        %3766 = vmatpush1.xpose.msra.mxu0 0.0
        %3767 = vmatprep.subr.mxu0 0.0
        %3768 = vmatpush1.xpose.msra.mxu0 0.0
        %3769 = vmatprep.subr.mxu0 0.0
        %3770 = vmatpush1.xpose.msra.mxu0 0.0
        %3771 = vmatprep.subr.mxu0 0.0
        %3772 = vmatpush1.xpose.msra.mxu0 0.0
        %3773 = vmatprep.subr.mxu0 0.0
        %3774 = vmatpush1.xpose.msra.mxu0 0.0
        %3775 = vmatprep.subr.mxu0 0.0
        %3776 = vmatpush1.xpose.msra.mxu0 0.0
        %3777 = vmatprep.subr.mxu0 0.0
        %3778 = vmatpush1.xpose.msra.mxu0 0.0
        %3779 = vmatprep.subr.mxu0 0.0
        %3780 = vmatpush1.xpose.msra.mxu0 0.0
        %3781 = vmatprep.subr.mxu0 0.0
        %3782 = vmatpush1.xpose.msra.mxu0 0.0
        %3783 = vmatprep.subr.mxu0 0.0
        %3784 = vmatpush1.xpose.msra.mxu0 0.0
        %3785 = vmatprep.mubr.f32.mxu0 0.0
        %v3786 = vand.u32 %v3563, 4294901760
        %v3787 = vsub.f32 %v3563, %v3786
        %3788 = vmatmul.mubr.f32.gmra.mrb[0].mxu0 %v3787
        %v3789 = vpop.f32.mrb[0].mxu0
        %v3790 = vadd.f32 %v3716, %v3789
        %v3791 = vpop.f32.mrb[0].mxu0
        %3792 = vdwg.mxu0
        %3793 = vmatprep.subr.mxu0 0.0
        %v3794 = vand.u32 %v3565, 4294901760
        %3795 = vmatpush1.xpose.msra.mxu0 %v3794
        %3796 = vmatprep.subr.mxu0 0.0
        %3797 = vmatpush1.xpose.msra.mxu0 0.0
        %3798 = vmatprep.subr.mxu0 0.0
        %3799 = vmatpush1.xpose.msra.mxu0 0.0
        %3800 = vmatprep.subr.mxu0 0.0
        %3801 = vmatpush1.xpose.msra.mxu0 0.0
        %3802 = vmatprep.subr.mxu0 0.0
        %3803 = vmatpush1.xpose.msra.mxu0 0.0
        %3804 = vmatprep.subr.mxu0 0.0
        %3805 = vmatpush1.xpose.msra.mxu0 0.0
        %3806 = vmatprep.subr.mxu0 0.0
        %3807 = vmatpush1.xpose.msra.mxu0 0.0
        %3808 = vmatprep.subr.mxu0 0.0
        %3809 = vmatpush1.xpose.msra.mxu0 0.0
        %3810 = vmatprep.subr.mxu0 0.0
        %3811 = vmatpush1.xpose.msra.mxu0 0.0
        %3812 = vmatprep.subr.mxu0 0.0
        %3813 = vmatpush1.xpose.msra.mxu0 0.0
        %3814 = vmatprep.subr.mxu0 0.0
        %3815 = vmatpush1.xpose.msra.mxu0 0.0
        %3816 = vmatprep.subr.mxu0 0.0
        %3817 = vmatpush1.xpose.msra.mxu0 0.0
        %3818 = vmatprep.subr.mxu0 0.0
        %3819 = vmatpush1.xpose.msra.mxu0 0.0
        %3820 = vmatprep.subr.mxu0 0.0
        %3821 = vmatpush1.xpose.msra.mxu0 0.0
        %3822 = vmatprep.subr.mxu0 0.0
        %3823 = vmatpush1.xpose.msra.mxu0 0.0
        %3824 = vmatprep.subr.mxu0 0.0
        %3825 = vmatpush1.xpose.msra.mxu0 0.0
        %3826 = vmatprep.subr.mxu0 0.0
        %3827 = vmatpush1.xpose.msra.mxu0 0.0
        %3828 = vmatprep.subr.mxu0 0.0
        %3829 = vmatpush1.xpose.msra.mxu0 0.0
        %3830 = vmatprep.subr.mxu0 0.0
        %3831 = vmatpush1.xpose.msra.mxu0 0.0
        %3832 = vmatprep.subr.mxu0 0.0
        %3833 = vmatpush1.xpose.msra.mxu0 0.0
        %3834 = vmatprep.subr.mxu0 0.0
        %3835 = vmatpush1.xpose.msra.mxu0 0.0
        %3836 = vmatprep.subr.mxu0 0.0
        %3837 = vmatpush1.xpose.msra.mxu0 0.0
        %3838 = vmatprep.subr.mxu0 0.0
        %3839 = vmatpush1.xpose.msra.mxu0 0.0
        %3840 = vmatprep.subr.mxu0 0.0
        %3841 = vmatpush1.xpose.msra.mxu0 0.0
        %3842 = vmatprep.subr.mxu0 0.0
        %3843 = vmatpush1.xpose.msra.mxu0 0.0
        %3844 = vmatprep.subr.mxu0 0.0
        %3845 = vmatpush1.xpose.msra.mxu0 0.0
        %3846 = vmatprep.subr.mxu0 0.0
        %3847 = vmatpush1.xpose.msra.mxu0 0.0
        %3848 = vmatprep.subr.mxu0 0.0
        %3849 = vmatpush1.xpose.msra.mxu0 0.0
        %3850 = vmatprep.subr.mxu0 0.0
        %3851 = vmatpush1.xpose.msra.mxu0 0.0
        %3852 = vmatprep.subr.mxu0 0.0
        %3853 = vmatpush1.xpose.msra.mxu0 0.0
        %3854 = vmatprep.subr.mxu0 0.0
        %3855 = vmatpush1.xpose.msra.mxu0 0.0
        %3856 = vmatprep.subr.mxu0 0.0
        %3857 = vmatpush1.xpose.msra.mxu0 0.0
        %3858 = vmatprep.mubr.f32.mxu0 0.0
        %v3859 = vand.u32 %v3563, 4294901760
        %v3860 = vsub.f32 %v3563, %v3859
        %v3861 = vand.u32 %v3860, 4294901760
        %3862 = vmatmul.mubr.f32.gmra.mrb[0].mxu0 %v3861
        %v3863 = vpop.f32.mrb[0].mxu0
        %v3864 = vadd.f32 %v3790, %v3863
        %v3865 = vpop.f32.mrb[0].mxu0
        %3866 = vdwg.mxu0
        %3867 = vmatprep.subr.mxu0 0.0
        %v3868 = vand.u32 %v3565, 4294901760
        %v3869 = vsub.f32 %v3565, %v3868
        %v3870 = vand.u32 %v3869, 4294901760
        %3871 = vmatpush1.xpose.msra.mxu0 %v3870
        %3872 = vmatprep.subr.mxu0 0.0
        %3873 = vmatpush1.xpose.msra.mxu0 0.0
        %3874 = vmatprep.subr.mxu0 0.0
        %3875 = vmatpush1.xpose.msra.mxu0 0.0
        %3876 = vmatprep.subr.mxu0 0.0
        %3877 = vmatpush1.xpose.msra.mxu0 0.0
        %3878 = vmatprep.subr.mxu0 0.0
        %3879 = vmatpush1.xpose.msra.mxu0 0.0
        %3880 = vmatprep.subr.mxu0 0.0
        %3881 = vmatpush1.xpose.msra.mxu0 0.0
        %3882 = vmatprep.subr.mxu0 0.0
        %3883 = vmatpush1.xpose.msra.mxu0 0.0
        %3884 = vmatprep.subr.mxu0 0.0
        %3885 = vmatpush1.xpose.msra.mxu0 0.0
        %3886 = vmatprep.subr.mxu0 0.0
        %3887 = vmatpush1.xpose.msra.mxu0 0.0
        %3888 = vmatprep.subr.mxu0 0.0
        %3889 = vmatpush1.xpose.msra.mxu0 0.0
        %3890 = vmatprep.subr.mxu0 0.0
        %3891 = vmatpush1.xpose.msra.mxu0 0.0
        %3892 = vmatprep.subr.mxu0 0.0
        %3893 = vmatpush1.xpose.msra.mxu0 0.0
        %3894 = vmatprep.subr.mxu0 0.0
        %3895 = vmatpush1.xpose.msra.mxu0 0.0
        %3896 = vmatprep.subr.mxu0 0.0
        %3897 = vmatpush1.xpose.msra.mxu0 0.0
        %3898 = vmatprep.subr.mxu0 0.0
        %3899 = vmatpush1.xpose.msra.mxu0 0.0
        %3900 = vmatprep.subr.mxu0 0.0
        %3901 = vmatpush1.xpose.msra.mxu0 0.0
        %3902 = vmatprep.subr.mxu0 0.0
        %3903 = vmatpush1.xpose.msra.mxu0 0.0
        %3904 = vmatprep.subr.mxu0 0.0
        %3905 = vmatpush1.xpose.msra.mxu0 0.0
        %3906 = vmatprep.subr.mxu0 0.0
        %3907 = vmatpush1.xpose.msra.mxu0 0.0
        %3908 = vmatprep.subr.mxu0 0.0
        %3909 = vmatpush1.xpose.msra.mxu0 0.0
        %3910 = vmatprep.subr.mxu0 0.0
        %3911 = vmatpush1.xpose.msra.mxu0 0.0
        %3912 = vmatprep.subr.mxu0 0.0
        %3913 = vmatpush1.xpose.msra.mxu0 0.0
        %3914 = vmatprep.subr.mxu0 0.0
        %3915 = vmatpush1.xpose.msra.mxu0 0.0
        %3916 = vmatprep.subr.mxu0 0.0
        %3917 = vmatpush1.xpose.msra.mxu0 0.0
        %3918 = vmatprep.subr.mxu0 0.0
        %3919 = vmatpush1.xpose.msra.mxu0 0.0
        %3920 = vmatprep.subr.mxu0 0.0
        %3921 = vmatpush1.xpose.msra.mxu0 0.0
        %3922 = vmatprep.subr.mxu0 0.0
        %3923 = vmatpush1.xpose.msra.mxu0 0.0
        %3924 = vmatprep.subr.mxu0 0.0
        %3925 = vmatpush1.xpose.msra.mxu0 0.0
        %3926 = vmatprep.subr.mxu0 0.0
        %3927 = vmatpush1.xpose.msra.mxu0 0.0
        %3928 = vmatprep.subr.mxu0 0.0
        %3929 = vmatpush1.xpose.msra.mxu0 0.0
        %3930 = vmatprep.subr.mxu0 0.0
        %3931 = vmatpush1.xpose.msra.mxu0 0.0
        %3932 = vmatprep.subr.mxu0 0.0
        %3933 = vmatpush1.xpose.msra.mxu0 0.0
        %3934 = vmatprep.mubr.f32.mxu0 0.0
        %v3935 = vand.u32 %v3563, 4294901760
        %3936 = vmatmul.mubr.f32.gmra.mrb[0].mxu0 %v3935
        %v3937 = vpop.f32.mrb[0].mxu0
        %v3938 = vadd.f32 %v3864, %v3937
        %v3939 = vpop.f32.mrb[0].mxu0
        %3940 = vdwg.mxu0
        %3941 = vmatprep.subr.mxu0 0.0
        %v3942 = vand.u32 %v3565, 4294901760
        %3943 = vmatpush1.xpose.msra.mxu0 %v3942
        %3944 = vmatprep.subr.mxu0 0.0
        %3945 = vmatpush1.xpose.msra.mxu0 0.0
        %3946 = vmatprep.subr.mxu0 0.0
        %3947 = vmatpush1.xpose.msra.mxu0 0.0
        %3948 = vmatprep.subr.mxu0 0.0
        %3949 = vmatpush1.xpose.msra.mxu0 0.0
        %3950 = vmatprep.subr.mxu0 0.0
        %3951 = vmatpush1.xpose.msra.mxu0 0.0
        %3952 = vmatprep.subr.mxu0 0.0
        %3953 = vmatpush1.xpose.msra.mxu0 0.0
        %3954 = vmatprep.subr.mxu0 0.0
        %3955 = vmatpush1.xpose.msra.mxu0 0.0
        %3956 = vmatprep.subr.mxu0 0.0
        %3957 = vmatpush1.xpose.msra.mxu0 0.0
        %3958 = vmatprep.subr.mxu0 0.0
        %3959 = vmatpush1.xpose.msra.mxu0 0.0
        %3960 = vmatprep.subr.mxu0 0.0
        %3961 = vmatpush1.xpose.msra.mxu0 0.0
        %3962 = vmatprep.subr.mxu0 0.0
        %3963 = vmatpush1.xpose.msra.mxu0 0.0
        %3964 = vmatprep.subr.mxu0 0.0
        %3965 = vmatpush1.xpose.msra.mxu0 0.0
        %3966 = vmatprep.subr.mxu0 0.0
        %3967 = vmatpush1.xpose.msra.mxu0 0.0
        %3968 = vmatprep.subr.mxu0 0.0
        %3969 = vmatpush1.xpose.msra.mxu0 0.0
        %3970 = vmatprep.subr.mxu0 0.0
        %3971 = vmatpush1.xpose.msra.mxu0 0.0
        %3972 = vmatprep.subr.mxu0 0.0
        %3973 = vmatpush1.xpose.msra.mxu0 0.0
        %3974 = vmatprep.subr.mxu0 0.0
        %3975 = vmatpush1.xpose.msra.mxu0 0.0
        %3976 = vmatprep.subr.mxu0 0.0
        %3977 = vmatpush1.xpose.msra.mxu0 0.0
        %3978 = vmatprep.subr.mxu0 0.0
        %3979 = vmatpush1.xpose.msra.mxu0 0.0
        %3980 = vmatprep.subr.mxu0 0.0
        %3981 = vmatpush1.xpose.msra.mxu0 0.0
        %3982 = vmatprep.subr.mxu0 0.0
        %3983 = vmatpush1.xpose.msra.mxu0 0.0
        %3984 = vmatprep.subr.mxu0 0.0
        %3985 = vmatpush1.xpose.msra.mxu0 0.0
        %3986 = vmatprep.subr.mxu0 0.0
        %3987 = vmatpush1.xpose.msra.mxu0 0.0
        %3988 = vmatprep.subr.mxu0 0.0
        %3989 = vmatpush1.xpose.msra.mxu0 0.0
        %3990 = vmatprep.subr.mxu0 0.0
        %3991 = vmatpush1.xpose.msra.mxu0 0.0
        %3992 = vmatprep.subr.mxu0 0.0
        %3993 = vmatpush1.xpose.msra.mxu0 0.0
        %3994 = vmatprep.subr.mxu0 0.0
        %3995 = vmatpush1.xpose.msra.mxu0 0.0
        %3996 = vmatprep.subr.mxu0 0.0
        %3997 = vmatpush1.xpose.msra.mxu0 0.0
        %3998 = vmatprep.subr.mxu0 0.0
        %3999 = vmatpush1.xpose.msra.mxu0 0.0
        %4000 = vmatprep.subr.mxu0 0.0
        %4001 = vmatpush1.xpose.msra.mxu0 0.0
        %4002 = vmatprep.subr.mxu0 0.0
        %4003 = vmatpush1.xpose.msra.mxu0 0.0
        %4004 = vmatprep.subr.mxu0 0.0
        %4005 = vmatpush1.xpose.msra.mxu0 0.0
        %4006 = vmatprep.mubr.f32.mxu0 0.0
        %v4007 = vand.u32 %v3563, 4294901760
        %4008 = vmatmul.mubr.f32.gmra.mrb[0].mxu0 %v4007
        %v4009 = vpop.f32.mrb[0].mxu0
        %v4010 = vadd.f32 %v3938, %v4009
        %v4011 = vpop.f32.mrb[0].mxu0
        %4012 = vdwg.mxu0
        %v4013 = vsel %vm830, %v4010, -inf
        %4014 = vmax.xlane.f32.xlu0 %v4013
        %v4015 = vpop.xlane.xlu0 %4014
        %v4016 = vsub.f32 %v4010, %v4015
        %v4017 = vmul.f32 %v4016, 1.442695
        %v4018 = vpow.pop %v4017
        %v4019 = vsel %vm830, %v4018, 0.0
        %4020 = vadd.xlane.f32.xlu0 %v4019
        %v4021 = vpop.xlane.xlu0 %4020
        %v4022 = vrcp.pop %v4021
        %v4023 = vmul.f32 %v4018, %v4022
        %4024 = vrot.lane.b32.xlu0 %v820, 48
        %v4025 = vpop.permute.xlu0 %4024
        %v4028 = vsel %vm830, %v4023, 0
        %4030 = vmatprep.subr.mxu0 0.0
        %v4031 = vand.u32 %v4025, 4294901760
        %4032 = vmatpush1.msra.mxu0 %v4031
        %4033 = vmatprep.subr.mxu0 0.0
        %4034 = vmatpush1.msra.mxu0 0.0
        %4035 = vmatprep.subr.mxu0 0.0
        %4036 = vmatpush1.msra.mxu0 0.0
        %4037 = vmatprep.subr.mxu0 0.0
        %4038 = vmatpush1.msra.mxu0 0.0
        %4039 = vmatprep.subr.mxu0 0.0
        %4040 = vmatpush1.msra.mxu0 0.0
        %4041 = vmatprep.subr.mxu0 0.0
        %4042 = vmatpush1.msra.mxu0 0.0
        %4043 = vmatprep.subr.mxu0 0.0
        %4044 = vmatpush1.msra.mxu0 0.0
        %4045 = vmatprep.subr.mxu0 0.0
        %4046 = vmatpush1.msra.mxu0 0.0
        %4047 = vmatprep.subr.mxu0 0.0
        %4048 = vmatpush1.msra.mxu0 0.0
        %4049 = vmatprep.subr.mxu0 0.0
        %4050 = vmatpush1.msra.mxu0 0.0
        %4051 = vmatprep.subr.mxu0 0.0
        %4052 = vmatpush1.msra.mxu0 0.0
        %4053 = vmatprep.subr.mxu0 0.0
        %4054 = vmatpush1.msra.mxu0 0.0
        %4055 = vmatprep.subr.mxu0 0.0
        %4056 = vmatpush1.msra.mxu0 0.0
        %4057 = vmatprep.subr.mxu0 0.0
        %4058 = vmatpush1.msra.mxu0 0.0
        %4059 = vmatprep.subr.mxu0 0.0
        %4060 = vmatpush1.msra.mxu0 0.0
        %4061 = vmatprep.subr.mxu0 0.0
        %4062 = vmatpush1.msra.mxu0 0.0
        %4063 = vmatprep.subr.mxu0 0.0
        %4064 = vmatpush1.msra.mxu0 0.0
        %4065 = vmatprep.subr.mxu0 0.0
        %4066 = vmatpush1.msra.mxu0 0.0
        %4067 = vmatprep.subr.mxu0 0.0
        %4068 = vmatpush1.msra.mxu0 0.0
        %4069 = vmatprep.subr.mxu0 0.0
        %4070 = vmatpush1.msra.mxu0 0.0
        %4071 = vmatprep.subr.mxu0 0.0
        %4072 = vmatpush1.msra.mxu0 0.0
        %4073 = vmatprep.subr.mxu0 0.0
        %4074 = vmatpush1.msra.mxu0 0.0
        %4075 = vmatprep.subr.mxu0 0.0
        %4076 = vmatpush1.msra.mxu0 0.0
        %4077 = vmatprep.subr.mxu0 0.0
        %4078 = vmatpush1.msra.mxu0 0.0
        %4079 = vmatprep.subr.mxu0 0.0
        %4080 = vmatpush1.msra.mxu0 0.0
        %4081 = vmatprep.subr.mxu0 0.0
        %4082 = vmatpush1.msra.mxu0 0.0
        %4083 = vmatprep.subr.mxu0 0.0
        %4084 = vmatpush1.msra.mxu0 0.0
        %4085 = vmatprep.subr.mxu0 0.0
        %4086 = vmatpush1.msra.mxu0 0.0
        %4087 = vmatprep.subr.mxu0 0.0
        %4088 = vmatpush1.msra.mxu0 0.0
        %4089 = vmatprep.subr.mxu0 0.0
        %4090 = vmatpush1.msra.mxu0 0.0
        %4091 = vmatprep.subr.mxu0 0.0
        %4092 = vmatpush1.msra.mxu0 0.0
        %4093 = vmatprep.subr.mxu0 0.0
        %4094 = vmatpush1.msra.mxu0 0.0
        %4095 = vmatprep.mubr.f32.mxu0 0.0
        %v4096 = vand.u32 %v4028, 4294901760
        %v4097 = vsub.f32 %v4028, %v4096
        %v4098 = vand.u32 %v4097, 4294901760
        %v4099 = vsub.f32 %v4097, %v4098
        %v4100 = vand.u32 %v4099, 4294901760
        %4101 = vmatmul.mubr.f32.gmra.mrb[0].mxu0 %v4100
        %v4102 = vpop.f32.mrb[0].mxu0
        %v4103 = vadd.f32 0.0, %v4102
        %v4104 = vpop.f32.mrb[0].mxu0
        %4105 = vdwg.mxu0
        %4106 = vmatprep.subr.mxu0 0.0
        %v4107 = vand.u32 %v4025, 4294901760
        %v4108 = vsub.f32 %v4025, %v4107
        %v4109 = vand.u32 %v4108, 4294901760
        %v4110 = vsub.f32 %v4108, %v4109
        %v4111 = vand.u32 %v4110, 4294901760
        %4112 = vmatpush1.msra.mxu0 %v4111
        %4113 = vmatprep.subr.mxu0 0.0
        %4114 = vmatpush1.msra.mxu0 0.0
        %4115 = vmatprep.subr.mxu0 0.0
        %4116 = vmatpush1.msra.mxu0 0.0
        %4117 = vmatprep.subr.mxu0 0.0
        %4118 = vmatpush1.msra.mxu0 0.0
        %4119 = vmatprep.subr.mxu0 0.0
        %4120 = vmatpush1.msra.mxu0 0.0
        %4121 = vmatprep.subr.mxu0 0.0
        %4122 = vmatpush1.msra.mxu0 0.0
        %4123 = vmatprep.subr.mxu0 0.0
        %4124 = vmatpush1.msra.mxu0 0.0
        %4125 = vmatprep.subr.mxu0 0.0
        %4126 = vmatpush1.msra.mxu0 0.0
        %4127 = vmatprep.subr.mxu0 0.0
        %4128 = vmatpush1.msra.mxu0 0.0
        %4129 = vmatprep.subr.mxu0 0.0
        %4130 = vmatpush1.msra.mxu0 0.0
        %4131 = vmatprep.subr.mxu0 0.0
        %4132 = vmatpush1.msra.mxu0 0.0
        %4133 = vmatprep.subr.mxu0 0.0
        %4134 = vmatpush1.msra.mxu0 0.0
        %4135 = vmatprep.subr.mxu0 0.0
        %4136 = vmatpush1.msra.mxu0 0.0
        %4137 = vmatprep.subr.mxu0 0.0
        %4138 = vmatpush1.msra.mxu0 0.0
        %4139 = vmatprep.subr.mxu0 0.0
        %4140 = vmatpush1.msra.mxu0 0.0
        %4141 = vmatprep.subr.mxu0 0.0
        %4142 = vmatpush1.msra.mxu0 0.0
        %4143 = vmatprep.subr.mxu0 0.0
        %4144 = vmatpush1.msra.mxu0 0.0
        %4145 = vmatprep.subr.mxu0 0.0
        %4146 = vmatpush1.msra.mxu0 0.0
        %4147 = vmatprep.subr.mxu0 0.0
        %4148 = vmatpush1.msra.mxu0 0.0
        %4149 = vmatprep.subr.mxu0 0.0
        %4150 = vmatpush1.msra.mxu0 0.0
        %4151 = vmatprep.subr.mxu0 0.0
        %4152 = vmatpush1.msra.mxu0 0.0
        %4153 = vmatprep.subr.mxu0 0.0
        %4154 = vmatpush1.msra.mxu0 0.0
        %4155 = vmatprep.subr.mxu0 0.0
        %4156 = vmatpush1.msra.mxu0 0.0
        %4157 = vmatprep.subr.mxu0 0.0
        %4158 = vmatpush1.msra.mxu0 0.0
        %4159 = vmatprep.subr.mxu0 0.0
        %4160 = vmatpush1.msra.mxu0 0.0
        %4161 = vmatprep.subr.mxu0 0.0
        %4162 = vmatpush1.msra.mxu0 0.0
        %4163 = vmatprep.subr.mxu0 0.0
        %4164 = vmatpush1.msra.mxu0 0.0
        %4165 = vmatprep.subr.mxu0 0.0
        %4166 = vmatpush1.msra.mxu0 0.0
        %4167 = vmatprep.subr.mxu0 0.0
        %4168 = vmatpush1.msra.mxu0 0.0
        %4169 = vmatprep.subr.mxu0 0.0
        %4170 = vmatpush1.msra.mxu0 0.0
        %4171 = vmatprep.subr.mxu0 0.0
        %4172 = vmatpush1.msra.mxu0 0.0
        %4173 = vmatprep.subr.mxu0 0.0
        %4174 = vmatpush1.msra.mxu0 0.0
        %4175 = vmatprep.mubr.f32.mxu0 0.0
        %v4176 = vand.u32 %v4028, 4294901760
        %4177 = vmatmul.mubr.f32.gmra.mrb[0].mxu0 %v4176
        %v4178 = vpop.f32.mrb[0].mxu0
        %v4179 = vadd.f32 %v4103, %v4178
        %v4180 = vpop.f32.mrb[0].mxu0
        %4181 = vdwg.mxu0
        %4182 = vmatprep.subr.mxu0 0.0
        %v4183 = vand.u32 %v4025, 4294901760
        %v4184 = vsub.f32 %v4025, %v4183
        %4185 = vmatpush1.msra.mxu0 %v4184
        %4186 = vmatprep.subr.mxu0 0.0
        %4187 = vmatpush1.msra.mxu0 0.0
        %4188 = vmatprep.subr.mxu0 0.0
        %4189 = vmatpush1.msra.mxu0 0.0
        %4190 = vmatprep.subr.mxu0 0.0
        %4191 = vmatpush1.msra.mxu0 0.0
        %4192 = vmatprep.subr.mxu0 0.0
        %4193 = vmatpush1.msra.mxu0 0.0
        %4194 = vmatprep.subr.mxu0 0.0
        %4195 = vmatpush1.msra.mxu0 0.0
        %4196 = vmatprep.subr.mxu0 0.0
        %4197 = vmatpush1.msra.mxu0 0.0
        %4198 = vmatprep.subr.mxu0 0.0
        %4199 = vmatpush1.msra.mxu0 0.0
        %4200 = vmatprep.subr.mxu0 0.0
        %4201 = vmatpush1.msra.mxu0 0.0
        %4202 = vmatprep.subr.mxu0 0.0
        %4203 = vmatpush1.msra.mxu0 0.0
        %4204 = vmatprep.subr.mxu0 0.0
        %4205 = vmatpush1.msra.mxu0 0.0
        %4206 = vmatprep.subr.mxu0 0.0
        %4207 = vmatpush1.msra.mxu0 0.0
        %4208 = vmatprep.subr.mxu0 0.0
        %4209 = vmatpush1.msra.mxu0 0.0
        %4210 = vmatprep.subr.mxu0 0.0
        %4211 = vmatpush1.msra.mxu0 0.0
        %4212 = vmatprep.subr.mxu0 0.0
        %4213 = vmatpush1.msra.mxu0 0.0
        %4214 = vmatprep.subr.mxu0 0.0
        %4215 = vmatpush1.msra.mxu0 0.0
        %4216 = vmatprep.subr.mxu0 0.0
        %4217 = vmatpush1.msra.mxu0 0.0
        %4218 = vmatprep.subr.mxu0 0.0
        %4219 = vmatpush1.msra.mxu0 0.0
        %4220 = vmatprep.subr.mxu0 0.0
        %4221 = vmatpush1.msra.mxu0 0.0
        %4222 = vmatprep.subr.mxu0 0.0
        %4223 = vmatpush1.msra.mxu0 0.0
        %4224 = vmatprep.subr.mxu0 0.0
        %4225 = vmatpush1.msra.mxu0 0.0
        %4226 = vmatprep.subr.mxu0 0.0
        %4227 = vmatpush1.msra.mxu0 0.0
        %4228 = vmatprep.subr.mxu0 0.0
        %4229 = vmatpush1.msra.mxu0 0.0
        %4230 = vmatprep.subr.mxu0 0.0
        %4231 = vmatpush1.msra.mxu0 0.0
        %4232 = vmatprep.subr.mxu0 0.0
        %4233 = vmatpush1.msra.mxu0 0.0
        %4234 = vmatprep.subr.mxu0 0.0
        %4235 = vmatpush1.msra.mxu0 0.0
        %4236 = vmatprep.subr.mxu0 0.0
        %4237 = vmatpush1.msra.mxu0 0.0
        %4238 = vmatprep.subr.mxu0 0.0
        %4239 = vmatpush1.msra.mxu0 0.0
        %4240 = vmatprep.subr.mxu0 0.0
        %4241 = vmatpush1.msra.mxu0 0.0
        %4242 = vmatprep.subr.mxu0 0.0
        %4243 = vmatpush1.msra.mxu0 0.0
        %4244 = vmatprep.subr.mxu0 0.0
        %4245 = vmatpush1.msra.mxu0 0.0
        %4246 = vmatprep.subr.mxu0 0.0
        %4247 = vmatpush1.msra.mxu0 0.0
        %4248 = vmatprep.mubr.f32.mxu0 0.0
        %v4249 = vand.u32 %v4028, 4294901760
        %v4250 = vsub.f32 %v4028, %v4249
        %4251 = vmatmul.mubr.f32.gmra.mrb[0].mxu0 %v4250
        %v4252 = vpop.f32.mrb[0].mxu0
        %v4253 = vadd.f32 %v4179, %v4252
        %v4254 = vpop.f32.mrb[0].mxu0
        %4255 = vdwg.mxu0
        %4256 = vmatprep.subr.mxu0 0.0
        %v4257 = vand.u32 %v4025, 4294901760
        %4258 = vmatpush1.msra.mxu0 %v4257
        %4259 = vmatprep.subr.mxu0 0.0
        %4260 = vmatpush1.msra.mxu0 0.0
        %4261 = vmatprep.subr.mxu0 0.0
        %4262 = vmatpush1.msra.mxu0 0.0
        %4263 = vmatprep.subr.mxu0 0.0
        %4264 = vmatpush1.msra.mxu0 0.0
        %4265 = vmatprep.subr.mxu0 0.0
        %4266 = vmatpush1.msra.mxu0 0.0
        %4267 = vmatprep.subr.mxu0 0.0
        %4268 = vmatpush1.msra.mxu0 0.0
        %4269 = vmatprep.subr.mxu0 0.0
        %4270 = vmatpush1.msra.mxu0 0.0
        %4271 = vmatprep.subr.mxu0 0.0
        %4272 = vmatpush1.msra.mxu0 0.0
        %4273 = vmatprep.subr.mxu0 0.0
        %4274 = vmatpush1.msra.mxu0 0.0
        %4275 = vmatprep.subr.mxu0 0.0
        %4276 = vmatpush1.msra.mxu0 0.0
        %4277 = vmatprep.subr.mxu0 0.0
        %4278 = vmatpush1.msra.mxu0 0.0
        %4279 = vmatprep.subr.mxu0 0.0
        %4280 = vmatpush1.msra.mxu0 0.0
        %4281 = vmatprep.subr.mxu0 0.0
        %4282 = vmatpush1.msra.mxu0 0.0
        %4283 = vmatprep.subr.mxu0 0.0
        %4284 = vmatpush1.msra.mxu0 0.0
        %4285 = vmatprep.subr.mxu0 0.0
        %4286 = vmatpush1.msra.mxu0 0.0
        %4287 = vmatprep.subr.mxu0 0.0
        %4288 = vmatpush1.msra.mxu0 0.0
        %4289 = vmatprep.subr.mxu0 0.0
        %4290 = vmatpush1.msra.mxu0 0.0
        %4291 = vmatprep.subr.mxu0 0.0
        %4292 = vmatpush1.msra.mxu0 0.0
        %4293 = vmatprep.subr.mxu0 0.0
        %4294 = vmatpush1.msra.mxu0 0.0
        %4295 = vmatprep.subr.mxu0 0.0
        %4296 = vmatpush1.msra.mxu0 0.0
        %4297 = vmatprep.subr.mxu0 0.0
        %4298 = vmatpush1.msra.mxu0 0.0
        %4299 = vmatprep.subr.mxu0 0.0
        %4300 = vmatpush1.msra.mxu0 0.0
        %4301 = vmatprep.subr.mxu0 0.0
        %4302 = vmatpush1.msra.mxu0 0.0
        %4303 = vmatprep.subr.mxu0 0.0
        %4304 = vmatpush1.msra.mxu0 0.0
        %4305 = vmatprep.subr.mxu0 0.0
        %4306 = vmatpush1.msra.mxu0 0.0
        %4307 = vmatprep.subr.mxu0 0.0
        %4308 = vmatpush1.msra.mxu0 0.0
        %4309 = vmatprep.subr.mxu0 0.0
        %4310 = vmatpush1.msra.mxu0 0.0
        %4311 = vmatprep.subr.mxu0 0.0
        %4312 = vmatpush1.msra.mxu0 0.0
        %4313 = vmatprep.subr.mxu0 0.0
        %4314 = vmatpush1.msra.mxu0 0.0
        %4315 = vmatprep.subr.mxu0 0.0
        %4316 = vmatpush1.msra.mxu0 0.0
        %4317 = vmatprep.subr.mxu0 0.0
        %4318 = vmatpush1.msra.mxu0 0.0
        %4319 = vmatprep.subr.mxu0 0.0
        %4320 = vmatpush1.msra.mxu0 0.0
        %4321 = vmatprep.mubr.f32.mxu0 0.0
        %v4322 = vand.u32 %v4028, 4294901760
        %v4323 = vsub.f32 %v4028, %v4322
        %v4324 = vand.u32 %v4323, 4294901760
        %4325 = vmatmul.mubr.f32.gmra.mrb[0].mxu0 %v4324
        %v4326 = vpop.f32.mrb[0].mxu0
        %v4327 = vadd.f32 %v4253, %v4326
        %v4328 = vpop.f32.mrb[0].mxu0
        %4329 = vdwg.mxu0
        %4330 = vmatprep.subr.mxu0 0.0
        %v4331 = vand.u32 %v4025, 4294901760
        %v4332 = vsub.f32 %v4025, %v4331
        %v4333 = vand.u32 %v4332, 4294901760
        %4334 = vmatpush1.msra.mxu0 %v4333
        %4335 = vmatprep.subr.mxu0 0.0
        %4336 = vmatpush1.msra.mxu0 0.0
        %4337 = vmatprep.subr.mxu0 0.0
        %4338 = vmatpush1.msra.mxu0 0.0
        %4339 = vmatprep.subr.mxu0 0.0
        %4340 = vmatpush1.msra.mxu0 0.0
        %4341 = vmatprep.subr.mxu0 0.0
        %4342 = vmatpush1.msra.mxu0 0.0
        %4343 = vmatprep.subr.mxu0 0.0
        %4344 = vmatpush1.msra.mxu0 0.0
        %4345 = vmatprep.subr.mxu0 0.0
        %4346 = vmatpush1.msra.mxu0 0.0
        %4347 = vmatprep.subr.mxu0 0.0
        %4348 = vmatpush1.msra.mxu0 0.0
        %4349 = vmatprep.subr.mxu0 0.0
        %4350 = vmatpush1.msra.mxu0 0.0
        %4351 = vmatprep.subr.mxu0 0.0
        %4352 = vmatpush1.msra.mxu0 0.0
        %4353 = vmatprep.subr.mxu0 0.0
        %4354 = vmatpush1.msra.mxu0 0.0
        %4355 = vmatprep.subr.mxu0 0.0
        %4356 = vmatpush1.msra.mxu0 0.0
        %4357 = vmatprep.subr.mxu0 0.0
        %4358 = vmatpush1.msra.mxu0 0.0
        %4359 = vmatprep.subr.mxu0 0.0
        %4360 = vmatpush1.msra.mxu0 0.0
        %4361 = vmatprep.subr.mxu0 0.0
        %4362 = vmatpush1.msra.mxu0 0.0
        %4363 = vmatprep.subr.mxu0 0.0
        %4364 = vmatpush1.msra.mxu0 0.0
        %4365 = vmatprep.subr.mxu0 0.0
        %4366 = vmatpush1.msra.mxu0 0.0
        %4367 = vmatprep.subr.mxu0 0.0
        %4368 = vmatpush1.msra.mxu0 0.0
        %4369 = vmatprep.subr.mxu0 0.0
        %4370 = vmatpush1.msra.mxu0 0.0
        %4371 = vmatprep.subr.mxu0 0.0
        %4372 = vmatpush1.msra.mxu0 0.0
        %4373 = vmatprep.subr.mxu0 0.0
        %4374 = vmatpush1.msra.mxu0 0.0
        %4375 = vmatprep.subr.mxu0 0.0
        %4376 = vmatpush1.msra.mxu0 0.0
        %4377 = vmatprep.subr.mxu0 0.0
        %4378 = vmatpush1.msra.mxu0 0.0
        %4379 = vmatprep.subr.mxu0 0.0
        %4380 = vmatpush1.msra.mxu0 0.0
        %4381 = vmatprep.subr.mxu0 0.0
        %4382 = vmatpush1.msra.mxu0 0.0
        %4383 = vmatprep.subr.mxu0 0.0
        %4384 = vmatpush1.msra.mxu0 0.0
        %4385 = vmatprep.subr.mxu0 0.0
        %4386 = vmatpush1.msra.mxu0 0.0
        %4387 = vmatprep.subr.mxu0 0.0
        %4388 = vmatpush1.msra.mxu0 0.0
        %4389 = vmatprep.subr.mxu0 0.0
        %4390 = vmatpush1.msra.mxu0 0.0
        %4391 = vmatprep.subr.mxu0 0.0
        %4392 = vmatpush1.msra.mxu0 0.0
        %4393 = vmatprep.subr.mxu0 0.0
        %4394 = vmatpush1.msra.mxu0 0.0
        %4395 = vmatprep.subr.mxu0 0.0
        %4396 = vmatpush1.msra.mxu0 0.0
        %4397 = vmatprep.mubr.f32.mxu0 0.0
        %v4398 = vand.u32 %v4028, 4294901760
        %4399 = vmatmul.mubr.f32.gmra.mrb[0].mxu0 %v4398
        %v4400 = vpop.f32.mrb[0].mxu0
        %v4401 = vadd.f32 %v4327, %v4400
        %v4402 = vpop.f32.mrb[0].mxu0
        %4403 = vdwg.mxu0
        %4404 = vmatprep.subr.mxu0 0.0
        %v4405 = vand.u32 %v4025, 4294901760
        %4406 = vmatpush1.msra.mxu0 %v4405
        %4407 = vmatprep.subr.mxu0 0.0
        %4408 = vmatpush1.msra.mxu0 0.0
        %4409 = vmatprep.subr.mxu0 0.0
        %4410 = vmatpush1.msra.mxu0 0.0
        %4411 = vmatprep.subr.mxu0 0.0
        %4412 = vmatpush1.msra.mxu0 0.0
        %4413 = vmatprep.subr.mxu0 0.0
        %4414 = vmatpush1.msra.mxu0 0.0
        %4415 = vmatprep.subr.mxu0 0.0
        %4416 = vmatpush1.msra.mxu0 0.0
        %4417 = vmatprep.subr.mxu0 0.0
        %4418 = vmatpush1.msra.mxu0 0.0
        %4419 = vmatprep.subr.mxu0 0.0
        %4420 = vmatpush1.msra.mxu0 0.0
        %4421 = vmatprep.subr.mxu0 0.0
        %4422 = vmatpush1.msra.mxu0 0.0
        %4423 = vmatprep.subr.mxu0 0.0
        %4424 = vmatpush1.msra.mxu0 0.0
        %4425 = vmatprep.subr.mxu0 0.0
        %4426 = vmatpush1.msra.mxu0 0.0
        %4427 = vmatprep.subr.mxu0 0.0
        %4428 = vmatpush1.msra.mxu0 0.0
        %4429 = vmatprep.subr.mxu0 0.0
        %4430 = vmatpush1.msra.mxu0 0.0
        %4431 = vmatprep.subr.mxu0 0.0
        %4432 = vmatpush1.msra.mxu0 0.0
        %4433 = vmatprep.subr.mxu0 0.0
        %4434 = vmatpush1.msra.mxu0 0.0
        %4435 = vmatprep.subr.mxu0 0.0
        %4436 = vmatpush1.msra.mxu0 0.0
        %4437 = vmatprep.subr.mxu0 0.0
        %4438 = vmatpush1.msra.mxu0 0.0
        %4439 = vmatprep.subr.mxu0 0.0
        %4440 = vmatpush1.msra.mxu0 0.0
        %4441 = vmatprep.subr.mxu0 0.0
        %4442 = vmatpush1.msra.mxu0 0.0
        %4443 = vmatprep.subr.mxu0 0.0
        %4444 = vmatpush1.msra.mxu0 0.0
        %4445 = vmatprep.subr.mxu0 0.0
        %4446 = vmatpush1.msra.mxu0 0.0
        %4447 = vmatprep.subr.mxu0 0.0
        %4448 = vmatpush1.msra.mxu0 0.0
        %4449 = vmatprep.subr.mxu0 0.0
        %4450 = vmatpush1.msra.mxu0 0.0
        %4451 = vmatprep.subr.mxu0 0.0
        %4452 = vmatpush1.msra.mxu0 0.0
        %4453 = vmatprep.subr.mxu0 0.0
        %4454 = vmatpush1.msra.mxu0 0.0
        %4455 = vmatprep.subr.mxu0 0.0
        %4456 = vmatpush1.msra.mxu0 0.0
        %4457 = vmatprep.subr.mxu0 0.0
        %4458 = vmatpush1.msra.mxu0 0.0
        %4459 = vmatprep.subr.mxu0 0.0
        %4460 = vmatpush1.msra.mxu0 0.0
        %4461 = vmatprep.subr.mxu0 0.0
        %4462 = vmatpush1.msra.mxu0 0.0
        %4463 = vmatprep.subr.mxu0 0.0
        %4464 = vmatpush1.msra.mxu0 0.0
        %4465 = vmatprep.subr.mxu0 0.0
        %4466 = vmatpush1.msra.mxu0 0.0
        %4467 = vmatprep.subr.mxu0 0.0
        %4468 = vmatpush1.msra.mxu0 0.0
        %4469 = vmatprep.mubr.f32.mxu0 0.0
        %v4470 = vand.u32 %v4028, 4294901760
        %4471 = vmatmul.mubr.f32.gmra.mrb[0].mxu0 %v4470
        %v4472 = vpop.f32.mrb[0].mxu0
        %v4473 = vadd.f32 %v4401, %v4472
        %v4474 = vpop.f32.mrb[0].mxu0
        %4475 = vdwg.mxu0
        %v4477 = vsel %vm830, %v4473, 0
        %4479 = vmatprep.subr.mxu0 0.0
        %v4480 = vand.u32 %v825, 4294901760
        %4481 = vmatpush1.msra.mxu0 %v4480
        %4482 = vmatprep.subr.mxu0 0.0
        %4483 = vmatpush1.msra.mxu0 0.0
        %4484 = vmatprep.subr.mxu0 0.0
        %4485 = vmatpush1.msra.mxu0 0.0
        %4486 = vmatprep.subr.mxu0 0.0
        %4487 = vmatpush1.msra.mxu0 0.0
        %4488 = vmatprep.subr.mxu0 0.0
        %4489 = vmatpush1.msra.mxu0 0.0
        %4490 = vmatprep.subr.mxu0 0.0
        %4491 = vmatpush1.msra.mxu0 0.0
        %4492 = vmatprep.subr.mxu0 0.0
        %4493 = vmatpush1.msra.mxu0 0.0
        %4494 = vmatprep.subr.mxu0 0.0
        %4495 = vmatpush1.msra.mxu0 0.0
        %4496 = vmatprep.subr.mxu0 0.0
        %4497 = vmatpush1.msra.mxu0 0.0
        %4498 = vmatprep.subr.mxu0 0.0
        %4499 = vmatpush1.msra.mxu0 0.0
        %4500 = vmatprep.subr.mxu0 0.0
        %4501 = vmatpush1.msra.mxu0 0.0
        %4502 = vmatprep.subr.mxu0 0.0
        %4503 = vmatpush1.msra.mxu0 0.0
        %4504 = vmatprep.subr.mxu0 0.0
        %4505 = vmatpush1.msra.mxu0 0.0
        %4506 = vmatprep.subr.mxu0 0.0
        %4507 = vmatpush1.msra.mxu0 0.0
        %4508 = vmatprep.subr.mxu0 0.0
        %4509 = vmatpush1.msra.mxu0 0.0
        %4510 = vmatprep.subr.mxu0 0.0
        %4511 = vmatpush1.msra.mxu0 0.0
        %4512 = vmatprep.subr.mxu0 0.0
        %4513 = vmatpush1.msra.mxu0 0.0
        %4514 = vmatprep.subr.mxu0 0.0
        %4515 = vmatpush1.msra.mxu0 0.0
        %4516 = vmatprep.subr.mxu0 0.0
        %4517 = vmatpush1.msra.mxu0 0.0
        %4518 = vmatprep.subr.mxu0 0.0
        %4519 = vmatpush1.msra.mxu0 0.0
        %4520 = vmatprep.subr.mxu0 0.0
        %4521 = vmatpush1.msra.mxu0 0.0
        %4522 = vmatprep.subr.mxu0 0.0
        %4523 = vmatpush1.msra.mxu0 0.0
        %4524 = vmatprep.subr.mxu0 0.0
        %4525 = vmatpush1.msra.mxu0 0.0
        %4526 = vmatprep.subr.mxu0 0.0
        %4527 = vmatpush1.msra.mxu0 0.0
        %4528 = vmatprep.subr.mxu0 0.0
        %4529 = vmatpush1.msra.mxu0 0.0
        %4530 = vmatprep.subr.mxu0 0.0
        %4531 = vmatpush1.msra.mxu0 0.0
        %4532 = vmatprep.subr.mxu0 0.0
        %4533 = vmatpush1.msra.mxu0 0.0
        %4534 = vmatprep.subr.mxu0 0.0
        %4535 = vmatpush1.msra.mxu0 0.0
        %4536 = vmatprep.subr.mxu0 0.0
        %4537 = vmatpush1.msra.mxu0 0.0
        %4538 = vmatprep.subr.mxu0 0.0
        %4539 = vmatpush1.msra.mxu0 0.0
        %4540 = vmatprep.subr.mxu0 0.0
        %4541 = vmatpush1.msra.mxu0 0.0
        %4542 = vmatprep.subr.mxu0 0.0
        %4543 = vmatpush1.msra.mxu0 0.0
        %4544 = vmatprep.mubr.f32.mxu0 0.0
        %v4545 = vand.u32 %v4477, 4294901760
        %v4546 = vsub.f32 %v4477, %v4545
        %v4547 = vand.u32 %v4546, 4294901760
        %v4548 = vsub.f32 %v4546, %v4547
        %v4549 = vand.u32 %v4548, 4294901760
        %4550 = vmatmul.mubr.f32.gmra.mrb[0].mxu0 %v4549
        %v4551 = vpop.f32.mrb[0].mxu0
        %v4552 = vadd.f32 0.0, %v4551
        %v4553 = vpop.f32.mrb[0].mxu0
        %4554 = vdwg.mxu0
        %4555 = vmatprep.subr.mxu0 0.0
        %v4556 = vand.u32 %v825, 4294901760
        %v4557 = vsub.f32 %v825, %v4556
        %v4558 = vand.u32 %v4557, 4294901760
        %v4559 = vsub.f32 %v4557, %v4558
        %v4560 = vand.u32 %v4559, 4294901760
        %4561 = vmatpush1.msra.mxu0 %v4560
        %4562 = vmatprep.subr.mxu0 0.0
        %4563 = vmatpush1.msra.mxu0 0.0
        %4564 = vmatprep.subr.mxu0 0.0
        %4565 = vmatpush1.msra.mxu0 0.0
        %4566 = vmatprep.subr.mxu0 0.0
        %4567 = vmatpush1.msra.mxu0 0.0
        %4568 = vmatprep.subr.mxu0 0.0
        %4569 = vmatpush1.msra.mxu0 0.0
        %4570 = vmatprep.subr.mxu0 0.0
        %4571 = vmatpush1.msra.mxu0 0.0
        %4572 = vmatprep.subr.mxu0 0.0
        %4573 = vmatpush1.msra.mxu0 0.0
        %4574 = vmatprep.subr.mxu0 0.0
        %4575 = vmatpush1.msra.mxu0 0.0
        %4576 = vmatprep.subr.mxu0 0.0
        %4577 = vmatpush1.msra.mxu0 0.0
        %4578 = vmatprep.subr.mxu0 0.0
        %4579 = vmatpush1.msra.mxu0 0.0
        %4580 = vmatprep.subr.mxu0 0.0
        %4581 = vmatpush1.msra.mxu0 0.0
        %4582 = vmatprep.subr.mxu0 0.0
        %4583 = vmatpush1.msra.mxu0 0.0
        %4584 = vmatprep.subr.mxu0 0.0
        %4585 = vmatpush1.msra.mxu0 0.0
        %4586 = vmatprep.subr.mxu0 0.0
        %4587 = vmatpush1.msra.mxu0 0.0
        %4588 = vmatprep.subr.mxu0 0.0
        %4589 = vmatpush1.msra.mxu0 0.0
        %4590 = vmatprep.subr.mxu0 0.0
        %4591 = vmatpush1.msra.mxu0 0.0
        %4592 = vmatprep.subr.mxu0 0.0
        %4593 = vmatpush1.msra.mxu0 0.0
        %4594 = vmatprep.subr.mxu0 0.0
        %4595 = vmatpush1.msra.mxu0 0.0
        %4596 = vmatprep.subr.mxu0 0.0
        %4597 = vmatpush1.msra.mxu0 0.0
        %4598 = vmatprep.subr.mxu0 0.0
        %4599 = vmatpush1.msra.mxu0 0.0
        %4600 = vmatprep.subr.mxu0 0.0
        %4601 = vmatpush1.msra.mxu0 0.0
        %4602 = vmatprep.subr.mxu0 0.0
        %4603 = vmatpush1.msra.mxu0 0.0
        %4604 = vmatprep.subr.mxu0 0.0
        %4605 = vmatpush1.msra.mxu0 0.0
        %4606 = vmatprep.subr.mxu0 0.0
        %4607 = vmatpush1.msra.mxu0 0.0
        %4608 = vmatprep.subr.mxu0 0.0
        %4609 = vmatpush1.msra.mxu0 0.0
        %4610 = vmatprep.subr.mxu0 0.0
        %4611 = vmatpush1.msra.mxu0 0.0
        %4612 = vmatprep.subr.mxu0 0.0
        %4613 = vmatpush1.msra.mxu0 0.0
        %4614 = vmatprep.subr.mxu0 0.0
        %4615 = vmatpush1.msra.mxu0 0.0
        %4616 = vmatprep.subr.mxu0 0.0
        %4617 = vmatpush1.msra.mxu0 0.0
        %4618 = vmatprep.subr.mxu0 0.0
        %4619 = vmatpush1.msra.mxu0 0.0
        %4620 = vmatprep.subr.mxu0 0.0
        %4621 = vmatpush1.msra.mxu0 0.0
        %4622 = vmatprep.subr.mxu0 0.0
        %4623 = vmatpush1.msra.mxu0 0.0
        %4624 = vmatprep.mubr.f32.mxu0 0.0
        %v4625 = vand.u32 %v4477, 4294901760
        %4626 = vmatmul.mubr.f32.gmra.mrb[0].mxu0 %v4625
        %v4627 = vpop.f32.mrb[0].mxu0
        %v4628 = vadd.f32 %v4552, %v4627
        %v4629 = vpop.f32.mrb[0].mxu0
        %4630 = vdwg.mxu0
        %4631 = vmatprep.subr.mxu0 0.0
        %v4632 = vand.u32 %v825, 4294901760
        %v4633 = vsub.f32 %v825, %v4632
        %4634 = vmatpush1.msra.mxu0 %v4633
        %4635 = vmatprep.subr.mxu0 0.0
        %4636 = vmatpush1.msra.mxu0 0.0
        %4637 = vmatprep.subr.mxu0 0.0
        %4638 = vmatpush1.msra.mxu0 0.0
        %4639 = vmatprep.subr.mxu0 0.0
        %4640 = vmatpush1.msra.mxu0 0.0
        %4641 = vmatprep.subr.mxu0 0.0
        %4642 = vmatpush1.msra.mxu0 0.0
        %4643 = vmatprep.subr.mxu0 0.0
        %4644 = vmatpush1.msra.mxu0 0.0
        %4645 = vmatprep.subr.mxu0 0.0
        %4646 = vmatpush1.msra.mxu0 0.0
        %4647 = vmatprep.subr.mxu0 0.0
        %4648 = vmatpush1.msra.mxu0 0.0
        %4649 = vmatprep.subr.mxu0 0.0
        %4650 = vmatpush1.msra.mxu0 0.0
        %4651 = vmatprep.subr.mxu0 0.0
        %4652 = vmatpush1.msra.mxu0 0.0
        %4653 = vmatprep.subr.mxu0 0.0
        %4654 = vmatpush1.msra.mxu0 0.0
        %4655 = vmatprep.subr.mxu0 0.0
        %4656 = vmatpush1.msra.mxu0 0.0
        %4657 = vmatprep.subr.mxu0 0.0
        %4658 = vmatpush1.msra.mxu0 0.0
        %4659 = vmatprep.subr.mxu0 0.0
        %4660 = vmatpush1.msra.mxu0 0.0
        %4661 = vmatprep.subr.mxu0 0.0
        %4662 = vmatpush1.msra.mxu0 0.0
        %4663 = vmatprep.subr.mxu0 0.0
        %4664 = vmatpush1.msra.mxu0 0.0
        %4665 = vmatprep.subr.mxu0 0.0
        %4666 = vmatpush1.msra.mxu0 0.0
        %4667 = vmatprep.subr.mxu0 0.0
        %4668 = vmatpush1.msra.mxu0 0.0
        %4669 = vmatprep.subr.mxu0 0.0
        %4670 = vmatpush1.msra.mxu0 0.0
        %4671 = vmatprep.subr.mxu0 0.0
        %4672 = vmatpush1.msra.mxu0 0.0
        %4673 = vmatprep.subr.mxu0 0.0
        %4674 = vmatpush1.msra.mxu0 0.0
        %4675 = vmatprep.subr.mxu0 0.0
        %4676 = vmatpush1.msra.mxu0 0.0
        %4677 = vmatprep.subr.mxu0 0.0
        %4678 = vmatpush1.msra.mxu0 0.0
        %4679 = vmatprep.subr.mxu0 0.0
        %4680 = vmatpush1.msra.mxu0 0.0
        %4681 = vmatprep.subr.mxu0 0.0
        %4682 = vmatpush1.msra.mxu0 0.0
        %4683 = vmatprep.subr.mxu0 0.0
        %4684 = vmatpush1.msra.mxu0 0.0
        %4685 = vmatprep.subr.mxu0 0.0
        %4686 = vmatpush1.msra.mxu0 0.0
        %4687 = vmatprep.subr.mxu0 0.0
        %4688 = vmatpush1.msra.mxu0 0.0
        %4689 = vmatprep.subr.mxu0 0.0
        %4690 = vmatpush1.msra.mxu0 0.0
        %4691 = vmatprep.subr.mxu0 0.0
        %4692 = vmatpush1.msra.mxu0 0.0
        %4693 = vmatprep.subr.mxu0 0.0
        %4694 = vmatpush1.msra.mxu0 0.0
        %4695 = vmatprep.subr.mxu0 0.0
        %4696 = vmatpush1.msra.mxu0 0.0
        %4697 = vmatprep.mubr.f32.mxu0 0.0
        %v4698 = vand.u32 %v4477, 4294901760
        %v4699 = vsub.f32 %v4477, %v4698
        %4700 = vmatmul.mubr.f32.gmra.mrb[0].mxu0 %v4699
        %v4701 = vpop.f32.mrb[0].mxu0
        %v4702 = vadd.f32 %v4628, %v4701
        %v4703 = vpop.f32.mrb[0].mxu0
        %4704 = vdwg.mxu0
        %4705 = vmatprep.subr.mxu0 0.0
        %v4706 = vand.u32 %v825, 4294901760
        %4707 = vmatpush1.msra.mxu0 %v4706
        %4708 = vmatprep.subr.mxu0 0.0
        %4709 = vmatpush1.msra.mxu0 0.0
        %4710 = vmatprep.subr.mxu0 0.0
        %4711 = vmatpush1.msra.mxu0 0.0
        %4712 = vmatprep.subr.mxu0 0.0
        %4713 = vmatpush1.msra.mxu0 0.0
        %4714 = vmatprep.subr.mxu0 0.0
        %4715 = vmatpush1.msra.mxu0 0.0
        %4716 = vmatprep.subr.mxu0 0.0
        %4717 = vmatpush1.msra.mxu0 0.0
        %4718 = vmatprep.subr.mxu0 0.0
        %4719 = vmatpush1.msra.mxu0 0.0
        %4720 = vmatprep.subr.mxu0 0.0
        %4721 = vmatpush1.msra.mxu0 0.0
        %4722 = vmatprep.subr.mxu0 0.0
        %4723 = vmatpush1.msra.mxu0 0.0
        %4724 = vmatprep.subr.mxu0 0.0
        %4725 = vmatpush1.msra.mxu0 0.0
        %4726 = vmatprep.subr.mxu0 0.0
        %4727 = vmatpush1.msra.mxu0 0.0
        %4728 = vmatprep.subr.mxu0 0.0
        %4729 = vmatpush1.msra.mxu0 0.0
        %4730 = vmatprep.subr.mxu0 0.0
        %4731 = vmatpush1.msra.mxu0 0.0
        %4732 = vmatprep.subr.mxu0 0.0
        %4733 = vmatpush1.msra.mxu0 0.0
        %4734 = vmatprep.subr.mxu0 0.0
        %4735 = vmatpush1.msra.mxu0 0.0
        %4736 = vmatprep.subr.mxu0 0.0
        %4737 = vmatpush1.msra.mxu0 0.0
        %4738 = vmatprep.subr.mxu0 0.0
        %4739 = vmatpush1.msra.mxu0 0.0
        %4740 = vmatprep.subr.mxu0 0.0
        %4741 = vmatpush1.msra.mxu0 0.0
        %4742 = vmatprep.subr.mxu0 0.0
        %4743 = vmatpush1.msra.mxu0 0.0
        %4744 = vmatprep.subr.mxu0 0.0
        %4745 = vmatpush1.msra.mxu0 0.0
        %4746 = vmatprep.subr.mxu0 0.0
        %4747 = vmatpush1.msra.mxu0 0.0
        %4748 = vmatprep.subr.mxu0 0.0
        %4749 = vmatpush1.msra.mxu0 0.0
        %4750 = vmatprep.subr.mxu0 0.0
        %4751 = vmatpush1.msra.mxu0 0.0
        %4752 = vmatprep.subr.mxu0 0.0
        %4753 = vmatpush1.msra.mxu0 0.0
        %4754 = vmatprep.subr.mxu0 0.0
        %4755 = vmatpush1.msra.mxu0 0.0
        %4756 = vmatprep.subr.mxu0 0.0
        %4757 = vmatpush1.msra.mxu0 0.0
        %4758 = vmatprep.subr.mxu0 0.0
        %4759 = vmatpush1.msra.mxu0 0.0
        %4760 = vmatprep.subr.mxu0 0.0
        %4761 = vmatpush1.msra.mxu0 0.0
        %4762 = vmatprep.subr.mxu0 0.0
        %4763 = vmatpush1.msra.mxu0 0.0
        %4764 = vmatprep.subr.mxu0 0.0
        %4765 = vmatpush1.msra.mxu0 0.0
        %4766 = vmatprep.subr.mxu0 0.0
        %4767 = vmatpush1.msra.mxu0 0.0
        %4768 = vmatprep.subr.mxu0 0.0
        %4769 = vmatpush1.msra.mxu0 0.0
        %4770 = vmatprep.mubr.f32.mxu0 0.0
        %v4771 = vand.u32 %v4477, 4294901760
        %v4772 = vsub.f32 %v4477, %v4771
        %v4773 = vand.u32 %v4772, 4294901760
        %4774 = vmatmul.mubr.f32.gmra.mrb[0].mxu0 %v4773
        %v4775 = vpop.f32.mrb[0].mxu0
        %v4776 = vadd.f32 %v4702, %v4775
        %v4777 = vpop.f32.mrb[0].mxu0
        %4778 = vdwg.mxu0
        %4779 = vmatprep.subr.mxu0 0.0
        %v4780 = vand.u32 %v825, 4294901760
        %v4781 = vsub.f32 %v825, %v4780
        %v4782 = vand.u32 %v4781, 4294901760
        %4783 = vmatpush1.msra.mxu0 %v4782
        %4784 = vmatprep.subr.mxu0 0.0
        %4785 = vmatpush1.msra.mxu0 0.0
        %4786 = vmatprep.subr.mxu0 0.0
        %4787 = vmatpush1.msra.mxu0 0.0
        %4788 = vmatprep.subr.mxu0 0.0
        %4789 = vmatpush1.msra.mxu0 0.0
        %4790 = vmatprep.subr.mxu0 0.0
        %4791 = vmatpush1.msra.mxu0 0.0
        %4792 = vmatprep.subr.mxu0 0.0
        %4793 = vmatpush1.msra.mxu0 0.0
        %4794 = vmatprep.subr.mxu0 0.0
        %4795 = vmatpush1.msra.mxu0 0.0
        %4796 = vmatprep.subr.mxu0 0.0
        %4797 = vmatpush1.msra.mxu0 0.0
        %4798 = vmatprep.subr.mxu0 0.0
        %4799 = vmatpush1.msra.mxu0 0.0
        %4800 = vmatprep.subr.mxu0 0.0
        %4801 = vmatpush1.msra.mxu0 0.0
        %4802 = vmatprep.subr.mxu0 0.0
        %4803 = vmatpush1.msra.mxu0 0.0
        %4804 = vmatprep.subr.mxu0 0.0
        %4805 = vmatpush1.msra.mxu0 0.0
        %4806 = vmatprep.subr.mxu0 0.0
        %4807 = vmatpush1.msra.mxu0 0.0
        %4808 = vmatprep.subr.mxu0 0.0
        %4809 = vmatpush1.msra.mxu0 0.0
        %4810 = vmatprep.subr.mxu0 0.0
        %4811 = vmatpush1.msra.mxu0 0.0
        %4812 = vmatprep.subr.mxu0 0.0
        %4813 = vmatpush1.msra.mxu0 0.0
        %4814 = vmatprep.subr.mxu0 0.0
        %4815 = vmatpush1.msra.mxu0 0.0
        %4816 = vmatprep.subr.mxu0 0.0
        %4817 = vmatpush1.msra.mxu0 0.0
        %4818 = vmatprep.subr.mxu0 0.0
        %4819 = vmatpush1.msra.mxu0 0.0
        %4820 = vmatprep.subr.mxu0 0.0
        %4821 = vmatpush1.msra.mxu0 0.0
        %4822 = vmatprep.subr.mxu0 0.0
        %4823 = vmatpush1.msra.mxu0 0.0
        %4824 = vmatprep.subr.mxu0 0.0
        %4825 = vmatpush1.msra.mxu0 0.0
        %4826 = vmatprep.subr.mxu0 0.0
        %4827 = vmatpush1.msra.mxu0 0.0
        %4828 = vmatprep.subr.mxu0 0.0
        %4829 = vmatpush1.msra.mxu0 0.0
        %4830 = vmatprep.subr.mxu0 0.0
        %4831 = vmatpush1.msra.mxu0 0.0
        %4832 = vmatprep.subr.mxu0 0.0
        %4833 = vmatpush1.msra.mxu0 0.0
        %4834 = vmatprep.subr.mxu0 0.0
        %4835 = vmatpush1.msra.mxu0 0.0
        %4836 = vmatprep.subr.mxu0 0.0
        %4837 = vmatpush1.msra.mxu0 0.0
        %4838 = vmatprep.subr.mxu0 0.0
        %4839 = vmatpush1.msra.mxu0 0.0
        %4840 = vmatprep.subr.mxu0 0.0
        %4841 = vmatpush1.msra.mxu0 0.0
        %4842 = vmatprep.subr.mxu0 0.0
        %4843 = vmatpush1.msra.mxu0 0.0
        %4844 = vmatprep.subr.mxu0 0.0
        %4845 = vmatpush1.msra.mxu0 0.0
        %4846 = vmatprep.mubr.f32.mxu0 0.0
        %v4847 = vand.u32 %v4477, 4294901760
        %4848 = vmatmul.mubr.f32.gmra.mrb[0].mxu0 %v4847
        %v4849 = vpop.f32.mrb[0].mxu0
        %v4850 = vadd.f32 %v4776, %v4849
        %v4851 = vpop.f32.mrb[0].mxu0
        %4852 = vdwg.mxu0
        %4853 = vmatprep.subr.mxu0 0.0
        %v4854 = vand.u32 %v825, 4294901760
        %4855 = vmatpush1.msra.mxu0 %v4854
        %4856 = vmatprep.subr.mxu0 0.0
        %4857 = vmatpush1.msra.mxu0 0.0
        %4858 = vmatprep.subr.mxu0 0.0
        %4859 = vmatpush1.msra.mxu0 0.0
        %4860 = vmatprep.subr.mxu0 0.0
        %4861 = vmatpush1.msra.mxu0 0.0
        %4862 = vmatprep.subr.mxu0 0.0
        %4863 = vmatpush1.msra.mxu0 0.0
        %4864 = vmatprep.subr.mxu0 0.0
        %4865 = vmatpush1.msra.mxu0 0.0
        %4866 = vmatprep.subr.mxu0 0.0
        %4867 = vmatpush1.msra.mxu0 0.0
        %4868 = vmatprep.subr.mxu0 0.0
        %4869 = vmatpush1.msra.mxu0 0.0
        %4870 = vmatprep.subr.mxu0 0.0
        %4871 = vmatpush1.msra.mxu0 0.0
        %4872 = vmatprep.subr.mxu0 0.0
        %4873 = vmatpush1.msra.mxu0 0.0
        %4874 = vmatprep.subr.mxu0 0.0
        %4875 = vmatpush1.msra.mxu0 0.0
        %4876 = vmatprep.subr.mxu0 0.0
        %4877 = vmatpush1.msra.mxu0 0.0
        %4878 = vmatprep.subr.mxu0 0.0
        %4879 = vmatpush1.msra.mxu0 0.0
        %4880 = vmatprep.subr.mxu0 0.0
        %4881 = vmatpush1.msra.mxu0 0.0
        %4882 = vmatprep.subr.mxu0 0.0
        %4883 = vmatpush1.msra.mxu0 0.0
        %4884 = vmatprep.subr.mxu0 0.0
        %4885 = vmatpush1.msra.mxu0 0.0
        %4886 = vmatprep.subr.mxu0 0.0
        %4887 = vmatpush1.msra.mxu0 0.0
        %4888 = vmatprep.subr.mxu0 0.0
        %4889 = vmatpush1.msra.mxu0 0.0
        %4890 = vmatprep.subr.mxu0 0.0
        %4891 = vmatpush1.msra.mxu0 0.0
        %4892 = vmatprep.subr.mxu0 0.0
        %4893 = vmatpush1.msra.mxu0 0.0
        %4894 = vmatprep.subr.mxu0 0.0
        %4895 = vmatpush1.msra.mxu0 0.0
        %4896 = vmatprep.subr.mxu0 0.0
        %4897 = vmatpush1.msra.mxu0 0.0
        %4898 = vmatprep.subr.mxu0 0.0
        %4899 = vmatpush1.msra.mxu0 0.0
        %4900 = vmatprep.subr.mxu0 0.0
        %4901 = vmatpush1.msra.mxu0 0.0
        %4902 = vmatprep.subr.mxu0 0.0
        %4903 = vmatpush1.msra.mxu0 0.0
        %4904 = vmatprep.subr.mxu0 0.0
        %4905 = vmatpush1.msra.mxu0 0.0
        %4906 = vmatprep.subr.mxu0 0.0
        %4907 = vmatpush1.msra.mxu0 0.0
        %4908 = vmatprep.subr.mxu0 0.0
        %4909 = vmatpush1.msra.mxu0 0.0
        %4910 = vmatprep.subr.mxu0 0.0
        %4911 = vmatpush1.msra.mxu0 0.0
        %4912 = vmatprep.subr.mxu0 0.0
        %4913 = vmatpush1.msra.mxu0 0.0
        %4914 = vmatprep.subr.mxu0 0.0
        %4915 = vmatpush1.msra.mxu0 0.0
        %4916 = vmatprep.subr.mxu0 0.0
        %4917 = vmatpush1.msra.mxu0 0.0
        %4918 = vmatprep.mubr.f32.mxu0 0.0
        %v4919 = vand.u32 %v4477, 4294901760
        %4920 = vmatmul.mubr.f32.gmra.mrb[0].mxu0 %v4919
        %v4921 = vpop.f32.mrb[0].mxu0
        %v4922 = vadd.f32 %v4850, %v4921
        %v4923 = vpop.f32.mrb[0].mxu0
        %4924 = vdwg.mxu0
        %v4925 = vadd.f32 %v3556, %v4922
        %4926 = vrot.lane.b32.xlu0 %v820, 104
        %v4927 = vpop.permute.xlu0 %4926
        %4928 = vrot.lane.b32.xlu0 %v820, 72
        %v4929 = vpop.permute.xlu0 %4928
        %v4930 = vsel %vm830, %v4927, 0
        %v4932 = vsel %vm830, %v4929, 0
        %4934 = vmatprep.subr.mxu0 0.0
        %v4935 = vand.u32 %v4932, 4294901760
        %4936 = vmatpush1.xpose.msra.mxu0 %v4935
        %4937 = vmatprep.subr.mxu0 0.0
        %4938 = vmatpush1.xpose.msra.mxu0 0.0
        %4939 = vmatprep.subr.mxu0 0.0
        %4940 = vmatpush1.xpose.msra.mxu0 0.0
        %4941 = vmatprep.subr.mxu0 0.0
        %4942 = vmatpush1.xpose.msra.mxu0 0.0
        %4943 = vmatprep.subr.mxu0 0.0
        %4944 = vmatpush1.xpose.msra.mxu0 0.0
        %4945 = vmatprep.subr.mxu0 0.0
        %4946 = vmatpush1.xpose.msra.mxu0 0.0
        %4947 = vmatprep.subr.mxu0 0.0
        %4948 = vmatpush1.xpose.msra.mxu0 0.0
        %4949 = vmatprep.subr.mxu0 0.0
        %4950 = vmatpush1.xpose.msra.mxu0 0.0
        %4951 = vmatprep.subr.mxu0 0.0
        %4952 = vmatpush1.xpose.msra.mxu0 0.0
        %4953 = vmatprep.subr.mxu0 0.0
        %4954 = vmatpush1.xpose.msra.mxu0 0.0
        %4955 = vmatprep.subr.mxu0 0.0
        %4956 = vmatpush1.xpose.msra.mxu0 0.0
        %4957 = vmatprep.subr.mxu0 0.0
        %4958 = vmatpush1.xpose.msra.mxu0 0.0
        %4959 = vmatprep.subr.mxu0 0.0
        %4960 = vmatpush1.xpose.msra.mxu0 0.0
        %4961 = vmatprep.subr.mxu0 0.0
        %4962 = vmatpush1.xpose.msra.mxu0 0.0
        %4963 = vmatprep.subr.mxu0 0.0
        %4964 = vmatpush1.xpose.msra.mxu0 0.0
        %4965 = vmatprep.subr.mxu0 0.0
        %4966 = vmatpush1.xpose.msra.mxu0 0.0
        %4967 = vmatprep.subr.mxu0 0.0
        %4968 = vmatpush1.xpose.msra.mxu0 0.0
        %4969 = vmatprep.subr.mxu0 0.0
        %4970 = vmatpush1.xpose.msra.mxu0 0.0
        %4971 = vmatprep.subr.mxu0 0.0
        %4972 = vmatpush1.xpose.msra.mxu0 0.0
        %4973 = vmatprep.subr.mxu0 0.0
        %4974 = vmatpush1.xpose.msra.mxu0 0.0
        %4975 = vmatprep.subr.mxu0 0.0
        %4976 = vmatpush1.xpose.msra.mxu0 0.0
        %4977 = vmatprep.subr.mxu0 0.0
        %4978 = vmatpush1.xpose.msra.mxu0 0.0
        %4979 = vmatprep.subr.mxu0 0.0
        %4980 = vmatpush1.xpose.msra.mxu0 0.0
        %4981 = vmatprep.subr.mxu0 0.0
        %4982 = vmatpush1.xpose.msra.mxu0 0.0
        %4983 = vmatprep.subr.mxu0 0.0
        %4984 = vmatpush1.xpose.msra.mxu0 0.0
        %4985 = vmatprep.subr.mxu0 0.0
        %4986 = vmatpush1.xpose.msra.mxu0 0.0
        %4987 = vmatprep.subr.mxu0 0.0
        %4988 = vmatpush1.xpose.msra.mxu0 0.0
        %4989 = vmatprep.subr.mxu0 0.0
        %4990 = vmatpush1.xpose.msra.mxu0 0.0
        %4991 = vmatprep.subr.mxu0 0.0
        %4992 = vmatpush1.xpose.msra.mxu0 0.0
        %4993 = vmatprep.subr.mxu0 0.0
        %4994 = vmatpush1.xpose.msra.mxu0 0.0
        %4995 = vmatprep.subr.mxu0 0.0
        %4996 = vmatpush1.xpose.msra.mxu0 0.0
        %4997 = vmatprep.subr.mxu0 0.0
        %4998 = vmatpush1.xpose.msra.mxu0 0.0
        %4999 = vmatprep.mubr.f32.mxu0 0.0
        %v5000 = vand.u32 %v4930, 4294901760
        %v5001 = vsub.f32 %v4930, %v5000
        %v5002 = vand.u32 %v5001, 4294901760
        %v5003 = vsub.f32 %v5001, %v5002
        %v5004 = vand.u32 %v5003, 4294901760
        %5005 = vmatmul.mubr.f32.gmra.mrb[0].mxu0 %v5004
        %v5006 = vpop.f32.mrb[0].mxu0
        %v5007 = vadd.f32 %v329, %v5006
        %v5008 = vpop.f32.mrb[0].mxu0
        %5009 = vdwg.mxu0
        %5010 = vmatprep.subr.mxu0 0.0
        %v5011 = vand.u32 %v4932, 4294901760
        %v5012 = vsub.f32 %v4932, %v5011
        %v5013 = vand.u32 %v5012, 4294901760
        %v5014 = vsub.f32 %v5012, %v5013
        %v5015 = vand.u32 %v5014, 4294901760
        %5016 = vmatpush1.xpose.msra.mxu0 %v5015
        %5017 = vmatprep.subr.mxu0 0.0
        %5018 = vmatpush1.xpose.msra.mxu0 0.0
        %5019 = vmatprep.subr.mxu0 0.0
        %5020 = vmatpush1.xpose.msra.mxu0 0.0
        %5021 = vmatprep.subr.mxu0 0.0
        %5022 = vmatpush1.xpose.msra.mxu0 0.0
        %5023 = vmatprep.subr.mxu0 0.0
        %5024 = vmatpush1.xpose.msra.mxu0 0.0
        %5025 = vmatprep.subr.mxu0 0.0
        %5026 = vmatpush1.xpose.msra.mxu0 0.0
        %5027 = vmatprep.subr.mxu0 0.0
        %5028 = vmatpush1.xpose.msra.mxu0 0.0
        %5029 = vmatprep.subr.mxu0 0.0
        %5030 = vmatpush1.xpose.msra.mxu0 0.0
        %5031 = vmatprep.subr.mxu0 0.0
        %5032 = vmatpush1.xpose.msra.mxu0 0.0
        %5033 = vmatprep.subr.mxu0 0.0
        %5034 = vmatpush1.xpose.msra.mxu0 0.0
        %5035 = vmatprep.subr.mxu0 0.0
        %5036 = vmatpush1.xpose.msra.mxu0 0.0
        %5037 = vmatprep.subr.mxu0 0.0
        %5038 = vmatpush1.xpose.msra.mxu0 0.0
        %5039 = vmatprep.subr.mxu0 0.0
        %5040 = vmatpush1.xpose.msra.mxu0 0.0
        %5041 = vmatprep.subr.mxu0 0.0
        %5042 = vmatpush1.xpose.msra.mxu0 0.0
        %5043 = vmatprep.subr.mxu0 0.0
        %5044 = vmatpush1.xpose.msra.mxu0 0.0
        %5045 = vmatprep.subr.mxu0 0.0
        %5046 = vmatpush1.xpose.msra.mxu0 0.0
        %5047 = vmatprep.subr.mxu0 0.0
        %5048 = vmatpush1.xpose.msra.mxu0 0.0
        %5049 = vmatprep.subr.mxu0 0.0
        %5050 = vmatpush1.xpose.msra.mxu0 0.0
        %5051 = vmatprep.subr.mxu0 0.0
        %5052 = vmatpush1.xpose.msra.mxu0 0.0
        %5053 = vmatprep.subr.mxu0 0.0
        %5054 = vmatpush1.xpose.msra.mxu0 0.0
        %5055 = vmatprep.subr.mxu0 0.0
        %5056 = vmatpush1.xpose.msra.mxu0 0.0
        %5057 = vmatprep.subr.mxu0 0.0
        %5058 = vmatpush1.xpose.msra.mxu0 0.0
        %5059 = vmatprep.subr.mxu0 0.0
        %5060 = vmatpush1.xpose.msra.mxu0 0.0
        %5061 = vmatprep.subr.mxu0 0.0
        %5062 = vmatpush1.xpose.msra.mxu0 0.0
        %5063 = vmatprep.subr.mxu0 0.0
        %5064 = vmatpush1.xpose.msra.mxu0 0.0
        %5065 = vmatprep.subr.mxu0 0.0
        %5066 = vmatpush1.xpose.msra.mxu0 0.0
        %5067 = vmatprep.subr.mxu0 0.0
        %5068 = vmatpush1.xpose.msra.mxu0 0.0
        %5069 = vmatprep.subr.mxu0 0.0
        %5070 = vmatpush1.xpose.msra.mxu0 0.0
        %5071 = vmatprep.subr.mxu0 0.0
        %5072 = vmatpush1.xpose.msra.mxu0 0.0
        %5073 = vmatprep.subr.mxu0 0.0
        %5074 = vmatpush1.xpose.msra.mxu0 0.0
        %5075 = vmatprep.subr.mxu0 0.0
        %5076 = vmatpush1.xpose.msra.mxu0 0.0
        %5077 = vmatprep.subr.mxu0 0.0
        %5078 = vmatpush1.xpose.msra.mxu0 0.0
        %5079 = vmatprep.mubr.f32.mxu0 0.0
        %v5080 = vand.u32 %v4930, 4294901760
        %5081 = vmatmul.mubr.f32.gmra.mrb[0].mxu0 %v5080
        %v5082 = vpop.f32.mrb[0].mxu0
        %v5083 = vadd.f32 %v5007, %v5082
        %v5084 = vpop.f32.mrb[0].mxu0
        %5085 = vdwg.mxu0
        %5086 = vmatprep.subr.mxu0 0.0
        %v5087 = vand.u32 %v4932, 4294901760
        %v5088 = vsub.f32 %v4932, %v5087
        %5089 = vmatpush1.xpose.msra.mxu0 %v5088
        %5090 = vmatprep.subr.mxu0 0.0
        %5091 = vmatpush1.xpose.msra.mxu0 0.0
        %5092 = vmatprep.subr.mxu0 0.0
        %5093 = vmatpush1.xpose.msra.mxu0 0.0
        %5094 = vmatprep.subr.mxu0 0.0
        %5095 = vmatpush1.xpose.msra.mxu0 0.0
        %5096 = vmatprep.subr.mxu0 0.0
        %5097 = vmatpush1.xpose.msra.mxu0 0.0
        %5098 = vmatprep.subr.mxu0 0.0
        %5099 = vmatpush1.xpose.msra.mxu0 0.0
        %5100 = vmatprep.subr.mxu0 0.0
        %5101 = vmatpush1.xpose.msra.mxu0 0.0
        %5102 = vmatprep.subr.mxu0 0.0
        %5103 = vmatpush1.xpose.msra.mxu0 0.0
        %5104 = vmatprep.subr.mxu0 0.0
        %5105 = vmatpush1.xpose.msra.mxu0 0.0
        %5106 = vmatprep.subr.mxu0 0.0
        %5107 = vmatpush1.xpose.msra.mxu0 0.0
        %5108 = vmatprep.subr.mxu0 0.0
        %5109 = vmatpush1.xpose.msra.mxu0 0.0
        %5110 = vmatprep.subr.mxu0 0.0
        %5111 = vmatpush1.xpose.msra.mxu0 0.0
        %5112 = vmatprep.subr.mxu0 0.0
        %5113 = vmatpush1.xpose.msra.mxu0 0.0
        %5114 = vmatprep.subr.mxu0 0.0
        %5115 = vmatpush1.xpose.msra.mxu0 0.0
        %5116 = vmatprep.subr.mxu0 0.0
        %5117 = vmatpush1.xpose.msra.mxu0 0.0
        %5118 = vmatprep.subr.mxu0 0.0
        %5119 = vmatpush1.xpose.msra.mxu0 0.0
        %5120 = vmatprep.subr.mxu0 0.0
        %5121 = vmatpush1.xpose.msra.mxu0 0.0
        %5122 = vmatprep.subr.mxu0 0.0
        %5123 = vmatpush1.xpose.msra.mxu0 0.0
        %5124 = vmatprep.subr.mxu0 0.0
        %5125 = vmatpush1.xpose.msra.mxu0 0.0
        %5126 = vmatprep.subr.mxu0 0.0
        %5127 = vmatpush1.xpose.msra.mxu0 0.0
        %5128 = vmatprep.subr.mxu0 0.0
        %5129 = vmatpush1.xpose.msra.mxu0 0.0
        %5130 = vmatprep.subr.mxu0 0.0
        %5131 = vmatpush1.xpose.msra.mxu0 0.0
        %5132 = vmatprep.subr.mxu0 0.0
        %5133 = vmatpush1.xpose.msra.mxu0 0.0
        %5134 = vmatprep.subr.mxu0 0.0
        %5135 = vmatpush1.xpose.msra.mxu0 0.0
        %5136 = vmatprep.subr.mxu0 0.0
        %5137 = vmatpush1.xpose.msra.mxu0 0.0
        %5138 = vmatprep.subr.mxu0 0.0
        %5139 = vmatpush1.xpose.msra.mxu0 0.0
        %5140 = vmatprep.subr.mxu0 0.0
        %5141 = vmatpush1.xpose.msra.mxu0 0.0
        %5142 = vmatprep.subr.mxu0 0.0
        %5143 = vmatpush1.xpose.msra.mxu0 0.0
        %5144 = vmatprep.subr.mxu0 0.0
        %5145 = vmatpush1.xpose.msra.mxu0 0.0
        %5146 = vmatprep.subr.mxu0 0.0
        %5147 = vmatpush1.xpose.msra.mxu0 0.0
        %5148 = vmatprep.subr.mxu0 0.0
        %5149 = vmatpush1.xpose.msra.mxu0 0.0
        %5150 = vmatprep.subr.mxu0 0.0
        %5151 = vmatpush1.xpose.msra.mxu0 0.0
        %5152 = vmatprep.mubr.f32.mxu0 0.0
        %v5153 = vand.u32 %v4930, 4294901760
        %v5154 = vsub.f32 %v4930, %v5153
        %5155 = vmatmul.mubr.f32.gmra.mrb[0].mxu0 %v5154
        %v5156 = vpop.f32.mrb[0].mxu0
        %v5157 = vadd.f32 %v5083, %v5156
        %v5158 = vpop.f32.mrb[0].mxu0
        %5159 = vdwg.mxu0
        %5160 = vmatprep.subr.mxu0 0.0
        %v5161 = vand.u32 %v4932, 4294901760
        %5162 = vmatpush1.xpose.msra.mxu0 %v5161
        %5163 = vmatprep.subr.mxu0 0.0
        %5164 = vmatpush1.xpose.msra.mxu0 0.0
        %5165 = vmatprep.subr.mxu0 0.0
        %5166 = vmatpush1.xpose.msra.mxu0 0.0
        %5167 = vmatprep.subr.mxu0 0.0
        %5168 = vmatpush1.xpose.msra.mxu0 0.0
        %5169 = vmatprep.subr.mxu0 0.0
        %5170 = vmatpush1.xpose.msra.mxu0 0.0
        %5171 = vmatprep.subr.mxu0 0.0
        %5172 = vmatpush1.xpose.msra.mxu0 0.0
        %5173 = vmatprep.subr.mxu0 0.0
        %5174 = vmatpush1.xpose.msra.mxu0 0.0
        %5175 = vmatprep.subr.mxu0 0.0
        %5176 = vmatpush1.xpose.msra.mxu0 0.0
        %5177 = vmatprep.subr.mxu0 0.0
        %5178 = vmatpush1.xpose.msra.mxu0 0.0
        %5179 = vmatprep.subr.mxu0 0.0
        %5180 = vmatpush1.xpose.msra.mxu0 0.0
        %5181 = vmatprep.subr.mxu0 0.0
        %5182 = vmatpush1.xpose.msra.mxu0 0.0
        %5183 = vmatprep.subr.mxu0 0.0
        %5184 = vmatpush1.xpose.msra.mxu0 0.0
        %5185 = vmatprep.subr.mxu0 0.0
        %5186 = vmatpush1.xpose.msra.mxu0 0.0
        %5187 = vmatprep.subr.mxu0 0.0
        %5188 = vmatpush1.xpose.msra.mxu0 0.0
        %5189 = vmatprep.subr.mxu0 0.0
        %5190 = vmatpush1.xpose.msra.mxu0 0.0
        %5191 = vmatprep.subr.mxu0 0.0
        %5192 = vmatpush1.xpose.msra.mxu0 0.0
        %5193 = vmatprep.subr.mxu0 0.0
        %5194 = vmatpush1.xpose.msra.mxu0 0.0
        %5195 = vmatprep.subr.mxu0 0.0
        %5196 = vmatpush1.xpose.msra.mxu0 0.0
        %5197 = vmatprep.subr.mxu0 0.0
        %5198 = vmatpush1.xpose.msra.mxu0 0.0
        %5199 = vmatprep.subr.mxu0 0.0
        %5200 = vmatpush1.xpose.msra.mxu0 0.0
        %5201 = vmatprep.subr.mxu0 0.0
        %5202 = vmatpush1.xpose.msra.mxu0 0.0
        %5203 = vmatprep.subr.mxu0 0.0
        %5204 = vmatpush1.xpose.msra.mxu0 0.0
        %5205 = vmatprep.subr.mxu0 0.0
        %5206 = vmatpush1.xpose.msra.mxu0 0.0
        %5207 = vmatprep.subr.mxu0 0.0
        %5208 = vmatpush1.xpose.msra.mxu0 0.0
        %5209 = vmatprep.subr.mxu0 0.0
        %5210 = vmatpush1.xpose.msra.mxu0 0.0
        %5211 = vmatprep.subr.mxu0 0.0
        %5212 = vmatpush1.xpose.msra.mxu0 0.0
        %5213 = vmatprep.subr.mxu0 0.0
        %5214 = vmatpush1.xpose.msra.mxu0 0.0
        %5215 = vmatprep.subr.mxu0 0.0
        %5216 = vmatpush1.xpose.msra.mxu0 0.0
        %5217 = vmatprep.subr.mxu0 0.0
        %5218 = vmatpush1.xpose.msra.mxu0 0.0
        %5219 = vmatprep.subr.mxu0 0.0
        %5220 = vmatpush1.xpose.msra.mxu0 0.0
        %5221 = vmatprep.subr.mxu0 0.0
        %5222 = vmatpush1.xpose.msra.mxu0 0.0
        %5223 = vmatprep.subr.mxu0 0.0
        %5224 = vmatpush1.xpose.msra.mxu0 0.0
        %5225 = vmatprep.mubr.f32.mxu0 0.0
        %v5226 = vand.u32 %v4930, 4294901760
        %v5227 = vsub.f32 %v4930, %v5226
        %v5228 = vand.u32 %v5227, 4294901760
        %5229 = vmatmul.mubr.f32.gmra.mrb[0].mxu0 %v5228
        %v5230 = vpop.f32.mrb[0].mxu0
        %v5231 = vadd.f32 %v5157, %v5230
        %v5232 = vpop.f32.mrb[0].mxu0
        %5233 = vdwg.mxu0
        %5234 = vmatprep.subr.mxu0 0.0
        %v5235 = vand.u32 %v4932, 4294901760
        %v5236 = vsub.f32 %v4932, %v5235
        %v5237 = vand.u32 %v5236, 4294901760
        %5238 = vmatpush1.xpose.msra.mxu0 %v5237
        %5239 = vmatprep.subr.mxu0 0.0
        %5240 = vmatpush1.xpose.msra.mxu0 0.0
        %5241 = vmatprep.subr.mxu0 0.0
        %5242 = vmatpush1.xpose.msra.mxu0 0.0
        %5243 = vmatprep.subr.mxu0 0.0
        %5244 = vmatpush1.xpose.msra.mxu0 0.0
        %5245 = vmatprep.subr.mxu0 0.0
        %5246 = vmatpush1.xpose.msra.mxu0 0.0
        %5247 = vmatprep.subr.mxu0 0.0
        %5248 = vmatpush1.xpose.msra.mxu0 0.0
        %5249 = vmatprep.subr.mxu0 0.0
        %5250 = vmatpush1.xpose.msra.mxu0 0.0
        %5251 = vmatprep.subr.mxu0 0.0
        %5252 = vmatpush1.xpose.msra.mxu0 0.0
        %5253 = vmatprep.subr.mxu0 0.0
        %5254 = vmatpush1.xpose.msra.mxu0 0.0
        %5255 = vmatprep.subr.mxu0 0.0
        %5256 = vmatpush1.xpose.msra.mxu0 0.0
        %5257 = vmatprep.subr.mxu0 0.0
        %5258 = vmatpush1.xpose.msra.mxu0 0.0
        %5259 = vmatprep.subr.mxu0 0.0
        %5260 = vmatpush1.xpose.msra.mxu0 0.0
        %5261 = vmatprep.subr.mxu0 0.0
        %5262 = vmatpush1.xpose.msra.mxu0 0.0
        %5263 = vmatprep.subr.mxu0 0.0
        %5264 = vmatpush1.xpose.msra.mxu0 0.0
        %5265 = vmatprep.subr.mxu0 0.0
        %5266 = vmatpush1.xpose.msra.mxu0 0.0
        %5267 = vmatprep.subr.mxu0 0.0
        %5268 = vmatpush1.xpose.msra.mxu0 0.0
        %5269 = vmatprep.subr.mxu0 0.0
        %5270 = vmatpush1.xpose.msra.mxu0 0.0
        %5271 = vmatprep.subr.mxu0 0.0
        %5272 = vmatpush1.xpose.msra.mxu0 0.0
        %5273 = vmatprep.subr.mxu0 0.0
        %5274 = vmatpush1.xpose.msra.mxu0 0.0
        %5275 = vmatprep.subr.mxu0 0.0
        %5276 = vmatpush1.xpose.msra.mxu0 0.0
        %5277 = vmatprep.subr.mxu0 0.0
        %5278 = vmatpush1.xpose.msra.mxu0 0.0
        %5279 = vmatprep.subr.mxu0 0.0
        %5280 = vmatpush1.xpose.msra.mxu0 0.0
        %5281 = vmatprep.subr.mxu0 0.0
        %5282 = vmatpush1.xpose.msra.mxu0 0.0
        %5283 = vmatprep.subr.mxu0 0.0
        %5284 = vmatpush1.xpose.msra.mxu0 0.0
        %5285 = vmatprep.subr.mxu0 0.0
        %5286 = vmatpush1.xpose.msra.mxu0 0.0
        %5287 = vmatprep.subr.mxu0 0.0
        %5288 = vmatpush1.xpose.msra.mxu0 0.0
        %5289 = vmatprep.subr.mxu0 0.0
        %5290 = vmatpush1.xpose.msra.mxu0 0.0
        %5291 = vmatprep.subr.mxu0 0.0
        %5292 = vmatpush1.xpose.msra.mxu0 0.0
        %5293 = vmatprep.subr.mxu0 0.0
        %5294 = vmatpush1.xpose.msra.mxu0 0.0
        %5295 = vmatprep.subr.mxu0 0.0
        %5296 = vmatpush1.xpose.msra.mxu0 0.0
        %5297 = vmatprep.subr.mxu0 0.0
        %5298 = vmatpush1.xpose.msra.mxu0 0.0
        %5299 = vmatprep.subr.mxu0 0.0
        %5300 = vmatpush1.xpose.msra.mxu0 0.0
        %5301 = vmatprep.mubr.f32.mxu0 0.0
        %v5302 = vand.u32 %v4930, 4294901760
        %5303 = vmatmul.mubr.f32.gmra.mrb[0].mxu0 %v5302
        %v5304 = vpop.f32.mrb[0].mxu0
        %v5305 = vadd.f32 %v5231, %v5304
        %v5306 = vpop.f32.mrb[0].mxu0
        %5307 = vdwg.mxu0
        %5308 = vmatprep.subr.mxu0 0.0
        %v5309 = vand.u32 %v4932, 4294901760
        %5310 = vmatpush1.xpose.msra.mxu0 %v5309
        %5311 = vmatprep.subr.mxu0 0.0
        %5312 = vmatpush1.xpose.msra.mxu0 0.0
        %5313 = vmatprep.subr.mxu0 0.0
        %5314 = vmatpush1.xpose.msra.mxu0 0.0
        %5315 = vmatprep.subr.mxu0 0.0
        %5316 = vmatpush1.xpose.msra.mxu0 0.0
        %5317 = vmatprep.subr.mxu0 0.0
        %5318 = vmatpush1.xpose.msra.mxu0 0.0
        %5319 = vmatprep.subr.mxu0 0.0
        %5320 = vmatpush1.xpose.msra.mxu0 0.0
        %5321 = vmatprep.subr.mxu0 0.0
        %5322 = vmatpush1.xpose.msra.mxu0 0.0
        %5323 = vmatprep.subr.mxu0 0.0
        %5324 = vmatpush1.xpose.msra.mxu0 0.0
        %5325 = vmatprep.subr.mxu0 0.0
        %5326 = vmatpush1.xpose.msra.mxu0 0.0
        %5327 = vmatprep.subr.mxu0 0.0
        %5328 = vmatpush1.xpose.msra.mxu0 0.0
        %5329 = vmatprep.subr.mxu0 0.0
        %5330 = vmatpush1.xpose.msra.mxu0 0.0
        %5331 = vmatprep.subr.mxu0 0.0
        %5332 = vmatpush1.xpose.msra.mxu0 0.0
        %5333 = vmatprep.subr.mxu0 0.0
        %5334 = vmatpush1.xpose.msra.mxu0 0.0
        %5335 = vmatprep.subr.mxu0 0.0
        %5336 = vmatpush1.xpose.msra.mxu0 0.0
        %5337 = vmatprep.subr.mxu0 0.0
        %5338 = vmatpush1.xpose.msra.mxu0 0.0
        %5339 = vmatprep.subr.mxu0 0.0
        %5340 = vmatpush1.xpose.msra.mxu0 0.0
        %5341 = vmatprep.subr.mxu0 0.0
        %5342 = vmatpush1.xpose.msra.mxu0 0.0
        %5343 = vmatprep.subr.mxu0 0.0
        %5344 = vmatpush1.xpose.msra.mxu0 0.0
        %5345 = vmatprep.subr.mxu0 0.0
        %5346 = vmatpush1.xpose.msra.mxu0 0.0
        %5347 = vmatprep.subr.mxu0 0.0
        %5348 = vmatpush1.xpose.msra.mxu0 0.0
        %5349 = vmatprep.subr.mxu0 0.0
        %5350 = vmatpush1.xpose.msra.mxu0 0.0
        %5351 = vmatprep.subr.mxu0 0.0
        %5352 = vmatpush1.xpose.msra.mxu0 0.0
        %5353 = vmatprep.subr.mxu0 0.0
        %5354 = vmatpush1.xpose.msra.mxu0 0.0
        %5355 = vmatprep.subr.mxu0 0.0
        %5356 = vmatpush1.xpose.msra.mxu0 0.0
        %5357 = vmatprep.subr.mxu0 0.0
        %5358 = vmatpush1.xpose.msra.mxu0 0.0
        %5359 = vmatprep.subr.mxu0 0.0
        %5360 = vmatpush1.xpose.msra.mxu0 0.0
        %5361 = vmatprep.subr.mxu0 0.0
        %5362 = vmatpush1.xpose.msra.mxu0 0.0
        %5363 = vmatprep.subr.mxu0 0.0
        %5364 = vmatpush1.xpose.msra.mxu0 0.0
        %5365 = vmatprep.subr.mxu0 0.0
        %5366 = vmatpush1.xpose.msra.mxu0 0.0
        %5367 = vmatprep.subr.mxu0 0.0
        %5368 = vmatpush1.xpose.msra.mxu0 0.0
        %5369 = vmatprep.subr.mxu0 0.0
        %5370 = vmatpush1.xpose.msra.mxu0 0.0
        %5371 = vmatprep.subr.mxu0 0.0
        %5372 = vmatpush1.xpose.msra.mxu0 0.0
        %5373 = vmatprep.mubr.f32.mxu0 0.0
        %v5374 = vand.u32 %v4930, 4294901760
        %5375 = vmatmul.mubr.f32.gmra.mrb[0].mxu0 %v5374
        %v5376 = vpop.f32.mrb[0].mxu0
        %v5377 = vadd.f32 %v5305, %v5376
        %v5378 = vpop.f32.mrb[0].mxu0
        %5379 = vdwg.mxu0
        %v5380 = vsel %vm830, %v5377, -inf
        %5381 = vmax.xlane.f32.xlu0 %v5380
        %v5382 = vpop.xlane.xlu0 %5381
        %v5383 = vsub.f32 %v5377, %v5382
        %v5384 = vmul.f32 %v5383, 1.442695
        %v5385 = vpow.pop %v5384
        %v5386 = vsel %vm830, %v5385, 0.0
        %5387 = vadd.xlane.f32.xlu0 %v5386
        %v5388 = vpop.xlane.xlu0 %5387
        %v5389 = vrcp.pop %v5388
        %v5390 = vmul.f32 %v5385, %v5389
        %5391 = vrot.lane.b32.xlu0 %v820, 40
        %v5392 = vpop.permute.xlu0 %5391
        %v5395 = vsel %vm830, %v5390, 0
        %5397 = vmatprep.subr.mxu0 0.0
        %v5398 = vand.u32 %v5392, 4294901760
        %5399 = vmatpush1.msra.mxu0 %v5398
        %5400 = vmatprep.subr.mxu0 0.0
        %5401 = vmatpush1.msra.mxu0 0.0
        %5402 = vmatprep.subr.mxu0 0.0
        %5403 = vmatpush1.msra.mxu0 0.0
        %5404 = vmatprep.subr.mxu0 0.0
        %5405 = vmatpush1.msra.mxu0 0.0
        %5406 = vmatprep.subr.mxu0 0.0
        %5407 = vmatpush1.msra.mxu0 0.0
        %5408 = vmatprep.subr.mxu0 0.0
        %5409 = vmatpush1.msra.mxu0 0.0
        %5410 = vmatprep.subr.mxu0 0.0
        %5411 = vmatpush1.msra.mxu0 0.0
        %5412 = vmatprep.subr.mxu0 0.0
        %5413 = vmatpush1.msra.mxu0 0.0
        %5414 = vmatprep.subr.mxu0 0.0
        %5415 = vmatpush1.msra.mxu0 0.0
        %5416 = vmatprep.subr.mxu0 0.0
        %5417 = vmatpush1.msra.mxu0 0.0
        %5418 = vmatprep.subr.mxu0 0.0
        %5419 = vmatpush1.msra.mxu0 0.0
        %5420 = vmatprep.subr.mxu0 0.0
        %5421 = vmatpush1.msra.mxu0 0.0
        %5422 = vmatprep.subr.mxu0 0.0
        %5423 = vmatpush1.msra.mxu0 0.0
        %5424 = vmatprep.subr.mxu0 0.0
        %5425 = vmatpush1.msra.mxu0 0.0
        %5426 = vmatprep.subr.mxu0 0.0
        %5427 = vmatpush1.msra.mxu0 0.0
        %5428 = vmatprep.subr.mxu0 0.0
        %5429 = vmatpush1.msra.mxu0 0.0
        %5430 = vmatprep.subr.mxu0 0.0
        %5431 = vmatpush1.msra.mxu0 0.0
        %5432 = vmatprep.subr.mxu0 0.0
        %5433 = vmatpush1.msra.mxu0 0.0
        %5434 = vmatprep.subr.mxu0 0.0
        %5435 = vmatpush1.msra.mxu0 0.0
        %5436 = vmatprep.subr.mxu0 0.0
        %5437 = vmatpush1.msra.mxu0 0.0
        %5438 = vmatprep.subr.mxu0 0.0
        %5439 = vmatpush1.msra.mxu0 0.0
        %5440 = vmatprep.subr.mxu0 0.0
        %5441 = vmatpush1.msra.mxu0 0.0
        %5442 = vmatprep.subr.mxu0 0.0
        %5443 = vmatpush1.msra.mxu0 0.0
        %5444 = vmatprep.subr.mxu0 0.0
        %5445 = vmatpush1.msra.mxu0 0.0
        %5446 = vmatprep.subr.mxu0 0.0
        %5447 = vmatpush1.msra.mxu0 0.0
        %5448 = vmatprep.subr.mxu0 0.0
        %5449 = vmatpush1.msra.mxu0 0.0
        %5450 = vmatprep.subr.mxu0 0.0
        %5451 = vmatpush1.msra.mxu0 0.0
        %5452 = vmatprep.subr.mxu0 0.0
        %5453 = vmatpush1.msra.mxu0 0.0
        %5454 = vmatprep.subr.mxu0 0.0
        %5455 = vmatpush1.msra.mxu0 0.0
        %5456 = vmatprep.subr.mxu0 0.0
        %5457 = vmatpush1.msra.mxu0 0.0
        %5458 = vmatprep.subr.mxu0 0.0
        %5459 = vmatpush1.msra.mxu0 0.0
        %5460 = vmatprep.subr.mxu0 0.0
        %5461 = vmatpush1.msra.mxu0 0.0
        %5462 = vmatprep.mubr.f32.mxu0 0.0
        %v5463 = vand.u32 %v5395, 4294901760
        %v5464 = vsub.f32 %v5395, %v5463
        %v5465 = vand.u32 %v5464, 4294901760
        %v5466 = vsub.f32 %v5464, %v5465
        %v5467 = vand.u32 %v5466, 4294901760
        %5468 = vmatmul.mubr.f32.gmra.mrb[0].mxu0 %v5467
        %v5469 = vpop.f32.mrb[0].mxu0
        %v5470 = vadd.f32 0.0, %v5469
        %v5471 = vpop.f32.mrb[0].mxu0
        %5472 = vdwg.mxu0
        %5473 = vmatprep.subr.mxu0 0.0
        %v5474 = vand.u32 %v5392, 4294901760
        %v5475 = vsub.f32 %v5392, %v5474
        %v5476 = vand.u32 %v5475, 4294901760
        %v5477 = vsub.f32 %v5475, %v5476
        %v5478 = vand.u32 %v5477, 4294901760
        %5479 = vmatpush1.msra.mxu0 %v5478
        %5480 = vmatprep.subr.mxu0 0.0
        %5481 = vmatpush1.msra.mxu0 0.0
        %5482 = vmatprep.subr.mxu0 0.0
        %5483 = vmatpush1.msra.mxu0 0.0
        %5484 = vmatprep.subr.mxu0 0.0
        %5485 = vmatpush1.msra.mxu0 0.0
        %5486 = vmatprep.subr.mxu0 0.0
        %5487 = vmatpush1.msra.mxu0 0.0
        %5488 = vmatprep.subr.mxu0 0.0
        %5489 = vmatpush1.msra.mxu0 0.0
        %5490 = vmatprep.subr.mxu0 0.0
        %5491 = vmatpush1.msra.mxu0 0.0
        %5492 = vmatprep.subr.mxu0 0.0
        %5493 = vmatpush1.msra.mxu0 0.0
        %5494 = vmatprep.subr.mxu0 0.0
        %5495 = vmatpush1.msra.mxu0 0.0
        %5496 = vmatprep.subr.mxu0 0.0
        %5497 = vmatpush1.msra.mxu0 0.0
        %5498 = vmatprep.subr.mxu0 0.0
        %5499 = vmatpush1.msra.mxu0 0.0
        %5500 = vmatprep.subr.mxu0 0.0
        %5501 = vmatpush1.msra.mxu0 0.0
        %5502 = vmatprep.subr.mxu0 0.0
        %5503 = vmatpush1.msra.mxu0 0.0
        %5504 = vmatprep.subr.mxu0 0.0
        %5505 = vmatpush1.msra.mxu0 0.0
        %5506 = vmatprep.subr.mxu0 0.0
        %5507 = vmatpush1.msra.mxu0 0.0
        %5508 = vmatprep.subr.mxu0 0.0
        %5509 = vmatpush1.msra.mxu0 0.0
        %5510 = vmatprep.subr.mxu0 0.0
        %5511 = vmatpush1.msra.mxu0 0.0
        %5512 = vmatprep.subr.mxu0 0.0
        %5513 = vmatpush1.msra.mxu0 0.0
        %5514 = vmatprep.subr.mxu0 0.0
        %5515 = vmatpush1.msra.mxu0 0.0
        %5516 = vmatprep.subr.mxu0 0.0
        %5517 = vmatpush1.msra.mxu0 0.0
        %5518 = vmatprep.subr.mxu0 0.0
        %5519 = vmatpush1.msra.mxu0 0.0
        %5520 = vmatprep.subr.mxu0 0.0
        %5521 = vmatpush1.msra.mxu0 0.0
        %5522 = vmatprep.subr.mxu0 0.0
        %5523 = vmatpush1.msra.mxu0 0.0
        %5524 = vmatprep.subr.mxu0 0.0
        %5525 = vmatpush1.msra.mxu0 0.0
        %5526 = vmatprep.subr.mxu0 0.0
        %5527 = vmatpush1.msra.mxu0 0.0
        %5528 = vmatprep.subr.mxu0 0.0
        %5529 = vmatpush1.msra.mxu0 0.0
        %5530 = vmatprep.subr.mxu0 0.0
        %5531 = vmatpush1.msra.mxu0 0.0
        %5532 = vmatprep.subr.mxu0 0.0
        %5533 = vmatpush1.msra.mxu0 0.0
        %5534 = vmatprep.subr.mxu0 0.0
        %5535 = vmatpush1.msra.mxu0 0.0
        %5536 = vmatprep.subr.mxu0 0.0
        %5537 = vmatpush1.msra.mxu0 0.0
        %5538 = vmatprep.subr.mxu0 0.0
        %5539 = vmatpush1.msra.mxu0 0.0
        %5540 = vmatprep.subr.mxu0 0.0
        %5541 = vmatpush1.msra.mxu0 0.0
        %5542 = vmatprep.mubr.f32.mxu0 0.0
        %v5543 = vand.u32 %v5395, 4294901760
        %5544 = vmatmul.mubr.f32.gmra.mrb[0].mxu0 %v5543
        %v5545 = vpop.f32.mrb[0].mxu0
        %v5546 = vadd.f32 %v5470, %v5545
        %v5547 = vpop.f32.mrb[0].mxu0
        %5548 = vdwg.mxu0
        %5549 = vmatprep.subr.mxu0 0.0
        %v5550 = vand.u32 %v5392, 4294901760
        %v5551 = vsub.f32 %v5392, %v5550
        %5552 = vmatpush1.msra.mxu0 %v5551
        %5553 = vmatprep.subr.mxu0 0.0
        %5554 = vmatpush1.msra.mxu0 0.0
        %5555 = vmatprep.subr.mxu0 0.0
        %5556 = vmatpush1.msra.mxu0 0.0
        %5557 = vmatprep.subr.mxu0 0.0
        %5558 = vmatpush1.msra.mxu0 0.0
        %5559 = vmatprep.subr.mxu0 0.0
        %5560 = vmatpush1.msra.mxu0 0.0
        %5561 = vmatprep.subr.mxu0 0.0
        %5562 = vmatpush1.msra.mxu0 0.0
        %5563 = vmatprep.subr.mxu0 0.0
        %5564 = vmatpush1.msra.mxu0 0.0
        %5565 = vmatprep.subr.mxu0 0.0
        %5566 = vmatpush1.msra.mxu0 0.0
        %5567 = vmatprep.subr.mxu0 0.0
        %5568 = vmatpush1.msra.mxu0 0.0
        %5569 = vmatprep.subr.mxu0 0.0
        %5570 = vmatpush1.msra.mxu0 0.0
        %5571 = vmatprep.subr.mxu0 0.0
        %5572 = vmatpush1.msra.mxu0 0.0
        %5573 = vmatprep.subr.mxu0 0.0
        %5574 = vmatpush1.msra.mxu0 0.0
        %5575 = vmatprep.subr.mxu0 0.0
        %5576 = vmatpush1.msra.mxu0 0.0
        %5577 = vmatprep.subr.mxu0 0.0
        %5578 = vmatpush1.msra.mxu0 0.0
        %5579 = vmatprep.subr.mxu0 0.0
        %5580 = vmatpush1.msra.mxu0 0.0
        %5581 = vmatprep.subr.mxu0 0.0
        %5582 = vmatpush1.msra.mxu0 0.0
        %5583 = vmatprep.subr.mxu0 0.0
        %5584 = vmatpush1.msra.mxu0 0.0
        %5585 = vmatprep.subr.mxu0 0.0
        %5586 = vmatpush1.msra.mxu0 0.0
        %5587 = vmatprep.subr.mxu0 0.0
        %5588 = vmatpush1.msra.mxu0 0.0
        %5589 = vmatprep.subr.mxu0 0.0
        %5590 = vmatpush1.msra.mxu0 0.0
        %5591 = vmatprep.subr.mxu0 0.0
        %5592 = vmatpush1.msra.mxu0 0.0
        %5593 = vmatprep.subr.mxu0 0.0
        %5594 = vmatpush1.msra.mxu0 0.0
        %5595 = vmatprep.subr.mxu0 0.0
        %5596 = vmatpush1.msra.mxu0 0.0
        %5597 = vmatprep.subr.mxu0 0.0
        %5598 = vmatpush1.msra.mxu0 0.0
        %5599 = vmatprep.subr.mxu0 0.0
        %5600 = vmatpush1.msra.mxu0 0.0
        %5601 = vmatprep.subr.mxu0 0.0
        %5602 = vmatpush1.msra.mxu0 0.0
        %5603 = vmatprep.subr.mxu0 0.0
        %5604 = vmatpush1.msra.mxu0 0.0
        %5605 = vmatprep.subr.mxu0 0.0
        %5606 = vmatpush1.msra.mxu0 0.0
        %5607 = vmatprep.subr.mxu0 0.0
        %5608 = vmatpush1.msra.mxu0 0.0
        %5609 = vmatprep.subr.mxu0 0.0
        %5610 = vmatpush1.msra.mxu0 0.0
        %5611 = vmatprep.subr.mxu0 0.0
        %5612 = vmatpush1.msra.mxu0 0.0
        %5613 = vmatprep.subr.mxu0 0.0
        %5614 = vmatpush1.msra.mxu0 0.0
        %5615 = vmatprep.mubr.f32.mxu0 0.0
        %v5616 = vand.u32 %v5395, 4294901760
        %v5617 = vsub.f32 %v5395, %v5616
        %5618 = vmatmul.mubr.f32.gmra.mrb[0].mxu0 %v5617
        %v5619 = vpop.f32.mrb[0].mxu0
        %v5620 = vadd.f32 %v5546, %v5619
        %v5621 = vpop.f32.mrb[0].mxu0
        %5622 = vdwg.mxu0
        %5623 = vmatprep.subr.mxu0 0.0
        %v5624 = vand.u32 %v5392, 4294901760
        %5625 = vmatpush1.msra.mxu0 %v5624
        %5626 = vmatprep.subr.mxu0 0.0
        %5627 = vmatpush1.msra.mxu0 0.0
        %5628 = vmatprep.subr.mxu0 0.0
        %5629 = vmatpush1.msra.mxu0 0.0
        %5630 = vmatprep.subr.mxu0 0.0
        %5631 = vmatpush1.msra.mxu0 0.0
        %5632 = vmatprep.subr.mxu0 0.0
        %5633 = vmatpush1.msra.mxu0 0.0
        %5634 = vmatprep.subr.mxu0 0.0
        %5635 = vmatpush1.msra.mxu0 0.0
        %5636 = vmatprep.subr.mxu0 0.0
        %5637 = vmatpush1.msra.mxu0 0.0
        %5638 = vmatprep.subr.mxu0 0.0
        %5639 = vmatpush1.msra.mxu0 0.0
        %5640 = vmatprep.subr.mxu0 0.0
        %5641 = vmatpush1.msra.mxu0 0.0
        %5642 = vmatprep.subr.mxu0 0.0
        %5643 = vmatpush1.msra.mxu0 0.0
        %5644 = vmatprep.subr.mxu0 0.0
        %5645 = vmatpush1.msra.mxu0 0.0
        %5646 = vmatprep.subr.mxu0 0.0
        %5647 = vmatpush1.msra.mxu0 0.0
        %5648 = vmatprep.subr.mxu0 0.0
        %5649 = vmatpush1.msra.mxu0 0.0
        %5650 = vmatprep.subr.mxu0 0.0
        %5651 = vmatpush1.msra.mxu0 0.0
        %5652 = vmatprep.subr.mxu0 0.0
        %5653 = vmatpush1.msra.mxu0 0.0
        %5654 = vmatprep.subr.mxu0 0.0
        %5655 = vmatpush1.msra.mxu0 0.0
        %5656 = vmatprep.subr.mxu0 0.0
        %5657 = vmatpush1.msra.mxu0 0.0
        %5658 = vmatprep.subr.mxu0 0.0
        %5659 = vmatpush1.msra.mxu0 0.0
        %5660 = vmatprep.subr.mxu0 0.0
        %5661 = vmatpush1.msra.mxu0 0.0
        %5662 = vmatprep.subr.mxu0 0.0
        %5663 = vmatpush1.msra.mxu0 0.0
        %5664 = vmatprep.subr.mxu0 0.0
        %5665 = vmatpush1.msra.mxu0 0.0
        %5666 = vmatprep.subr.mxu0 0.0
        %5667 = vmatpush1.msra.mxu0 0.0
        %5668 = vmatprep.subr.mxu0 0.0
        %5669 = vmatpush1.msra.mxu0 0.0
        %5670 = vmatprep.subr.mxu0 0.0
        %5671 = vmatpush1.msra.mxu0 0.0
        %5672 = vmatprep.subr.mxu0 0.0
        %5673 = vmatpush1.msra.mxu0 0.0
        %5674 = vmatprep.subr.mxu0 0.0
        %5675 = vmatpush1.msra.mxu0 0.0
        %5676 = vmatprep.subr.mxu0 0.0
        %5677 = vmatpush1.msra.mxu0 0.0
        %5678 = vmatprep.subr.mxu0 0.0
        %5679 = vmatpush1.msra.mxu0 0.0
        %5680 = vmatprep.subr.mxu0 0.0
        %5681 = vmatpush1.msra.mxu0 0.0
        %5682 = vmatprep.subr.mxu0 0.0
        %5683 = vmatpush1.msra.mxu0 0.0
        %5684 = vmatprep.subr.mxu0 0.0
        %5685 = vmatpush1.msra.mxu0 0.0
        %5686 = vmatprep.subr.mxu0 0.0
        %5687 = vmatpush1.msra.mxu0 0.0
        %5688 = vmatprep.mubr.f32.mxu0 0.0
        %v5689 = vand.u32 %v5395, 4294901760
        %v5690 = vsub.f32 %v5395, %v5689
        %v5691 = vand.u32 %v5690, 4294901760
        %5692 = vmatmul.mubr.f32.gmra.mrb[0].mxu0 %v5691
        %v5693 = vpop.f32.mrb[0].mxu0
        %v5694 = vadd.f32 %v5620, %v5693
        %v5695 = vpop.f32.mrb[0].mxu0
        %5696 = vdwg.mxu0
        %5697 = vmatprep.subr.mxu0 0.0
        %v5698 = vand.u32 %v5392, 4294901760
        %v5699 = vsub.f32 %v5392, %v5698
        %v5700 = vand.u32 %v5699, 4294901760
        %5701 = vmatpush1.msra.mxu0 %v5700
        %5702 = vmatprep.subr.mxu0 0.0
        %5703 = vmatpush1.msra.mxu0 0.0
        %5704 = vmatprep.subr.mxu0 0.0
        %5705 = vmatpush1.msra.mxu0 0.0
        %5706 = vmatprep.subr.mxu0 0.0
        %5707 = vmatpush1.msra.mxu0 0.0
        %5708 = vmatprep.subr.mxu0 0.0
        %5709 = vmatpush1.msra.mxu0 0.0
        %5710 = vmatprep.subr.mxu0 0.0
        %5711 = vmatpush1.msra.mxu0 0.0
        %5712 = vmatprep.subr.mxu0 0.0
        %5713 = vmatpush1.msra.mxu0 0.0
        %5714 = vmatprep.subr.mxu0 0.0
        %5715 = vmatpush1.msra.mxu0 0.0
        %5716 = vmatprep.subr.mxu0 0.0
        %5717 = vmatpush1.msra.mxu0 0.0
        %5718 = vmatprep.subr.mxu0 0.0
        %5719 = vmatpush1.msra.mxu0 0.0
        %5720 = vmatprep.subr.mxu0 0.0
        %5721 = vmatpush1.msra.mxu0 0.0
        %5722 = vmatprep.subr.mxu0 0.0
        %5723 = vmatpush1.msra.mxu0 0.0
        %5724 = vmatprep.subr.mxu0 0.0
        %5725 = vmatpush1.msra.mxu0 0.0
        %5726 = vmatprep.subr.mxu0 0.0
        %5727 = vmatpush1.msra.mxu0 0.0
        %5728 = vmatprep.subr.mxu0 0.0
        %5729 = vmatpush1.msra.mxu0 0.0
        %5730 = vmatprep.subr.mxu0 0.0
        %5731 = vmatpush1.msra.mxu0 0.0
        %5732 = vmatprep.subr.mxu0 0.0
        %5733 = vmatpush1.msra.mxu0 0.0
        %5734 = vmatprep.subr.mxu0 0.0
        %5735 = vmatpush1.msra.mxu0 0.0
        %5736 = vmatprep.subr.mxu0 0.0
        %5737 = vmatpush1.msra.mxu0 0.0
        %5738 = vmatprep.subr.mxu0 0.0
        %5739 = vmatpush1.msra.mxu0 0.0
        %5740 = vmatprep.subr.mxu0 0.0
        %5741 = vmatpush1.msra.mxu0 0.0
        %5742 = vmatprep.subr.mxu0 0.0
        %5743 = vmatpush1.msra.mxu0 0.0
        %5744 = vmatprep.subr.mxu0 0.0
        %5745 = vmatpush1.msra.mxu0 0.0
        %5746 = vmatprep.subr.mxu0 0.0
        %5747 = vmatpush1.msra.mxu0 0.0
        %5748 = vmatprep.subr.mxu0 0.0
        %5749 = vmatpush1.msra.mxu0 0.0
        %5750 = vmatprep.subr.mxu0 0.0
        %5751 = vmatpush1.msra.mxu0 0.0
        %5752 = vmatprep.subr.mxu0 0.0
        %5753 = vmatpush1.msra.mxu0 0.0
        %5754 = vmatprep.subr.mxu0 0.0
        %5755 = vmatpush1.msra.mxu0 0.0
        %5756 = vmatprep.subr.mxu0 0.0
        %5757 = vmatpush1.msra.mxu0 0.0
        %5758 = vmatprep.subr.mxu0 0.0
        %5759 = vmatpush1.msra.mxu0 0.0
        %5760 = vmatprep.subr.mxu0 0.0
        %5761 = vmatpush1.msra.mxu0 0.0
        %5762 = vmatprep.subr.mxu0 0.0
        %5763 = vmatpush1.msra.mxu0 0.0
        %5764 = vmatprep.mubr.f32.mxu0 0.0
        %v5765 = vand.u32 %v5395, 4294901760
        %5766 = vmatmul.mubr.f32.gmra.mrb[0].mxu0 %v5765
        %v5767 = vpop.f32.mrb[0].mxu0
        %v5768 = vadd.f32 %v5694, %v5767
        %v5769 = vpop.f32.mrb[0].mxu0
        %5770 = vdwg.mxu0
        %5771 = vmatprep.subr.mxu0 0.0
        %v5772 = vand.u32 %v5392, 4294901760
        %5773 = vmatpush1.msra.mxu0 %v5772
        %5774 = vmatprep.subr.mxu0 0.0
        %5775 = vmatpush1.msra.mxu0 0.0
        %5776 = vmatprep.subr.mxu0 0.0
        %5777 = vmatpush1.msra.mxu0 0.0
        %5778 = vmatprep.subr.mxu0 0.0
        %5779 = vmatpush1.msra.mxu0 0.0
        %5780 = vmatprep.subr.mxu0 0.0
        %5781 = vmatpush1.msra.mxu0 0.0
        %5782 = vmatprep.subr.mxu0 0.0
        %5783 = vmatpush1.msra.mxu0 0.0
        %5784 = vmatprep.subr.mxu0 0.0
        %5785 = vmatpush1.msra.mxu0 0.0
        %5786 = vmatprep.subr.mxu0 0.0
        %5787 = vmatpush1.msra.mxu0 0.0
        %5788 = vmatprep.subr.mxu0 0.0
        %5789 = vmatpush1.msra.mxu0 0.0
        %5790 = vmatprep.subr.mxu0 0.0
        %5791 = vmatpush1.msra.mxu0 0.0
        %5792 = vmatprep.subr.mxu0 0.0
        %5793 = vmatpush1.msra.mxu0 0.0
        %5794 = vmatprep.subr.mxu0 0.0
        %5795 = vmatpush1.msra.mxu0 0.0
        %5796 = vmatprep.subr.mxu0 0.0
        %5797 = vmatpush1.msra.mxu0 0.0
        %5798 = vmatprep.subr.mxu0 0.0
        %5799 = vmatpush1.msra.mxu0 0.0
        %5800 = vmatprep.subr.mxu0 0.0
        %5801 = vmatpush1.msra.mxu0 0.0
        %5802 = vmatprep.subr.mxu0 0.0
        %5803 = vmatpush1.msra.mxu0 0.0
        %5804 = vmatprep.subr.mxu0 0.0
        %5805 = vmatpush1.msra.mxu0 0.0
        %5806 = vmatprep.subr.mxu0 0.0
        %5807 = vmatpush1.msra.mxu0 0.0
        %5808 = vmatprep.subr.mxu0 0.0
        %5809 = vmatpush1.msra.mxu0 0.0
        %5810 = vmatprep.subr.mxu0 0.0
        %5811 = vmatpush1.msra.mxu0 0.0
        %5812 = vmatprep.subr.mxu0 0.0
        %5813 = vmatpush1.msra.mxu0 0.0
        %5814 = vmatprep.subr.mxu0 0.0
        %5815 = vmatpush1.msra.mxu0 0.0
        %5816 = vmatprep.subr.mxu0 0.0
        %5817 = vmatpush1.msra.mxu0 0.0
        %5818 = vmatprep.subr.mxu0 0.0
        %5819 = vmatpush1.msra.mxu0 0.0
        %5820 = vmatprep.subr.mxu0 0.0
        %5821 = vmatpush1.msra.mxu0 0.0
        %5822 = vmatprep.subr.mxu0 0.0
        %5823 = vmatpush1.msra.mxu0 0.0
        %5824 = vmatprep.subr.mxu0 0.0
        %5825 = vmatpush1.msra.mxu0 0.0
        %5826 = vmatprep.subr.mxu0 0.0
        %5827 = vmatpush1.msra.mxu0 0.0
        %5828 = vmatprep.subr.mxu0 0.0
        %5829 = vmatpush1.msra.mxu0 0.0
        %5830 = vmatprep.subr.mxu0 0.0
        %5831 = vmatpush1.msra.mxu0 0.0
        %5832 = vmatprep.subr.mxu0 0.0
        %5833 = vmatpush1.msra.mxu0 0.0
        %5834 = vmatprep.subr.mxu0 0.0
        %5835 = vmatpush1.msra.mxu0 0.0
        %5836 = vmatprep.mubr.f32.mxu0 0.0
        %v5837 = vand.u32 %v5395, 4294901760
        %5838 = vmatmul.mubr.f32.gmra.mrb[0].mxu0 %v5837
        %v5839 = vpop.f32.mrb[0].mxu0
        %v5840 = vadd.f32 %v5768, %v5839
        %v5841 = vpop.f32.mrb[0].mxu0
        %5842 = vdwg.mxu0
        %v5844 = vsel %vm830, %v5840, 0
        %5846 = vmatprep.subr.mxu0 0.0
        %v5847 = vand.u32 %v826, 4294901760
        %5848 = vmatpush1.msra.mxu0 %v5847
        %5849 = vmatprep.subr.mxu0 0.0
        %5850 = vmatpush1.msra.mxu0 0.0
        %5851 = vmatprep.subr.mxu0 0.0
        %5852 = vmatpush1.msra.mxu0 0.0
        %5853 = vmatprep.subr.mxu0 0.0
        %5854 = vmatpush1.msra.mxu0 0.0
        %5855 = vmatprep.subr.mxu0 0.0
        %5856 = vmatpush1.msra.mxu0 0.0
        %5857 = vmatprep.subr.mxu0 0.0
        %5858 = vmatpush1.msra.mxu0 0.0
        %5859 = vmatprep.subr.mxu0 0.0
        %5860 = vmatpush1.msra.mxu0 0.0
        %5861 = vmatprep.subr.mxu0 0.0
        %5862 = vmatpush1.msra.mxu0 0.0
        %5863 = vmatprep.subr.mxu0 0.0
        %5864 = vmatpush1.msra.mxu0 0.0
        %5865 = vmatprep.subr.mxu0 0.0
        %5866 = vmatpush1.msra.mxu0 0.0
        %5867 = vmatprep.subr.mxu0 0.0
        %5868 = vmatpush1.msra.mxu0 0.0
        %5869 = vmatprep.subr.mxu0 0.0
        %5870 = vmatpush1.msra.mxu0 0.0
        %5871 = vmatprep.subr.mxu0 0.0
        %5872 = vmatpush1.msra.mxu0 0.0
        %5873 = vmatprep.subr.mxu0 0.0
        %5874 = vmatpush1.msra.mxu0 0.0
        %5875 = vmatprep.subr.mxu0 0.0
        %5876 = vmatpush1.msra.mxu0 0.0
        %5877 = vmatprep.subr.mxu0 0.0
        %5878 = vmatpush1.msra.mxu0 0.0
        %5879 = vmatprep.subr.mxu0 0.0
        %5880 = vmatpush1.msra.mxu0 0.0
        %5881 = vmatprep.subr.mxu0 0.0
        %5882 = vmatpush1.msra.mxu0 0.0
        %5883 = vmatprep.subr.mxu0 0.0
        %5884 = vmatpush1.msra.mxu0 0.0
        %5885 = vmatprep.subr.mxu0 0.0
        %5886 = vmatpush1.msra.mxu0 0.0
        %5887 = vmatprep.subr.mxu0 0.0
        %5888 = vmatpush1.msra.mxu0 0.0
        %5889 = vmatprep.subr.mxu0 0.0
        %5890 = vmatpush1.msra.mxu0 0.0
        %5891 = vmatprep.subr.mxu0 0.0
        %5892 = vmatpush1.msra.mxu0 0.0
        %5893 = vmatprep.subr.mxu0 0.0
        %5894 = vmatpush1.msra.mxu0 0.0
        %5895 = vmatprep.subr.mxu0 0.0
        %5896 = vmatpush1.msra.mxu0 0.0
        %5897 = vmatprep.subr.mxu0 0.0
        %5898 = vmatpush1.msra.mxu0 0.0
        %5899 = vmatprep.subr.mxu0 0.0
        %5900 = vmatpush1.msra.mxu0 0.0
        %5901 = vmatprep.subr.mxu0 0.0
        %5902 = vmatpush1.msra.mxu0 0.0
        %5903 = vmatprep.subr.mxu0 0.0
        %5904 = vmatpush1.msra.mxu0 0.0
        %5905 = vmatprep.subr.mxu0 0.0
        %5906 = vmatpush1.msra.mxu0 0.0
        %5907 = vmatprep.subr.mxu0 0.0
        %5908 = vmatpush1.msra.mxu0 0.0
        %5909 = vmatprep.subr.mxu0 0.0
        %5910 = vmatpush1.msra.mxu0 0.0
        %5911 = vmatprep.mubr.f32.mxu0 0.0
        %v5912 = vand.u32 %v5844, 4294901760
        %v5913 = vsub.f32 %v5844, %v5912
        %v5914 = vand.u32 %v5913, 4294901760
        %v5915 = vsub.f32 %v5913, %v5914
        %v5916 = vand.u32 %v5915, 4294901760
        %5917 = vmatmul.mubr.f32.gmra.mrb[0].mxu0 %v5916
        %v5918 = vpop.f32.mrb[0].mxu0
        %v5919 = vadd.f32 0.0, %v5918
        %v5920 = vpop.f32.mrb[0].mxu0
        %5921 = vdwg.mxu0
        %5922 = vmatprep.subr.mxu0 0.0
        %v5923 = vand.u32 %v826, 4294901760
        %v5924 = vsub.f32 %v826, %v5923
        %v5925 = vand.u32 %v5924, 4294901760
        %v5926 = vsub.f32 %v5924, %v5925
        %v5927 = vand.u32 %v5926, 4294901760
        %5928 = vmatpush1.msra.mxu0 %v5927
        %5929 = vmatprep.subr.mxu0 0.0
        %5930 = vmatpush1.msra.mxu0 0.0
        %5931 = vmatprep.subr.mxu0 0.0
        %5932 = vmatpush1.msra.mxu0 0.0
        %5933 = vmatprep.subr.mxu0 0.0
        %5934 = vmatpush1.msra.mxu0 0.0
        %5935 = vmatprep.subr.mxu0 0.0
        %5936 = vmatpush1.msra.mxu0 0.0
        %5937 = vmatprep.subr.mxu0 0.0
        %5938 = vmatpush1.msra.mxu0 0.0
        %5939 = vmatprep.subr.mxu0 0.0
        %5940 = vmatpush1.msra.mxu0 0.0
        %5941 = vmatprep.subr.mxu0 0.0
        %5942 = vmatpush1.msra.mxu0 0.0
        %5943 = vmatprep.subr.mxu0 0.0
        %5944 = vmatpush1.msra.mxu0 0.0
        %5945 = vmatprep.subr.mxu0 0.0
        %5946 = vmatpush1.msra.mxu0 0.0
        %5947 = vmatprep.subr.mxu0 0.0
        %5948 = vmatpush1.msra.mxu0 0.0
        %5949 = vmatprep.subr.mxu0 0.0
        %5950 = vmatpush1.msra.mxu0 0.0
        %5951 = vmatprep.subr.mxu0 0.0
        %5952 = vmatpush1.msra.mxu0 0.0
        %5953 = vmatprep.subr.mxu0 0.0
        %5954 = vmatpush1.msra.mxu0 0.0
        %5955 = vmatprep.subr.mxu0 0.0
        %5956 = vmatpush1.msra.mxu0 0.0
        %5957 = vmatprep.subr.mxu0 0.0
        %5958 = vmatpush1.msra.mxu0 0.0
        %5959 = vmatprep.subr.mxu0 0.0
        %5960 = vmatpush1.msra.mxu0 0.0
        %5961 = vmatprep.subr.mxu0 0.0
        %5962 = vmatpush1.msra.mxu0 0.0
        %5963 = vmatprep.subr.mxu0 0.0
        %5964 = vmatpush1.msra.mxu0 0.0
        %5965 = vmatprep.subr.mxu0 0.0
        %5966 = vmatpush1.msra.mxu0 0.0
        %5967 = vmatprep.subr.mxu0 0.0
        %5968 = vmatpush1.msra.mxu0 0.0
        %5969 = vmatprep.subr.mxu0 0.0
        %5970 = vmatpush1.msra.mxu0 0.0
        %5971 = vmatprep.subr.mxu0 0.0
        %5972 = vmatpush1.msra.mxu0 0.0
        %5973 = vmatprep.subr.mxu0 0.0
        %5974 = vmatpush1.msra.mxu0 0.0
        %5975 = vmatprep.subr.mxu0 0.0
        %5976 = vmatpush1.msra.mxu0 0.0
        %5977 = vmatprep.subr.mxu0 0.0
        %5978 = vmatpush1.msra.mxu0 0.0
        %5979 = vmatprep.subr.mxu0 0.0
        %5980 = vmatpush1.msra.mxu0 0.0
        %5981 = vmatprep.subr.mxu0 0.0
        %5982 = vmatpush1.msra.mxu0 0.0
        %5983 = vmatprep.subr.mxu0 0.0
        %5984 = vmatpush1.msra.mxu0 0.0
        %5985 = vmatprep.subr.mxu0 0.0
        %5986 = vmatpush1.msra.mxu0 0.0
        %5987 = vmatprep.subr.mxu0 0.0
        %5988 = vmatpush1.msra.mxu0 0.0
        %5989 = vmatprep.subr.mxu0 0.0
        %5990 = vmatpush1.msra.mxu0 0.0
        %5991 = vmatprep.mubr.f32.mxu0 0.0
        %v5992 = vand.u32 %v5844, 4294901760
        %5993 = vmatmul.mubr.f32.gmra.mrb[0].mxu0 %v5992
        %v5994 = vpop.f32.mrb[0].mxu0
        %v5995 = vadd.f32 %v5919, %v5994
        %v5996 = vpop.f32.mrb[0].mxu0
        %5997 = vdwg.mxu0
        %5998 = vmatprep.subr.mxu0 0.0
        %v5999 = vand.u32 %v826, 4294901760
        %v6000 = vsub.f32 %v826, %v5999
        %6001 = vmatpush1.msra.mxu0 %v6000
        %6002 = vmatprep.subr.mxu0 0.0
        %6003 = vmatpush1.msra.mxu0 0.0
        %6004 = vmatprep.subr.mxu0 0.0
        %6005 = vmatpush1.msra.mxu0 0.0
        %6006 = vmatprep.subr.mxu0 0.0
        %6007 = vmatpush1.msra.mxu0 0.0
        %6008 = vmatprep.subr.mxu0 0.0
        %6009 = vmatpush1.msra.mxu0 0.0
        %6010 = vmatprep.subr.mxu0 0.0
        %6011 = vmatpush1.msra.mxu0 0.0
        %6012 = vmatprep.subr.mxu0 0.0
        %6013 = vmatpush1.msra.mxu0 0.0
        %6014 = vmatprep.subr.mxu0 0.0
        %6015 = vmatpush1.msra.mxu0 0.0
        %6016 = vmatprep.subr.mxu0 0.0
        %6017 = vmatpush1.msra.mxu0 0.0
        %6018 = vmatprep.subr.mxu0 0.0
        %6019 = vmatpush1.msra.mxu0 0.0
        %6020 = vmatprep.subr.mxu0 0.0
        %6021 = vmatpush1.msra.mxu0 0.0
        %6022 = vmatprep.subr.mxu0 0.0
        %6023 = vmatpush1.msra.mxu0 0.0
        %6024 = vmatprep.subr.mxu0 0.0
        %6025 = vmatpush1.msra.mxu0 0.0
        %6026 = vmatprep.subr.mxu0 0.0
        %6027 = vmatpush1.msra.mxu0 0.0
        %6028 = vmatprep.subr.mxu0 0.0
        %6029 = vmatpush1.msra.mxu0 0.0
        %6030 = vmatprep.subr.mxu0 0.0
        %6031 = vmatpush1.msra.mxu0 0.0
        %6032 = vmatprep.subr.mxu0 0.0
        %6033 = vmatpush1.msra.mxu0 0.0
        %6034 = vmatprep.subr.mxu0 0.0
        %6035 = vmatpush1.msra.mxu0 0.0
        %6036 = vmatprep.subr.mxu0 0.0
        %6037 = vmatpush1.msra.mxu0 0.0
        %6038 = vmatprep.subr.mxu0 0.0
        %6039 = vmatpush1.msra.mxu0 0.0
        %6040 = vmatprep.subr.mxu0 0.0
        %6041 = vmatpush1.msra.mxu0 0.0
        %6042 = vmatprep.subr.mxu0 0.0
        %6043 = vmatpush1.msra.mxu0 0.0
        %6044 = vmatprep.subr.mxu0 0.0
        %6045 = vmatpush1.msra.mxu0 0.0
        %6046 = vmatprep.subr.mxu0 0.0
        %6047 = vmatpush1.msra.mxu0 0.0
        %6048 = vmatprep.subr.mxu0 0.0
        %6049 = vmatpush1.msra.mxu0 0.0
        %6050 = vmatprep.subr.mxu0 0.0
        %6051 = vmatpush1.msra.mxu0 0.0
        %6052 = vmatprep.subr.mxu0 0.0
        %6053 = vmatpush1.msra.mxu0 0.0
        %6054 = vmatprep.subr.mxu0 0.0
        %6055 = vmatpush1.msra.mxu0 0.0
        %6056 = vmatprep.subr.mxu0 0.0
        %6057 = vmatpush1.msra.mxu0 0.0
        %6058 = vmatprep.subr.mxu0 0.0
        %6059 = vmatpush1.msra.mxu0 0.0
        %6060 = vmatprep.subr.mxu0 0.0
        %6061 = vmatpush1.msra.mxu0 0.0
        %6062 = vmatprep.subr.mxu0 0.0
        %6063 = vmatpush1.msra.mxu0 0.0
        %6064 = vmatprep.mubr.f32.mxu0 0.0
        %v6065 = vand.u32 %v5844, 4294901760
        %v6066 = vsub.f32 %v5844, %v6065
        %6067 = vmatmul.mubr.f32.gmra.mrb[0].mxu0 %v6066
        %v6068 = vpop.f32.mrb[0].mxu0
        %v6069 = vadd.f32 %v5995, %v6068
        %v6070 = vpop.f32.mrb[0].mxu0
        %6071 = vdwg.mxu0
        %6072 = vmatprep.subr.mxu0 0.0
        %v6073 = vand.u32 %v826, 4294901760
        %6074 = vmatpush1.msra.mxu0 %v6073
        %6075 = vmatprep.subr.mxu0 0.0
        %6076 = vmatpush1.msra.mxu0 0.0
        %6077 = vmatprep.subr.mxu0 0.0
        %6078 = vmatpush1.msra.mxu0 0.0
        %6079 = vmatprep.subr.mxu0 0.0
        %6080 = vmatpush1.msra.mxu0 0.0
        %6081 = vmatprep.subr.mxu0 0.0
        %6082 = vmatpush1.msra.mxu0 0.0
        %6083 = vmatprep.subr.mxu0 0.0
        %6084 = vmatpush1.msra.mxu0 0.0
        %6085 = vmatprep.subr.mxu0 0.0
        %6086 = vmatpush1.msra.mxu0 0.0
        %6087 = vmatprep.subr.mxu0 0.0
        %6088 = vmatpush1.msra.mxu0 0.0
        %6089 = vmatprep.subr.mxu0 0.0
        %6090 = vmatpush1.msra.mxu0 0.0
        %6091 = vmatprep.subr.mxu0 0.0
        %6092 = vmatpush1.msra.mxu0 0.0
        %6093 = vmatprep.subr.mxu0 0.0
        %6094 = vmatpush1.msra.mxu0 0.0
        %6095 = vmatprep.subr.mxu0 0.0
        %6096 = vmatpush1.msra.mxu0 0.0
        %6097 = vmatprep.subr.mxu0 0.0
        %6098 = vmatpush1.msra.mxu0 0.0
        %6099 = vmatprep.subr.mxu0 0.0
        %6100 = vmatpush1.msra.mxu0 0.0
        %6101 = vmatprep.subr.mxu0 0.0
        %6102 = vmatpush1.msra.mxu0 0.0
        %6103 = vmatprep.subr.mxu0 0.0
        %6104 = vmatpush1.msra.mxu0 0.0
        %6105 = vmatprep.subr.mxu0 0.0
        %6106 = vmatpush1.msra.mxu0 0.0
        %6107 = vmatprep.subr.mxu0 0.0
        %6108 = vmatpush1.msra.mxu0 0.0
        %6109 = vmatprep.subr.mxu0 0.0
        %6110 = vmatpush1.msra.mxu0 0.0
        %6111 = vmatprep.subr.mxu0 0.0
        %6112 = vmatpush1.msra.mxu0 0.0
        %6113 = vmatprep.subr.mxu0 0.0
        %6114 = vmatpush1.msra.mxu0 0.0
        %6115 = vmatprep.subr.mxu0 0.0
        %6116 = vmatpush1.msra.mxu0 0.0
        %6117 = vmatprep.subr.mxu0 0.0
        %6118 = vmatpush1.msra.mxu0 0.0
        %6119 = vmatprep.subr.mxu0 0.0
        %6120 = vmatpush1.msra.mxu0 0.0
        %6121 = vmatprep.subr.mxu0 0.0
        %6122 = vmatpush1.msra.mxu0 0.0
        %6123 = vmatprep.subr.mxu0 0.0
        %6124 = vmatpush1.msra.mxu0 0.0
        %6125 = vmatprep.subr.mxu0 0.0
        %6126 = vmatpush1.msra.mxu0 0.0
        %6127 = vmatprep.subr.mxu0 0.0
        %6128 = vmatpush1.msra.mxu0 0.0
        %6129 = vmatprep.subr.mxu0 0.0
        %6130 = vmatpush1.msra.mxu0 0.0
        %6131 = vmatprep.subr.mxu0 0.0
        %6132 = vmatpush1.msra.mxu0 0.0
        %6133 = vmatprep.subr.mxu0 0.0
        %6134 = vmatpush1.msra.mxu0 0.0
        %6135 = vmatprep.subr.mxu0 0.0
        %6136 = vmatpush1.msra.mxu0 0.0
        %6137 = vmatprep.mubr.f32.mxu0 0.0
        %v6138 = vand.u32 %v5844, 4294901760
        %v6139 = vsub.f32 %v5844, %v6138
        %v6140 = vand.u32 %v6139, 4294901760
        %6141 = vmatmul.mubr.f32.gmra.mrb[0].mxu0 %v6140
        %v6142 = vpop.f32.mrb[0].mxu0
        %v6143 = vadd.f32 %v6069, %v6142
        %v6144 = vpop.f32.mrb[0].mxu0
        %6145 = vdwg.mxu0
        %6146 = vmatprep.subr.mxu0 0.0
        %v6147 = vand.u32 %v826, 4294901760
        %v6148 = vsub.f32 %v826, %v6147
        %v6149 = vand.u32 %v6148, 4294901760
        %6150 = vmatpush1.msra.mxu0 %v6149
        %6151 = vmatprep.subr.mxu0 0.0
        %6152 = vmatpush1.msra.mxu0 0.0
        %6153 = vmatprep.subr.mxu0 0.0
        %6154 = vmatpush1.msra.mxu0 0.0
        %6155 = vmatprep.subr.mxu0 0.0
        %6156 = vmatpush1.msra.mxu0 0.0
        %6157 = vmatprep.subr.mxu0 0.0
        %6158 = vmatpush1.msra.mxu0 0.0
        %6159 = vmatprep.subr.mxu0 0.0
        %6160 = vmatpush1.msra.mxu0 0.0
        %6161 = vmatprep.subr.mxu0 0.0
        %6162 = vmatpush1.msra.mxu0 0.0
        %6163 = vmatprep.subr.mxu0 0.0
        %6164 = vmatpush1.msra.mxu0 0.0
        %6165 = vmatprep.subr.mxu0 0.0
        %6166 = vmatpush1.msra.mxu0 0.0
        %6167 = vmatprep.subr.mxu0 0.0
        %6168 = vmatpush1.msra.mxu0 0.0
        %6169 = vmatprep.subr.mxu0 0.0
        %6170 = vmatpush1.msra.mxu0 0.0
        %6171 = vmatprep.subr.mxu0 0.0
        %6172 = vmatpush1.msra.mxu0 0.0
        %6173 = vmatprep.subr.mxu0 0.0
        %6174 = vmatpush1.msra.mxu0 0.0
        %6175 = vmatprep.subr.mxu0 0.0
        %6176 = vmatpush1.msra.mxu0 0.0
        %6177 = vmatprep.subr.mxu0 0.0
        %6178 = vmatpush1.msra.mxu0 0.0
        %6179 = vmatprep.subr.mxu0 0.0
        %6180 = vmatpush1.msra.mxu0 0.0
        %6181 = vmatprep.subr.mxu0 0.0
        %6182 = vmatpush1.msra.mxu0 0.0
        %6183 = vmatprep.subr.mxu0 0.0
        %6184 = vmatpush1.msra.mxu0 0.0
        %6185 = vmatprep.subr.mxu0 0.0
        %6186 = vmatpush1.msra.mxu0 0.0
        %6187 = vmatprep.subr.mxu0 0.0
        %6188 = vmatpush1.msra.mxu0 0.0
        %6189 = vmatprep.subr.mxu0 0.0
        %6190 = vmatpush1.msra.mxu0 0.0
        %6191 = vmatprep.subr.mxu0 0.0
        %6192 = vmatpush1.msra.mxu0 0.0
        %6193 = vmatprep.subr.mxu0 0.0
        %6194 = vmatpush1.msra.mxu0 0.0
        %6195 = vmatprep.subr.mxu0 0.0
        %6196 = vmatpush1.msra.mxu0 0.0
        %6197 = vmatprep.subr.mxu0 0.0
        %6198 = vmatpush1.msra.mxu0 0.0
        %6199 = vmatprep.subr.mxu0 0.0
        %6200 = vmatpush1.msra.mxu0 0.0
        %6201 = vmatprep.subr.mxu0 0.0
        %6202 = vmatpush1.msra.mxu0 0.0
        %6203 = vmatprep.subr.mxu0 0.0
        %6204 = vmatpush1.msra.mxu0 0.0
        %6205 = vmatprep.subr.mxu0 0.0
        %6206 = vmatpush1.msra.mxu0 0.0
        %6207 = vmatprep.subr.mxu0 0.0
        %6208 = vmatpush1.msra.mxu0 0.0
        %6209 = vmatprep.subr.mxu0 0.0
        %6210 = vmatpush1.msra.mxu0 0.0
        %6211 = vmatprep.subr.mxu0 0.0
        %6212 = vmatpush1.msra.mxu0 0.0
        %6213 = vmatprep.mubr.f32.mxu0 0.0
        %v6214 = vand.u32 %v5844, 4294901760
        %6215 = vmatmul.mubr.f32.gmra.mrb[0].mxu0 %v6214
        %v6216 = vpop.f32.mrb[0].mxu0
        %v6217 = vadd.f32 %v6143, %v6216
        %v6218 = vpop.f32.mrb[0].mxu0
        %6219 = vdwg.mxu0
        %6220 = vmatprep.subr.mxu0 0.0
        %v6221 = vand.u32 %v826, 4294901760
        %6222 = vmatpush1.msra.mxu0 %v6221
        %6223 = vmatprep.subr.mxu0 0.0
        %6224 = vmatpush1.msra.mxu0 0.0
        %6225 = vmatprep.subr.mxu0 0.0
        %6226 = vmatpush1.msra.mxu0 0.0
        %6227 = vmatprep.subr.mxu0 0.0
        %6228 = vmatpush1.msra.mxu0 0.0
        %6229 = vmatprep.subr.mxu0 0.0
        %6230 = vmatpush1.msra.mxu0 0.0
        %6231 = vmatprep.subr.mxu0 0.0
        %6232 = vmatpush1.msra.mxu0 0.0
        %6233 = vmatprep.subr.mxu0 0.0
        %6234 = vmatpush1.msra.mxu0 0.0
        %6235 = vmatprep.subr.mxu0 0.0
        %6236 = vmatpush1.msra.mxu0 0.0
        %6237 = vmatprep.subr.mxu0 0.0
        %6238 = vmatpush1.msra.mxu0 0.0
        %6239 = vmatprep.subr.mxu0 0.0
        %6240 = vmatpush1.msra.mxu0 0.0
        %6241 = vmatprep.subr.mxu0 0.0
        %6242 = vmatpush1.msra.mxu0 0.0
        %6243 = vmatprep.subr.mxu0 0.0
        %6244 = vmatpush1.msra.mxu0 0.0
        %6245 = vmatprep.subr.mxu0 0.0
        %6246 = vmatpush1.msra.mxu0 0.0
        %6247 = vmatprep.subr.mxu0 0.0
        %6248 = vmatpush1.msra.mxu0 0.0
        %6249 = vmatprep.subr.mxu0 0.0
        %6250 = vmatpush1.msra.mxu0 0.0
        %6251 = vmatprep.subr.mxu0 0.0
        %6252 = vmatpush1.msra.mxu0 0.0
        %6253 = vmatprep.subr.mxu0 0.0
        %6254 = vmatpush1.msra.mxu0 0.0
        %6255 = vmatprep.subr.mxu0 0.0
        %6256 = vmatpush1.msra.mxu0 0.0
        %6257 = vmatprep.subr.mxu0 0.0
        %6258 = vmatpush1.msra.mxu0 0.0
        %6259 = vmatprep.subr.mxu0 0.0
        %6260 = vmatpush1.msra.mxu0 0.0
        %6261 = vmatprep.subr.mxu0 0.0
        %6262 = vmatpush1.msra.mxu0 0.0
        %6263 = vmatprep.subr.mxu0 0.0
        %6264 = vmatpush1.msra.mxu0 0.0
        %6265 = vmatprep.subr.mxu0 0.0
        %6266 = vmatpush1.msra.mxu0 0.0
        %6267 = vmatprep.subr.mxu0 0.0
        %6268 = vmatpush1.msra.mxu0 0.0
        %6269 = vmatprep.subr.mxu0 0.0
        %6270 = vmatpush1.msra.mxu0 0.0
        %6271 = vmatprep.subr.mxu0 0.0
        %6272 = vmatpush1.msra.mxu0 0.0
        %6273 = vmatprep.subr.mxu0 0.0
        %6274 = vmatpush1.msra.mxu0 0.0
        %6275 = vmatprep.subr.mxu0 0.0
        %6276 = vmatpush1.msra.mxu0 0.0
        %6277 = vmatprep.subr.mxu0 0.0
        %6278 = vmatpush1.msra.mxu0 0.0
        %6279 = vmatprep.subr.mxu0 0.0
        %6280 = vmatpush1.msra.mxu0 0.0
        %6281 = vmatprep.subr.mxu0 0.0
        %6282 = vmatpush1.msra.mxu0 0.0
        %6283 = vmatprep.subr.mxu0 0.0
        %6284 = vmatpush1.msra.mxu0 0.0
        %6285 = vmatprep.mubr.f32.mxu0 0.0
        %v6286 = vand.u32 %v5844, 4294901760
        %6287 = vmatmul.mubr.f32.gmra.mrb[0].mxu0 %v6286
        %v6288 = vpop.f32.mrb[0].mxu0
        %v6289 = vadd.f32 %v6217, %v6288
        %v6290 = vpop.f32.mrb[0].mxu0
        %6291 = vdwg.mxu0
        %v6292 = vadd.f32 %v4925, %v6289
        %v6293 = vadd.f32 %v328, %v6292
        %v6294 = vld [vmem:[%s4] sm:$0x1]
        %v6296 = vlaneseq
        %v6297 = vshrl.u32 %v6296, 7
        %v6298 = vsub.s32 0, %v6297
        %v6299 = vrot.slane %v6294, %v6298
        %v6301 = vadd.f32 %v6293, %v6299
        %v6302 = vld [vmem:[%s5] sm:$0xff]
        %v6303 = vld [vmem:[%s5 + $0x8] sm:$0xff]
        %v6304 = vld [vmem:[%s5 + $0x10] sm:$0xff]
        %v6305 = vld [vmem:[%s5 + $0x18] sm:$0xff]
        %v6306 = vld [vmem:[%s6] sm:$0x1]
        %v6308 = vlaneseq
        %v6309 = vshrl.u32 %v6308, 7
        %v6310 = vsub.s32 0, %v6309
        %v6311 = vrot.slane %v6306, %v6310
        %v6314 = vsel %vm334, %v6301, 0
        %6316 = vmatprep.subr.mxu0 0.0
        %v6317 = vand.u32 %v6302, 4294901760
        %6318 = vmatpush1.msra.mxu0 %v6317
        %6319 = vmatprep.subr.mxu0 0.0
        %v6320 = vand.u32 %v6303, 4294901760
        %6321 = vmatpush1.msra.mxu0 %v6320
        %6322 = vmatprep.subr.mxu0 0.0
        %v6323 = vand.u32 %v6304, 4294901760
        %6324 = vmatpush1.msra.mxu0 %v6323
        %6325 = vmatprep.subr.mxu0 0.0
        %v6326 = vand.u32 %v6305, 4294901760
        %6327 = vmatpush1.msra.mxu0 %v6326
        %6328 = vmatprep.subr.mxu0 0.0
        %6329 = vmatpush1.msra.mxu0 0.0
        %6330 = vmatprep.subr.mxu0 0.0
        %6331 = vmatpush1.msra.mxu0 0.0
        %6332 = vmatprep.subr.mxu0 0.0
        %6333 = vmatpush1.msra.mxu0 0.0
        %6334 = vmatprep.subr.mxu0 0.0
        %6335 = vmatpush1.msra.mxu0 0.0
        %6336 = vmatprep.subr.mxu0 0.0
        %6337 = vmatpush1.msra.mxu0 0.0
        %6338 = vmatprep.subr.mxu0 0.0
        %6339 = vmatpush1.msra.mxu0 0.0
        %6340 = vmatprep.subr.mxu0 0.0
        %6341 = vmatpush1.msra.mxu0 0.0
        %6342 = vmatprep.subr.mxu0 0.0
        %6343 = vmatpush1.msra.mxu0 0.0
        %6344 = vmatprep.subr.mxu0 0.0
        %6345 = vmatpush1.msra.mxu0 0.0
        %6346 = vmatprep.subr.mxu0 0.0
        %6347 = vmatpush1.msra.mxu0 0.0
        %6348 = vmatprep.subr.mxu0 0.0
        %6349 = vmatpush1.msra.mxu0 0.0
        %6350 = vmatprep.subr.mxu0 0.0
        %6351 = vmatpush1.msra.mxu0 0.0
        %6352 = vmatprep.subr.mxu0 0.0
        %6353 = vmatpush1.msra.mxu0 0.0
        %6354 = vmatprep.subr.mxu0 0.0
        %6355 = vmatpush1.msra.mxu0 0.0
        %6356 = vmatprep.subr.mxu0 0.0
        %6357 = vmatpush1.msra.mxu0 0.0
        %6358 = vmatprep.subr.mxu0 0.0
        %6359 = vmatpush1.msra.mxu0 0.0
        %6360 = vmatprep.subr.mxu0 0.0
        %6361 = vmatpush1.msra.mxu0 0.0
        %6362 = vmatprep.subr.mxu0 0.0
        %6363 = vmatpush1.msra.mxu0 0.0
        %6364 = vmatprep.subr.mxu0 0.0
        %6365 = vmatpush1.msra.mxu0 0.0
        %6366 = vmatprep.subr.mxu0 0.0
        %6367 = vmatpush1.msra.mxu0 0.0
        %6368 = vmatprep.subr.mxu0 0.0
        %6369 = vmatpush1.msra.mxu0 0.0
        %6370 = vmatprep.subr.mxu0 0.0
        %6371 = vmatpush1.msra.mxu0 0.0
        %6372 = vmatprep.subr.mxu0 0.0
        %6373 = vmatpush1.msra.mxu0 0.0
        %6374 = vmatprep.subr.mxu0 0.0
        %6375 = vmatpush1.msra.mxu0 0.0
        %6376 = vmatprep.subr.mxu0 0.0
        %6377 = vmatpush1.msra.mxu0 0.0
        %6378 = vmatprep.subr.mxu0 0.0
        %6379 = vmatpush1.msra.mxu0 0.0
        %6380 = vmatprep.subr.mxu0 0.0
        %6381 = vmatpush1.msra.mxu0 0.0
        %6382 = vmatprep.subr.mxu0 0.0
        %6383 = vmatpush1.msra.mxu0 0.0
        %6384 = vmatprep.mubr.f32.mxu0 0.0
        %v6385 = vand.u32 %v6314, 4294901760
        %v6386 = vsub.f32 %v6314, %v6385
        %v6387 = vand.u32 %v6386, 4294901760
        %v6388 = vsub.f32 %v6386, %v6387
        %v6389 = vand.u32 %v6388, 4294901760
        %6390 = vmatmul.mubr.f32.gmra.mrb[0].mxu0 %v6389
        %v6391 = vpop.f32.mrb[0].mxu0
        %v6392 = vadd.f32 %v6311, %v6391
        %v6393 = vpop.f32.mrb[0].mxu0
        %6394 = vdwg.mxu0
        %6395 = vmatprep.subr.mxu0 0.0
        %v6396 = vand.u32 %v6302, 4294901760
        %v6397 = vsub.f32 %v6302, %v6396
        %v6398 = vand.u32 %v6397, 4294901760
        %v6399 = vsub.f32 %v6397, %v6398
        %v6400 = vand.u32 %v6399, 4294901760
        %6401 = vmatpush1.msra.mxu0 %v6400
        %6402 = vmatprep.subr.mxu0 0.0
        %v6403 = vand.u32 %v6303, 4294901760
        %v6404 = vsub.f32 %v6303, %v6403
        %v6405 = vand.u32 %v6404, 4294901760
        %v6406 = vsub.f32 %v6404, %v6405
        %v6407 = vand.u32 %v6406, 4294901760
        %6408 = vmatpush1.msra.mxu0 %v6407
        %6409 = vmatprep.subr.mxu0 0.0
        %v6410 = vand.u32 %v6304, 4294901760
        %v6411 = vsub.f32 %v6304, %v6410
        %v6412 = vand.u32 %v6411, 4294901760
        %v6413 = vsub.f32 %v6411, %v6412
        %v6414 = vand.u32 %v6413, 4294901760
        %6415 = vmatpush1.msra.mxu0 %v6414
        %6416 = vmatprep.subr.mxu0 0.0
        %v6417 = vand.u32 %v6305, 4294901760
        %v6418 = vsub.f32 %v6305, %v6417
        %v6419 = vand.u32 %v6418, 4294901760
        %v6420 = vsub.f32 %v6418, %v6419
        %v6421 = vand.u32 %v6420, 4294901760
        %6422 = vmatpush1.msra.mxu0 %v6421
        %6423 = vmatprep.subr.mxu0 0.0
        %6424 = vmatpush1.msra.mxu0 0.0
        %6425 = vmatprep.subr.mxu0 0.0
        %6426 = vmatpush1.msra.mxu0 0.0
        %6427 = vmatprep.subr.mxu0 0.0
        %6428 = vmatpush1.msra.mxu0 0.0
        %6429 = vmatprep.subr.mxu0 0.0
        %6430 = vmatpush1.msra.mxu0 0.0
        %6431 = vmatprep.subr.mxu0 0.0
        %6432 = vmatpush1.msra.mxu0 0.0
        %6433 = vmatprep.subr.mxu0 0.0
        %6434 = vmatpush1.msra.mxu0 0.0
        %6435 = vmatprep.subr.mxu0 0.0
        %6436 = vmatpush1.msra.mxu0 0.0
        %6437 = vmatprep.subr.mxu0 0.0
        %6438 = vmatpush1.msra.mxu0 0.0
        %6439 = vmatprep.subr.mxu0 0.0
        %6440 = vmatpush1.msra.mxu0 0.0
        %6441 = vmatprep.subr.mxu0 0.0
        %6442 = vmatpush1.msra.mxu0 0.0
        %6443 = vmatprep.subr.mxu0 0.0
        %6444 = vmatpush1.msra.mxu0 0.0
        %6445 = vmatprep.subr.mxu0 0.0
        %6446 = vmatpush1.msra.mxu0 0.0
        %6447 = vmatprep.subr.mxu0 0.0
        %6448 = vmatpush1.msra.mxu0 0.0
        %6449 = vmatprep.subr.mxu0 0.0
        %6450 = vmatpush1.msra.mxu0 0.0
        %6451 = vmatprep.subr.mxu0 0.0
        %6452 = vmatpush1.msra.mxu0 0.0
        %6453 = vmatprep.subr.mxu0 0.0
        %6454 = vmatpush1.msra.mxu0 0.0
        %6455 = vmatprep.subr.mxu0 0.0
        %6456 = vmatpush1.msra.mxu0 0.0
        %6457 = vmatprep.subr.mxu0 0.0
        %6458 = vmatpush1.msra.mxu0 0.0
        %6459 = vmatprep.subr.mxu0 0.0
        %6460 = vmatpush1.msra.mxu0 0.0
        %6461 = vmatprep.subr.mxu0 0.0
        %6462 = vmatpush1.msra.mxu0 0.0
        %6463 = vmatprep.subr.mxu0 0.0
        %6464 = vmatpush1.msra.mxu0 0.0
        %6465 = vmatprep.subr.mxu0 0.0
        %6466 = vmatpush1.msra.mxu0 0.0
        %6467 = vmatprep.subr.mxu0 0.0
        %6468 = vmatpush1.msra.mxu0 0.0
        %6469 = vmatprep.subr.mxu0 0.0
        %6470 = vmatpush1.msra.mxu0 0.0
        %6471 = vmatprep.subr.mxu0 0.0
        %6472 = vmatpush1.msra.mxu0 0.0
        %6473 = vmatprep.subr.mxu0 0.0
        %6474 = vmatpush1.msra.mxu0 0.0
        %6475 = vmatprep.subr.mxu0 0.0
        %6476 = vmatpush1.msra.mxu0 0.0
        %6477 = vmatprep.subr.mxu0 0.0
        %6478 = vmatpush1.msra.mxu0 0.0
        %6479 = vmatprep.mubr.f32.mxu0 0.0
        %v6480 = vand.u32 %v6314, 4294901760
        %6481 = vmatmul.mubr.f32.gmra.mrb[0].mxu0 %v6480
        %v6482 = vpop.f32.mrb[0].mxu0
        %v6483 = vadd.f32 %v6392, %v6482
        %v6484 = vpop.f32.mrb[0].mxu0
        %6485 = vdwg.mxu0
        %6486 = vmatprep.subr.mxu0 0.0
        %v6487 = vand.u32 %v6302, 4294901760
        %v6488 = vsub.f32 %v6302, %v6487
        %6489 = vmatpush1.msra.mxu0 %v6488
        %6490 = vmatprep.subr.mxu0 0.0
        %v6491 = vand.u32 %v6303, 4294901760
        %v6492 = vsub.f32 %v6303, %v6491
        %6493 = vmatpush1.msra.mxu0 %v6492
        %6494 = vmatprep.subr.mxu0 0.0
        %v6495 = vand.u32 %v6304, 4294901760
        %v6496 = vsub.f32 %v6304, %v6495
        %6497 = vmatpush1.msra.mxu0 %v6496
        %6498 = vmatprep.subr.mxu0 0.0
        %v6499 = vand.u32 %v6305, 4294901760
        %v6500 = vsub.f32 %v6305, %v6499
        %6501 = vmatpush1.msra.mxu0 %v6500
        %6502 = vmatprep.subr.mxu0 0.0
        %6503 = vmatpush1.msra.mxu0 0.0
        %6504 = vmatprep.subr.mxu0 0.0
        %6505 = vmatpush1.msra.mxu0 0.0
        %6506 = vmatprep.subr.mxu0 0.0
        %6507 = vmatpush1.msra.mxu0 0.0
        %6508 = vmatprep.subr.mxu0 0.0
        %6509 = vmatpush1.msra.mxu0 0.0
        %6510 = vmatprep.subr.mxu0 0.0
        %6511 = vmatpush1.msra.mxu0 0.0
        %6512 = vmatprep.subr.mxu0 0.0
        %6513 = vmatpush1.msra.mxu0 0.0
        %6514 = vmatprep.subr.mxu0 0.0
        %6515 = vmatpush1.msra.mxu0 0.0
        %6516 = vmatprep.subr.mxu0 0.0
        %6517 = vmatpush1.msra.mxu0 0.0
        %6518 = vmatprep.subr.mxu0 0.0
        %6519 = vmatpush1.msra.mxu0 0.0
        %6520 = vmatprep.subr.mxu0 0.0
        %6521 = vmatpush1.msra.mxu0 0.0
        %6522 = vmatprep.subr.mxu0 0.0
        %6523 = vmatpush1.msra.mxu0 0.0
        %6524 = vmatprep.subr.mxu0 0.0
        %6525 = vmatpush1.msra.mxu0 0.0
        %6526 = vmatprep.subr.mxu0 0.0
        %6527 = vmatpush1.msra.mxu0 0.0
        %6528 = vmatprep.subr.mxu0 0.0
        %6529 = vmatpush1.msra.mxu0 0.0
        %6530 = vmatprep.subr.mxu0 0.0
        %6531 = vmatpush1.msra.mxu0 0.0
        %6532 = vmatprep.subr.mxu0 0.0
        %6533 = vmatpush1.msra.mxu0 0.0
        %6534 = vmatprep.subr.mxu0 0.0
        %6535 = vmatpush1.msra.mxu0 0.0
        %6536 = vmatprep.subr.mxu0 0.0
        %6537 = vmatpush1.msra.mxu0 0.0
        %6538 = vmatprep.subr.mxu0 0.0
        %6539 = vmatpush1.msra.mxu0 0.0
        %6540 = vmatprep.subr.mxu0 0.0
        %6541 = vmatpush1.msra.mxu0 0.0
        %6542 = vmatprep.subr.mxu0 0.0
        %6543 = vmatpush1.msra.mxu0 0.0
        %6544 = vmatprep.subr.mxu0 0.0
        %6545 = vmatpush1.msra.mxu0 0.0
        %6546 = vmatprep.subr.mxu0 0.0
        %6547 = vmatpush1.msra.mxu0 0.0
        %6548 = vmatprep.subr.mxu0 0.0
        %6549 = vmatpush1.msra.mxu0 0.0
        %6550 = vmatprep.subr.mxu0 0.0
        %6551 = vmatpush1.msra.mxu0 0.0
        %6552 = vmatprep.subr.mxu0 0.0
        %6553 = vmatpush1.msra.mxu0 0.0
        %6554 = vmatprep.subr.mxu0 0.0
        %6555 = vmatpush1.msra.mxu0 0.0
        %6556 = vmatprep.subr.mxu0 0.0
        %6557 = vmatpush1.msra.mxu0 0.0
        %6558 = vmatprep.mubr.f32.mxu0 0.0
        %v6559 = vand.u32 %v6314, 4294901760
        %v6560 = vsub.f32 %v6314, %v6559
        %6561 = vmatmul.mubr.f32.gmra.mrb[0].mxu0 %v6560
        %v6562 = vpop.f32.mrb[0].mxu0
        %v6563 = vadd.f32 %v6483, %v6562
        %v6564 = vpop.f32.mrb[0].mxu0
        %6565 = vdwg.mxu0
        %6566 = vmatprep.subr.mxu0 0.0
        %v6567 = vand.u32 %v6302, 4294901760
        %6568 = vmatpush1.msra.mxu0 %v6567
        %6569 = vmatprep.subr.mxu0 0.0
        %v6570 = vand.u32 %v6303, 4294901760
        %6571 = vmatpush1.msra.mxu0 %v6570
        %6572 = vmatprep.subr.mxu0 0.0
        %v6573 = vand.u32 %v6304, 4294901760
        %6574 = vmatpush1.msra.mxu0 %v6573
        %6575 = vmatprep.subr.mxu0 0.0
        %v6576 = vand.u32 %v6305, 4294901760
        %6577 = vmatpush1.msra.mxu0 %v6576
        %6578 = vmatprep.subr.mxu0 0.0
        %6579 = vmatpush1.msra.mxu0 0.0
        %6580 = vmatprep.subr.mxu0 0.0
        %6581 = vmatpush1.msra.mxu0 0.0
        %6582 = vmatprep.subr.mxu0 0.0
        %6583 = vmatpush1.msra.mxu0 0.0
        %6584 = vmatprep.subr.mxu0 0.0
        %6585 = vmatpush1.msra.mxu0 0.0
        %6586 = vmatprep.subr.mxu0 0.0
        %6587 = vmatpush1.msra.mxu0 0.0
        %6588 = vmatprep.subr.mxu0 0.0
        %6589 = vmatpush1.msra.mxu0 0.0
        %6590 = vmatprep.subr.mxu0 0.0
        %6591 = vmatpush1.msra.mxu0 0.0
        %6592 = vmatprep.subr.mxu0 0.0
        %6593 = vmatpush1.msra.mxu0 0.0
        %6594 = vmatprep.subr.mxu0 0.0
        %6595 = vmatpush1.msra.mxu0 0.0
        %6596 = vmatprep.subr.mxu0 0.0
        %6597 = vmatpush1.msra.mxu0 0.0
        %6598 = vmatprep.subr.mxu0 0.0
        %6599 = vmatpush1.msra.mxu0 0.0
        %6600 = vmatprep.subr.mxu0 0.0
        %6601 = vmatpush1.msra.mxu0 0.0
        %6602 = vmatprep.subr.mxu0 0.0
        %6603 = vmatpush1.msra.mxu0 0.0
        %6604 = vmatprep.subr.mxu0 0.0
        %6605 = vmatpush1.msra.mxu0 0.0
        %6606 = vmatprep.subr.mxu0 0.0
        %6607 = vmatpush1.msra.mxu0 0.0
        %6608 = vmatprep.subr.mxu0 0.0
        %6609 = vmatpush1.msra.mxu0 0.0
        %6610 = vmatprep.subr.mxu0 0.0
        %6611 = vmatpush1.msra.mxu0 0.0
        %6612 = vmatprep.subr.mxu0 0.0
        %6613 = vmatpush1.msra.mxu0 0.0
        %6614 = vmatprep.subr.mxu0 0.0
        %6615 = vmatpush1.msra.mxu0 0.0
        %6616 = vmatprep.subr.mxu0 0.0
        %6617 = vmatpush1.msra.mxu0 0.0
        %6618 = vmatprep.subr.mxu0 0.0
        %6619 = vmatpush1.msra.mxu0 0.0
        %6620 = vmatprep.subr.mxu0 0.0
        %6621 = vmatpush1.msra.mxu0 0.0
        %6622 = vmatprep.subr.mxu0 0.0
        %6623 = vmatpush1.msra.mxu0 0.0
        %6624 = vmatprep.subr.mxu0 0.0
        %6625 = vmatpush1.msra.mxu0 0.0
        %6626 = vmatprep.subr.mxu0 0.0
        %6627 = vmatpush1.msra.mxu0 0.0
        %6628 = vmatprep.subr.mxu0 0.0
        %6629 = vmatpush1.msra.mxu0 0.0
        %6630 = vmatprep.subr.mxu0 0.0
        %6631 = vmatpush1.msra.mxu0 0.0
        %6632 = vmatprep.subr.mxu0 0.0
        %6633 = vmatpush1.msra.mxu0 0.0
        %6634 = vmatprep.mubr.f32.mxu0 0.0
        %v6635 = vand.u32 %v6314, 4294901760
        %v6636 = vsub.f32 %v6314, %v6635
        %v6637 = vand.u32 %v6636, 4294901760
        %6638 = vmatmul.mubr.f32.gmra.mrb[0].mxu0 %v6637
        %v6639 = vpop.f32.mrb[0].mxu0
        %v6640 = vadd.f32 %v6563, %v6639
        %v6641 = vpop.f32.mrb[0].mxu0
        %6642 = vdwg.mxu0
        %6643 = vmatprep.subr.mxu0 0.0
        %v6644 = vand.u32 %v6302, 4294901760
        %v6645 = vsub.f32 %v6302, %v6644
        %v6646 = vand.u32 %v6645, 4294901760
        %6647 = vmatpush1.msra.mxu0 %v6646
        %6648 = vmatprep.subr.mxu0 0.0
        %v6649 = vand.u32 %v6303, 4294901760
        %v6650 = vsub.f32 %v6303, %v6649
        %v6651 = vand.u32 %v6650, 4294901760
        %6652 = vmatpush1.msra.mxu0 %v6651
        %6653 = vmatprep.subr.mxu0 0.0
        %v6654 = vand.u32 %v6304, 4294901760
        %v6655 = vsub.f32 %v6304, %v6654
        %v6656 = vand.u32 %v6655, 4294901760
        %6657 = vmatpush1.msra.mxu0 %v6656
        %6658 = vmatprep.subr.mxu0 0.0
        %v6659 = vand.u32 %v6305, 4294901760
        %v6660 = vsub.f32 %v6305, %v6659
        %v6661 = vand.u32 %v6660, 4294901760
        %6662 = vmatpush1.msra.mxu0 %v6661
        %6663 = vmatprep.subr.mxu0 0.0
        %6664 = vmatpush1.msra.mxu0 0.0
        %6665 = vmatprep.subr.mxu0 0.0
        %6666 = vmatpush1.msra.mxu0 0.0
        %6667 = vmatprep.subr.mxu0 0.0
        %6668 = vmatpush1.msra.mxu0 0.0
        %6669 = vmatprep.subr.mxu0 0.0
        %6670 = vmatpush1.msra.mxu0 0.0
        %6671 = vmatprep.subr.mxu0 0.0
        %6672 = vmatpush1.msra.mxu0 0.0
        %6673 = vmatprep.subr.mxu0 0.0
        %6674 = vmatpush1.msra.mxu0 0.0
        %6675 = vmatprep.subr.mxu0 0.0
        %6676 = vmatpush1.msra.mxu0 0.0
        %6677 = vmatprep.subr.mxu0 0.0
        %6678 = vmatpush1.msra.mxu0 0.0
        %6679 = vmatprep.subr.mxu0 0.0
        %6680 = vmatpush1.msra.mxu0 0.0
        %6681 = vmatprep.subr.mxu0 0.0
        %6682 = vmatpush1.msra.mxu0 0.0
        %6683 = vmatprep.subr.mxu0 0.0
        %6684 = vmatpush1.msra.mxu0 0.0
        %6685 = vmatprep.subr.mxu0 0.0
        %6686 = vmatpush1.msra.mxu0 0.0
        %6687 = vmatprep.subr.mxu0 0.0
        %6688 = vmatpush1.msra.mxu0 0.0
        %6689 = vmatprep.subr.mxu0 0.0
        %6690 = vmatpush1.msra.mxu0 0.0
        %6691 = vmatprep.subr.mxu0 0.0
        %6692 = vmatpush1.msra.mxu0 0.0
        %6693 = vmatprep.subr.mxu0 0.0
        %6694 = vmatpush1.msra.mxu0 0.0
        %6695 = vmatprep.subr.mxu0 0.0
        %6696 = vmatpush1.msra.mxu0 0.0
        %6697 = vmatprep.subr.mxu0 0.0
        %6698 = vmatpush1.msra.mxu0 0.0
        %6699 = vmatprep.subr.mxu0 0.0
        %6700 = vmatpush1.msra.mxu0 0.0
        %6701 = vmatprep.subr.mxu0 0.0
        %6702 = vmatpush1.msra.mxu0 0.0
        %6703 = vmatprep.subr.mxu0 0.0
        %6704 = vmatpush1.msra.mxu0 0.0
        %6705 = vmatprep.subr.mxu0 0.0
        %6706 = vmatpush1.msra.mxu0 0.0
        %6707 = vmatprep.subr.mxu0 0.0
        %6708 = vmatpush1.msra.mxu0 0.0
        %6709 = vmatprep.subr.mxu0 0.0
        %6710 = vmatpush1.msra.mxu0 0.0
        %6711 = vmatprep.subr.mxu0 0.0
        %6712 = vmatpush1.msra.mxu0 0.0
        %6713 = vmatprep.subr.mxu0 0.0
        %6714 = vmatpush1.msra.mxu0 0.0
        %6715 = vmatprep.subr.mxu0 0.0
        %6716 = vmatpush1.msra.mxu0 0.0
        %6717 = vmatprep.subr.mxu0 0.0
        %6718 = vmatpush1.msra.mxu0 0.0
        %6719 = vmatprep.mubr.f32.mxu0 0.0
        %v6720 = vand.u32 %v6314, 4294901760
        %6721 = vmatmul.mubr.f32.gmra.mrb[0].mxu0 %v6720
        %v6722 = vpop.f32.mrb[0].mxu0
        %v6723 = vadd.f32 %v6640, %v6722
        %v6724 = vpop.f32.mrb[0].mxu0
        %6725 = vdwg.mxu0
        %6726 = vmatprep.subr.mxu0 0.0
        %v6727 = vand.u32 %v6302, 4294901760
        %6728 = vmatpush1.msra.mxu0 %v6727
        %6729 = vmatprep.subr.mxu0 0.0
        %v6730 = vand.u32 %v6303, 4294901760
        %6731 = vmatpush1.msra.mxu0 %v6730
        %6732 = vmatprep.subr.mxu0 0.0
        %v6733 = vand.u32 %v6304, 4294901760
        %6734 = vmatpush1.msra.mxu0 %v6733
        %6735 = vmatprep.subr.mxu0 0.0
        %v6736 = vand.u32 %v6305, 4294901760
        %6737 = vmatpush1.msra.mxu0 %v6736
        %6738 = vmatprep.subr.mxu0 0.0
        %6739 = vmatpush1.msra.mxu0 0.0
        %6740 = vmatprep.subr.mxu0 0.0
        %6741 = vmatpush1.msra.mxu0 0.0
        %6742 = vmatprep.subr.mxu0 0.0
        %6743 = vmatpush1.msra.mxu0 0.0
        %6744 = vmatprep.subr.mxu0 0.0
        %6745 = vmatpush1.msra.mxu0 0.0
        %6746 = vmatprep.subr.mxu0 0.0
        %6747 = vmatpush1.msra.mxu0 0.0
        %6748 = vmatprep.subr.mxu0 0.0
        %6749 = vmatpush1.msra.mxu0 0.0
        %6750 = vmatprep.subr.mxu0 0.0
        %6751 = vmatpush1.msra.mxu0 0.0
        %6752 = vmatprep.subr.mxu0 0.0
        %6753 = vmatpush1.msra.mxu0 0.0
        %6754 = vmatprep.subr.mxu0 0.0
        %6755 = vmatpush1.msra.mxu0 0.0
        %6756 = vmatprep.subr.mxu0 0.0
        %6757 = vmatpush1.msra.mxu0 0.0
        %6758 = vmatprep.subr.mxu0 0.0
        %6759 = vmatpush1.msra.mxu0 0.0
        %6760 = vmatprep.subr.mxu0 0.0
        %6761 = vmatpush1.msra.mxu0 0.0
        %6762 = vmatprep.subr.mxu0 0.0
        %6763 = vmatpush1.msra.mxu0 0.0
        %6764 = vmatprep.subr.mxu0 0.0
        %6765 = vmatpush1.msra.mxu0 0.0
        %6766 = vmatprep.subr.mxu0 0.0
        %6767 = vmatpush1.msra.mxu0 0.0
        %6768 = vmatprep.subr.mxu0 0.0
        %6769 = vmatpush1.msra.mxu0 0.0
        %6770 = vmatprep.subr.mxu0 0.0
        %6771 = vmatpush1.msra.mxu0 0.0
        %6772 = vmatprep.subr.mxu0 0.0
        %6773 = vmatpush1.msra.mxu0 0.0
        %6774 = vmatprep.subr.mxu0 0.0
        %6775 = vmatpush1.msra.mxu0 0.0
        %6776 = vmatprep.subr.mxu0 0.0
        %6777 = vmatpush1.msra.mxu0 0.0
        %6778 = vmatprep.subr.mxu0 0.0
        %6779 = vmatpush1.msra.mxu0 0.0
        %6780 = vmatprep.subr.mxu0 0.0
        %6781 = vmatpush1.msra.mxu0 0.0
        %6782 = vmatprep.subr.mxu0 0.0
        %6783 = vmatpush1.msra.mxu0 0.0
        %6784 = vmatprep.subr.mxu0 0.0
        %6785 = vmatpush1.msra.mxu0 0.0
        %6786 = vmatprep.subr.mxu0 0.0
        %6787 = vmatpush1.msra.mxu0 0.0
        %6788 = vmatprep.subr.mxu0 0.0
        %6789 = vmatpush1.msra.mxu0 0.0
        %6790 = vmatprep.subr.mxu0 0.0
        %6791 = vmatpush1.msra.mxu0 0.0
        %6792 = vmatprep.subr.mxu0 0.0
        %6793 = vmatpush1.msra.mxu0 0.0
        %6794 = vmatprep.mubr.f32.mxu0 0.0
        %v6795 = vand.u32 %v6314, 4294901760
        %6796 = vmatmul.mubr.f32.gmra.mrb[0].mxu0 %v6795
        %v6797 = vpop.f32.mrb[0].mxu0
        %v6798 = vadd.f32 %v6723, %v6797
        %v6799 = vpop.f32.mrb[0].mxu0
        %6800 = vdwg.mxu0
        %v6801 = vmax.f32 %v6798, 0.0
        %v6802 = vld [vmem:[%s7] sm:$0xff]
        %v6803 = vld [vmem:[%s7 + $0x8] sm:$0xff]
        %v6804 = vld [vmem:[%s7 + $0x10] sm:$0xff]
        %v6805 = vld [vmem:[%s7 + $0x18] sm:$0xff]
        %v6806 = vld [vmem:[%s7 + $0x20] sm:$0xff]
        %v6807 = vld [vmem:[%s7 + $0x28] sm:$0xff]
        %v6808 = vld [vmem:[%s7 + $0x30] sm:$0xff]
        %v6809 = vld [vmem:[%s7 + $0x38] sm:$0xff]
        %v6810 = vld [vmem:[%s7 + $0x40] sm:$0xff]
        %v6811 = vld [vmem:[%s7 + $0x48] sm:$0xff]
        %v6812 = vld [vmem:[%s7 + $0x50] sm:$0xff]
        %v6813 = vld [vmem:[%s7 + $0x58] sm:$0xff]
        %v6814 = vld [vmem:[%s7 + $0x60] sm:$0xff]
        %v6815 = vld [vmem:[%s7 + $0x68] sm:$0xff]
        %v6816 = vld [vmem:[%s7 + $0x70] sm:$0xff]
        %v6817 = vld [vmem:[%s7 + $0x78] sm:$0xff]
        %v6818 = vld [vmem:[%s8] sm:$0x1]
        %v6820 = vlaneseq
        %v6821 = vshrl.u32 %v6820, 7
        %v6822 = vsub.s32 0, %v6821
        %v6823 = vrot.slane %v6818, %v6822
        %6825 = vmatprep.subr.mxu0 0.0
        %v6826 = vand.u32 %v6802, 4294901760
        %6827 = vmatpush1.msra.mxu0 %v6826
        %6828 = vmatprep.subr.mxu0 0.0
        %v6829 = vand.u32 %v6803, 4294901760
        %6830 = vmatpush1.msra.mxu0 %v6829
        %6831 = vmatprep.subr.mxu0 0.0
        %v6832 = vand.u32 %v6804, 4294901760
        %6833 = vmatpush1.msra.mxu0 %v6832
        %6834 = vmatprep.subr.mxu0 0.0
        %v6835 = vand.u32 %v6805, 4294901760
        %6836 = vmatpush1.msra.mxu0 %v6835
        %6837 = vmatprep.subr.mxu0 0.0
        %v6838 = vand.u32 %v6806, 4294901760
        %6839 = vmatpush1.msra.mxu0 %v6838
        %6840 = vmatprep.subr.mxu0 0.0
        %v6841 = vand.u32 %v6807, 4294901760
        %6842 = vmatpush1.msra.mxu0 %v6841
        %6843 = vmatprep.subr.mxu0 0.0
        %v6844 = vand.u32 %v6808, 4294901760
        %6845 = vmatpush1.msra.mxu0 %v6844
        %6846 = vmatprep.subr.mxu0 0.0
        %v6847 = vand.u32 %v6809, 4294901760
        %6848 = vmatpush1.msra.mxu0 %v6847
        %6849 = vmatprep.subr.mxu0 0.0
        %v6850 = vand.u32 %v6810, 4294901760
        %6851 = vmatpush1.msra.mxu0 %v6850
        %6852 = vmatprep.subr.mxu0 0.0
        %v6853 = vand.u32 %v6811, 4294901760
        %6854 = vmatpush1.msra.mxu0 %v6853
        %6855 = vmatprep.subr.mxu0 0.0
        %v6856 = vand.u32 %v6812, 4294901760
        %6857 = vmatpush1.msra.mxu0 %v6856
        %6858 = vmatprep.subr.mxu0 0.0
        %v6859 = vand.u32 %v6813, 4294901760
        %6860 = vmatpush1.msra.mxu0 %v6859
        %6861 = vmatprep.subr.mxu0 0.0
        %v6862 = vand.u32 %v6814, 4294901760
        %6863 = vmatpush1.msra.mxu0 %v6862
        %6864 = vmatprep.subr.mxu0 0.0
        %v6865 = vand.u32 %v6815, 4294901760
        %6866 = vmatpush1.msra.mxu0 %v6865
        %6867 = vmatprep.subr.mxu0 0.0
        %v6868 = vand.u32 %v6816, 4294901760
        %6869 = vmatpush1.msra.mxu0 %v6868
        %6870 = vmatprep.subr.mxu0 0.0
        %v6871 = vand.u32 %v6817, 4294901760
        %6872 = vmatpush1.msra.mxu0 %v6871
        %6873 = vmatprep.subr.mxu0 0.0
        %6874 = vmatpush1.msra.mxu0 0.0
        %6875 = vmatprep.subr.mxu0 0.0
        %6876 = vmatpush1.msra.mxu0 0.0
        %6877 = vmatprep.subr.mxu0 0.0
        %6878 = vmatpush1.msra.mxu0 0.0
        %6879 = vmatprep.subr.mxu0 0.0
        %6880 = vmatpush1.msra.mxu0 0.0
        %6881 = vmatprep.subr.mxu0 0.0
        %6882 = vmatpush1.msra.mxu0 0.0
        %6883 = vmatprep.subr.mxu0 0.0
        %6884 = vmatpush1.msra.mxu0 0.0
        %6885 = vmatprep.subr.mxu0 0.0
        %6886 = vmatpush1.msra.mxu0 0.0
        %6887 = vmatprep.subr.mxu0 0.0
        %6888 = vmatpush1.msra.mxu0 0.0
        %6889 = vmatprep.subr.mxu0 0.0
        %6890 = vmatpush1.msra.mxu0 0.0
        %6891 = vmatprep.subr.mxu0 0.0
        %6892 = vmatpush1.msra.mxu0 0.0
        %6893 = vmatprep.subr.mxu0 0.0
        %6894 = vmatpush1.msra.mxu0 0.0
        %6895 = vmatprep.subr.mxu0 0.0
        %6896 = vmatpush1.msra.mxu0 0.0
        %6897 = vmatprep.subr.mxu0 0.0
        %6898 = vmatpush1.msra.mxu0 0.0
        %6899 = vmatprep.subr.mxu0 0.0
        %6900 = vmatpush1.msra.mxu0 0.0
        %6901 = vmatprep.subr.mxu0 0.0
        %6902 = vmatpush1.msra.mxu0 0.0
        %6903 = vmatprep.subr.mxu0 0.0
        %6904 = vmatpush1.msra.mxu0 0.0
        %6905 = vmatprep.mubr.f32.mxu0 0.0
        %v6906 = vand.u32 %v6801, 4294901760
        %v6907 = vsub.f32 %v6801, %v6906
        %v6908 = vand.u32 %v6907, 4294901760
        %v6909 = vsub.f32 %v6907, %v6908
        %v6910 = vand.u32 %v6909, 4294901760
        %6911 = vmatmul.mubr.f32.gmra.mrb[0].mxu0 %v6910
        %v6912 = vpop.f32.mrb[0].mxu0
        %v6913 = vadd.f32 %v6823, %v6912
        %v6914 = vpop.f32.mrb[0].mxu0
        %6915 = vdwg.mxu0
        %6916 = vmatprep.subr.mxu0 0.0
        %v6917 = vand.u32 %v6802, 4294901760
        %v6918 = vsub.f32 %v6802, %v6917
        %v6919 = vand.u32 %v6918, 4294901760
        %v6920 = vsub.f32 %v6918, %v6919
        %v6921 = vand.u32 %v6920, 4294901760
        %6922 = vmatpush1.msra.mxu0 %v6921
        %6923 = vmatprep.subr.mxu0 0.0
        %v6924 = vand.u32 %v6803, 4294901760
        %v6925 = vsub.f32 %v6803, %v6924
        %v6926 = vand.u32 %v6925, 4294901760
        %v6927 = vsub.f32 %v6925, %v6926
        %v6928 = vand.u32 %v6927, 4294901760
        %6929 = vmatpush1.msra.mxu0 %v6928
        %6930 = vmatprep.subr.mxu0 0.0
        %v6931 = vand.u32 %v6804, 4294901760
        %v6932 = vsub.f32 %v6804, %v6931
        %v6933 = vand.u32 %v6932, 4294901760
        %v6934 = vsub.f32 %v6932, %v6933
        %v6935 = vand.u32 %v6934, 4294901760
        %6936 = vmatpush1.msra.mxu0 %v6935
        %6937 = vmatprep.subr.mxu0 0.0
        %v6938 = vand.u32 %v6805, 4294901760
        %v6939 = vsub.f32 %v6805, %v6938
        %v6940 = vand.u32 %v6939, 4294901760
        %v6941 = vsub.f32 %v6939, %v6940
        %v6942 = vand.u32 %v6941, 4294901760
        %6943 = vmatpush1.msra.mxu0 %v6942
        %6944 = vmatprep.subr.mxu0 0.0
        %v6945 = vand.u32 %v6806, 4294901760
        %v6946 = vsub.f32 %v6806, %v6945
        %v6947 = vand.u32 %v6946, 4294901760
        %v6948 = vsub.f32 %v6946, %v6947
        %v6949 = vand.u32 %v6948, 4294901760
        %6950 = vmatpush1.msra.mxu0 %v6949
        %6951 = vmatprep.subr.mxu0 0.0
        %v6952 = vand.u32 %v6807, 4294901760
        %v6953 = vsub.f32 %v6807, %v6952
        %v6954 = vand.u32 %v6953, 4294901760
        %v6955 = vsub.f32 %v6953, %v6954
        %v6956 = vand.u32 %v6955, 4294901760
        %6957 = vmatpush1.msra.mxu0 %v6956
        %6958 = vmatprep.subr.mxu0 0.0
        %v6959 = vand.u32 %v6808, 4294901760
        %v6960 = vsub.f32 %v6808, %v6959
        %v6961 = vand.u32 %v6960, 4294901760
        %v6962 = vsub.f32 %v6960, %v6961
        %v6963 = vand.u32 %v6962, 4294901760
        %6964 = vmatpush1.msra.mxu0 %v6963
        %6965 = vmatprep.subr.mxu0 0.0
        %v6966 = vand.u32 %v6809, 4294901760
        %v6967 = vsub.f32 %v6809, %v6966
        %v6968 = vand.u32 %v6967, 4294901760
        %v6969 = vsub.f32 %v6967, %v6968
        %v6970 = vand.u32 %v6969, 4294901760
        %6971 = vmatpush1.msra.mxu0 %v6970
        %6972 = vmatprep.subr.mxu0 0.0
        %v6973 = vand.u32 %v6810, 4294901760
        %v6974 = vsub.f32 %v6810, %v6973
        %v6975 = vand.u32 %v6974, 4294901760
        %v6976 = vsub.f32 %v6974, %v6975
        %v6977 = vand.u32 %v6976, 4294901760
        %6978 = vmatpush1.msra.mxu0 %v6977
        %6979 = vmatprep.subr.mxu0 0.0
        %v6980 = vand.u32 %v6811, 4294901760
        %v6981 = vsub.f32 %v6811, %v6980
        %v6982 = vand.u32 %v6981, 4294901760
        %v6983 = vsub.f32 %v6981, %v6982
        %v6984 = vand.u32 %v6983, 4294901760
        %6985 = vmatpush1.msra.mxu0 %v6984
        %6986 = vmatprep.subr.mxu0 0.0
        %v6987 = vand.u32 %v6812, 4294901760
        %v6988 = vsub.f32 %v6812, %v6987
        %v6989 = vand.u32 %v6988, 4294901760
        %v6990 = vsub.f32 %v6988, %v6989
        %v6991 = vand.u32 %v6990, 4294901760
        %6992 = vmatpush1.msra.mxu0 %v6991
        %6993 = vmatprep.subr.mxu0 0.0
        %v6994 = vand.u32 %v6813, 4294901760
        %v6995 = vsub.f32 %v6813, %v6994
        %v6996 = vand.u32 %v6995, 4294901760
        %v6997 = vsub.f32 %v6995, %v6996
        %v6998 = vand.u32 %v6997, 4294901760
        %6999 = vmatpush1.msra.mxu0 %v6998
        %7000 = vmatprep.subr.mxu0 0.0
        %v7001 = vand.u32 %v6814, 4294901760
        %v7002 = vsub.f32 %v6814, %v7001
        %v7003 = vand.u32 %v7002, 4294901760
        %v7004 = vsub.f32 %v7002, %v7003
        %v7005 = vand.u32 %v7004, 4294901760
        %7006 = vmatpush1.msra.mxu0 %v7005
        %7007 = vmatprep.subr.mxu0 0.0
        %v7008 = vand.u32 %v6815, 4294901760
        %v7009 = vsub.f32 %v6815, %v7008
        %v7010 = vand.u32 %v7009, 4294901760
        %v7011 = vsub.f32 %v7009, %v7010
        %v7012 = vand.u32 %v7011, 4294901760
        %7013 = vmatpush1.msra.mxu0 %v7012
        %7014 = vmatprep.subr.mxu0 0.0
        %v7015 = vand.u32 %v6816, 4294901760
        %v7016 = vsub.f32 %v6816, %v7015
        %v7017 = vand.u32 %v7016, 4294901760
        %v7018 = vsub.f32 %v7016, %v7017
        %v7019 = vand.u32 %v7018, 4294901760
        %7020 = vmatpush1.msra.mxu0 %v7019
        %7021 = vmatprep.subr.mxu0 0.0
        %v7022 = vand.u32 %v6817, 4294901760
        %v7023 = vsub.f32 %v6817, %v7022
        %v7024 = vand.u32 %v7023, 4294901760
        %v7025 = vsub.f32 %v7023, %v7024
        %v7026 = vand.u32 %v7025, 4294901760
        %7027 = vmatpush1.msra.mxu0 %v7026
        %7028 = vmatprep.subr.mxu0 0.0
        %7029 = vmatpush1.msra.mxu0 0.0
        %7030 = vmatprep.subr.mxu0 0.0
        %7031 = vmatpush1.msra.mxu0 0.0
        %7032 = vmatprep.subr.mxu0 0.0
        %7033 = vmatpush1.msra.mxu0 0.0
        %7034 = vmatprep.subr.mxu0 0.0
        %7035 = vmatpush1.msra.mxu0 0.0
        %7036 = vmatprep.subr.mxu0 0.0
        %7037 = vmatpush1.msra.mxu0 0.0
        %7038 = vmatprep.subr.mxu0 0.0
        %7039 = vmatpush1.msra.mxu0 0.0
        %7040 = vmatprep.subr.mxu0 0.0
        %7041 = vmatpush1.msra.mxu0 0.0
        %7042 = vmatprep.subr.mxu0 0.0
        %7043 = vmatpush1.msra.mxu0 0.0
        %7044 = vmatprep.subr.mxu0 0.0
        %7045 = vmatpush1.msra.mxu0 0.0
        %7046 = vmatprep.subr.mxu0 0.0
        %7047 = vmatpush1.msra.mxu0 0.0
        %7048 = vmatprep.subr.mxu0 0.0
        %7049 = vmatpush1.msra.mxu0 0.0
        %7050 = vmatprep.subr.mxu0 0.0
        %7051 = vmatpush1.msra.mxu0 0.0
        %7052 = vmatprep.subr.mxu0 0.0
        %7053 = vmatpush1.msra.mxu0 0.0
        %7054 = vmatprep.subr.mxu0 0.0
        %7055 = vmatpush1.msra.mxu0 0.0
        %7056 = vmatprep.subr.mxu0 0.0
        %7057 = vmatpush1.msra.mxu0 0.0
        %7058 = vmatprep.subr.mxu0 0.0
        %7059 = vmatpush1.msra.mxu0 0.0
        %7060 = vmatprep.mubr.f32.mxu0 0.0
        %v7061 = vand.u32 %v6801, 4294901760
        %7062 = vmatmul.mubr.f32.gmra.mrb[0].mxu0 %v7061
        %v7063 = vpop.f32.mrb[0].mxu0
        %v7064 = vadd.f32 %v6913, %v7063
        %v7065 = vpop.f32.mrb[0].mxu0
        %7066 = vdwg.mxu0
        %7067 = vmatprep.subr.mxu0 0.0
        %v7068 = vand.u32 %v6802, 4294901760
        %v7069 = vsub.f32 %v6802, %v7068
        %7070 = vmatpush1.msra.mxu0 %v7069
        %7071 = vmatprep.subr.mxu0 0.0
        %v7072 = vand.u32 %v6803, 4294901760
        %v7073 = vsub.f32 %v6803, %v7072
        %7074 = vmatpush1.msra.mxu0 %v7073
        %7075 = vmatprep.subr.mxu0 0.0
        %v7076 = vand.u32 %v6804, 4294901760
        %v7077 = vsub.f32 %v6804, %v7076
        %7078 = vmatpush1.msra.mxu0 %v7077
        %7079 = vmatprep.subr.mxu0 0.0
        %v7080 = vand.u32 %v6805, 4294901760
        %v7081 = vsub.f32 %v6805, %v7080
        %7082 = vmatpush1.msra.mxu0 %v7081
        %7083 = vmatprep.subr.mxu0 0.0
        %v7084 = vand.u32 %v6806, 4294901760
        %v7085 = vsub.f32 %v6806, %v7084
        %7086 = vmatpush1.msra.mxu0 %v7085
        %7087 = vmatprep.subr.mxu0 0.0
        %v7088 = vand.u32 %v6807, 4294901760
        %v7089 = vsub.f32 %v6807, %v7088
        %7090 = vmatpush1.msra.mxu0 %v7089
        %7091 = vmatprep.subr.mxu0 0.0
        %v7092 = vand.u32 %v6808, 4294901760
        %v7093 = vsub.f32 %v6808, %v7092
        %7094 = vmatpush1.msra.mxu0 %v7093
        %7095 = vmatprep.subr.mxu0 0.0
        %v7096 = vand.u32 %v6809, 4294901760
        %v7097 = vsub.f32 %v6809, %v7096
        %7098 = vmatpush1.msra.mxu0 %v7097
        %7099 = vmatprep.subr.mxu0 0.0
        %v7100 = vand.u32 %v6810, 4294901760
        %v7101 = vsub.f32 %v6810, %v7100
        %7102 = vmatpush1.msra.mxu0 %v7101
        %7103 = vmatprep.subr.mxu0 0.0
        %v7104 = vand.u32 %v6811, 4294901760
        %v7105 = vsub.f32 %v6811, %v7104
        %7106 = vmatpush1.msra.mxu0 %v7105
        %7107 = vmatprep.subr.mxu0 0.0
        %v7108 = vand.u32 %v6812, 4294901760
        %v7109 = vsub.f32 %v6812, %v7108
        %7110 = vmatpush1.msra.mxu0 %v7109
        %7111 = vmatprep.subr.mxu0 0.0
        %v7112 = vand.u32 %v6813, 4294901760
        %v7113 = vsub.f32 %v6813, %v7112
        %7114 = vmatpush1.msra.mxu0 %v7113
        %7115 = vmatprep.subr.mxu0 0.0
        %v7116 = vand.u32 %v6814, 4294901760
        %v7117 = vsub.f32 %v6814, %v7116
        %7118 = vmatpush1.msra.mxu0 %v7117
        %7119 = vmatprep.subr.mxu0 0.0
        %v7120 = vand.u32 %v6815, 4294901760
        %v7121 = vsub.f32 %v6815, %v7120
        %7122 = vmatpush1.msra.mxu0 %v7121
        %7123 = vmatprep.subr.mxu0 0.0
        %v7124 = vand.u32 %v6816, 4294901760
        %v7125 = vsub.f32 %v6816, %v7124
        %7126 = vmatpush1.msra.mxu0 %v7125
        %7127 = vmatprep.subr.mxu0 0.0
        %v7128 = vand.u32 %v6817, 4294901760
        %v7129 = vsub.f32 %v6817, %v7128
        %7130 = vmatpush1.msra.mxu0 %v7129
        %7131 = vmatprep.subr.mxu0 0.0
        %7132 = vmatpush1.msra.mxu0 0.0
        %7133 = vmatprep.subr.mxu0 0.0
        %7134 = vmatpush1.msra.mxu0 0.0
        %7135 = vmatprep.subr.mxu0 0.0
        %7136 = vmatpush1.msra.mxu0 0.0
        %7137 = vmatprep.subr.mxu0 0.0
        %7138 = vmatpush1.msra.mxu0 0.0
        %7139 = vmatprep.subr.mxu0 0.0
        %7140 = vmatpush1.msra.mxu0 0.0
        %7141 = vmatprep.subr.mxu0 0.0
        %7142 = vmatpush1.msra.mxu0 0.0
        %7143 = vmatprep.subr.mxu0 0.0
        %7144 = vmatpush1.msra.mxu0 0.0
        %7145 = vmatprep.subr.mxu0 0.0
        %7146 = vmatpush1.msra.mxu0 0.0
        %7147 = vmatprep.subr.mxu0 0.0
        %7148 = vmatpush1.msra.mxu0 0.0
        %7149 = vmatprep.subr.mxu0 0.0
        %7150 = vmatpush1.msra.mxu0 0.0
        %7151 = vmatprep.subr.mxu0 0.0
        %7152 = vmatpush1.msra.mxu0 0.0
        %7153 = vmatprep.subr.mxu0 0.0
        %7154 = vmatpush1.msra.mxu0 0.0
        %7155 = vmatprep.subr.mxu0 0.0
        %7156 = vmatpush1.msra.mxu0 0.0
        %7157 = vmatprep.subr.mxu0 0.0
        %7158 = vmatpush1.msra.mxu0 0.0
        %7159 = vmatprep.subr.mxu0 0.0
        %7160 = vmatpush1.msra.mxu0 0.0
        %7161 = vmatprep.subr.mxu0 0.0
        %7162 = vmatpush1.msra.mxu0 0.0
        %7163 = vmatprep.mubr.f32.mxu0 0.0
        %v7164 = vand.u32 %v6801, 4294901760
        %v7165 = vsub.f32 %v6801, %v7164
        %7166 = vmatmul.mubr.f32.gmra.mrb[0].mxu0 %v7165
        %v7167 = vpop.f32.mrb[0].mxu0
        %v7168 = vadd.f32 %v7064, %v7167
        %v7169 = vpop.f32.mrb[0].mxu0
        %7170 = vdwg.mxu0
        %7171 = vmatprep.subr.mxu0 0.0
        %v7172 = vand.u32 %v6802, 4294901760
        %7173 = vmatpush1.msra.mxu0 %v7172
        %7174 = vmatprep.subr.mxu0 0.0
        %v7175 = vand.u32 %v6803, 4294901760
        %7176 = vmatpush1.msra.mxu0 %v7175
        %7177 = vmatprep.subr.mxu0 0.0
        %v7178 = vand.u32 %v6804, 4294901760
        %7179 = vmatpush1.msra.mxu0 %v7178
        %7180 = vmatprep.subr.mxu0 0.0
        %v7181 = vand.u32 %v6805, 4294901760
        %7182 = vmatpush1.msra.mxu0 %v7181
        %7183 = vmatprep.subr.mxu0 0.0
        %v7184 = vand.u32 %v6806, 4294901760
        %7185 = vmatpush1.msra.mxu0 %v7184
        %7186 = vmatprep.subr.mxu0 0.0
        %v7187 = vand.u32 %v6807, 4294901760
        %7188 = vmatpush1.msra.mxu0 %v7187
        %7189 = vmatprep.subr.mxu0 0.0
        %v7190 = vand.u32 %v6808, 4294901760
        %7191 = vmatpush1.msra.mxu0 %v7190
        %7192 = vmatprep.subr.mxu0 0.0
        %v7193 = vand.u32 %v6809, 4294901760
        %7194 = vmatpush1.msra.mxu0 %v7193
        %7195 = vmatprep.subr.mxu0 0.0
        %v7196 = vand.u32 %v6810, 4294901760
        %7197 = vmatpush1.msra.mxu0 %v7196
        %7198 = vmatprep.subr.mxu0 0.0
        %v7199 = vand.u32 %v6811, 4294901760
        %7200 = vmatpush1.msra.mxu0 %v7199
        %7201 = vmatprep.subr.mxu0 0.0
        %v7202 = vand.u32 %v6812, 4294901760
        %7203 = vmatpush1.msra.mxu0 %v7202
        %7204 = vmatprep.subr.mxu0 0.0
        %v7205 = vand.u32 %v6813, 4294901760
        %7206 = vmatpush1.msra.mxu0 %v7205
        %7207 = vmatprep.subr.mxu0 0.0
        %v7208 = vand.u32 %v6814, 4294901760
        %7209 = vmatpush1.msra.mxu0 %v7208
        %7210 = vmatprep.subr.mxu0 0.0
        %v7211 = vand.u32 %v6815, 4294901760
        %7212 = vmatpush1.msra.mxu0 %v7211
        %7213 = vmatprep.subr.mxu0 0.0
        %v7214 = vand.u32 %v6816, 4294901760
        %7215 = vmatpush1.msra.mxu0 %v7214
        %7216 = vmatprep.subr.mxu0 0.0
        %v7217 = vand.u32 %v6817, 4294901760
        %7218 = vmatpush1.msra.mxu0 %v7217
        %7219 = vmatprep.subr.mxu0 0.0
        %7220 = vmatpush1.msra.mxu0 0.0
        %7221 = vmatprep.subr.mxu0 0.0
        %7222 = vmatpush1.msra.mxu0 0.0
        %7223 = vmatprep.subr.mxu0 0.0
        %7224 = vmatpush1.msra.mxu0 0.0
        %7225 = vmatprep.subr.mxu0 0.0
        %7226 = vmatpush1.msra.mxu0 0.0
        %7227 = vmatprep.subr.mxu0 0.0
        %7228 = vmatpush1.msra.mxu0 0.0
        %7229 = vmatprep.subr.mxu0 0.0
        %7230 = vmatpush1.msra.mxu0 0.0
        %7231 = vmatprep.subr.mxu0 0.0
        %7232 = vmatpush1.msra.mxu0 0.0
        %7233 = vmatprep.subr.mxu0 0.0
        %7234 = vmatpush1.msra.mxu0 0.0
        %7235 = vmatprep.subr.mxu0 0.0
        %7236 = vmatpush1.msra.mxu0 0.0
        %7237 = vmatprep.subr.mxu0 0.0
        %7238 = vmatpush1.msra.mxu0 0.0
        %7239 = vmatprep.subr.mxu0 0.0
        %7240 = vmatpush1.msra.mxu0 0.0
        %7241 = vmatprep.subr.mxu0 0.0
        %7242 = vmatpush1.msra.mxu0 0.0
        %7243 = vmatprep.subr.mxu0 0.0
        %7244 = vmatpush1.msra.mxu0 0.0
        %7245 = vmatprep.subr.mxu0 0.0
        %7246 = vmatpush1.msra.mxu0 0.0
        %7247 = vmatprep.subr.mxu0 0.0
        %7248 = vmatpush1.msra.mxu0 0.0
        %7249 = vmatprep.subr.mxu0 0.0
        %7250 = vmatpush1.msra.mxu0 0.0
        %7251 = vmatprep.mubr.f32.mxu0 0.0
        %v7252 = vand.u32 %v6801, 4294901760
        %v7253 = vsub.f32 %v6801, %v7252
        %v7254 = vand.u32 %v7253, 4294901760
        %7255 = vmatmul.mubr.f32.gmra.mrb[0].mxu0 %v7254
        %v7256 = vpop.f32.mrb[0].mxu0
        %v7257 = vadd.f32 %v7168, %v7256
        %v7258 = vpop.f32.mrb[0].mxu0
        %7259 = vdwg.mxu0
        %7260 = vmatprep.subr.mxu0 0.0
        %v7261 = vand.u32 %v6802, 4294901760
        %v7262 = vsub.f32 %v6802, %v7261
        %v7263 = vand.u32 %v7262, 4294901760
        %7264 = vmatpush1.msra.mxu0 %v7263
        %7265 = vmatprep.subr.mxu0 0.0
        %v7266 = vand.u32 %v6803, 4294901760
        %v7267 = vsub.f32 %v6803, %v7266
        %v7268 = vand.u32 %v7267, 4294901760
        %7269 = vmatpush1.msra.mxu0 %v7268
        %7270 = vmatprep.subr.mxu0 0.0
        %v7271 = vand.u32 %v6804, 4294901760
        %v7272 = vsub.f32 %v6804, %v7271
        %v7273 = vand.u32 %v7272, 4294901760
        %7274 = vmatpush1.msra.mxu0 %v7273
        %7275 = vmatprep.subr.mxu0 0.0
        %v7276 = vand.u32 %v6805, 4294901760
        %v7277 = vsub.f32 %v6805, %v7276
        %v7278 = vand.u32 %v7277, 4294901760
        %7279 = vmatpush1.msra.mxu0 %v7278
        %7280 = vmatprep.subr.mxu0 0.0
        %v7281 = vand.u32 %v6806, 4294901760
        %v7282 = vsub.f32 %v6806, %v7281
        %v7283 = vand.u32 %v7282, 4294901760
        %7284 = vmatpush1.msra.mxu0 %v7283
        %7285 = vmatprep.subr.mxu0 0.0
        %v7286 = vand.u32 %v6807, 4294901760
        %v7287 = vsub.f32 %v6807, %v7286
        %v7288 = vand.u32 %v7287, 4294901760
        %7289 = vmatpush1.msra.mxu0 %v7288
        %7290 = vmatprep.subr.mxu0 0.0
        %v7291 = vand.u32 %v6808, 4294901760
        %v7292 = vsub.f32 %v6808, %v7291
        %v7293 = vand.u32 %v7292, 4294901760
        %7294 = vmatpush1.msra.mxu0 %v7293
        %7295 = vmatprep.subr.mxu0 0.0
        %v7296 = vand.u32 %v6809, 4294901760
        %v7297 = vsub.f32 %v6809, %v7296
        %v7298 = vand.u32 %v7297, 4294901760
        %7299 = vmatpush1.msra.mxu0 %v7298
        %7300 = vmatprep.subr.mxu0 0.0
        %v7301 = vand.u32 %v6810, 4294901760
        %v7302 = vsub.f32 %v6810, %v7301
        %v7303 = vand.u32 %v7302, 4294901760
        %7304 = vmatpush1.msra.mxu0 %v7303
        %7305 = vmatprep.subr.mxu0 0.0
        %v7306 = vand.u32 %v6811, 4294901760
        %v7307 = vsub.f32 %v6811, %v7306
        %v7308 = vand.u32 %v7307, 4294901760
        %7309 = vmatpush1.msra.mxu0 %v7308
        %7310 = vmatprep.subr.mxu0 0.0
        %v7311 = vand.u32 %v6812, 4294901760
        %v7312 = vsub.f32 %v6812, %v7311
        %v7313 = vand.u32 %v7312, 4294901760
        %7314 = vmatpush1.msra.mxu0 %v7313
        %7315 = vmatprep.subr.mxu0 0.0
        %v7316 = vand.u32 %v6813, 4294901760
        %v7317 = vsub.f32 %v6813, %v7316
        %v7318 = vand.u32 %v7317, 4294901760
        %7319 = vmatpush1.msra.mxu0 %v7318
        %7320 = vmatprep.subr.mxu0 0.0
        %v7321 = vand.u32 %v6814, 4294901760
        %v7322 = vsub.f32 %v6814, %v7321
        %v7323 = vand.u32 %v7322, 4294901760
        %7324 = vmatpush1.msra.mxu0 %v7323
        %7325 = vmatprep.subr.mxu0 0.0
        %v7326 = vand.u32 %v6815, 4294901760
        %v7327 = vsub.f32 %v6815, %v7326
        %v7328 = vand.u32 %v7327, 4294901760
        %7329 = vmatpush1.msra.mxu0 %v7328
        %7330 = vmatprep.subr.mxu0 0.0
        %v7331 = vand.u32 %v6816, 4294901760
        %v7332 = vsub.f32 %v6816, %v7331
        %v7333 = vand.u32 %v7332, 4294901760
        %7334 = vmatpush1.msra.mxu0 %v7333
        %7335 = vmatprep.subr.mxu0 0.0
        %v7336 = vand.u32 %v6817, 4294901760
        %v7337 = vsub.f32 %v6817, %v7336
        %v7338 = vand.u32 %v7337, 4294901760
        %7339 = vmatpush1.msra.mxu0 %v7338
        %7340 = vmatprep.subr.mxu0 0.0
        %7341 = vmatpush1.msra.mxu0 0.0
        %7342 = vmatprep.subr.mxu0 0.0
        %7343 = vmatpush1.msra.mxu0 0.0
        %7344 = vmatprep.subr.mxu0 0.0
        %7345 = vmatpush1.msra.mxu0 0.0
        %7346 = vmatprep.subr.mxu0 0.0
        %7347 = vmatpush1.msra.mxu0 0.0
        %7348 = vmatprep.subr.mxu0 0.0
        %7349 = vmatpush1.msra.mxu0 0.0
        %7350 = vmatprep.subr.mxu0 0.0
        %7351 = vmatpush1.msra.mxu0 0.0
        %7352 = vmatprep.subr.mxu0 0.0
        %7353 = vmatpush1.msra.mxu0 0.0
        %7354 = vmatprep.subr.mxu0 0.0
        %7355 = vmatpush1.msra.mxu0 0.0
        %7356 = vmatprep.subr.mxu0 0.0
        %7357 = vmatpush1.msra.mxu0 0.0
        %7358 = vmatprep.subr.mxu0 0.0
        %7359 = vmatpush1.msra.mxu0 0.0
        %7360 = vmatprep.subr.mxu0 0.0
        %7361 = vmatpush1.msra.mxu0 0.0
        %7362 = vmatprep.subr.mxu0 0.0
        %7363 = vmatpush1.msra.mxu0 0.0
        %7364 = vmatprep.subr.mxu0 0.0
        %7365 = vmatpush1.msra.mxu0 0.0
        %7366 = vmatprep.subr.mxu0 0.0
        %7367 = vmatpush1.msra.mxu0 0.0
        %7368 = vmatprep.subr.mxu0 0.0
        %7369 = vmatpush1.msra.mxu0 0.0
        %7370 = vmatprep.subr.mxu0 0.0
        %7371 = vmatpush1.msra.mxu0 0.0
        %7372 = vmatprep.mubr.f32.mxu0 0.0
        %v7373 = vand.u32 %v6801, 4294901760
        %7374 = vmatmul.mubr.f32.gmra.mrb[0].mxu0 %v7373
        %v7375 = vpop.f32.mrb[0].mxu0
        %v7376 = vadd.f32 %v7257, %v7375
        %v7377 = vpop.f32.mrb[0].mxu0
        %7378 = vdwg.mxu0
        %7379 = vmatprep.subr.mxu0 0.0
        %v7380 = vand.u32 %v6802, 4294901760
        %7381 = vmatpush1.msra.mxu0 %v7380
        %7382 = vmatprep.subr.mxu0 0.0
        %v7383 = vand.u32 %v6803, 4294901760
        %7384 = vmatpush1.msra.mxu0 %v7383
        %7385 = vmatprep.subr.mxu0 0.0
        %v7386 = vand.u32 %v6804, 4294901760
        %7387 = vmatpush1.msra.mxu0 %v7386
        %7388 = vmatprep.subr.mxu0 0.0
        %v7389 = vand.u32 %v6805, 4294901760
        %7390 = vmatpush1.msra.mxu0 %v7389
        %7391 = vmatprep.subr.mxu0 0.0
        %v7392 = vand.u32 %v6806, 4294901760
        %7393 = vmatpush1.msra.mxu0 %v7392
        %7394 = vmatprep.subr.mxu0 0.0
        %v7395 = vand.u32 %v6807, 4294901760
        %7396 = vmatpush1.msra.mxu0 %v7395
        %7397 = vmatprep.subr.mxu0 0.0
        %v7398 = vand.u32 %v6808, 4294901760
        %7399 = vmatpush1.msra.mxu0 %v7398
        %7400 = vmatprep.subr.mxu0 0.0
        %v7401 = vand.u32 %v6809, 4294901760
        %7402 = vmatpush1.msra.mxu0 %v7401
        %7403 = vmatprep.subr.mxu0 0.0
        %v7404 = vand.u32 %v6810, 4294901760
        %7405 = vmatpush1.msra.mxu0 %v7404
        %7406 = vmatprep.subr.mxu0 0.0
        %v7407 = vand.u32 %v6811, 4294901760
        %7408 = vmatpush1.msra.mxu0 %v7407
        %7409 = vmatprep.subr.mxu0 0.0
        %v7410 = vand.u32 %v6812, 4294901760
        %7411 = vmatpush1.msra.mxu0 %v7410
        %7412 = vmatprep.subr.mxu0 0.0
        %v7413 = vand.u32 %v6813, 4294901760
        %7414 = vmatpush1.msra.mxu0 %v7413
        %7415 = vmatprep.subr.mxu0 0.0
        %v7416 = vand.u32 %v6814, 4294901760
        %7417 = vmatpush1.msra.mxu0 %v7416
        %7418 = vmatprep.subr.mxu0 0.0
        %v7419 = vand.u32 %v6815, 4294901760
        %7420 = vmatpush1.msra.mxu0 %v7419
        %7421 = vmatprep.subr.mxu0 0.0
        %v7422 = vand.u32 %v6816, 4294901760
        %7423 = vmatpush1.msra.mxu0 %v7422
        %7424 = vmatprep.subr.mxu0 0.0
        %v7425 = vand.u32 %v6817, 4294901760
        %7426 = vmatpush1.msra.mxu0 %v7425
        %7427 = vmatprep.subr.mxu0 0.0
        %7428 = vmatpush1.msra.mxu0 0.0
        %7429 = vmatprep.subr.mxu0 0.0
        %7430 = vmatpush1.msra.mxu0 0.0
        %7431 = vmatprep.subr.mxu0 0.0
        %7432 = vmatpush1.msra.mxu0 0.0
        %7433 = vmatprep.subr.mxu0 0.0
        %7434 = vmatpush1.msra.mxu0 0.0
        %7435 = vmatprep.subr.mxu0 0.0
        %7436 = vmatpush1.msra.mxu0 0.0
        %7437 = vmatprep.subr.mxu0 0.0
        %7438 = vmatpush1.msra.mxu0 0.0
        %7439 = vmatprep.subr.mxu0 0.0
        %7440 = vmatpush1.msra.mxu0 0.0
        %7441 = vmatprep.subr.mxu0 0.0
        %7442 = vmatpush1.msra.mxu0 0.0
        %7443 = vmatprep.subr.mxu0 0.0
        %7444 = vmatpush1.msra.mxu0 0.0
        %7445 = vmatprep.subr.mxu0 0.0
        %7446 = vmatpush1.msra.mxu0 0.0
        %7447 = vmatprep.subr.mxu0 0.0
        %7448 = vmatpush1.msra.mxu0 0.0
        %7449 = vmatprep.subr.mxu0 0.0
        %7450 = vmatpush1.msra.mxu0 0.0
        %7451 = vmatprep.subr.mxu0 0.0
        %7452 = vmatpush1.msra.mxu0 0.0
        %7453 = vmatprep.subr.mxu0 0.0
        %7454 = vmatpush1.msra.mxu0 0.0
        %7455 = vmatprep.subr.mxu0 0.0
        %7456 = vmatpush1.msra.mxu0 0.0
        %7457 = vmatprep.subr.mxu0 0.0
        %7458 = vmatpush1.msra.mxu0 0.0
        %7459 = vmatprep.mubr.f32.mxu0 0.0
        %v7460 = vand.u32 %v6801, 4294901760
        %7461 = vmatmul.mubr.f32.gmra.mrb[0].mxu0 %v7460
        %v7462 = vpop.f32.mrb[0].mxu0
        %v7463 = vadd.f32 %v7376, %v7462
        %v7464 = vpop.f32.mrb[0].mxu0
        %7465 = vdwg.mxu0
        %v7466 = vadd.f32 %v6301, %v7463
        %7467 = vst.msk [vmem:[%s323] sm:$0xff] %vm334, %v7466
        %s7468 = sand.u32 %s225, 1
        %s7469 = scalar_lea.sflag [#allocation3], %s7468
        %s7470 = sand.u32 %s225, 1
        %s7471 = smul.addr %s7470, 8
        %s7472 = scalar_lea.vmem [#allocation2], %s7471
        // Predicated region
        $region57: #{tpu_custom_call.1} parent=55 // pred_check
          %p7473 = pneg %p235
        $region58: #{tpu_custom_call.1} parent=55 // pred_check_branch
          %7475 = sbr.rel (%p7473) target = $region60
        $region59: #{tpu_custom_call.1} parent=55 // pred_region
          %s7477 = ssub.s32 128, 128
          %7478 = vsyncadd %s7469, %s7477
          %s7479 = smul.addr %s23, 128
          %s7480 = scalar_lea.hbm %s9, %s7479
          %s7482 = sshll.u32 %s7472, 4
          %s7483 = int_to_ptr.vmem [resolvable:$true] %s7482
          %7485 = dma.vmem_to_hbm [thread:$0]  %s7483, 128, %s7480, %s7469
        $region60: #{tpu_custom_call.1} parent=55 // pred_fallthru
          _
      $region56: #{tpu_custom_call.1} parent=5 // pred_fallthru
        _
      %p7486 = scmp.le.s32.totalorder 2, %s18
      // Predicated region
      $region61: #{tpu_custom_call.1} parent=5 // pred_check
        %p7487 = pneg %p7486
      $region62: #{tpu_custom_call.1} parent=5 // pred_check_branch
        %7489 = sbr.rel (%p7487) target = $region64
      $region63: #{tpu_custom_call.1} parent=5 // pred_region
        %s7490 = ssub.s32 %s18, 2
        // Predicated region
        $region65: #{tpu_custom_call.1} parent=63 // pred_check
          %p7491 = pneg %p241
        $region66: #{tpu_custom_call.1} parent=63 // pred_check_branch
          %7493 = sbr.rel (%p7491) target = $region68
        $region67: #{tpu_custom_call.1} parent=63 // pred_region
          %s7494 = sand.u32 %s226, 1
          %s7495 = scalar_lea.sflag [#allocation3], %s7494
          %s7496 = sand.u32 %s226, 1
          %s7497 = smul.addr %s7496, 8
          %s7498 = scalar_lea.vmem [#allocation2], %s7497
          %7499 = dma.done %s7495, 128
        $region68: #{tpu_custom_call.1} parent=63 // pred_fallthru
          _
      $region64: #{tpu_custom_call.1} parent=5 // pred_fallthru
        _
    $region6: #{tpu_custom_call.1} parent=1 // loop_footer
      %s22 = sadd.s32 1, %s18
    $region7: #{tpu_custom_call.1} parent=1 // loop_footer_branch
      %17 = sbr.rel target = $region3
    $region8: #{tpu_custom_call.1} parent=1 // loop_exit
      _
    %7500 = vsyncpa [#allocation3], 1
    %s7501 = scalar_lea.sflag [#allocation3], 1
    %7502 = vsyncpa %s7501, 1

</llo_original>
